<compile_context>
chip_gen: v7x
topology: tpu7x:2x2x1
jax: 0.10.0
libtpu: 0.0.40
codegen_flags: <defaults>
</compile_context>

<pallas_src>
import jax
import jax.numpy as jnp
from jax import lax
from jax.experimental import pallas as pl
from jax.experimental.pallas import tpu as pltpu

GROUPS = 32
EPS = 1e-6          # matches nn.GroupNorm(..., eps=1e-06)


def _round_up(x, m):
    return (x + m - 1) // m * m


# --------------------------------------------------------------------------------------
# in-kernel helpers
# --------------------------------------------------------------------------------------
def _masked_group_norm(h, mask, gamma, beta, m_cg, m_gc, n_per_group):
    """GroupNorm over the wide (L, C) layout; mask (L,1) zeroes the pad columns in the stats."""
    inv_n = jnp.float32(1.0 / float(n_per_group))
    s = jnp.sum(h * mask, axis=0, keepdims=True)                               # (1, C)
    gmean = jnp.dot(s, m_cg, preferred_element_type=jnp.float32) * inv_n       # (1, G)
    mean_c = jnp.dot(gmean, m_gc, preferred_element_type=jnp.float32)          # (1, C)
    d = h - mean_c
    dm = d * mask
    ss = jnp.sum(dm * dm, axis=0, keepdims=True)                               # (1, C)
    gvar = jnp.dot(ss, m_cg, preferred_element_type=jnp.float32) * inv_n       # (1, G)
    ginv = lax.rsqrt(gvar + EPS)
    scale = jnp.dot(ginv, m_gc, preferred_element_type=jnp.float32) * gamma    # (1, C)
    return d * scale + beta


def _lane_view(ref, start, length, c, cp):
    """Sublane-windowed (and lane-restricted when c < cp) load of the shared scratch."""
    if c == cp:
        return ref[pl.ds(start, length), :]
    return ref[pl.ds(start, length), :c]


def _store_fill(pad_ref, start, length, value, c, cp):
    value = value.astype(pad_ref.dtype)
    if c == cp:
        pad_ref[pl.ds(start, length), :] = value
    else:
        pad_ref[pl.ds(start, length), :c] = value


def _conv3x3(pad_ref, w_ref, bias, *, wp8, L, cin, cout, cp, mm_dtype, use_roll):
    """3x3 'same' conv on the wide padded scratch -> (L, cout) f32 (+bias).

    Scratch layout (flat rows, stride wp8): image (r, c) at flat row 2*wp8 + r*wp8 + c; rows
    [0, 2*wp8) and [(H+2)*wp8, pad_rows) are zero, pad columns c in [W, wp8) of the interior
    are zero (written by the masked fill).  Output row j = r*wp8 + c needs
    pad[(kh+1)*wp8 + (kw-1) + j]; the kh slab load is sublane-aligned and the kw = 0/2 shifts
    are +-1 rolls of that slab.  The single wrapped row of each roll either reads a zeroed
    halo/pad position or lands in a discarded pad column of the output, so valid rows are exact.
    """
    acc = jnp.zeros((L, cout), jnp.float32)
    for kh in range(3):
        base = (kh + 1) * wp8                                   # multiple of 8 -> aligned load
        if use_roll:
            slab = _lane_view(pad_ref, base, L, cin, cp)        # f32 slab, loaded once per kh
            taps = (pltpu.roll(slab, 1, 0), slab, pltpu.roll(slab, -1, 0))
        else:  # conservative fallback: misaligned loads (Mosaic materialises shifted copies)
            taps = tuple(_lane_view(pad_ref, base + kw - 1, L, cin, cp) for kw in range(3))
        for kw in range(3):
            acc = acc + jnp.dot(taps[kw].astype(mm_dtype), w_ref[kh * 3 + kw],
                                preferred_element_type=jnp.float32)
    return acc + bias


def _make_kernel(H, W, wp8, pad_rows, cin, cout, cp, use_up, mm_dtype, use_roll):
    L = H * wp8
    interior = 2 * wp8            # image (r, c) lives at flat row interior + r*wp8 + c

    def kernel(*refs):
        it = iter(refs)
        x_ref = next(it)
        mask_ref = next(it)
        mcg1 = next(it); mgc1 = next(it)
        g1 = next(it); b1 = next(it); w1 = next(it); c1 = next(it)
        if use_up:
            mcg2 = next(it); mgc2 = next(it)
        else:
            mcg2, mgc2 = mcg1, mgc1
        g2 = next(it); b2 = next(it); w2 = next(it); c2 = next(it)
        if use_up:
            wup = next(it); bup = next(it)
        out_ref = next(it)
        pad_ref = next(it)

        mask = mask_ref[...]                  # (L, 1): 1 on image columns, 0 on pad columns

        # halo: only the head/tail row blocks need explicit zeroing (2 wide aligned stores);
        # the left/right pad columns inside the interior are zeroed by the masked fills below.
        pad_ref[pl.ds(0, interior), :] = jnp.zeros((interior, cp), pad_ref.dtype)
        tail = (H + 2) * wp8
        pad_ref[pl.ds(tail, pad_rows - tail), :] = jnp.zeros((pad_rows - tail, cp), pad_ref.dtype)

        x_wide = x_ref[0].reshape(L, cin).astype(jnp.float32)

        # GroupNorm(in_channel) + Swish  ->  ONE aligned masked fill of the scratch interior
        h = _masked_group_norm(x_wide, mask, g1[...], b1[...], mcg1[...], mgc1[...],
                               H * W * (cin // GROUPS))
        h = h * jax.nn.sigmoid(h)
        _store_fill(pad_ref, interior, L, h * mask, cin, cp)

        # Conv2d(in_channel, out_channel, 3, 1, 1)
        h = _conv3x3(pad_ref, w1, c1[...], wp8=wp8, L=L, cin=cin, cout=cout, cp=cp,
                     mm_dtype=mm_dtype, use_roll=use_roll)

        # GroupNorm(out_channel) + Swish, still in the wide layout (no strided [:, :W, :] slice)
        h = _masked_group_norm(h, mask, g2[...], b2[...], mcg2[...], mgc2[...],
                               H * W * (cout // GROUPS))
        h = h * jax.nn.sigmoid(h)
        _store_fill(pad_ref, interior, L, h * mask, cout, cp)

        # Conv2d(out_channel, out_channel, 3, 1, 1)
        h = _conv3x3(pad_ref, w2, c2[...], wp8=wp8, L=L, cin=cout, cout=cout, cp=cp,
                     mm_dtype=mm_dtype, use_roll=use_roll)

        # residual path: 1x1 conv when the channel counts differ, exact passthrough otherwise
        if use_up:
            res = jnp.dot(x_wide.astype(mm_dtype), wup[...],
                          preferred_element_type=jnp.float32) + bup[...]
        else:
            res = x_wide
        out_ref[0] = (res + h).reshape(H, wp8, cout).astype(out_ref.dtype)

    return kernel


# --------------------------------------------------------------------------------------
# wrapper
# --------------------------------------------------------------------------------------
def _indicators(c):
    grp = jnp.arange(c, dtype=jnp.int32) // (c // GROUPS)
    m_cg = (grp[:, None] == jnp.arange(GROUPS, dtype=jnp.int32)[None, :]).astype(jnp.float32)
    return m_cg, m_cg.T                                   # (C, G), (G, C)


_BEST_FLAGS = None      # cached (use_roll, use_buffered) combo that lowered successfully


def residual_block(x_nchw, params, *, matmul_dtype=jnp.bfloat16):
    """x_nchw: (N, Cin, H, W) float32 -> (N, Cout, H, W) float32."""
    global _BEST_FLAGS
    N, Cin, H, W = x_nchw.shape
    Cout = params["w1"].shape[-1]
    assert Cin % GROUPS == 0 and Cout % GROUPS == 0, "GroupNorm(32) requires channels % 32 == 0"
    assert params["w1"].shape == (3, 3, Cin, Cout)
    assert params["w2"].shape == (3, 3, Cout, Cout)
    use_up = Cin != Cout
    Cp = max(Cin, Cout)

    wp8 = _round_up(W + 2, 8)        # padded row stride: keeps every slab / fill offset aligned
    L = H * wp8
    pad_rows = (H + 3) * wp8 + 8     # 3 kh slabs of L rows + zeroed tail (covers no-roll fallback)

    # NCHW -> NHWC and zero-pad W -> wp8; the zero columns double as the left/right conv halo.
    x = jnp.transpose(x_nchw, (0, 2, 3, 1)).astype(jnp.float32)
    x = jnp.pad(x, ((0, 0), (0, 0), (0, wp8 - W), (0, 0)))

    # grid-invariant small tensors, hoisted out of the per-step kernel trace
    mask = (jnp.tile(jnp.arange(wp8, dtype=jnp.int32), (H,)) < W)
    mask = mask.astype(jnp.float32).reshape(L, 1)
    m_cg1, m_gc1 = _indicators(Cin)

    w1r = params["w1"].reshape(9, Cin, Cout).astype(matmul_dtype)
    w2r = params["w2"].reshape(9, Cout, Cout).astype(matmul_dtype)

    args = [x, mask, m_cg1, m_gc1, params["g1"], params["b1"], w1r, params["bias1"]]
    if use_up:
        m_cg2, m_gc2 = _indicators(Cout)
        args += [m_cg2, m_gc2]
    args += [params["g2"], params["b2"], w2r, params["bias2"]]
    if use_up:
        args += [params["wup"].astype(matmul_dtype), params["bup"]]

    # VMEM budget: per-step blocks + (worst-case double-buffered) invariants + scratch + in-kernel
    # temporaries, clamped to the physical VMEM minus headroom.
    f32b, mmb = 4, jnp.dtype(matmul_dtype).itemsize
    inv_bytes = sum(int(a.size) * a.dtype.itemsize for a in args[1:])
    est = (2 * L * Cin * f32b + 2 * L * Cout * f32b        # x / out blocks (double-buffered)
           + 2 * inv_bytes                                  # invariant inputs
           + pad_rows * Cp * f32b                           # shared padded scratch
           + (3 * Cp + 3 * Cout) * L * f32b                 # slabs/rolls + acc/h/res temporaries
           + 2 * Cp * L * mmb)                              # casted MXU operands
    phys = 64 * 2 ** 20
    try:
        info_fn = getattr(pltpu, "get_tpu_info", None)
        if info_fn is not None:
            phys = int(info_fn().vmem_capacity_bytes)
    except Exception:
        pass
    vmem_limit = min(max(int(1.25 * est), 32 * 2 ** 20), max(phys - 8 * 2 ** 20, 16 * 2 ** 20))

    def build_and_run(use_roll, use_buffered):
        def inv_spec(shape):
            zeros = (0,) * len(shape)
            if use_buffered:   # grid-invariant block: single-buffer it (halves its VMEM footprint)
                return pl.BlockSpec(shape, lambda n, _z=zeros: _z,
                                    pipeline_mode=pl.Buffered(1))
            return pl.BlockSpec(shape, lambda n, _z=zeros: _z)

        in_specs = [pl.BlockSpec((1, H, wp8, Cin), lambda n: (n, 0, 0, 0))]
        in_specs += [inv_spec(tuple(a.shape)) for a in args[1:]]

        kernel = _make_kernel(H, W, wp8, pad_rows, Cin, Cout, Cp, use_up,
                              matmul_dtype, use_roll)
        fn = pl.pallas_call(
            kernel,
            out_shape=jax.ShapeDtypeStruct((N, H, wp8, Cout), jnp.float32),
            grid_spec=pltpu.PrefetchScalarGridSpec(
                num_scalar_prefetch=0,
                grid=(N,),
                in_specs=in_specs,
                out_specs=pl.BlockSpec((1, H, wp8, Cout), lambda n: (n, 0, 0, 0)),
                scratch_shapes=[pltpu.VMEM((pad_rows, Cp), jnp.float32)],
            ),
            compiler_params=pltpu.CompilerParams(
                dimension_semantics=("parallel",),
                vmem_limit_bytes=vmem_limit,
            ),
        )
        return jax.block_until_ready(fn(*args))

    out_wide = None
    if _BEST_FLAGS is not None:
        try:
            out_wide = build_and_run(*_BEST_FLAGS)
        except Exception:
            _BEST_FLAGS = None
    if out_wide is None:
        attempts = []
        if hasattr(pltpu, "roll") and hasattr(pl, "Buffered"):
            attempts.append((True, True))
        if hasattr(pltpu, "roll"):
            attempts.append((True, False))
        attempts.append((False, False))
        err = None
        for flags in attempts:
            try:
                out_wide = build_and_run(*flags)
                _BEST_FLAGS = flags
                break
            except Exception as e:   # unsupported Buffered(1)/roll lowering -> conservative path
                err = e
        if out_wide is None:
            raise err

    # drop the pad columns, back to NCHW
    return jnp.transpose(out_wide[:, :, :W, :], (0, 3, 1, 2))


# --------------------------------------------------------------------------------------
# pure-JAX reference (same matmul dtype as the kernel so only kernel errors are measured)
# --------------------------------------------------------------------------------------
def _ref_group_norm(x, gamma, beta):                  # x: NHWC
    N, H, W, C = x.shape
    xg = x.reshape(N, H, W, GROUPS, C // GROUPS)
    mean = xg.mean(axis=(1, 2, 4), keepdims=True)
    var = ((xg - mean) ** 2).mean(axis=(1, 2, 4), keepdims=True)
    xn = ((xg - mean) / jnp.sqrt(var + EPS)).reshape(N, H, W, C)
    return xn * gamma.reshape(1, 1, 1, C) + beta.reshape(1, 1, 1, C)


def _ref_conv3x3(x, w, b, mm_dtype):                  # x: NHWC, w: HWIO
    y = lax.conv_general_dilated(
        x.astype(mm_dtype), w.astype(mm_dtype), window_strides=(1, 1), padding="SAME",
        dimension_numbers=("NHWC", "HWIO", "NHWC"),
        preferred_element_type=jnp.float32)
    return y + b.reshape(1, 1, 1, -1)


def ref_residual_block(x_nchw, params, *, matmul_dtype=jnp.bfloat16):
    x = jnp.transpose(x_nchw, (0, 2, 3, 1)).astype(jnp.float32)
    cin, cout = x.shape[-1], params["w1"].shape[-1]
    h = _ref_group_norm(x, params["g1"], params["b1"])
    h = h * jax.nn.sigmoid(h)
    h = _ref_conv3x3(h, params["w1"], params["bias1"], matmul_dtype)
    h = _ref_group_norm(h, params["g2"], params["b2"])
    h = h * jax.nn.sigmoid(h)
    h = _ref_conv3x3(h, params["w2"], params["bias2"], matmul_dtype)
    if cin != cout:
        n, hh, ww, _ = x.shape
        res = jnp.dot(x.reshape(-1, cin).astype(matmul_dtype),
                      params["wup"].astype(matmul_dtype),
                      preferred_element_type=jnp.float32).reshape(n, hh, ww, cout)
        res = res + params["bup"].reshape(1, 1, 1, -1)
    else:
        res = x
    return jnp.transpose(res + h, (0, 3, 1, 2))


def _make_params(key, cin, cout):
    ks = jax.random.split(key, 10)
    p = {
        "g1":    1.0 + 0.1 * jax.random.normal(ks[0], (1, cin), jnp.float32),
        "b1":    0.1 * jax.random.normal(ks[1], (1, cin), jnp.float32),
        "w1":    0.05 * jax.random.normal(ks[2], (3, 3, cin, cout), jnp.float32),
        "bias1": 0.1 * jax.random.normal(ks[3], (1, cout), jnp.float32),
        "g2":    1.0 + 0.1 * jax.random.normal(ks[4], (1, cout), jnp.float32),
        "b2":    0.1 * jax.random.normal(ks[5], (1, cout), jnp.float32),
        "w2":    0.05 * jax.random.normal(ks[6], (3, 3, cout, cout), jnp.float32),
        "bias2": 0.1 * jax.random.normal(ks[7], (1, cout), jnp.float32),
    }
    if cin != cout:
        p["wup"] = 0.1 * jax.random.normal(ks[8], (cin, cout), jnp.float32)
        p["bup"] = 0.1 * jax.random.normal(ks[9], (1, cout), jnp.float32)
    return p


if __name__ == "__main__":
    key = jax.random.PRNGKey(0)
    kp_a, kx_a, kp_b, kx_b = jax.random.split(key, 4)

    # --- config A: channel-up residual block (32 -> 64), N=2, H=W=8 -----------------
    N, Cin, Cout, H, W = 2, 32, 64, 8, 8
    params_a = _make_params(kp_a, Cin, Cout)
    x_a = jax.random.normal(kx_a, (N, Cin, H, W), jnp.float32)

    # exact f32 path
    out_f32 = jax.block_until_ready(residual_block(x_a, params_a, matmul_dtype=jnp.float32))
    ref_f32 = ref_residual_block(x_a, params_a, matmul_dtype=jnp.float32)
    assert out_f32.shape == (N, Cout, H, W)
    err_f32 = float(jnp.max(jnp.abs(out_f32 - ref_f32)))
    assert err_f32 < 1e-3, f"f32 path max abs error too large: {err_f32}"

    # default bf16-MXU path (f32 accumulation / f32 GroupNorm-Swish math)
    out_bf16 = jax.block_until_ready(residual_block(x_a, params_a))
    ref_bf16 = ref_residual_block(x_a, params_a, matmul_dtype=jnp.bfloat16)
    err_bf16 = float(jnp.max(jnp.abs(out_bf16 - ref_bf16)))
    assert err_bf16 < 1e-2, f"bf16 path max abs error too large: {err_bf16}"

    # --- config B: identity-residual block (64 -> 64) exercises the no-1x1 path -----
    params_b = _make_params(kp_b, 64, 64)
    x_b = jax.random.normal(kx_b, (2, 64, 8, 8), jnp.float32)
    out_b = jax.block_until_ready(residual_block(x_b, params_b, matmul_dtype=jnp.float32))
    ref_b = ref_residual_block(x_b, params_b, matmul_dtype=jnp.float32)
    err_b = float(jnp.max(jnp.abs(out_b - ref_b)))
    assert err_b < 1e-3, f"identity-residual path max abs error too large: {err_b}"

    print("KERNEL_OK")
</pallas_src>

<mosaic_0001>
module attributes {stable_mosaic.version = 11 : i64} {
  func.func @kernel(%arg0: i32, %arg1: memref<1x8x16x32xf32, #tpu.memory_space<vmem>>, %arg2: memref<128x1xf32, #tpu.memory_space<vmem>>, %arg3: memref<32x32xf32, #tpu.memory_space<vmem>>, %arg4: memref<32x32xf32, #tpu.memory_space<vmem>>, %arg5: memref<1x32xf32, #tpu.memory_space<vmem>>, %arg6: memref<1x32xf32, #tpu.memory_space<vmem>>, %arg7: memref<9x32x64xf32, #tpu.memory_space<vmem>>, %arg8: memref<1x64xf32, #tpu.memory_space<vmem>>, %arg9: memref<64x32xf32, #tpu.memory_space<vmem>>, %arg10: memref<32x64xf32, #tpu.memory_space<vmem>>, %arg11: memref<1x64xf32, #tpu.memory_space<vmem>>, %arg12: memref<1x64xf32, #tpu.memory_space<vmem>>, %arg13: memref<9x64x64xf32, #tpu.memory_space<vmem>>, %arg14: memref<1x64xf32, #tpu.memory_space<vmem>>, %arg15: memref<32x64xf32, #tpu.memory_space<vmem>>, %arg16: memref<1x64xf32, #tpu.memory_space<vmem>>, %arg17: memref<1x8x16x64xf32, #tpu.memory_space<vmem>>, %arg18: memref<184x64xf32, #tpu.memory_space<vmem>>) attributes {dimension_semantics = [#tpu.dimension_semantics<parallel>], iteration_bounds = array<i64: 2>, scalar_prefetch = 0 : i64, scratch_operands = 1 : i64, tpu.core_type = #tpu.core_type<tc>, window_params = [{transform_indices = @transform_0, window_bounds = array<i64: 1, 8, 16, 32>}, {pipeline_mode = #tpu.pipeline_mode<synchronous>, transform_indices = @transform_1, window_bounds = array<i64: 128, 1>}, {pipeline_mode = #tpu.pipeline_mode<synchronous>, transform_indices = @transform_2, window_bounds = array<i64: 32, 32>}, {pipeline_mode = #tpu.pipeline_mode<synchronous>, transform_indices = @transform_3, window_bounds = array<i64: 32, 32>}, {pipeline_mode = #tpu.pipeline_mode<synchronous>, transform_indices = @transform_4, window_bounds = array<i64: 1, 32>}, {pipeline_mode = #tpu.pipeline_mode<synchronous>, transform_indices = @transform_5, window_bounds = array<i64: 1, 32>}, {pipeline_mode = #tpu.pipeline_mode<synchronous>, transform_indices = @transform_6, window_bounds = array<i64: 9, 32, 64>}, {pipeline_mode = #tpu.pipeline_mode<synchronous>, transform_indices = @transform_7, window_bounds = array<i64: 1, 64>}, {pipeline_mode = #tpu.pipeline_mode<synchronous>, transform_indices = @transform_8, window_bounds = array<i64: 64, 32>}, {pipeline_mode = #tpu.pipeline_mode<synchronous>, transform_indices = @transform_9, window_bounds = array<i64: 32, 64>}, {pipeline_mode = #tpu.pipeline_mode<synchronous>, transform_indices = @transform_10, window_bounds = array<i64: 1, 64>}, {pipeline_mode = #tpu.pipeline_mode<synchronous>, transform_indices = @transform_11, window_bounds = array<i64: 1, 64>}, {pipeline_mode = #tpu.pipeline_mode<synchronous>, transform_indices = @transform_12, window_bounds = array<i64: 9, 64, 64>}, {pipeline_mode = #tpu.pipeline_mode<synchronous>, transform_indices = @transform_13, window_bounds = array<i64: 1, 64>}, {pipeline_mode = #tpu.pipeline_mode<synchronous>, transform_indices = @transform_14, window_bounds = array<i64: 32, 64>}, {pipeline_mode = #tpu.pipeline_mode<synchronous>, transform_indices = @transform_15, window_bounds = array<i64: 1, 64>}, {transform_indices = @transform_16, window_bounds = array<i64: 1, 8, 16, 64>}]} {
    %c0 = arith.constant 0 : index
    %c0_0 = arith.constant 0 : index
    %0 = vector.load %arg2[%c0, %c0_0] : memref<128x1xf32, #tpu.memory_space<vmem>>, vector<128x1xf32>
    %cst = arith.constant 0.000000e+00 : f32
    %1 = vector.broadcast %cst : f32 to vector<32x64xf32>
    %c0_1 = arith.constant 0 : index
    %c0_2 = arith.constant 0 : index
    %2 = vector.load %arg18[%c0_1, %c0_2] : memref<184x64xf32, #tpu.memory_space<vmem>>, vector<32x64xf32>
    tpu.vector_store %arg18[%c0_1, %c0_2], %1 {strides = array<i32>} : memref<184x64xf32, #tpu.memory_space<vmem>>, vector<32x64xf32>,
    %cst_3 = arith.constant 0.000000e+00 : f32
    %3 = vector.broadcast %cst_3 : f32 to vector<24x64xf32>
    %c160 = arith.constant 160 : index
    %c0_4 = arith.constant 0 : index
    %4 = vector.load %arg18[%c160, %c0_4] : memref<184x64xf32, #tpu.memory_space<vmem>>, vector<24x64xf32>
    tpu.vector_store %arg18[%c160, %c0_4], %3 {strides = array<i32>} : memref<184x64xf32, #tpu.memory_space<vmem>>, vector<24x64xf32>,
    %c0_5 = arith.constant 0 : index
    %c0_6 = arith.constant 0 : index
    %c0_7 = arith.constant 0 : index
    %c0_8 = arith.constant 0 : index
    %5 = vector.load %arg1[%c0_5, %c0_6, %c0_7, %c0_8] : memref<1x8x16x32xf32, #tpu.memory_space<vmem>>, vector<1x8x16x32xf32>
    %6 = vector.shape_cast %5 : vector<1x8x16x32xf32> to vector<8x16x32xf32>
    %7 = vector.shape_cast %6 : vector<8x16x32xf32> to vector<128x32xf32>
    %c0_9 = arith.constant 0 : index
    %c0_10 = arith.constant 0 : index
    %8 = vector.load %arg5[%c0_9, %c0_10] : memref<1x32xf32, #tpu.memory_space<vmem>>, vector<1x32xf32>
    %c0_11 = arith.constant 0 : index
    %c0_12 = arith.constant 0 : index
    %9 = vector.load %arg6[%c0_11, %c0_12] : memref<1x32xf32, #tpu.memory_space<vmem>>, vector<1x32xf32>
    %c0_13 = arith.constant 0 : index
    %c0_14 = arith.constant 0 : index
    %10 = vector.load %arg3[%c0_13, %c0_14] : memref<32x32xf32, #tpu.memory_space<vmem>>, vector<32x32xf32>
    %c0_15 = arith.constant 0 : index
    %c0_16 = arith.constant 0 : index
    %11 = vector.load %arg4[%c0_15, %c0_16] : memref<32x32xf32, #tpu.memory_space<vmem>>, vector<32x32xf32>
    %12 = vector.broadcast %0 : vector<128x1xf32> to vector<128x32xf32>
    %13 = arith.mulf %7, %12 : vector<128x32xf32>
    %cst_17 = arith.constant dense<0.000000e+00> : vector<32xf32>
    %14 = vector.multi_reduction <add>, %13, %cst_17 [0] : vector<128x32xf32> to vector<32xf32>
    %15 = vector.shape_cast %14 : vector<32xf32> to vector<1x32xf32>
    %cst_18 = arith.constant dense<0.000000e+00> : vector<1x32xf32>
    %16 = tpu.matmul %15, %10, %cst_18 {dimension_numbers = #tpu.dot_dimension_numbers<[1], [0], [0], [1], [0, 0, 1, 1], [], []>} : vector<1x32xf32>, vector<32x32xf32>, vector<1x32xf32> -> vector<1x32xf32>
    %cst_19 = arith.constant 1.562500e-02 : f32
    %17 = vector.broadcast %cst_19 : f32 to vector<1x32xf32>
    %18 = arith.mulf %16, %17 : vector<1x32xf32>
    %cst_20 = arith.constant dense<0.000000e+00> : vector<1x32xf32>
    %19 = tpu.matmul %18, %11, %cst_20 {dimension_numbers = #tpu.dot_dimension_numbers<[1], [0], [0], [1], [0, 0, 1, 1], [], []>} : vector<1x32xf32>, vector<32x32xf32>, vector<1x32xf32> -> vector<1x32xf32>
    %20 = vector.broadcast %19 : vector<1x32xf32> to vector<128x32xf32>
    %21 = arith.subf %7, %20 : vector<128x32xf32>
    %22 = vector.broadcast %0 : vector<128x1xf32> to vector<128x32xf32>
    %23 = arith.mulf %21, %22 : vector<128x32xf32>
    %24 = arith.mulf %23, %23 : vector<128x32xf32>
    %cst_21 = arith.constant dense<0.000000e+00> : vector<32xf32>
    %25 = vector.multi_reduction <add>, %24, %cst_21 [0] : vector<128x32xf32> to vector<32xf32>
    %26 = vector.shape_cast %25 : vector<32xf32> to vector<1x32xf32>
    %cst_22 = arith.constant dense<0.000000e+00> : vector<1x32xf32>
    %27 = tpu.matmul %26, %10, %cst_22 {dimension_numbers = #tpu.dot_dimension_numbers<[1], [0], [0], [1], [0, 0, 1, 1], [], []>} : vector<1x32xf32>, vector<32x32xf32>, vector<1x32xf32> -> vector<1x32xf32>
    %cst_23 = arith.constant 1.562500e-02 : f32
    %28 = vector.broadcast %cst_23 : f32 to vector<1x32xf32>
    %29 = arith.mulf %27, %28 : vector<1x32xf32>
    %cst_24 = arith.constant 9.99999997E-7 : f32
    %30 = vector.broadcast %cst_24 : f32 to vector<1x32xf32>
    %31 = arith.addf %29, %30 : vector<1x32xf32>
    %32 = math.rsqrt %31 : vector<1x32xf32>
    %cst_25 = arith.constant dense<0.000000e+00> : vector<1x32xf32>
    %33 = tpu.matmul %32, %11, %cst_25 {dimension_numbers = #tpu.dot_dimension_numbers<[1], [0], [0], [1], [0, 0, 1, 1], [], []>} : vector<1x32xf32>, vector<32x32xf32>, vector<1x32xf32> -> vector<1x32xf32>
    %34 = arith.mulf %33, %8 : vector<1x32xf32>
    %35 = vector.broadcast %34 : vector<1x32xf32> to vector<128x32xf32>
    %36 = arith.mulf %21, %35 : vector<128x32xf32>
    %37 = vector.broadcast %9 : vector<1x32xf32> to vector<128x32xf32>
    %38 = arith.addf %36, %37 : vector<128x32xf32>
    %39 = arith.negf %38 : vector<128x32xf32>
    %40 = math.exp %39 : vector<128x32xf32>
    %cst_26 = arith.constant 1.000000e+00 : f32
    %41 = vector.broadcast %cst_26 : f32 to vector<128x32xf32>
    %42 = arith.addf %41, %40 : vector<128x32xf32>
    %43 = arith.divf %41, %42 : vector<128x32xf32>
    %44 = arith.mulf %38, %43 : vector<128x32xf32>
    %45 = vector.broadcast %0 : vector<128x1xf32> to vector<128x32xf32>
    %46 = arith.mulf %44, %45 : vector<128x32xf32>
    %c32 = arith.constant 32 : index
    %c0_27 = arith.constant 0 : index
    %47 = vector.load %arg18[%c32, %c0_27] : memref<184x64xf32, #tpu.memory_space<vmem>>, vector<128x32xf32>
    tpu.vector_store %arg18[%c32, %c0_27], %46 {strides = array<i32>} : memref<184x64xf32, #tpu.memory_space<vmem>>, vector<128x32xf32>,
    %c0_28 = arith.constant 0 : index
    %c0_29 = arith.constant 0 : index
    %48 = vector.load %arg8[%c0_28, %c0_29] : memref<1x64xf32, #tpu.memory_space<vmem>>, vector<1x64xf32>
    %cst_30 = arith.constant 0.000000e+00 : f32
    %49 = vector.broadcast %cst_30 : f32 to vector<128x64xf32>
    %c15 = arith.constant 15 : index
    %c0_31 = arith.constant 0 : index
    %50 = vector.load %arg18[%c15, %c0_31] : memref<184x64xf32, #tpu.memory_space<vmem>>, vector<128x32xf32>
    %c16 = arith.constant 16 : index
    %c0_32 = arith.constant 0 : index
    %51 = vector.load %arg18[%c16, %c0_32] : memref<184x64xf32, #tpu.memory_space<vmem>>, vector<128x32xf32>
    %c17 = arith.constant 17 : index
    %c0_33 = arith.constant 0 : index
    %52 = vector.load %arg18[%c17, %c0_33] : memref<184x64xf32, #tpu.memory_space<vmem>>, vector<128x32xf32>
    %c0_34 = arith.constant 0 : index
    %c0_35 = arith.constant 0 : index
    %c0_36 = arith.constant 0 : index
    %53 = vector.load %arg7[%c0_34, %c0_35, %c0_36] : memref<9x32x64xf32, #tpu.memory_space<vmem>>, vector<1x32x64xf32>
    %54 = vector.shape_cast %53 : vector<1x32x64xf32> to vector<32x64xf32>
    %cst_37 = arith.constant dense<0.000000e+00> : vector<128x64xf32>
    %55 = tpu.matmul %50, %54, %cst_37 {dimension_numbers = #tpu.dot_dimension_numbers<[1], [0], [0], [1], [0, 0, 1, 1], [], []>} : vector<128x32xf32>, vector<32x64xf32>, vector<128x64xf32> -> vector<128x64xf32>
    %56 = arith.addf %49, %55 : vector<128x64xf32>
    %c1 = arith.constant 1 : index
    %c0_38 = arith.constant 0 : index
    %c0_39 = arith.constant 0 : index
    %57 = vector.load %arg7[%c1, %c0_38, %c0_39] : memref<9x32x64xf32, #tpu.memory_space<vmem>>, vector<1x32x64xf32>
    %58 = vector.shape_cast %57 : vector<1x32x64xf32> to vector<32x64xf32>
    %cst_40 = arith.constant dense<0.000000e+00> : vector<128x64xf32>
    %59 = tpu.matmul %51, %58, %cst_40 {dimension_numbers = #tpu.dot_dimension_numbers<[1], [0], [0], [1], [0, 0, 1, 1], [], []>} : vector<128x32xf32>, vector<32x64xf32>, vector<128x64xf32> -> vector<128x64xf32>
    %60 = arith.addf %56, %59 : vector<128x64xf32>
    %c2 = arith.constant 2 : index
    %c0_41 = arith.constant 0 : index
    %c0_42 = arith.constant 0 : index
    %61 = vector.load %arg7[%c2, %c0_41, %c0_42] : memref<9x32x64xf32, #tpu.memory_space<vmem>>, vector<1x32x64xf32>
    %62 = vector.shape_cast %61 : vector<1x32x64xf32> to vector<32x64xf32>
    %cst_43 = arith.constant dense<0.000000e+00> : vector<128x64xf32>
    %63 = tpu.matmul %52, %62, %cst_43 {dimension_numbers = #tpu.dot_dimension_numbers<[1], [0], [0], [1], [0, 0, 1, 1], [], []>} : vector<128x32xf32>, vector<32x64xf32>, vector<128x64xf32> -> vector<128x64xf32>
    %64 = arith.addf %60, %63 : vector<128x64xf32>
    %c31 = arith.constant 31 : index
    %c0_44 = arith.constant 0 : index
    %65 = vector.load %arg18[%c31, %c0_44] : memref<184x64xf32, #tpu.memory_space<vmem>>, vector<128x32xf32>
    %c32_45 = arith.constant 32 : index
    %c0_46 = arith.constant 0 : index
    %66 = vector.load %arg18[%c32_45, %c0_46] : memref<184x64xf32, #tpu.memory_space<vmem>>, vector<128x32xf32>
    %c33 = arith.constant 33 : index
    %c0_47 = arith.constant 0 : index
    %67 = vector.load %arg18[%c33, %c0_47] : memref<184x64xf32, #tpu.memory_space<vmem>>, vector<128x32xf32>
    %c3 = arith.constant 3 : index
    %c0_48 = arith.constant 0 : index
    %c0_49 = arith.constant 0 : index
    %68 = vector.load %arg7[%c3, %c0_48, %c0_49] : memref<9x32x64xf32, #tpu.memory_space<vmem>>, vector<1x32x64xf32>
    %69 = vector.shape_cast %68 : vector<1x32x64xf32> to vector<32x64xf32>
    %cst_50 = arith.constant dense<0.000000e+00> : vector<128x64xf32>
    %70 = tpu.matmul %65, %69, %cst_50 {dimension_numbers = #tpu.dot_dimension_numbers<[1], [0], [0], [1], [0, 0, 1, 1], [], []>} : vector<128x32xf32>, vector<32x64xf32>, vector<128x64xf32> -> vector<128x64xf32>
    %71 = arith.addf %64, %70 : vector<128x64xf32>
    %c4 = arith.constant 4 : index
    %c0_51 = arith.constant 0 : index
    %c0_52 = arith.constant 0 : index
    %72 = vector.load %arg7[%c4, %c0_51, %c0_52] : memref<9x32x64xf32, #tpu.memory_space<vmem>>, vector<1x32x64xf32>
    %73 = vector.shape_cast %72 : vector<1x32x64xf32> to vector<32x64xf32>
    %cst_53 = arith.constant dense<0.000000e+00> : vector<128x64xf32>
    %74 = tpu.matmul %66, %73, %cst_53 {dimension_numbers = #tpu.dot_dimension_numbers<[1], [0], [0], [1], [0, 0, 1, 1], [], []>} : vector<128x32xf32>, vector<32x64xf32>, vector<128x64xf32> -> vector<128x64xf32>
    %75 = arith.addf %71, %74 : vector<128x64xf32>
    %c5 = arith.constant 5 : index
    %c0_54 = arith.constant 0 : index
    %c0_55 = arith.constant 0 : index
    %76 = vector.load %arg7[%c5, %c0_54, %c0_55] : memref<9x32x64xf32, #tpu.memory_space<vmem>>, vector<1x32x64xf32>
    %77 = vector.shape_cast %76 : vector<1x32x64xf32> to vector<32x64xf32>
    %cst_56 = arith.constant dense<0.000000e+00> : vector<128x64xf32>
    %78 = tpu.matmul %67, %77, %cst_56 {dimension_numbers = #tpu.dot_dimension_numbers<[1], [0], [0], [1], [0, 0, 1, 1], [], []>} : vector<128x32xf32>, vector<32x64xf32>, vector<128x64xf32> -> vector<128x64xf32>
    %79 = arith.addf %75, %78 : vector<128x64xf32>
    %c47 = arith.constant 47 : index
    %c0_57 = arith.constant 0 : index
    %80 = vector.load %arg18[%c47, %c0_57] : memref<184x64xf32, #tpu.memory_space<vmem>>, vector<128x32xf32>
    %c48 = arith.constant 48 : index
    %c0_58 = arith.constant 0 : index
    %81 = vector.load %arg18[%c48, %c0_58] : memref<184x64xf32, #tpu.memory_space<vmem>>, vector<128x32xf32>
    %c49 = arith.constant 49 : index
    %c0_59 = arith.constant 0 : index
    %82 = vector.load %arg18[%c49, %c0_59] : memref<184x64xf32, #tpu.memory_space<vmem>>, vector<128x32xf32>
    %c6 = arith.constant 6 : index
    %c0_60 = arith.constant 0 : index
    %c0_61 = arith.constant 0 : index
    %83 = vector.load %arg7[%c6, %c0_60, %c0_61] : memref<9x32x64xf32, #tpu.memory_space<vmem>>, vector<1x32x64xf32>
    %84 = vector.shape_cast %83 : vector<1x32x64xf32> to vector<32x64xf32>
    %cst_62 = arith.constant dense<0.000000e+00> : vector<128x64xf32>
    %85 = tpu.matmul %80, %84, %cst_62 {dimension_numbers = #tpu.dot_dimension_numbers<[1], [0], [0], [1], [0, 0, 1, 1], [], []>} : vector<128x32xf32>, vector<32x64xf32>, vector<128x64xf32> -> vector<128x64xf32>
    %86 = arith.addf %79, %85 : vector<128x64xf32>
    %c7 = arith.constant 7 : index
    %c0_63 = arith.constant 0 : index
    %c0_64 = arith.constant 0 : index
    %87 = vector.load %arg7[%c7, %c0_63, %c0_64] : memref<9x32x64xf32, #tpu.memory_space<vmem>>, vector<1x32x64xf32>
    %88 = vector.shape_cast %87 : vector<1x32x64xf32> to vector<32x64xf32>
    %cst_65 = arith.constant dense<0.000000e+00> : vector<128x64xf32>
    %89 = tpu.matmul %81, %88, %cst_65 {dimension_numbers = #tpu.dot_dimension_numbers<[1], [0], [0], [1], [0, 0, 1, 1], [], []>} : vector<128x32xf32>, vector<32x64xf32>, vector<128x64xf32> -> vector<128x64xf32>
    %90 = arith.addf %86, %89 : vector<128x64xf32>
    %c8 = arith.constant 8 : index
    %c0_66 = arith.constant 0 : index
    %c0_67 = arith.constant 0 : index
    %91 = vector.load %arg7[%c8, %c0_66, %c0_67] : memref<9x32x64xf32, #tpu.memory_space<vmem>>, vector<1x32x64xf32>
    %92 = vector.shape_cast %91 : vector<1x32x64xf32> to vector<32x64xf32>
    %cst_68 = arith.constant dense<0.000000e+00> : vector<128x64xf32>
    %93 = tpu.matmul %82, %92, %cst_68 {dimension_numbers = #tpu.dot_dimension_numbers<[1], [0], [0], [1], [0, 0, 1, 1], [], []>} : vector<128x32xf32>, vector<32x64xf32>, vector<128x64xf32> -> vector<128x64xf32>
    %94 = arith.addf %90, %93 : vector<128x64xf32>
    %95 = vector.broadcast %48 : vector<1x64xf32> to vector<128x64xf32>
    %96 = arith.addf %94, %95 : vector<128x64xf32>
    %c0_69 = arith.constant 0 : index
    %c0_70 = arith.constant 0 : index
    %97 = vector.load %arg11[%c0_69, %c0_70] : memref<1x64xf32, #tpu.memory_space<vmem>>, vector<1x64xf32>
    %c0_71 = arith.constant 0 : index
    %c0_72 = arith.constant 0 : index
    %98 = vector.load %arg12[%c0_71, %c0_72] : memref<1x64xf32, #tpu.memory_space<vmem>>, vector<1x64xf32>
    %c0_73 = arith.constant 0 : index
    %c0_74 = arith.constant 0 : index
    %99 = vector.load %arg9[%c0_73, %c0_74] : memref<64x32xf32, #tpu.memory_space<vmem>>, vector<64x32xf32>
    %c0_75 = arith.constant 0 : index
    %c0_76 = arith.constant 0 : index
    %100 = vector.load %arg10[%c0_75, %c0_76] : memref<32x64xf32, #tpu.memory_space<vmem>>, vector<32x64xf32>
    %101 = vector.broadcast %0 : vector<128x1xf32> to vector<128x64xf32>
    %102 = arith.mulf %96, %101 : vector<128x64xf32>
    %cst_77 = arith.constant dense<0.000000e+00> : vector<64xf32>
    %103 = vector.multi_reduction <add>, %102, %cst_77 [0] : vector<128x64xf32> to vector<64xf32>
    %104 = vector.shape_cast %103 : vector<64xf32> to vector<1x64xf32>
    %cst_78 = arith.constant dense<0.000000e+00> : vector<1x32xf32>
    %105 = tpu.matmul %104, %99, %cst_78 {dimension_numbers = #tpu.dot_dimension_numbers<[1], [0], [0], [1], [0, 0, 1, 1], [], []>} : vector<1x64xf32>, vector<64x32xf32>, vector<1x32xf32> -> vector<1x32xf32>
    %cst_79 = arith.constant 7.812500e-03 : f32
    %106 = vector.broadcast %cst_79 : f32 to vector<1x32xf32>
    %107 = arith.mulf %105, %106 : vector<1x32xf32>
    %cst_80 = arith.constant dense<0.000000e+00> : vector<1x64xf32>
    %108 = tpu.matmul %107, %100, %cst_80 {dimension_numbers = #tpu.dot_dimension_numbers<[1], [0], [0], [1], [0, 0, 1, 1], [], []>} : vector<1x32xf32>, vector<32x64xf32>, vector<1x64xf32> -> vector<1x64xf32>
    %109 = vector.broadcast %108 : vector<1x64xf32> to vector<128x64xf32>
    %110 = arith.subf %96, %109 : vector<128x64xf32>
    %111 = vector.broadcast %0 : vector<128x1xf32> to vector<128x64xf32>
    %112 = arith.mulf %110, %111 : vector<128x64xf32>
    %113 = arith.mulf %112, %112 : vector<128x64xf32>
    %cst_81 = arith.constant dense<0.000000e+00> : vector<64xf32>
    %114 = vector.multi_reduction <add>, %113, %cst_81 [0] : vector<128x64xf32> to vector<64xf32>
    %115 = vector.shape_cast %114 : vector<64xf32> to vector<1x64xf32>
    %cst_82 = arith.constant dense<0.000000e+00> : vector<1x32xf32>
    %116 = tpu.matmul %115, %99, %cst_82 {dimension_numbers = #tpu.dot_dimension_numbers<[1], [0], [0], [1], [0, 0, 1, 1], [], []>} : vector<1x64xf32>, vector<64x32xf32>, vector<1x32xf32> -> vector<1x32xf32>
    %cst_83 = arith.constant 7.812500e-03 : f32
    %117 = vector.broadcast %cst_83 : f32 to vector<1x32xf32>
    %118 = arith.mulf %116, %117 : vector<1x32xf32>
    %cst_84 = arith.constant 9.99999997E-7 : f32
    %119 = vector.broadcast %cst_84 : f32 to vector<1x32xf32>
    %120 = arith.addf %118, %119 : vector<1x32xf32>
    %121 = math.rsqrt %120 : vector<1x32xf32>
    %cst_85 = arith.constant dense<0.000000e+00> : vector<1x64xf32>
    %122 = tpu.matmul %121, %100, %cst_85 {dimension_numbers = #tpu.dot_dimension_numbers<[1], [0], [0], [1], [0, 0, 1, 1], [], []>} : vector<1x32xf32>, vector<32x64xf32>, vector<1x64xf32> -> vector<1x64xf32>
    %123 = arith.mulf %122, %97 : vector<1x64xf32>
    %124 = vector.broadcast %123 : vector<1x64xf32> to vector<128x64xf32>
    %125 = arith.mulf %110, %124 : vector<128x64xf32>
    %126 = vector.broadcast %98 : vector<1x64xf32> to vector<128x64xf32>
    %127 = arith.addf %125, %126 : vector<128x64xf32>
    %128 = arith.negf %127 : vector<128x64xf32>
    %129 = math.exp %128 : vector<128x64xf32>
    %cst_86 = arith.constant 1.000000e+00 : f32
    %130 = vector.broadcast %cst_86 : f32 to vector<128x64xf32>
    %131 = arith.addf %130, %129 : vector<128x64xf32>
    %132 = arith.divf %130, %131 : vector<128x64xf32>
    %133 = arith.mulf %127, %132 : vector<128x64xf32>
    %134 = vector.broadcast %0 : vector<128x1xf32> to vector<128x64xf32>
    %135 = arith.mulf %133, %134 : vector<128x64xf32>
    %c32_87 = arith.constant 32 : index
    %c0_88 = arith.constant 0 : index
    %136 = vector.load %arg18[%c32_87, %c0_88] : memref<184x64xf32, #tpu.memory_space<vmem>>, vector<128x64xf32>
    tpu.vector_store %arg18[%c32_87, %c0_88], %135 {strides = array<i32>} : memref<184x64xf32, #tpu.memory_space<vmem>>, vector<128x64xf32>,
    %c0_89 = arith.constant 0 : index
    %c0_90 = arith.constant 0 : index
    %137 = vector.load %arg14[%c0_89, %c0_90] : memref<1x64xf32, #tpu.memory_space<vmem>>, vector<1x64xf32>
    %cst_91 = arith.constant 0.000000e+00 : f32
    %138 = vector.broadcast %cst_91 : f32 to vector<128x64xf32>
    %c15_92 = arith.constant 15 : index
    %c0_93 = arith.constant 0 : index
    %139 = vector.load %arg18[%c15_92, %c0_93] : memref<184x64xf32, #tpu.memory_space<vmem>>, vector<128x64xf32>
    %c16_94 = arith.constant 16 : index
    %c0_95 = arith.constant 0 : index
    %140 = vector.load %arg18[%c16_94, %c0_95] : memref<184x64xf32, #tpu.memory_space<vmem>>, vector<128x64xf32>
    %c17_96 = arith.constant 17 : index
    %c0_97 = arith.constant 0 : index
    %141 = vector.load %arg18[%c17_96, %c0_97] : memref<184x64xf32, #tpu.memory_space<vmem>>, vector<128x64xf32>
    %c0_98 = arith.constant 0 : index
    %c0_99 = arith.constant 0 : index
    %c0_100 = arith.constant 0 : index
    %142 = vector.load %arg13[%c0_98, %c0_99, %c0_100] : memref<9x64x64xf32, #tpu.memory_space<vmem>>, vector<1x64x64xf32>
    %143 = vector.shape_cast %142 : vector<1x64x64xf32> to vector<64x64xf32>
    %cst_101 = arith.constant dense<0.000000e+00> : vector<128x64xf32>
    %144 = tpu.matmul %139, %143, %cst_101 {dimension_numbers = #tpu.dot_dimension_numbers<[1], [0], [0], [1], [0, 0, 1, 1], [], []>} : vector<128x64xf32>, vector<64x64xf32>, vector<128x64xf32> -> vector<128x64xf32>
    %145 = arith.addf %138, %144 : vector<128x64xf32>
    %c1_102 = arith.constant 1 : index
    %c0_103 = arith.constant 0 : index
    %c0_104 = arith.constant 0 : index
    %146 = vector.load %arg13[%c1_102, %c0_103, %c0_104] : memref<9x64x64xf32, #tpu.memory_space<vmem>>, vector<1x64x64xf32>
    %147 = vector.shape_cast %146 : vector<1x64x64xf32> to vector<64x64xf32>
    %cst_105 = arith.constant dense<0.000000e+00> : vector<128x64xf32>
    %148 = tpu.matmul %140, %147, %cst_105 {dimension_numbers = #tpu.dot_dimension_numbers<[1], [0], [0], [1], [0, 0, 1, 1], [], []>} : vector<128x64xf32>, vector<64x64xf32>, vector<128x64xf32> -> vector<128x64xf32>
    %149 = arith.addf %145, %148 : vector<128x64xf32>
    %c2_106 = arith.constant 2 : index
    %c0_107 = arith.constant 0 : index
    %c0_108 = arith.constant 0 : index
    %150 = vector.load %arg13[%c2_106, %c0_107, %c0_108] : memref<9x64x64xf32, #tpu.memory_space<vmem>>, vector<1x64x64xf32>
    %151 = vector.shape_cast %150 : vector<1x64x64xf32> to vector<64x64xf32>
    %cst_109 = arith.constant dense<0.000000e+00> : vector<128x64xf32>
    %152 = tpu.matmul %141, %151, %cst_109 {dimension_numbers = #tpu.dot_dimension_numbers<[1], [0], [0], [1], [0, 0, 1, 1], [], []>} : vector<128x64xf32>, vector<64x64xf32>, vector<128x64xf32> -> vector<128x64xf32>
    %153 = arith.addf %149, %152 : vector<128x64xf32>
    %c31_110 = arith.constant 31 : index
    %c0_111 = arith.constant 0 : index
    %154 = vector.load %arg18[%c31_110, %c0_111] : memref<184x64xf32, #tpu.memory_space<vmem>>, vector<128x64xf32>
    %c32_112 = arith.constant 32 : index
    %c0_113 = arith.constant 0 : index
    %155 = vector.load %arg18[%c32_112, %c0_113] : memref<184x64xf32, #tpu.memory_space<vmem>>, vector<128x64xf32>
    %c33_114 = arith.constant 33 : index
    %c0_115 = arith.constant 0 : index
    %156 = vector.load %arg18[%c33_114, %c0_115] : memref<184x64xf32, #tpu.memory_space<vmem>>, vector<128x64xf32>
    %c3_116 = arith.constant 3 : index
    %c0_117 = arith.constant 0 : index
    %c0_118 = arith.constant 0 : index
    %157 = vector.load %arg13[%c3_116, %c0_117, %c0_118] : memref<9x64x64xf32, #tpu.memory_space<vmem>>, vector<1x64x64xf32>
    %158 = vector.shape_cast %157 : vector<1x64x64xf32> to vector<64x64xf32>
    %cst_119 = arith.constant dense<0.000000e+00> : vector<128x64xf32>
    %159 = tpu.matmul %154, %158, %cst_119 {dimension_numbers = #tpu.dot_dimension_numbers<[1], [0], [0], [1], [0, 0, 1, 1], [], []>} : vector<128x64xf32>, vector<64x64xf32>, vector<128x64xf32> -> vector<128x64xf32>
    %160 = arith.addf %153, %159 : vector<128x64xf32>
    %c4_120 = arith.constant 4 : index
    %c0_121 = arith.constant 0 : index
    %c0_122 = arith.constant 0 : index
    %161 = vector.load %arg13[%c4_120, %c0_121, %c0_122] : memref<9x64x64xf32, #tpu.memory_space<vmem>>, vector<1x64x64xf32>
    %162 = vector.shape_cast %161 : vector<1x64x64xf32> to vector<64x64xf32>
    %cst_123 = arith.constant dense<0.000000e+00> : vector<128x64xf32>
    %163 = tpu.matmul %155, %162, %cst_123 {dimension_numbers = #tpu.dot_dimension_numbers<[1], [0], [0], [1], [0, 0, 1, 1], [], []>} : vector<128x64xf32>, vector<64x64xf32>, vector<128x64xf32> -> vector<128x64xf32>
    %164 = arith.addf %160, %163 : vector<128x64xf32>
    %c5_124 = arith.constant 5 : index
    %c0_125 = arith.constant 0 : index
    %c0_126 = arith.constant 0 : index
    %165 = vector.load %arg13[%c5_124, %c0_125, %c0_126] : memref<9x64x64xf32, #tpu.memory_space<vmem>>, vector<1x64x64xf32>
    %166 = vector.shape_cast %165 : vector<1x64x64xf32> to vector<64x64xf32>
    %cst_127 = arith.constant dense<0.000000e+00> : vector<128x64xf32>
    %167 = tpu.matmul %156, %166, %cst_127 {dimension_numbers = #tpu.dot_dimension_numbers<[1], [0], [0], [1], [0, 0, 1, 1], [], []>} : vector<128x64xf32>, vector<64x64xf32>, vector<128x64xf32> -> vector<128x64xf32>
    %168 = arith.addf %164, %167 : vector<128x64xf32>
    %c47_128 = arith.constant 47 : index
    %c0_129 = arith.constant 0 : index
    %169 = vector.load %arg18[%c47_128, %c0_129] : memref<184x64xf32, #tpu.memory_space<vmem>>, vector<128x64xf32>
    %c48_130 = arith.constant 48 : index
    %c0_131 = arith.constant 0 : index
    %170 = vector.load %arg18[%c48_130, %c0_131] : memref<184x64xf32, #tpu.memory_space<vmem>>, vector<128x64xf32>
    %c49_132 = arith.constant 49 : index
    %c0_133 = arith.constant 0 : index
    %171 = vector.load %arg18[%c49_132, %c0_133] : memref<184x64xf32, #tpu.memory_space<vmem>>, vector<128x64xf32>
    %c6_134 = arith.constant 6 : index
    %c0_135 = arith.constant 0 : index
    %c0_136 = arith.constant 0 : index
    %172 = vector.load %arg13[%c6_134, %c0_135, %c0_136] : memref<9x64x64xf32, #tpu.memory_space<vmem>>, vector<1x64x64xf32>
    %173 = vector.shape_cast %172 : vector<1x64x64xf32> to vector<64x64xf32>
    %cst_137 = arith.constant dense<0.000000e+00> : vector<128x64xf32>
    %174 = tpu.matmul %169, %173, %cst_137 {dimension_numbers = #tpu.dot_dimension_numbers<[1], [0], [0], [1], [0, 0, 1, 1], [], []>} : vector<128x64xf32>, vector<64x64xf32>, vector<128x64xf32> -> vector<128x64xf32>
    %175 = arith.addf %168, %174 : vector<128x64xf32>
    %c7_138 = arith.constant 7 : index
    %c0_139 = arith.constant 0 : index
    %c0_140 = arith.constant 0 : index
    %176 = vector.load %arg13[%c7_138, %c0_139, %c0_140] : memref<9x64x64xf32, #tpu.memory_space<vmem>>, vector<1x64x64xf32>
    %177 = vector.shape_cast %176 : vector<1x64x64xf32> to vector<64x64xf32>
    %cst_141 = arith.constant dense<0.000000e+00> : vector<128x64xf32>
    %178 = tpu.matmul %170, %177, %cst_141 {dimension_numbers = #tpu.dot_dimension_numbers<[1], [0], [0], [1], [0, 0, 1, 1], [], []>} : vector<128x64xf32>, vector<64x64xf32>, vector<128x64xf32> -> vector<128x64xf32>
    %179 = arith.addf %175, %178 : vector<128x64xf32>
    %c8_142 = arith.constant 8 : index
    %c0_143 = arith.constant 0 : index
    %c0_144 = arith.constant 0 : index
    %180 = vector.load %arg13[%c8_142, %c0_143, %c0_144] : memref<9x64x64xf32, #tpu.memory_space<vmem>>, vector<1x64x64xf32>
    %181 = vector.shape_cast %180 : vector<1x64x64xf32> to vector<64x64xf32>
    %cst_145 = arith.constant dense<0.000000e+00> : vector<128x64xf32>
    %182 = tpu.matmul %171, %181, %cst_145 {dimension_numbers = #tpu.dot_dimension_numbers<[1], [0], [0], [1], [0, 0, 1, 1], [], []>} : vector<128x64xf32>, vector<64x64xf32>, vector<128x64xf32> -> vector<128x64xf32>
    %183 = arith.addf %179, %182 : vector<128x64xf32>
    %184 = vector.broadcast %137 : vector<1x64xf32> to vector<128x64xf32>
    %185 = arith.addf %183, %184 : vector<128x64xf32>
    %c0_146 = arith.constant 0 : index
    %c0_147 = arith.constant 0 : index
    %186 = vector.load %arg15[%c0_146, %c0_147] : memref<32x64xf32, #tpu.memory_space<vmem>>, vector<32x64xf32>
    %cst_148 = arith.constant dense<0.000000e+00> : vector<128x64xf32>
    %187 = tpu.matmul %7, %186, %cst_148 {dimension_numbers = #tpu.dot_dimension_numbers<[1], [0], [0], [1], [0, 0, 1, 1], [], []>} : vector<128x32xf32>, vector<32x64xf32>, vector<128x64xf32> -> vector<128x64xf32>
    %c0_149 = arith.constant 0 : index
    %c0_150 = arith.constant 0 : index
    %188 = vector.load %arg16[%c0_149, %c0_150] : memref<1x64xf32, #tpu.memory_space<vmem>>, vector<1x64xf32>
    %189 = vector.broadcast %188 : vector<1x64xf32> to vector<128x64xf32>
    %190 = arith.addf %187, %189 : vector<128x64xf32>
    %191 = arith.addf %190, %185 : vector<128x64xf32>
    %192 = vector.shape_cast %191 : vector<128x64xf32> to vector<8x16x64xf32>
    %c0_151 = arith.constant 0 : index
    %c0_152 = arith.constant 0 : index
    %c0_153 = arith.constant 0 : index
    %c0_154 = arith.constant 0 : index
    %193 = vector.load %arg17[%c0_151, %c0_152, %c0_153, %c0_154] : memref<1x8x16x64xf32, #tpu.memory_space<vmem>>, vector<1x8x16x64xf32>
    %194 = vector.shape_cast %193 : vector<1x8x16x64xf32> to vector<8x16x64xf32>
    %195 = vector.shape_cast %192 : vector<8x16x64xf32> to vector<1x8x16x64xf32>
    tpu.vector_store %arg17[%c0_151, %c0_152, %c0_153, %c0_154], %195 {strides = array<i32>} : memref<1x8x16x64xf32, #tpu.memory_space<vmem>>, vector<1x8x16x64xf32>,
    return
  }
  func.func @transform_0(%arg0: i32) -> (i32, i32, i32, i32) {
    %c0_i32 = arith.constant 0 : i32
    %c0_i32_0 = arith.constant 0 : i32
    %c0_i32_1 = arith.constant 0 : i32
    %c0_i32_2 = arith.constant 0 : i32
    return %arg0, %c0_i32, %c0_i32_0, %c0_i32_1 : i32, i32, i32, i32
  }
  func.func @transform_1(%arg0: i32) -> (i32, i32) {
    %c0_i32 = arith.constant 0 : i32
    %c0_i32_0 = arith.constant 0 : i32
    %c0_i32_1 = arith.constant 0 : i32
    return %c0_i32, %c0_i32_0 : i32, i32
  }
  func.func @transform_2(%arg0: i32) -> (i32, i32) {
    %c0_i32 = arith.constant 0 : i32
    %c0_i32_0 = arith.constant 0 : i32
    %c0_i32_1 = arith.constant 0 : i32
    return %c0_i32, %c0_i32_0 : i32, i32
  }
  func.func @transform_3(%arg0: i32) -> (i32, i32) {
    %c0_i32 = arith.constant 0 : i32
    %c0_i32_0 = arith.constant 0 : i32
    %c0_i32_1 = arith.constant 0 : i32
    return %c0_i32, %c0_i32_0 : i32, i32
  }
  func.func @transform_4(%arg0: i32) -> (i32, i32) {
    %c0_i32 = arith.constant 0 : i32
    %c0_i32_0 = arith.constant 0 : i32
    %c0_i32_1 = arith.constant 0 : i32
    return %c0_i32, %c0_i32_0 : i32, i32
  }
  func.func @transform_5(%arg0: i32) -> (i32, i32) {
    %c0_i32 = arith.constant 0 : i32
    %c0_i32_0 = arith.constant 0 : i32
    %c0_i32_1 = arith.constant 0 : i32
    return %c0_i32, %c0_i32_0 : i32, i32
  }
  func.func @transform_6(%arg0: i32) -> (i32, i32, i32) {
    %c0_i32 = arith.constant 0 : i32
    %c0_i32_0 = arith.constant 0 : i32
    %c0_i32_1 = arith.constant 0 : i32
    %c0_i32_2 = arith.constant 0 : i32
    return %c0_i32, %c0_i32_0, %c0_i32_1 : i32, i32, i32
  }
  func.func @transform_7(%arg0: i32) -> (i32, i32) {
    %c0_i32 = arith.constant 0 : i32
    %c0_i32_0 = arith.constant 0 : i32
    %c0_i32_1 = arith.constant 0 : i32
    return %c0_i32, %c0_i32_0 : i32, i32
  }
  func.func @transform_8(%arg0: i32) -> (i32, i32) {
    %c0_i32 = arith.constant 0 : i32
    %c0_i32_0 = arith.constant 0 : i32
    %c0_i32_1 = arith.constant 0 : i32
    return %c0_i32, %c0_i32_0 : i32, i32
  }
  func.func @transform_9(%arg0: i32) -> (i32, i32) {
    %c0_i32 = arith.constant 0 : i32
    %c0_i32_0 = arith.constant 0 : i32
    %c0_i32_1 = arith.constant 0 : i32
    return %c0_i32, %c0_i32_0 : i32, i32
  }
  func.func @transform_10(%arg0: i32) -> (i32, i32) {
    %c0_i32 = arith.constant 0 : i32
    %c0_i32_0 = arith.constant 0 : i32
    %c0_i32_1 = arith.constant 0 : i32
    return %c0_i32, %c0_i32_0 : i32, i32
  }
  func.func @transform_11(%arg0: i32) -> (i32, i32) {
    %c0_i32 = arith.constant 0 : i32
    %c0_i32_0 = arith.constant 0 : i32
    %c0_i32_1 = arith.constant 0 : i32
    return %c0_i32, %c0_i32_0 : i32, i32
  }
  func.func @transform_12(%arg0: i32) -> (i32, i32, i32) {
    %c0_i32 = arith.constant 0 : i32
    %c0_i32_0 = arith.constant 0 : i32
    %c0_i32_1 = arith.constant 0 : i32
    %c0_i32_2 = arith.constant 0 : i32
    return %c0_i32, %c0_i32_0, %c0_i32_1 : i32, i32, i32
  }
  func.func @transform_13(%arg0: i32) -> (i32, i32) {
    %c0_i32 = arith.constant 0 : i32
    %c0_i32_0 = arith.constant 0 : i32
    %c0_i32_1 = arith.constant 0 : i32
    return %c0_i32, %c0_i32_0 : i32, i32
  }
  func.func @transform_14(%arg0: i32) -> (i32, i32) {
    %c0_i32 = arith.constant 0 : i32
    %c0_i32_0 = arith.constant 0 : i32
    %c0_i32_1 = arith.constant 0 : i32
    return %c0_i32, %c0_i32_0 : i32, i32
  }
  func.func @transform_15(%arg0: i32) -> (i32, i32) {
    %c0_i32 = arith.constant 0 : i32
    %c0_i32_0 = arith.constant 0 : i32
    %c0_i32_1 = arith.constant 0 : i32
    return %c0_i32, %c0_i32_0 : i32, i32
  }
  func.func @transform_16(%arg0: i32) -> (i32, i32, i32, i32) {
    %c0_i32 = arith.constant 0 : i32
    %c0_i32_0 = arith.constant 0 : i32
    %c0_i32_1 = arith.constant 0 : i32
    %c0_i32_2 = arith.constant 0 : i32
    return %arg0, %c0_i32, %c0_i32_0, %c0_i32_1 : i32, i32, i32, i32
  }
}

</mosaic_0001>

<llo_original>
// kernel: tpu_custom_call.1
$region0: #{tpu_custom_call.1}
  #allocation0 [shape = 'u32[]', space=smem, size = 0x4, offset = 0x4, fixed_abs, tag = 'smem constant byte address 0x4 - core index']
  #allocation1 [shape = 'u32[144,128]{1,0:T(1,128)}', space=vmem, size = 0x12000, scoped, tag = 'internal scratch']
  #allocation2 [shape = 'f32[184,64]{1,0:T(8,128)}', space=vmem, size = 0x17000, scoped, tag = 'scratch operand']
  %s0 = inlined_call_operand.hbm [shape: f32[2,8,16,32], index: 0, kind: input, shape index: {}]
  %s1 = inlined_call_operand.vmem [shape: f32[128,1], index: 1, kind: input, shape index: {}]
  %s2 = inlined_call_operand.vmem [shape: f32[32,32], index: 2, kind: input, shape index: {}]
  %s3 = inlined_call_operand.vmem [shape: f32[32,32], index: 3, kind: input, shape index: {}]
  %s4 = inlined_call_operand.vmem [shape: f32[1,32], index: 4, kind: input, shape index: {}]
  %s5 = inlined_call_operand.vmem [shape: f32[1,32], index: 5, kind: input, shape index: {}]
  %s6 = inlined_call_operand.hbm [shape: f32[9,32,64], index: 6, kind: input, shape index: {}]
  %s7 = inlined_call_operand.vmem [shape: f32[1,64], index: 7, kind: input, shape index: {}]
  %s8 = inlined_call_operand.vmem [shape: f32[64,32], index: 8, kind: input, shape index: {}]
  %s9 = inlined_call_operand.vmem [shape: f32[32,64], index: 9, kind: input, shape index: {}]
  %s10 = inlined_call_operand.vmem [shape: f32[1,64], index: 10, kind: input, shape index: {}]
  %s11 = inlined_call_operand.vmem [shape: f32[1,64], index: 11, kind: input, shape index: {}]
  %s12 = inlined_call_operand.hbm [shape: f32[9,64,64], index: 12, kind: input, shape index: {}]
  %s13 = inlined_call_operand.vmem [shape: f32[1,64], index: 13, kind: input, shape index: {}]
  %s14 = inlined_call_operand.vmem [shape: f32[32,64], index: 14, kind: input, shape index: {}]
  %s15 = inlined_call_operand.vmem [shape: f32[1,64], index: 15, kind: input, shape index: {}]
  %s16 = inlined_call_operand.hbm [shape: f32[2,8,16,64], index: 16, kind: output, shape index: {}]
  %s17 = sld [smem:[#allocation0]]
  $region109: #{tpu_custom_call.1} parent=0
    _
  %s19 = ssub.s32 1, %s17
  %s20 = scalar_select 0, %s19, %s17
  $region1: #{tpu_custom_call.1} parent=0
    #allocation3 [shape = 'u8[131072]{0}', space=vmem, size = 0x20000, scoped, tag = 'input window, operand 0']
    #allocation4 [shape = 's32[2]{0}', space=sflag, size = 0x8, scoped, tag = 'scoped memory for tpu_custom_call.1']
    #allocation5 [shape = 's32[2]{0}', space=sflag, size = 0x8, scoped, tag = 'scoped memory for tpu_custom_call.1']
    #allocation6 [shape = 'u8[147456]{0}', space=vmem, size = 0x24000, scoped, tag = 'input window, operand 6, single buffered']
    #allocation7 [shape = 's32[1]{0}', space=sflag, size = 0x4, scoped, tag = 'scoped memory for tpu_custom_call.1']
    #allocation8 [shape = 'u8[294912]{0}', space=vmem, size = 0x48000, scoped, tag = 'input window, operand 12, single buffered']
    #allocation9 [shape = 'u8[131072]{0}', space=vmem, size = 0x20000, scoped, tag = 'output window, operand 0']
    %21 = vsyncpa [#allocation4], 0
    %s22 = scalar_lea.sflag [#allocation4], 1
    %23 = vsyncpa %s22, 0
    %24 = vsyncpa [#allocation7], 0
    %25 = vsyncpa [#allocation5], 0
    %s26 = scalar_lea.sflag [#allocation5], 1
    %27 = vsyncpa %s26, 0
    loop: start=0, step=1, limit=4
    $region2: #{tpu_custom_call.1} parent=1 // loop_pre_header
      _
    $region3: #{tpu_custom_call.1} parent=1 // loop_header
      %s29 = sphi 0, %s33
      %p30 = scmp.ge.s32.totalorder %s29, 4
      %s39 = sphi 0, %s41
      %s42 = sphi 0, %s39
      %s43 = sphi 0, %s42
      %s59 = sphi 0, %s43
      %s63 = sphi 0, %s63
      %s65 = sphi 0, %s63
      %s66 = sphi 0, %s65
      %s80 = sphi 0, %s66
      %s84 = sphi 0, %s84
      %s86 = sphi 0, %s84
      %s87 = sphi 0, %s86
      %s101 = sphi 0, %s87
      %s105 = sphi 0, %s105
      %s107 = sphi 0, %s105
      %s108 = sphi 0, %s107
      %s122 = sphi 0, %s108
      %s126 = sphi 0, %s126
      %s128 = sphi 0, %s126
      %s129 = sphi 0, %s128
      %s143 = sphi 0, %s129
      %s147 = sphi 0, %s147
      %s149 = sphi 0, %s147
      %s150 = sphi 0, %s149
      %s164 = sphi 0, %s150
      %s168 = sphi 0, %s168
      %s170 = sphi 0, %s168
      %s171 = sphi 0, %s170
      %s185 = sphi 0, %s171
      %s189 = sphi 0, %s189
      %s191 = sphi 0, %s189
      %s192 = sphi 0, %s191
      %s206 = sphi 0, %s192
      %s210 = sphi 0, %s210
      %s212 = sphi 0, %s210
      %s213 = sphi 0, %s212
      %s227 = sphi 0, %s213
      %s231 = sphi 0, %s231
      %s233 = sphi 0, %s231
      %s234 = sphi 0, %s233
      %s248 = sphi 0, %s234
      %s252 = sphi 0, %s252
      %s254 = sphi 0, %s252
      %s255 = sphi 0, %s254
      %s269 = sphi 0, %s255
      %s273 = sphi 0, %s273
      %s275 = sphi 0, %s273
      %s276 = sphi 0, %s275
      %s290 = sphi 0, %s276
      %s294 = sphi 0, %s294
      %s296 = sphi 0, %s294
      %s297 = sphi 0, %s296
      %s311 = sphi 0, %s297
      %s315 = sphi 0, %s315
      %s317 = sphi 0, %s315
      %s318 = sphi 0, %s317
      %s332 = sphi 0, %s318
      %s336 = sphi 0, %s336
      %s338 = sphi 0, %s336
      %s339 = sphi 0, %s338
      %s353 = sphi 0, %s339
      %s357 = sphi 0, %s357
      %s359 = sphi 0, %s357
      %s360 = sphi 0, %s359
      %s374 = sphi 0, %s360
      %s380 = sphi 0, %s382
      %s383 = sphi 0, %s380
      %s384 = sphi 0, %s383
      %s400 = sphi 0, %s384
    $region4: #{tpu_custom_call.1} parent=1 // loop_header_branch
      %32 = sbr.rel (%p30) target = $region8
    $region5: #{tpu_custom_call.1} parent=1 // loop_body
      %s34 = ssub.s32 %s29, 1
      %s35 = ssub.s32 %s29, 2
      %s36 = sadd.s32 %s29, 1
      %s37 = ssub.s32 %s29, %s36
      %p38 = scmp.eq.s32.totalorder %s37, 0
      %s40 = sadd.s32 %s39, 1
      %s41 = scalar_select %p38, %s39, %s40
      %p44 = pneg %p38
      %p45 = scmp.eq.s32.totalorder %s29, 1
      %p46 = por %p44, %p45
      %p47 = scmp.ne.s32.totalorder %s39, %s42
      %p48 = scmp.eq.s32.totalorder %s29, 0
      %p49 = por %p47, %p48
      %p50 = scmp.ne.s32.totalorder %s39, %s42
      %p51 = scmp.eq.s32.totalorder %s34, 1
      %p52 = por %p50, %p51
      %p53 = scmp.ne.s32.totalorder %s42, %s43
      %p54 = scmp.eq.s32.totalorder %s34, 0
      %p55 = por %p53, %p54
      %p56 = scmp.ne.s32.totalorder %s42, %s43
      %p57 = scmp.eq.s32.totalorder %s35, 1
      %p58 = por %p56, %p57
      %p60 = scmp.ne.s32.totalorder %s43, %s59
      %p61 = scmp.eq.s32.totalorder %s35, 0
      %p62 = por %p60, %p61
      %s64 = sadd.s32 %s63, 1
      %p67 = scmp.eq.s32.totalorder %s29, 1
      %p68 = scmp.ne.s32.totalorder %s63, %s65
      %p69 = scmp.eq.s32.totalorder %s29, 0
      %p70 = por %p68, %p69
      %p71 = scmp.ne.s32.totalorder %s63, %s65
      %p72 = scmp.eq.s32.totalorder %s34, 1
      %p73 = por %p71, %p72
      %p74 = scmp.ne.s32.totalorder %s65, %s66
      %p75 = scmp.eq.s32.totalorder %s34, 0
      %p76 = por %p74, %p75
      %p77 = scmp.ne.s32.totalorder %s65, %s66
      %p78 = scmp.eq.s32.totalorder %s35, 1
      %p79 = por %p77, %p78
      %p81 = scmp.ne.s32.totalorder %s66, %s80
      %p82 = scmp.eq.s32.totalorder %s35, 0
      %p83 = por %p81, %p82
      %s85 = sadd.s32 %s84, 1
      %p88 = scmp.eq.s32.totalorder %s29, 1
      %p89 = scmp.ne.s32.totalorder %s84, %s86
      %p90 = scmp.eq.s32.totalorder %s29, 0
      %p91 = por %p89, %p90
      %p92 = scmp.ne.s32.totalorder %s84, %s86
      %p93 = scmp.eq.s32.totalorder %s34, 1
      %p94 = por %p92, %p93
      %p95 = scmp.ne.s32.totalorder %s86, %s87
      %p96 = scmp.eq.s32.totalorder %s34, 0
      %p97 = por %p95, %p96
      %p98 = scmp.ne.s32.totalorder %s86, %s87
      %p99 = scmp.eq.s32.totalorder %s35, 1
      %p100 = por %p98, %p99
      %p102 = scmp.ne.s32.totalorder %s87, %s101
      %p103 = scmp.eq.s32.totalorder %s35, 0
      %p104 = por %p102, %p103
      %s106 = sadd.s32 %s105, 1
      %p109 = scmp.eq.s32.totalorder %s29, 1
      %p110 = scmp.ne.s32.totalorder %s105, %s107
      %p111 = scmp.eq.s32.totalorder %s29, 0
      %p112 = por %p110, %p111
      %p113 = scmp.ne.s32.totalorder %s105, %s107
      %p114 = scmp.eq.s32.totalorder %s34, 1
      %p115 = por %p113, %p114
      %p116 = scmp.ne.s32.totalorder %s107, %s108
      %p117 = scmp.eq.s32.totalorder %s34, 0
      %p118 = por %p116, %p117
      %p119 = scmp.ne.s32.totalorder %s107, %s108
      %p120 = scmp.eq.s32.totalorder %s35, 1
      %p121 = por %p119, %p120
      %p123 = scmp.ne.s32.totalorder %s108, %s122
      %p124 = scmp.eq.s32.totalorder %s35, 0
      %p125 = por %p123, %p124
      %s127 = sadd.s32 %s126, 1
      %p130 = scmp.eq.s32.totalorder %s29, 1
      %p131 = scmp.ne.s32.totalorder %s126, %s128
      %p132 = scmp.eq.s32.totalorder %s29, 0
      %p133 = por %p131, %p132
      %p134 = scmp.ne.s32.totalorder %s126, %s128
      %p135 = scmp.eq.s32.totalorder %s34, 1
      %p136 = por %p134, %p135
      %p137 = scmp.ne.s32.totalorder %s128, %s129
      %p138 = scmp.eq.s32.totalorder %s34, 0
      %p139 = por %p137, %p138
      %p140 = scmp.ne.s32.totalorder %s128, %s129
      %p141 = scmp.eq.s32.totalorder %s35, 1
      %p142 = por %p140, %p141
      %p144 = scmp.ne.s32.totalorder %s129, %s143
      %p145 = scmp.eq.s32.totalorder %s35, 0
      %p146 = por %p144, %p145
      %s148 = sadd.s32 %s147, 1
      %p151 = scmp.eq.s32.totalorder %s29, 1
      %p152 = scmp.ne.s32.totalorder %s147, %s149
      %p153 = scmp.eq.s32.totalorder %s29, 0
      %p154 = por %p152, %p153
      %p155 = scmp.ne.s32.totalorder %s147, %s149
      %p156 = scmp.eq.s32.totalorder %s34, 1
      %p157 = por %p155, %p156
      %p158 = scmp.ne.s32.totalorder %s149, %s150
      %p159 = scmp.eq.s32.totalorder %s34, 0
      %p160 = por %p158, %p159
      %p161 = scmp.ne.s32.totalorder %s149, %s150
      %p162 = scmp.eq.s32.totalorder %s35, 1
      %p163 = por %p161, %p162
      %p165 = scmp.ne.s32.totalorder %s150, %s164
      %p166 = scmp.eq.s32.totalorder %s35, 0
      %p167 = por %p165, %p166
      %s169 = sadd.s32 %s168, 1
      %p172 = scmp.eq.s32.totalorder %s29, 1
      %p173 = scmp.ne.s32.totalorder %s168, %s170
      %p174 = scmp.eq.s32.totalorder %s29, 0
      %p175 = por %p173, %p174
      %p176 = scmp.ne.s32.totalorder %s168, %s170
      %p177 = scmp.eq.s32.totalorder %s34, 1
      %p178 = por %p176, %p177
      %p179 = scmp.ne.s32.totalorder %s170, %s171
      %p180 = scmp.eq.s32.totalorder %s34, 0
      %p181 = por %p179, %p180
      %p182 = scmp.ne.s32.totalorder %s170, %s171
      %p183 = scmp.eq.s32.totalorder %s35, 1
      %p184 = por %p182, %p183
      %p186 = scmp.ne.s32.totalorder %s171, %s185
      %p187 = scmp.eq.s32.totalorder %s35, 0
      %p188 = por %p186, %p187
      %s190 = sadd.s32 %s189, 1
      %p193 = scmp.eq.s32.totalorder %s29, 1
      %p194 = scmp.ne.s32.totalorder %s189, %s191
      %p195 = scmp.eq.s32.totalorder %s29, 0
      %p196 = por %p194, %p195
      %p197 = scmp.ne.s32.totalorder %s189, %s191
      %p198 = scmp.eq.s32.totalorder %s34, 1
      %p199 = por %p197, %p198
      %p200 = scmp.ne.s32.totalorder %s191, %s192
      %p201 = scmp.eq.s32.totalorder %s34, 0
      %p202 = por %p200, %p201
      %p203 = scmp.ne.s32.totalorder %s191, %s192
      %p204 = scmp.eq.s32.totalorder %s35, 1
      %p205 = por %p203, %p204
      %p207 = scmp.ne.s32.totalorder %s192, %s206
      %p208 = scmp.eq.s32.totalorder %s35, 0
      %p209 = por %p207, %p208
      %s211 = sadd.s32 %s210, 1
      %p214 = scmp.eq.s32.totalorder %s29, 1
      %p215 = scmp.ne.s32.totalorder %s210, %s212
      %p216 = scmp.eq.s32.totalorder %s29, 0
      %p217 = por %p215, %p216
      %p218 = scmp.ne.s32.totalorder %s210, %s212
      %p219 = scmp.eq.s32.totalorder %s34, 1
      %p220 = por %p218, %p219
      %p221 = scmp.ne.s32.totalorder %s212, %s213
      %p222 = scmp.eq.s32.totalorder %s34, 0
      %p223 = por %p221, %p222
      %p224 = scmp.ne.s32.totalorder %s212, %s213
      %p225 = scmp.eq.s32.totalorder %s35, 1
      %p226 = por %p224, %p225
      %p228 = scmp.ne.s32.totalorder %s213, %s227
      %p229 = scmp.eq.s32.totalorder %s35, 0
      %p230 = por %p228, %p229
      %s232 = sadd.s32 %s231, 1
      %p235 = scmp.eq.s32.totalorder %s29, 1
      %p236 = scmp.ne.s32.totalorder %s231, %s233
      %p237 = scmp.eq.s32.totalorder %s29, 0
      %p238 = por %p236, %p237
      %p239 = scmp.ne.s32.totalorder %s231, %s233
      %p240 = scmp.eq.s32.totalorder %s34, 1
      %p241 = por %p239, %p240
      %p242 = scmp.ne.s32.totalorder %s233, %s234
      %p243 = scmp.eq.s32.totalorder %s34, 0
      %p244 = por %p242, %p243
      %p245 = scmp.ne.s32.totalorder %s233, %s234
      %p246 = scmp.eq.s32.totalorder %s35, 1
      %p247 = por %p245, %p246
      %p249 = scmp.ne.s32.totalorder %s234, %s248
      %p250 = scmp.eq.s32.totalorder %s35, 0
      %p251 = por %p249, %p250
      %s253 = sadd.s32 %s252, 1
      %p256 = scmp.eq.s32.totalorder %s29, 1
      %p257 = scmp.ne.s32.totalorder %s252, %s254
      %p258 = scmp.eq.s32.totalorder %s29, 0
      %p259 = por %p257, %p258
      %p260 = scmp.ne.s32.totalorder %s252, %s254
      %p261 = scmp.eq.s32.totalorder %s34, 1
      %p262 = por %p260, %p261
      %p263 = scmp.ne.s32.totalorder %s254, %s255
      %p264 = scmp.eq.s32.totalorder %s34, 0
      %p265 = por %p263, %p264
      %p266 = scmp.ne.s32.totalorder %s254, %s255
      %p267 = scmp.eq.s32.totalorder %s35, 1
      %p268 = por %p266, %p267
      %p270 = scmp.ne.s32.totalorder %s255, %s269
      %p271 = scmp.eq.s32.totalorder %s35, 0
      %p272 = por %p270, %p271
      %s274 = sadd.s32 %s273, 1
      %p277 = scmp.eq.s32.totalorder %s29, 1
      %p278 = scmp.ne.s32.totalorder %s273, %s275
      %p279 = scmp.eq.s32.totalorder %s29, 0
      %p280 = por %p278, %p279
      %p281 = scmp.ne.s32.totalorder %s273, %s275
      %p282 = scmp.eq.s32.totalorder %s34, 1
      %p283 = por %p281, %p282
      %p284 = scmp.ne.s32.totalorder %s275, %s276
      %p285 = scmp.eq.s32.totalorder %s34, 0
      %p286 = por %p284, %p285
      %p287 = scmp.ne.s32.totalorder %s275, %s276
      %p288 = scmp.eq.s32.totalorder %s35, 1
      %p289 = por %p287, %p288
      %p291 = scmp.ne.s32.totalorder %s276, %s290
      %p292 = scmp.eq.s32.totalorder %s35, 0
      %p293 = por %p291, %p292
      %s295 = sadd.s32 %s294, 1
      %p298 = scmp.eq.s32.totalorder %s29, 1
      %p299 = scmp.ne.s32.totalorder %s294, %s296
      %p300 = scmp.eq.s32.totalorder %s29, 0
      %p301 = por %p299, %p300
      %p302 = scmp.ne.s32.totalorder %s294, %s296
      %p303 = scmp.eq.s32.totalorder %s34, 1
      %p304 = por %p302, %p303
      %p305 = scmp.ne.s32.totalorder %s296, %s297
      %p306 = scmp.eq.s32.totalorder %s34, 0
      %p307 = por %p305, %p306
      %p308 = scmp.ne.s32.totalorder %s296, %s297
      %p309 = scmp.eq.s32.totalorder %s35, 1
      %p310 = por %p308, %p309
      %p312 = scmp.ne.s32.totalorder %s297, %s311
      %p313 = scmp.eq.s32.totalorder %s35, 0
      %p314 = por %p312, %p313
      %s316 = sadd.s32 %s315, 1
      %p319 = scmp.eq.s32.totalorder %s29, 1
      %p320 = scmp.ne.s32.totalorder %s315, %s317
      %p321 = scmp.eq.s32.totalorder %s29, 0
      %p322 = por %p320, %p321
      %p323 = scmp.ne.s32.totalorder %s315, %s317
      %p324 = scmp.eq.s32.totalorder %s34, 1
      %p325 = por %p323, %p324
      %p326 = scmp.ne.s32.totalorder %s317, %s318
      %p327 = scmp.eq.s32.totalorder %s34, 0
      %p328 = por %p326, %p327
      %p329 = scmp.ne.s32.totalorder %s317, %s318
      %p330 = scmp.eq.s32.totalorder %s35, 1
      %p331 = por %p329, %p330
      %p333 = scmp.ne.s32.totalorder %s318, %s332
      %p334 = scmp.eq.s32.totalorder %s35, 0
      %p335 = por %p333, %p334
      %s337 = sadd.s32 %s336, 1
      %p340 = scmp.eq.s32.totalorder %s29, 1
      %p341 = scmp.ne.s32.totalorder %s336, %s338
      %p342 = scmp.eq.s32.totalorder %s29, 0
      %p343 = por %p341, %p342
      %p344 = scmp.ne.s32.totalorder %s336, %s338
      %p345 = scmp.eq.s32.totalorder %s34, 1
      %p346 = por %p344, %p345
      %p347 = scmp.ne.s32.totalorder %s338, %s339
      %p348 = scmp.eq.s32.totalorder %s34, 0
      %p349 = por %p347, %p348
      %p350 = scmp.ne.s32.totalorder %s338, %s339
      %p351 = scmp.eq.s32.totalorder %s35, 1
      %p352 = por %p350, %p351
      %p354 = scmp.ne.s32.totalorder %s339, %s353
      %p355 = scmp.eq.s32.totalorder %s35, 0
      %p356 = por %p354, %p355
      %s358 = sadd.s32 %s357, 1
      %p361 = scmp.eq.s32.totalorder %s29, 1
      %p362 = scmp.ne.s32.totalorder %s357, %s359
      %p363 = scmp.eq.s32.totalorder %s29, 0
      %p364 = por %p362, %p363
      %p365 = scmp.ne.s32.totalorder %s357, %s359
      %p366 = scmp.eq.s32.totalorder %s34, 1
      %p367 = por %p365, %p366
      %p368 = scmp.ne.s32.totalorder %s359, %s360
      %p369 = scmp.eq.s32.totalorder %s34, 0
      %p370 = por %p368, %p369
      %p371 = scmp.ne.s32.totalorder %s359, %s360
      %p372 = scmp.eq.s32.totalorder %s35, 1
      %p373 = por %p371, %p372
      %p375 = scmp.ne.s32.totalorder %s360, %s374
      %p376 = scmp.eq.s32.totalorder %s35, 0
      %p377 = por %p375, %p376
      %s378 = ssub.s32 %s29, %s36
      %p379 = scmp.eq.s32.totalorder %s378, 0
      %s381 = sadd.s32 %s380, 1
      %s382 = scalar_select %p379, %s380, %s381
      %p385 = pneg %p379
      %p386 = scmp.eq.s32.totalorder %s29, 1
      %p387 = por %p385, %p386
      %p388 = scmp.ne.s32.totalorder %s380, %s383
      %p389 = scmp.eq.s32.totalorder %s29, 0
      %p390 = por %p388, %p389
      %p391 = scmp.ne.s32.totalorder %s380, %s383
      %p392 = scmp.eq.s32.totalorder %s34, 1
      %p393 = por %p391, %p392
      %p394 = scmp.ne.s32.totalorder %s383, %s384
      %p395 = scmp.eq.s32.totalorder %s34, 0
      %p396 = por %p394, %p395
      %p397 = scmp.ne.s32.totalorder %s383, %s384
      %p398 = scmp.eq.s32.totalorder %s35, 1
      %p399 = por %p397, %p398
      %p401 = scmp.ne.s32.totalorder %s384, %s400
      %p402 = scmp.eq.s32.totalorder %s35, 0
      %p403 = por %p401, %p402
      %p404 = scmp.le.s32.totalorder 1, %s29
      %p405 = scmp.lt.s32.totalorder %s29, 3
      %p406 = pnand %p404, %p405
      %p407 = pneg %p406
      // Predicated region
      $region9: #{tpu_custom_call.1} parent=5 // pred_check
        _
      $region10: #{tpu_custom_call.1} parent=5 // pred_check_branch
        %409 = sbr.rel (%p406) target = $region12
      $region11: #{tpu_custom_call.1} parent=5 // pred_region
        %s410 = ssub.s32 %s29, 1
        // Predicated region
        $region13: #{tpu_custom_call.1} parent=11 // pred_check
          %p411 = pneg %p76
        $region14: #{tpu_custom_call.1} parent=11 // pred_check_branch
          %413 = sbr.rel (%p411) target = $region16
        $region15: #{tpu_custom_call.1} parent=11 // pred_region
          _
        $region16: #{tpu_custom_call.1} parent=11 // pred_fallthru
          _
        // Predicated region
        $region17: #{tpu_custom_call.1} parent=11 // pred_check
          %p414 = pneg %p97
        $region18: #{tpu_custom_call.1} parent=11 // pred_check_branch
          %416 = sbr.rel (%p414) target = $region20
        $region19: #{tpu_custom_call.1} parent=11 // pred_region
          _
        $region20: #{tpu_custom_call.1} parent=11 // pred_fallthru
          _
        // Predicated region
        $region21: #{tpu_custom_call.1} parent=11 // pred_check
          %p417 = pneg %p118
        $region22: #{tpu_custom_call.1} parent=11 // pred_check_branch
          %419 = sbr.rel (%p417) target = $region24
        $region23: #{tpu_custom_call.1} parent=11 // pred_region
          _
        $region24: #{tpu_custom_call.1} parent=11 // pred_fallthru
          _
        // Predicated region
        $region25: #{tpu_custom_call.1} parent=11 // pred_check
          %p420 = pneg %p139
        $region26: #{tpu_custom_call.1} parent=11 // pred_check_branch
          %422 = sbr.rel (%p420) target = $region28
        $region27: #{tpu_custom_call.1} parent=11 // pred_region
          _
        $region28: #{tpu_custom_call.1} parent=11 // pred_fallthru
          _
        // Predicated region
        $region29: #{tpu_custom_call.1} parent=11 // pred_check
          %p423 = pneg %p160
        $region30: #{tpu_custom_call.1} parent=11 // pred_check_branch
          %425 = sbr.rel (%p423) target = $region32
        $region31: #{tpu_custom_call.1} parent=11 // pred_region
          _
        $region32: #{tpu_custom_call.1} parent=11 // pred_fallthru
          _
        // Predicated region
        $region33: #{tpu_custom_call.1} parent=11 // pred_check
          %p426 = pneg %p181
        $region34: #{tpu_custom_call.1} parent=11 // pred_check_branch
          %428 = sbr.rel (%p426) target = $region36
        $region35: #{tpu_custom_call.1} parent=11 // pred_region
          %s430 = ssub.s32 4608, 4608
          %431 = vsyncadd [#allocation7], %s430
          %s432 = sshll.u32 [#allocation6], 4
          %s433 = int_to_ptr.vmem [resolvable:$true] %s432
          %438 = dma.hbm_to_vmem [thread:$0]  %s6, 4608, %s433, [#allocation7], 128, 128, 8
        $region36: #{tpu_custom_call.1} parent=11 // pred_fallthru
          _
        // Predicated region
        $region37: #{tpu_custom_call.1} parent=11 // pred_check
          %p439 = pneg %p202
        $region38: #{tpu_custom_call.1} parent=11 // pred_check_branch
          %441 = sbr.rel (%p439) target = $region40
        $region39: #{tpu_custom_call.1} parent=11 // pred_region
          _
        $region40: #{tpu_custom_call.1} parent=11 // pred_fallthru
          _
        // Predicated region
        $region41: #{tpu_custom_call.1} parent=11 // pred_check
          %p442 = pneg %p223
        $region42: #{tpu_custom_call.1} parent=11 // pred_check_branch
          %444 = sbr.rel (%p442) target = $region44
        $region43: #{tpu_custom_call.1} parent=11 // pred_region
          _
        $region44: #{tpu_custom_call.1} parent=11 // pred_fallthru
          _
        // Predicated region
        $region45: #{tpu_custom_call.1} parent=11 // pred_check
          %p445 = pneg %p244
        $region46: #{tpu_custom_call.1} parent=11 // pred_check_branch
          %447 = sbr.rel (%p445) target = $region48
        $region47: #{tpu_custom_call.1} parent=11 // pred_region
          _
        $region48: #{tpu_custom_call.1} parent=11 // pred_fallthru
          _
        // Predicated region
        $region49: #{tpu_custom_call.1} parent=11 // pred_check
          %p448 = pneg %p265
        $region50: #{tpu_custom_call.1} parent=11 // pred_check_branch
          %450 = sbr.rel (%p448) target = $region52
        $region51: #{tpu_custom_call.1} parent=11 // pred_region
          _
        $region52: #{tpu_custom_call.1} parent=11 // pred_fallthru
          _
        // Predicated region
        $region53: #{tpu_custom_call.1} parent=11 // pred_check
          %p451 = pneg %p286
        $region54: #{tpu_custom_call.1} parent=11 // pred_check_branch
          %453 = sbr.rel (%p451) target = $region56
        $region55: #{tpu_custom_call.1} parent=11 // pred_region
          _
        $region56: #{tpu_custom_call.1} parent=11 // pred_fallthru
          _
        // Predicated region
        $region57: #{tpu_custom_call.1} parent=11 // pred_check
          %p454 = pneg %p307
        $region58: #{tpu_custom_call.1} parent=11 // pred_check_branch
          %456 = sbr.rel (%p454) target = $region60
        $region59: #{tpu_custom_call.1} parent=11 // pred_region
          %s458 = ssub.s32 9216, 9216
          %459 = vsyncadd [#allocation7], %s458
          %s460 = sshll.u32 [#allocation8], 4
          %s461 = int_to_ptr.vmem [resolvable:$true] %s460
          %466 = dma.hbm_to_vmem [thread:$0]  %s12, 9216, %s461, [#allocation7], 128, 128, 8
        $region60: #{tpu_custom_call.1} parent=11 // pred_fallthru
          _
        // Predicated region
        $region61: #{tpu_custom_call.1} parent=11 // pred_check
          %p467 = pneg %p328
        $region62: #{tpu_custom_call.1} parent=11 // pred_check_branch
          %469 = sbr.rel (%p467) target = $region64
        $region63: #{tpu_custom_call.1} parent=11 // pred_region
          _
        $region64: #{tpu_custom_call.1} parent=11 // pred_fallthru
          _
        // Predicated region
        $region65: #{tpu_custom_call.1} parent=11 // pred_check
          %p470 = pneg %p349
        $region66: #{tpu_custom_call.1} parent=11 // pred_check_branch
          %472 = sbr.rel (%p470) target = $region68
        $region67: #{tpu_custom_call.1} parent=11 // pred_region
          _
        $region68: #{tpu_custom_call.1} parent=11 // pred_fallthru
          _
        // Predicated region
        $region69: #{tpu_custom_call.1} parent=11 // pred_check
          %p473 = pneg %p370
        $region70: #{tpu_custom_call.1} parent=11 // pred_check_branch
          %475 = sbr.rel (%p473) target = $region72
        $region71: #{tpu_custom_call.1} parent=11 // pred_region
          _
        $region72: #{tpu_custom_call.1} parent=11 // pred_fallthru
          _
      $region12: #{tpu_custom_call.1} parent=5 // pred_fallthru
        _
      %p476 = scmp.lt.s32.totalorder %s29, 2
      // Predicated region
      $region73: #{tpu_custom_call.1} parent=5 // pred_check
        %p477 = pneg %p476
      $region74: #{tpu_custom_call.1} parent=5 // pred_check_branch
        %479 = sbr.rel (%p477) target = $region76
      $region75: #{tpu_custom_call.1} parent=5 // pred_region
        // Predicated region
        $region77: #{tpu_custom_call.1} parent=75 // pred_check
          %p480 = pneg %p49
        $region78: #{tpu_custom_call.1} parent=75 // pred_check_branch
          %482 = sbr.rel (%p480) target = $region80
        $region79: #{tpu_custom_call.1} parent=75 // pred_region
          %s483 = sand.u32 %s39, 1
          %s484 = scalar_lea.sflag [#allocation4], %s483
          %s485 = sand.u32 %s39, 1
          %s486 = smul.addr %s485, 128
          %s487 = scalar_lea.vmem [#allocation3], %s486
          %s489 = ssub.s32 2048, 2048
          %490 = vsyncadd %s484, %s489
          %s491 = smul.addr %s29, 16
          %s492 = smul.addr %s491, 128
          %s493 = scalar_lea.hbm %s0, %s492
          %s494 = sshll.u32 %s487, 4
          %s495 = int_to_ptr.vmem [resolvable:$true] %s494
          %500 = dma.hbm_to_vmem [thread:$0]  %s493, 2048, %s495, %s484, 128, 128, 8
        $region80: #{tpu_custom_call.1} parent=75 // pred_fallthru
          _
      $region76: #{tpu_custom_call.1} parent=5 // pred_fallthru
        _
      %p501 = scmp.le.s32.totalorder 1, %s29
      %p502 = scmp.lt.s32.totalorder %s29, 3
      %p503 = pnand %p501, %p502
      %p504 = pneg %p503
      // Predicated region
      $region81: #{tpu_custom_call.1} parent=5 // pred_check
        _
      $region82: #{tpu_custom_call.1} parent=5 // pred_check_branch
        %506 = sbr.rel (%p503) target = $region84
      $region83: #{tpu_custom_call.1} parent=5 // pred_region
        %s507 = ssub.s32 %s29, 1
        %s508 = sand.u32 %s42, 1
        %s509 = scalar_lea.sflag [#allocation4], %s508
        %s510 = sand.u32 %s42, 1
        %s511 = smul.addr %s510, 128
        %s512 = scalar_lea.vmem [#allocation3], %s511
        // Predicated region
        $region85: #{tpu_custom_call.1} parent=83 // pred_check
          %p513 = pneg %p55
        $region86: #{tpu_custom_call.1} parent=83 // pred_check_branch
          %515 = sbr.rel (%p513) target = $region88
        $region87: #{tpu_custom_call.1} parent=83 // pred_region
          %516 = dma.done %s509, 2048
        $region88: #{tpu_custom_call.1} parent=83 // pred_fallthru
          _
        // Predicated region
        $region89: #{tpu_custom_call.1} parent=83 // pred_check
          %p517 = pneg %p181
        $region90: #{tpu_custom_call.1} parent=83 // pred_check_branch
          %519 = sbr.rel (%p517) target = $region92
        $region91: #{tpu_custom_call.1} parent=83 // pred_region
          %520 = dma.done [#allocation7], 4608
        $region92: #{tpu_custom_call.1} parent=83 // pred_fallthru
          _
        // Predicated region
        $region93: #{tpu_custom_call.1} parent=83 // pred_check
          %p521 = pneg %p307
        $region94: #{tpu_custom_call.1} parent=83 // pred_check_branch
          %523 = sbr.rel (%p521) target = $region96
        $region95: #{tpu_custom_call.1} parent=83 // pred_region
          %524 = dma.done [#allocation7], 9216
        $region96: #{tpu_custom_call.1} parent=83 // pred_fallthru
          _
        %s525 = sand.u32 %s42, 1
        %s526 = scalar_lea.sflag [#allocation4], %s525
        %s527 = sand.u32 %s42, 1
        %s528 = smul.addr %s527, 128
        %s529 = scalar_lea.vmem [#allocation3], %s528
        %p530 = pneg %p55
        %p531 = pneg %p52
        %p532 = pneg %p76
        %p533 = pneg %p73
        %p534 = pneg %p97
        %p535 = pneg %p94
        %p536 = pneg %p118
        %p537 = pneg %p115
        %p538 = pneg %p139
        %p539 = pneg %p136
        %p540 = pneg %p160
        %p541 = pneg %p157
        %p542 = pneg %p181
        %p543 = pneg %p178
        %p544 = pneg %p202
        %p545 = pneg %p199
        %p546 = pneg %p223
        %p547 = pneg %p220
        %p548 = pneg %p244
        %p549 = pneg %p241
        %p550 = pneg %p265
        %p551 = pneg %p262
        %p552 = pneg %p286
        %p553 = pneg %p283
        %p554 = pneg %p307
        %p555 = pneg %p304
        %p556 = pneg %p328
        %p557 = pneg %p325
        %p558 = pneg %p349
        %p559 = pneg %p346
        %p560 = pneg %p370
        %p561 = pneg %p367
        %p562 = pneg %p396
        %p563 = pneg %p393
        %s564 = sand.u32 %s383, 1
        %s565 = scalar_lea.sflag [#allocation5], %s564
        %s566 = sand.u32 %s383, 1
        %s567 = smul.addr %s566, 128
        %s568 = scalar_lea.vmem [#allocation9], %s567
        %v569 = vld [vmem:[%s1] sm:$0xff]
        %v570 = vld [vmem:[%s1 + $0x8] sm:$0xff]
        %v571 = vld [vmem:[%s1 + $0x10] sm:$0xff]
        %v572 = vld [vmem:[%s1 + $0x18] sm:$0xff]
        %v573 = vld [vmem:[%s1 + $0x20] sm:$0xff]
        %v574 = vld [vmem:[%s1 + $0x28] sm:$0xff]
        %v575 = vld [vmem:[%s1 + $0x30] sm:$0xff]
        %v576 = vld [vmem:[%s1 + $0x38] sm:$0xff]
        %v577 = vld [vmem:[%s1 + $0x40] sm:$0xff]
        %v578 = vld [vmem:[%s1 + $0x48] sm:$0xff]
        %v579 = vld [vmem:[%s1 + $0x50] sm:$0xff]
        %v580 = vld [vmem:[%s1 + $0x58] sm:$0xff]
        %v581 = vld [vmem:[%s1 + $0x60] sm:$0xff]
        %v582 = vld [vmem:[%s1 + $0x68] sm:$0xff]
        %v583 = vld [vmem:[%s1 + $0x70] sm:$0xff]
        %v584 = vld [vmem:[%s1 + $0x78] sm:$0xff]
        %vm585 = vcmask 523264
        %586 = vst.msk [vmem:[#allocation2] sm:$0xff] %vm585, 0.0
        %587 = vst.msk [vmem:[#allocation2 + $0x8] sm:$0xff] %vm585, 0.0
        %588 = vst.msk [vmem:[#allocation2 + $0x10] sm:$0xff] %vm585, 0.0
        %589 = vst.msk [vmem:[#allocation2 + $0x18] sm:$0xff] %vm585, 0.0
        %590 = vst.msk [vmem:[#allocation2 + $0xa0] sm:$0xff] %vm585, 0.0
        %591 = vst.msk [vmem:[#allocation2 + $0xa8] sm:$0xff] %vm585, 0.0
        %592 = vst.msk [vmem:[#allocation2 + $0xb0] sm:$0xff] %vm585, 0.0
        %v593 = vld [vmem:[%s512] sm:$0xff]
        %v594 = vld [vmem:[%s512 + $0x8] sm:$0xff]
        %v595 = vld [vmem:[%s512 + $0x10] sm:$0xff]
        %v596 = vld [vmem:[%s512 + $0x18] sm:$0xff]
        %v597 = vld [vmem:[%s512 + $0x20] sm:$0xff]
        %v598 = vld [vmem:[%s512 + $0x28] sm:$0xff]
        %v599 = vld [vmem:[%s512 + $0x30] sm:$0xff]
        %v600 = vld [vmem:[%s512 + $0x38] sm:$0xff]
        %v601 = vld [vmem:[%s512 + $0x40] sm:$0xff]
        %v602 = vld [vmem:[%s512 + $0x48] sm:$0xff]
        %v603 = vld [vmem:[%s512 + $0x50] sm:$0xff]
        %v604 = vld [vmem:[%s512 + $0x58] sm:$0xff]
        %v605 = vld [vmem:[%s512 + $0x60] sm:$0xff]
        %v606 = vld [vmem:[%s512 + $0x68] sm:$0xff]
        %v607 = vld [vmem:[%s512 + $0x70] sm:$0xff]
        %v608 = vld [vmem:[%s512 + $0x78] sm:$0xff]
        %v609 = vld [vmem:[%s4] sm:$0x1]
        %v610 = vld [vmem:[%s5] sm:$0x1]
        %v611 = vld [vmem:[%s2] sm:$0xff]
        %v612 = vld [vmem:[%s2 + $0x8] sm:$0xff]
        %v613 = vld [vmem:[%s2 + $0x10] sm:$0xff]
        %v614 = vld [vmem:[%s2 + $0x18] sm:$0xff]
        %v615 = vld [vmem:[%s3] sm:$0xff]
        %v616 = vld [vmem:[%s3 + $0x8] sm:$0xff]
        %v617 = vld [vmem:[%s3 + $0x10] sm:$0xff]
        %v618 = vld [vmem:[%s3 + $0x18] sm:$0xff]
        %620 = vset.pattern.permute.xlu0 0
        %621 = vperm.xlu0 %620, %v569
        %v622 = vpop.permute.xlu0 %621
        %625 = vset.pattern.permute.xlu0 0
        %626 = vperm.xlu0 %625, %v570
        %v627 = vpop.permute.xlu0 %626
        %630 = vset.pattern.permute.xlu0 0
        %631 = vperm.xlu0 %630, %v571
        %v632 = vpop.permute.xlu0 %631
        %635 = vset.pattern.permute.xlu0 0
        %636 = vperm.xlu0 %635, %v572
        %v637 = vpop.permute.xlu0 %636
        %640 = vset.pattern.permute.xlu0 0
        %641 = vperm.xlu0 %640, %v573
        %v642 = vpop.permute.xlu0 %641
        %645 = vset.pattern.permute.xlu0 0
        %646 = vperm.xlu0 %645, %v574
        %v647 = vpop.permute.xlu0 %646
        %650 = vset.pattern.permute.xlu0 0
        %651 = vperm.xlu0 %650, %v575
        %v652 = vpop.permute.xlu0 %651
        %655 = vset.pattern.permute.xlu0 0
        %656 = vperm.xlu0 %655, %v576
        %v657 = vpop.permute.xlu0 %656
        %660 = vset.pattern.permute.xlu0 0
        %661 = vperm.xlu0 %660, %v577
        %v662 = vpop.permute.xlu0 %661
        %665 = vset.pattern.permute.xlu0 0
        %666 = vperm.xlu0 %665, %v578
        %v667 = vpop.permute.xlu0 %666
        %670 = vset.pattern.permute.xlu0 0
        %671 = vperm.xlu0 %670, %v579
        %v672 = vpop.permute.xlu0 %671
        %675 = vset.pattern.permute.xlu0 0
        %676 = vperm.xlu0 %675, %v580
        %v677 = vpop.permute.xlu0 %676
        %680 = vset.pattern.permute.xlu0 0
        %681 = vperm.xlu0 %680, %v581
        %v682 = vpop.permute.xlu0 %681
        %685 = vset.pattern.permute.xlu0 0
        %686 = vperm.xlu0 %685, %v582
        %v687 = vpop.permute.xlu0 %686
        %690 = vset.pattern.permute.xlu0 0
        %691 = vperm.xlu0 %690, %v583
        %v692 = vpop.permute.xlu0 %691
        %695 = vset.pattern.permute.xlu0 0
        %696 = vperm.xlu0 %695, %v584
        %v697 = vpop.permute.xlu0 %696
        %v699 = vmul.f32 %v593, %v622
        %v700 = vmul.f32 %v594, %v627
        %v701 = vmul.f32 %v595, %v632
        %v702 = vmul.f32 %v596, %v637
        %v703 = vmul.f32 %v597, %v642
        %v704 = vmul.f32 %v598, %v647
        %v705 = vmul.f32 %v599, %v652
        %v706 = vmul.f32 %v600, %v657
        %v707 = vmul.f32 %v601, %v662
        %v708 = vmul.f32 %v602, %v667
        %v709 = vmul.f32 %v603, %v672
        %v710 = vmul.f32 %v604, %v677
        %v711 = vmul.f32 %v605, %v682
        %v712 = vmul.f32 %v606, %v687
        %v713 = vmul.f32 %v607, %v692
        %v714 = vmul.f32 %v608, %v697
        %vm715 = vcmask 261120
        %v716 = vsel %vm715, %v699, 0.0
        %v717 = vsel %vm715, %v700, 0.0
        %v718 = vadd.f32 %v716, %v717
        %v719 = vsel %vm715, %v701, 0.0
        %v720 = vadd.f32 %v718, %v719
        %v721 = vsel %vm715, %v702, 0.0
        %v722 = vadd.f32 %v720, %v721
        %v723 = vsel %vm715, %v703, 0.0
        %v724 = vadd.f32 %v722, %v723
        %v725 = vsel %vm715, %v704, 0.0
        %v726 = vadd.f32 %v724, %v725
        %v727 = vsel %vm715, %v705, 0.0
        %v728 = vadd.f32 %v726, %v727
        %v729 = vsel %vm715, %v706, 0.0
        %v730 = vadd.f32 %v728, %v729
        %v731 = vsel %vm715, %v707, 0.0
        %v732 = vadd.f32 %v730, %v731
        %v733 = vsel %vm715, %v708, 0.0
        %v734 = vadd.f32 %v732, %v733
        %v735 = vsel %vm715, %v709, 0.0
        %v736 = vadd.f32 %v734, %v735
        %v737 = vsel %vm715, %v710, 0.0
        %v738 = vadd.f32 %v736, %v737
        %v739 = vsel %vm715, %v711, 0.0
        %v740 = vadd.f32 %v738, %v739
        %v741 = vsel %vm715, %v712, 0.0
        %v742 = vadd.f32 %v740, %v741
        %v743 = vsel %vm715, %v713, 0.0
        %v744 = vadd.f32 %v742, %v743
        %v745 = vsel %vm715, %v714, 0.0
        %v746 = vadd.f32 %v744, %v745
        %v747 = vrot.slane %v746, 4
        %v748 = vadd.f32 %v746, %v747
        %v749 = vrot.slane %v748, 2
        %v750 = vadd.f32 %v748, %v749
        %v751 = vrot.slane %v750, 1
        %v752 = vadd.f32 %v750, %v751
        %v754 = vsel %vm715, %v752, 0
        %756 = vmatprep.subr.mxu0 0.0
        %757 = vmatpush1.msra.mxu0 %v611
        %758 = vmatprep.subr.mxu0 0.0
        %759 = vmatpush1.msra.mxu0 %v612
        %760 = vmatprep.subr.mxu0 0.0
        %761 = vmatpush1.msra.mxu0 %v613
        %762 = vmatprep.subr.mxu0 0.0
        %763 = vmatpush1.msra.mxu0 %v614
        %764 = vmatprep.subr.mxu0 0.0
        %765 = vmatpush1.msra.mxu0 0.0
        %766 = vmatprep.subr.mxu0 0.0
        %767 = vmatpush1.msra.mxu0 0.0
        %768 = vmatprep.subr.mxu0 0.0
        %769 = vmatpush1.msra.mxu0 0.0
        %770 = vmatprep.subr.mxu0 0.0
        %771 = vmatpush1.msra.mxu0 0.0
        %772 = vmatprep.subr.mxu0 0.0
        %773 = vmatpush1.msra.mxu0 0.0
        %774 = vmatprep.subr.mxu0 0.0
        %775 = vmatpush1.msra.mxu0 0.0
        %776 = vmatprep.subr.mxu0 0.0
        %777 = vmatpush1.msra.mxu0 0.0
        %778 = vmatprep.subr.mxu0 0.0
        %779 = vmatpush1.msra.mxu0 0.0
        %780 = vmatprep.subr.mxu0 0.0
        %781 = vmatpush1.msra.mxu0 0.0
        %782 = vmatprep.subr.mxu0 0.0
        %783 = vmatpush1.msra.mxu0 0.0
        %784 = vmatprep.subr.mxu0 0.0
        %785 = vmatpush1.msra.mxu0 0.0
        %786 = vmatprep.subr.mxu0 0.0
        %787 = vmatpush1.msra.mxu0 0.0
        %788 = vmatprep.subr.mxu0 0.0
        %789 = vmatpush1.msra.mxu0 0.0
        %790 = vmatprep.subr.mxu0 0.0
        %791 = vmatpush1.msra.mxu0 0.0
        %792 = vmatprep.subr.mxu0 0.0
        %793 = vmatpush1.msra.mxu0 0.0
        %794 = vmatprep.subr.mxu0 0.0
        %795 = vmatpush1.msra.mxu0 0.0
        %796 = vmatprep.subr.mxu0 0.0
        %797 = vmatpush1.msra.mxu0 0.0
        %798 = vmatprep.subr.mxu0 0.0
        %799 = vmatpush1.msra.mxu0 0.0
        %800 = vmatprep.subr.mxu0 0.0
        %801 = vmatpush1.msra.mxu0 0.0
        %802 = vmatprep.subr.mxu0 0.0
        %803 = vmatpush1.msra.mxu0 0.0
        %804 = vmatprep.subr.mxu0 0.0
        %805 = vmatpush1.msra.mxu0 0.0
        %806 = vmatprep.subr.mxu0 0.0
        %807 = vmatpush1.msra.mxu0 0.0
        %808 = vmatprep.subr.mxu0 0.0
        %809 = vmatpush1.msra.mxu0 0.0
        %810 = vmatprep.subr.mxu0 0.0
        %811 = vmatpush1.msra.mxu0 0.0
        %812 = vmatprep.subr.mxu0 0.0
        %813 = vmatpush1.msra.mxu0 0.0
        %814 = vmatprep.subr.mxu0 0.0
        %815 = vmatpush1.msra.mxu0 0.0
        %816 = vmatprep.subr.mxu0 0.0
        %817 = vmatpush1.msra.mxu0 0.0
        %818 = vmatprep.subr.mxu0 0.0
        %819 = vmatpush1.msra.mxu0 0.0
        %820 = vmatprep.mubr.f32.mxu0 0.0
        %821 = vmatmul.mubr.f32.gmra.mrb[0].mxu0 %v754
        %v822 = vpop.f32.mrb[0].mxu0
        %v823 = vadd.f32 0.0, %v822
        %v824 = vpop.f32.mrb[0].mxu0
        %825 = vdwg.mxu0
        %v826 = vmul.f32 %v823, 0.015625
        %v828 = vsel %vm715, %v826, 0
        %830 = vmatprep.subr.mxu0 0.0
        %831 = vmatpush1.msra.mxu0 %v615
        %832 = vmatprep.subr.mxu0 0.0
        %833 = vmatpush1.msra.mxu0 %v616
        %834 = vmatprep.subr.mxu0 0.0
        %835 = vmatpush1.msra.mxu0 %v617
        %836 = vmatprep.subr.mxu0 0.0
        %837 = vmatpush1.msra.mxu0 %v618
        %838 = vmatprep.subr.mxu0 0.0
        %839 = vmatpush1.msra.mxu0 0.0
        %840 = vmatprep.subr.mxu0 0.0
        %841 = vmatpush1.msra.mxu0 0.0
        %842 = vmatprep.subr.mxu0 0.0
        %843 = vmatpush1.msra.mxu0 0.0
        %844 = vmatprep.subr.mxu0 0.0
        %845 = vmatpush1.msra.mxu0 0.0
        %846 = vmatprep.subr.mxu0 0.0
        %847 = vmatpush1.msra.mxu0 0.0
        %848 = vmatprep.subr.mxu0 0.0
        %849 = vmatpush1.msra.mxu0 0.0
        %850 = vmatprep.subr.mxu0 0.0
        %851 = vmatpush1.msra.mxu0 0.0
        %852 = vmatprep.subr.mxu0 0.0
        %853 = vmatpush1.msra.mxu0 0.0
        %854 = vmatprep.subr.mxu0 0.0
        %855 = vmatpush1.msra.mxu0 0.0
        %856 = vmatprep.subr.mxu0 0.0
        %857 = vmatpush1.msra.mxu0 0.0
        %858 = vmatprep.subr.mxu0 0.0
        %859 = vmatpush1.msra.mxu0 0.0
        %860 = vmatprep.subr.mxu0 0.0
        %861 = vmatpush1.msra.mxu0 0.0
        %862 = vmatprep.subr.mxu0 0.0
        %863 = vmatpush1.msra.mxu0 0.0
        %864 = vmatprep.subr.mxu0 0.0
        %865 = vmatpush1.msra.mxu0 0.0
        %866 = vmatprep.subr.mxu0 0.0
        %867 = vmatpush1.msra.mxu0 0.0
        %868 = vmatprep.subr.mxu0 0.0
        %869 = vmatpush1.msra.mxu0 0.0
        %870 = vmatprep.subr.mxu0 0.0
        %871 = vmatpush1.msra.mxu0 0.0
        %872 = vmatprep.subr.mxu0 0.0
        %873 = vmatpush1.msra.mxu0 0.0
        %874 = vmatprep.subr.mxu0 0.0
        %875 = vmatpush1.msra.mxu0 0.0
        %876 = vmatprep.subr.mxu0 0.0
        %877 = vmatpush1.msra.mxu0 0.0
        %878 = vmatprep.subr.mxu0 0.0
        %879 = vmatpush1.msra.mxu0 0.0
        %880 = vmatprep.subr.mxu0 0.0
        %881 = vmatpush1.msra.mxu0 0.0
        %882 = vmatprep.subr.mxu0 0.0
        %883 = vmatpush1.msra.mxu0 0.0
        %884 = vmatprep.subr.mxu0 0.0
        %885 = vmatpush1.msra.mxu0 0.0
        %886 = vmatprep.subr.mxu0 0.0
        %887 = vmatpush1.msra.mxu0 0.0
        %888 = vmatprep.subr.mxu0 0.0
        %889 = vmatpush1.msra.mxu0 0.0
        %890 = vmatprep.subr.mxu0 0.0
        %891 = vmatpush1.msra.mxu0 0.0
        %892 = vmatprep.subr.mxu0 0.0
        %893 = vmatpush1.msra.mxu0 0.0
        %894 = vmatprep.mubr.f32.mxu0 0.0
        %895 = vmatmul.mubr.f32.gmra.mrb[0].mxu0 %v828
        %v896 = vpop.f32.mrb[0].mxu0
        %v897 = vadd.f32 0.0, %v896
        %v898 = vpop.f32.mrb[0].mxu0
        %899 = vdwg.mxu0
        %v900 = vlaneseq
        %v901 = vshrl.u32 %v900, 7
        %v902 = vsub.s32 0, %v901
        %v903 = vrot.slane %v897, %v902
        %v904 = vsub.f32 %v593, %v903
        %v905 = vsub.f32 %v594, %v903
        %v906 = vsub.f32 %v595, %v903
        %v907 = vsub.f32 %v596, %v903
        %v908 = vsub.f32 %v597, %v903
        %v909 = vsub.f32 %v598, %v903
        %v910 = vsub.f32 %v599, %v903
        %v911 = vsub.f32 %v600, %v903
        %v912 = vsub.f32 %v601, %v903
        %v913 = vsub.f32 %v602, %v903
        %v914 = vsub.f32 %v603, %v903
        %v915 = vsub.f32 %v604, %v903
        %v916 = vsub.f32 %v605, %v903
        %v917 = vsub.f32 %v606, %v903
        %v918 = vsub.f32 %v607, %v903
        %v919 = vsub.f32 %v608, %v903
        %v920 = vmul.f32 %v904, %v622
        %v921 = vmul.f32 %v905, %v627
        %v922 = vmul.f32 %v906, %v632
        %v923 = vmul.f32 %v907, %v637
        %v924 = vmul.f32 %v908, %v642
        %v925 = vmul.f32 %v909, %v647
        %v926 = vmul.f32 %v910, %v652
        %v927 = vmul.f32 %v911, %v657
        %v928 = vmul.f32 %v912, %v662
        %v929 = vmul.f32 %v913, %v667
        %v930 = vmul.f32 %v914, %v672
        %v931 = vmul.f32 %v915, %v677
        %v932 = vmul.f32 %v916, %v682
        %v933 = vmul.f32 %v917, %v687
        %v934 = vmul.f32 %v918, %v692
        %v935 = vmul.f32 %v919, %v697
        %v936 = vmul.f32 %v920, %v920
        %v937 = vmul.f32 %v921, %v921
        %v938 = vmul.f32 %v922, %v922
        %v939 = vmul.f32 %v923, %v923
        %v940 = vmul.f32 %v924, %v924
        %v941 = vmul.f32 %v925, %v925
        %v942 = vmul.f32 %v926, %v926
        %v943 = vmul.f32 %v927, %v927
        %v944 = vmul.f32 %v928, %v928
        %v945 = vmul.f32 %v929, %v929
        %v946 = vmul.f32 %v930, %v930
        %v947 = vmul.f32 %v931, %v931
        %v948 = vmul.f32 %v932, %v932
        %v949 = vmul.f32 %v933, %v933
        %v950 = vmul.f32 %v934, %v934
        %v951 = vmul.f32 %v935, %v935
        %v952 = vsel %vm715, %v936, 0.0
        %v953 = vsel %vm715, %v937, 0.0
        %v954 = vadd.f32 %v952, %v953
        %v955 = vsel %vm715, %v938, 0.0
        %v956 = vadd.f32 %v954, %v955
        %v957 = vsel %vm715, %v939, 0.0
        %v958 = vadd.f32 %v956, %v957
        %v959 = vsel %vm715, %v940, 0.0
        %v960 = vadd.f32 %v958, %v959
        %v961 = vsel %vm715, %v941, 0.0
        %v962 = vadd.f32 %v960, %v961
        %v963 = vsel %vm715, %v942, 0.0
        %v964 = vadd.f32 %v962, %v963
        %v965 = vsel %vm715, %v943, 0.0
        %v966 = vadd.f32 %v964, %v965
        %v967 = vsel %vm715, %v944, 0.0
        %v968 = vadd.f32 %v966, %v967
        %v969 = vsel %vm715, %v945, 0.0
        %v970 = vadd.f32 %v968, %v969
        %v971 = vsel %vm715, %v946, 0.0
        %v972 = vadd.f32 %v970, %v971
        %v973 = vsel %vm715, %v947, 0.0
        %v974 = vadd.f32 %v972, %v973
        %v975 = vsel %vm715, %v948, 0.0
        %v976 = vadd.f32 %v974, %v975
        %v977 = vsel %vm715, %v949, 0.0
        %v978 = vadd.f32 %v976, %v977
        %v979 = vsel %vm715, %v950, 0.0
        %v980 = vadd.f32 %v978, %v979
        %v981 = vsel %vm715, %v951, 0.0
        %v982 = vadd.f32 %v980, %v981
        %v983 = vrot.slane %v982, 4
        %v984 = vadd.f32 %v982, %v983
        %v985 = vrot.slane %v984, 2
        %v986 = vadd.f32 %v984, %v985
        %v987 = vrot.slane %v986, 1
        %v988 = vadd.f32 %v986, %v987
        %v990 = vsel %vm715, %v988, 0
        %992 = vmatprep.subr.mxu0 0.0
        %993 = vmatpush1.msra.mxu0 %v611
        %994 = vmatprep.subr.mxu0 0.0
        %995 = vmatpush1.msra.mxu0 %v612
        %996 = vmatprep.subr.mxu0 0.0
        %997 = vmatpush1.msra.mxu0 %v613
        %998 = vmatprep.subr.mxu0 0.0
        %999 = vmatpush1.msra.mxu0 %v614
        %1000 = vmatprep.subr.mxu0 0.0
        %1001 = vmatpush1.msra.mxu0 0.0
        %1002 = vmatprep.subr.mxu0 0.0
        %1003 = vmatpush1.msra.mxu0 0.0
        %1004 = vmatprep.subr.mxu0 0.0
        %1005 = vmatpush1.msra.mxu0 0.0
        %1006 = vmatprep.subr.mxu0 0.0
        %1007 = vmatpush1.msra.mxu0 0.0
        %1008 = vmatprep.subr.mxu0 0.0
        %1009 = vmatpush1.msra.mxu0 0.0
        %1010 = vmatprep.subr.mxu0 0.0
        %1011 = vmatpush1.msra.mxu0 0.0
        %1012 = vmatprep.subr.mxu0 0.0
        %1013 = vmatpush1.msra.mxu0 0.0
        %1014 = vmatprep.subr.mxu0 0.0
        %1015 = vmatpush1.msra.mxu0 0.0
        %1016 = vmatprep.subr.mxu0 0.0
        %1017 = vmatpush1.msra.mxu0 0.0
        %1018 = vmatprep.subr.mxu0 0.0
        %1019 = vmatpush1.msra.mxu0 0.0
        %1020 = vmatprep.subr.mxu0 0.0
        %1021 = vmatpush1.msra.mxu0 0.0
        %1022 = vmatprep.subr.mxu0 0.0
        %1023 = vmatpush1.msra.mxu0 0.0
        %1024 = vmatprep.subr.mxu0 0.0
        %1025 = vmatpush1.msra.mxu0 0.0
        %1026 = vmatprep.subr.mxu0 0.0
        %1027 = vmatpush1.msra.mxu0 0.0
        %1028 = vmatprep.subr.mxu0 0.0
        %1029 = vmatpush1.msra.mxu0 0.0
        %1030 = vmatprep.subr.mxu0 0.0
        %1031 = vmatpush1.msra.mxu0 0.0
        %1032 = vmatprep.subr.mxu0 0.0
        %1033 = vmatpush1.msra.mxu0 0.0
        %1034 = vmatprep.subr.mxu0 0.0
        %1035 = vmatpush1.msra.mxu0 0.0
        %1036 = vmatprep.subr.mxu0 0.0
        %1037 = vmatpush1.msra.mxu0 0.0
        %1038 = vmatprep.subr.mxu0 0.0
        %1039 = vmatpush1.msra.mxu0 0.0
        %1040 = vmatprep.subr.mxu0 0.0
        %1041 = vmatpush1.msra.mxu0 0.0
        %1042 = vmatprep.subr.mxu0 0.0
        %1043 = vmatpush1.msra.mxu0 0.0
        %1044 = vmatprep.subr.mxu0 0.0
        %1045 = vmatpush1.msra.mxu0 0.0
        %1046 = vmatprep.subr.mxu0 0.0
        %1047 = vmatpush1.msra.mxu0 0.0
        %1048 = vmatprep.subr.mxu0 0.0
        %1049 = vmatpush1.msra.mxu0 0.0
        %1050 = vmatprep.subr.mxu0 0.0
        %1051 = vmatpush1.msra.mxu0 0.0
        %1052 = vmatprep.subr.mxu0 0.0
        %1053 = vmatpush1.msra.mxu0 0.0
        %1054 = vmatprep.subr.mxu0 0.0
        %1055 = vmatpush1.msra.mxu0 0.0
        %1056 = vmatprep.mubr.f32.mxu0 0.0
        %1057 = vmatmul.mubr.f32.gmra.mrb[0].mxu0 %v990
        %v1058 = vpop.f32.mrb[0].mxu0
        %v1059 = vadd.f32 0.0, %v1058
        %v1060 = vpop.f32.mrb[0].mxu0
        %1061 = vdwg.mxu0
        %v1062 = vmul.f32 %v1059, 0.015625
        %v1063 = vadd.f32 %v1062, 1e-06
        %v1064 = vrsqrt.pop %v1063
        %v1066 = vsel %vm715, %v1064, 0
        %1068 = vmatprep.subr.mxu0 0.0
        %1069 = vmatpush1.msra.mxu0 %v615
        %1070 = vmatprep.subr.mxu0 0.0
        %1071 = vmatpush1.msra.mxu0 %v616
        %1072 = vmatprep.subr.mxu0 0.0
        %1073 = vmatpush1.msra.mxu0 %v617
        %1074 = vmatprep.subr.mxu0 0.0
        %1075 = vmatpush1.msra.mxu0 %v618
        %1076 = vmatprep.subr.mxu0 0.0
        %1077 = vmatpush1.msra.mxu0 0.0
        %1078 = vmatprep.subr.mxu0 0.0
        %1079 = vmatpush1.msra.mxu0 0.0
        %1080 = vmatprep.subr.mxu0 0.0
        %1081 = vmatpush1.msra.mxu0 0.0
        %1082 = vmatprep.subr.mxu0 0.0
        %1083 = vmatpush1.msra.mxu0 0.0
        %1084 = vmatprep.subr.mxu0 0.0
        %1085 = vmatpush1.msra.mxu0 0.0
        %1086 = vmatprep.subr.mxu0 0.0
        %1087 = vmatpush1.msra.mxu0 0.0
        %1088 = vmatprep.subr.mxu0 0.0
        %1089 = vmatpush1.msra.mxu0 0.0
        %1090 = vmatprep.subr.mxu0 0.0
        %1091 = vmatpush1.msra.mxu0 0.0
        %1092 = vmatprep.subr.mxu0 0.0
        %1093 = vmatpush1.msra.mxu0 0.0
        %1094 = vmatprep.subr.mxu0 0.0
        %1095 = vmatpush1.msra.mxu0 0.0
        %1096 = vmatprep.subr.mxu0 0.0
        %1097 = vmatpush1.msra.mxu0 0.0
        %1098 = vmatprep.subr.mxu0 0.0
        %1099 = vmatpush1.msra.mxu0 0.0
        %1100 = vmatprep.subr.mxu0 0.0
        %1101 = vmatpush1.msra.mxu0 0.0
        %1102 = vmatprep.subr.mxu0 0.0
        %1103 = vmatpush1.msra.mxu0 0.0
        %1104 = vmatprep.subr.mxu0 0.0
        %1105 = vmatpush1.msra.mxu0 0.0
        %1106 = vmatprep.subr.mxu0 0.0
        %1107 = vmatpush1.msra.mxu0 0.0
        %1108 = vmatprep.subr.mxu0 0.0
        %1109 = vmatpush1.msra.mxu0 0.0
        %1110 = vmatprep.subr.mxu0 0.0
        %1111 = vmatpush1.msra.mxu0 0.0
        %1112 = vmatprep.subr.mxu0 0.0
        %1113 = vmatpush1.msra.mxu0 0.0
        %1114 = vmatprep.subr.mxu0 0.0
        %1115 = vmatpush1.msra.mxu0 0.0
        %1116 = vmatprep.subr.mxu0 0.0
        %1117 = vmatpush1.msra.mxu0 0.0
        %1118 = vmatprep.subr.mxu0 0.0
        %1119 = vmatpush1.msra.mxu0 0.0
        %1120 = vmatprep.subr.mxu0 0.0
        %1121 = vmatpush1.msra.mxu0 0.0
        %1122 = vmatprep.subr.mxu0 0.0
        %1123 = vmatpush1.msra.mxu0 0.0
        %1124 = vmatprep.subr.mxu0 0.0
        %1125 = vmatpush1.msra.mxu0 0.0
        %1126 = vmatprep.subr.mxu0 0.0
        %1127 = vmatpush1.msra.mxu0 0.0
        %1128 = vmatprep.subr.mxu0 0.0
        %1129 = vmatpush1.msra.mxu0 0.0
        %1130 = vmatprep.subr.mxu0 0.0
        %1131 = vmatpush1.msra.mxu0 0.0
        %1132 = vmatprep.mubr.f32.mxu0 0.0
        %1133 = vmatmul.mubr.f32.gmra.mrb[0].mxu0 %v1066
        %v1134 = vpop.f32.mrb[0].mxu0
        %v1135 = vadd.f32 0.0, %v1134
        %v1136 = vpop.f32.mrb[0].mxu0
        %1137 = vdwg.mxu0
        %v1138 = vmul.f32 %v1135, %v609
        %v1139 = vlaneseq
        %v1140 = vshrl.u32 %v1139, 7
        %v1141 = vsub.s32 0, %v1140
        %v1142 = vrot.slane %v1138, %v1141
        %v1143 = vmul.f32 %v904, %v1142
        %v1144 = vmul.f32 %v905, %v1142
        %v1145 = vmul.f32 %v906, %v1142
        %v1146 = vmul.f32 %v907, %v1142
        %v1147 = vmul.f32 %v908, %v1142
        %v1148 = vmul.f32 %v909, %v1142
        %v1149 = vmul.f32 %v910, %v1142
        %v1150 = vmul.f32 %v911, %v1142
        %v1151 = vmul.f32 %v912, %v1142
        %v1152 = vmul.f32 %v913, %v1142
        %v1153 = vmul.f32 %v914, %v1142
        %v1154 = vmul.f32 %v915, %v1142
        %v1155 = vmul.f32 %v916, %v1142
        %v1156 = vmul.f32 %v917, %v1142
        %v1157 = vmul.f32 %v918, %v1142
        %v1158 = vmul.f32 %v919, %v1142
        %v1160 = vlaneseq
        %v1161 = vshrl.u32 %v1160, 7
        %v1162 = vsub.s32 0, %v1161
        %v1163 = vrot.slane %v610, %v1162
        %v1165 = vadd.f32 %v1143, %v1163
        %v1166 = vadd.f32 %v1144, %v1163
        %v1167 = vadd.f32 %v1145, %v1163
        %v1168 = vadd.f32 %v1146, %v1163
        %v1169 = vadd.f32 %v1147, %v1163
        %v1170 = vadd.f32 %v1148, %v1163
        %v1171 = vadd.f32 %v1149, %v1163
        %v1172 = vadd.f32 %v1150, %v1163
        %v1173 = vadd.f32 %v1151, %v1163
        %v1174 = vadd.f32 %v1152, %v1163
        %v1175 = vadd.f32 %v1153, %v1163
        %v1176 = vadd.f32 %v1154, %v1163
        %v1177 = vadd.f32 %v1155, %v1163
        %v1178 = vadd.f32 %v1156, %v1163
        %v1179 = vadd.f32 %v1157, %v1163
        %v1180 = vadd.f32 %v1158, %v1163
        %v1181 = vxor.u32 %v1165, 2147483648
        %v1182 = vxor.u32 %v1166, 2147483648
        %v1183 = vxor.u32 %v1167, 2147483648
        %v1184 = vxor.u32 %v1168, 2147483648
        %v1185 = vxor.u32 %v1169, 2147483648
        %v1186 = vxor.u32 %v1170, 2147483648
        %v1187 = vxor.u32 %v1171, 2147483648
        %v1188 = vxor.u32 %v1172, 2147483648
        %v1189 = vxor.u32 %v1173, 2147483648
        %v1190 = vxor.u32 %v1174, 2147483648
        %v1191 = vxor.u32 %v1175, 2147483648
        %v1192 = vxor.u32 %v1176, 2147483648
        %v1193 = vxor.u32 %v1177, 2147483648
        %v1194 = vxor.u32 %v1178, 2147483648
        %v1195 = vxor.u32 %v1179, 2147483648
        %v1196 = vxor.u32 %v1180, 2147483648
        %v1197 = vmul.f32 %v1181, 1.442695
        %v1198 = vpow.pop %v1197
        %v1199 = vmul.f32 %v1182, 1.442695
        %v1200 = vpow.pop %v1199
        %v1201 = vmul.f32 %v1183, 1.442695
        %v1202 = vpow.pop %v1201
        %v1203 = vmul.f32 %v1184, 1.442695
        %v1204 = vpow.pop %v1203
        %v1205 = vmul.f32 %v1185, 1.442695
        %v1206 = vpow.pop %v1205
        %v1207 = vmul.f32 %v1186, 1.442695
        %v1208 = vpow.pop %v1207
        %v1209 = vmul.f32 %v1187, 1.442695
        %v1210 = vpow.pop %v1209
        %v1211 = vmul.f32 %v1188, 1.442695
        %v1212 = vpow.pop %v1211
        %v1213 = vmul.f32 %v1189, 1.442695
        %v1214 = vpow.pop %v1213
        %v1215 = vmul.f32 %v1190, 1.442695
        %v1216 = vpow.pop %v1215
        %v1217 = vmul.f32 %v1191, 1.442695
        %v1218 = vpow.pop %v1217
        %v1219 = vmul.f32 %v1192, 1.442695
        %v1220 = vpow.pop %v1219
        %v1221 = vmul.f32 %v1193, 1.442695
        %v1222 = vpow.pop %v1221
        %v1223 = vmul.f32 %v1194, 1.442695
        %v1224 = vpow.pop %v1223
        %v1225 = vmul.f32 %v1195, 1.442695
        %v1226 = vpow.pop %v1225
        %v1227 = vmul.f32 %v1196, 1.442695
        %v1228 = vpow.pop %v1227
        %v1229 = vadd.f32 %v1198, 1.0
        %v1230 = vadd.f32 %v1200, 1.0
        %v1231 = vadd.f32 %v1202, 1.0
        %v1232 = vadd.f32 %v1204, 1.0
        %v1233 = vadd.f32 %v1206, 1.0
        %v1234 = vadd.f32 %v1208, 1.0
        %v1235 = vadd.f32 %v1210, 1.0
        %v1236 = vadd.f32 %v1212, 1.0
        %v1237 = vadd.f32 %v1214, 1.0
        %v1238 = vadd.f32 %v1216, 1.0
        %v1239 = vadd.f32 %v1218, 1.0
        %v1240 = vadd.f32 %v1220, 1.0
        %v1241 = vadd.f32 %v1222, 1.0
        %v1242 = vadd.f32 %v1224, 1.0
        %v1243 = vadd.f32 %v1226, 1.0
        %v1244 = vadd.f32 %v1228, 1.0
        %v1245 = vrcp.pop %v1229
        %v1246 = vmul.f32 1.0, %v1245
        %v1247 = vrcp.pop %v1230
        %v1248 = vmul.f32 1.0, %v1247
        %v1249 = vrcp.pop %v1231
        %v1250 = vmul.f32 1.0, %v1249
        %v1251 = vrcp.pop %v1232
        %v1252 = vmul.f32 1.0, %v1251
        %v1253 = vrcp.pop %v1233
        %v1254 = vmul.f32 1.0, %v1253
        %v1255 = vrcp.pop %v1234
        %v1256 = vmul.f32 1.0, %v1255
        %v1257 = vrcp.pop %v1235
        %v1258 = vmul.f32 1.0, %v1257
        %v1259 = vrcp.pop %v1236
        %v1260 = vmul.f32 1.0, %v1259
        %v1261 = vrcp.pop %v1237
        %v1262 = vmul.f32 1.0, %v1261
        %v1263 = vrcp.pop %v1238
        %v1264 = vmul.f32 1.0, %v1263
        %v1265 = vrcp.pop %v1239
        %v1266 = vmul.f32 1.0, %v1265
        %v1267 = vrcp.pop %v1240
        %v1268 = vmul.f32 1.0, %v1267
        %v1269 = vrcp.pop %v1241
        %v1270 = vmul.f32 1.0, %v1269
        %v1271 = vrcp.pop %v1242
        %v1272 = vmul.f32 1.0, %v1271
        %v1273 = vrcp.pop %v1243
        %v1274 = vmul.f32 1.0, %v1273
        %v1275 = vrcp.pop %v1244
        %v1276 = vmul.f32 1.0, %v1275
        %v1277 = vmul.f32 %v1165, %v1246
        %v1278 = vmul.f32 %v1166, %v1248
        %v1279 = vmul.f32 %v1167, %v1250
        %v1280 = vmul.f32 %v1168, %v1252
        %v1281 = vmul.f32 %v1169, %v1254
        %v1282 = vmul.f32 %v1170, %v1256
        %v1283 = vmul.f32 %v1171, %v1258
        %v1284 = vmul.f32 %v1172, %v1260
        %v1285 = vmul.f32 %v1173, %v1262
        %v1286 = vmul.f32 %v1174, %v1264
        %v1287 = vmul.f32 %v1175, %v1266
        %v1288 = vmul.f32 %v1176, %v1268
        %v1289 = vmul.f32 %v1177, %v1270
        %v1290 = vmul.f32 %v1178, %v1272
        %v1291 = vmul.f32 %v1179, %v1274
        %v1292 = vmul.f32 %v1180, %v1276
        %v1293 = vmul.f32 %v1277, %v622
        %v1294 = vmul.f32 %v1278, %v627
        %v1295 = vmul.f32 %v1279, %v632
        %v1296 = vmul.f32 %v1280, %v637
        %v1297 = vmul.f32 %v1281, %v642
        %v1298 = vmul.f32 %v1282, %v647
        %v1299 = vmul.f32 %v1283, %v652
        %v1300 = vmul.f32 %v1284, %v657
        %v1301 = vmul.f32 %v1285, %v662
        %v1302 = vmul.f32 %v1286, %v667
        %v1303 = vmul.f32 %v1287, %v672
        %v1304 = vmul.f32 %v1288, %v677
        %v1305 = vmul.f32 %v1289, %v682
        %v1306 = vmul.f32 %v1290, %v687
        %v1307 = vmul.f32 %v1291, %v692
        %v1308 = vmul.f32 %v1292, %v697
        %1309 = vst.msk [vmem:[#allocation2 + $0x20] sm:$0xff] %vm715, %v1293
        %1310 = vst.msk [vmem:[#allocation2 + $0x28] sm:$0xff] %vm715, %v1294
        %1311 = vst.msk [vmem:[#allocation2 + $0x30] sm:$0xff] %vm715, %v1295
        %1312 = vst.msk [vmem:[#allocation2 + $0x38] sm:$0xff] %vm715, %v1296
        %1313 = vst.msk [vmem:[#allocation2 + $0x40] sm:$0xff] %vm715, %v1297
        %1314 = vst.msk [vmem:[#allocation2 + $0x48] sm:$0xff] %vm715, %v1298
        %1315 = vst.msk [vmem:[#allocation2 + $0x50] sm:$0xff] %vm715, %v1299
        %1316 = vst.msk [vmem:[#allocation2 + $0x58] sm:$0xff] %vm715, %v1300
        %1317 = vst.msk [vmem:[#allocation2 + $0x60] sm:$0xff] %vm715, %v1301
        %1318 = vst.msk [vmem:[#allocation2 + $0x68] sm:$0xff] %vm715, %v1302
        %1319 = vst.msk [vmem:[#allocation2 + $0x70] sm:$0xff] %vm715, %v1303
        %1320 = vst.msk [vmem:[#allocation2 + $0x78] sm:$0xff] %vm715, %v1304
        %1321 = vst.msk [vmem:[#allocation2 + $0x80] sm:$0xff] %vm715, %v1305
        %1322 = vst.msk [vmem:[#allocation2 + $0x88] sm:$0xff] %vm715, %v1306
        %1323 = vst.msk [vmem:[#allocation2 + $0x90] sm:$0xff] %vm715, %v1307
        %1324 = vst.msk [vmem:[#allocation2 + $0x98] sm:$0xff] %vm715, %v1308
        %v1325 = vld [vmem:[%s7] sm:$0x1]
        %v1326 = vld [vmem:[#allocation2 + $0xf] sm:$0xff]
        %v1327 = vld [vmem:[#allocation2 + $0x17] sm:$0xff]
        %v1328 = vld [vmem:[#allocation2 + $0x1f] sm:$0xff]
        %v1329 = vld [vmem:[#allocation2 + $0x27] sm:$0xff]
        %v1330 = vld [vmem:[#allocation2 + $0x2f] sm:$0xff]
        %v1331 = vld [vmem:[#allocation2 + $0x37] sm:$0xff]
        %v1332 = vld [vmem:[#allocation2 + $0x3f] sm:$0xff]
        %v1333 = vld [vmem:[#allocation2 + $0x47] sm:$0xff]
        %v1334 = vld [vmem:[#allocation2 + $0x4f] sm:$0xff]
        %v1335 = vld [vmem:[#allocation2 + $0x57] sm:$0xff]
        %v1336 = vld [vmem:[#allocation2 + $0x5f] sm:$0xff]
        %v1337 = vld [vmem:[#allocation2 + $0x67] sm:$0xff]
        %v1338 = vld [vmem:[#allocation2 + $0x6f] sm:$0xff]
        %v1339 = vld [vmem:[#allocation2 + $0x77] sm:$0xff]
        %v1340 = vld [vmem:[#allocation2 + $0x7f] sm:$0xff]
        %v1341 = vld [vmem:[#allocation2 + $0x87] sm:$0xff]
        %v1342 = vld [vmem:[#allocation2 + $0x10] sm:$0xff]
        %v1343 = vld [vmem:[#allocation2 + $0x18] sm:$0xff]
        %v1344 = vld [vmem:[#allocation2 + $0x20] sm:$0xff]
        %v1345 = vld [vmem:[#allocation2 + $0x28] sm:$0xff]
        %v1346 = vld [vmem:[#allocation2 + $0x30] sm:$0xff]
        %v1347 = vld [vmem:[#allocation2 + $0x38] sm:$0xff]
        %v1348 = vld [vmem:[#allocation2 + $0x40] sm:$0xff]
        %v1349 = vld [vmem:[#allocation2 + $0x48] sm:$0xff]
        %v1350 = vld [vmem:[#allocation2 + $0x50] sm:$0xff]
        %v1351 = vld [vmem:[#allocation2 + $0x58] sm:$0xff]
        %v1352 = vld [vmem:[#allocation2 + $0x60] sm:$0xff]
        %v1353 = vld [vmem:[#allocation2 + $0x68] sm:$0xff]
        %v1354 = vld [vmem:[#allocation2 + $0x70] sm:$0xff]
        %v1355 = vld [vmem:[#allocation2 + $0x78] sm:$0xff]
        %v1356 = vld [vmem:[#allocation2 + $0x80] sm:$0xff]
        %v1357 = vld [vmem:[#allocation2 + $0x88] sm:$0xff]
        %v1358 = vld [vmem:[#allocation2 + $0x11] sm:$0xff]
        %v1359 = vld [vmem:[#allocation2 + $0x19] sm:$0xff]
        %v1360 = vld [vmem:[#allocation2 + $0x21] sm:$0xff]
        %v1361 = vld [vmem:[#allocation2 + $0x29] sm:$0xff]
        %v1362 = vld [vmem:[#allocation2 + $0x31] sm:$0xff]
        %v1363 = vld [vmem:[#allocation2 + $0x39] sm:$0xff]
        %v1364 = vld [vmem:[#allocation2 + $0x41] sm:$0xff]
        %v1365 = vld [vmem:[#allocation2 + $0x49] sm:$0xff]
        %v1366 = vld [vmem:[#allocation2 + $0x51] sm:$0xff]
        %v1367 = vld [vmem:[#allocation2 + $0x59] sm:$0xff]
        %v1368 = vld [vmem:[#allocation2 + $0x61] sm:$0xff]
        %v1369 = vld [vmem:[#allocation2 + $0x69] sm:$0xff]
        %v1370 = vld [vmem:[#allocation2 + $0x71] sm:$0xff]
        %v1371 = vld [vmem:[#allocation2 + $0x79] sm:$0xff]
        %v1372 = vld [vmem:[#allocation2 + $0x81] sm:$0xff]
        %v1373 = vld [vmem:[#allocation2 + $0x89] sm:$0xff]
        %v1374 = vld [vmem:[#allocation6] sm:$0xff]
        %v1375 = vld [vmem:[#allocation6 + $0x8] sm:$0xff]
        %v1376 = vld [vmem:[#allocation6 + $0x10] sm:$0xff]
        %v1377 = vld [vmem:[#allocation6 + $0x18] sm:$0xff]
        %s1378 = scalar_lea.vmem [#allocation6], 32
        %v1379 = vld [vmem:[%s1378] sm:$0xff]
        %v1380 = vld [vmem:[%s1378 + $0x8] sm:$0xff]
        %v1381 = vld [vmem:[%s1378 + $0x10] sm:$0xff]
        %v1382 = vld [vmem:[%s1378 + $0x18] sm:$0xff]
        %v1384 = vsel %vm715, %v1342, 0
        %v1387 = vsel %vm715, %v1343, 0
        %v1390 = vsel %vm715, %v1344, 0
        %v1393 = vsel %vm715, %v1345, 0
        %v1396 = vsel %vm715, %v1346, 0
        %v1399 = vsel %vm715, %v1347, 0
        %v1402 = vsel %vm715, %v1348, 0
        %v1405 = vsel %vm715, %v1349, 0
        %v1408 = vsel %vm715, %v1350, 0
        %v1411 = vsel %vm715, %v1351, 0
        %v1414 = vsel %vm715, %v1352, 0
        %v1417 = vsel %vm715, %v1353, 0
        %v1420 = vsel %vm715, %v1354, 0
        %v1423 = vsel %vm715, %v1355, 0
        %v1426 = vsel %vm715, %v1356, 0
        %v1429 = vsel %vm715, %v1357, 0
        %1431 = vmatprep.subr.mxu0 0.0
        %1432 = vmatpush1.msra.mxu0 %v1379
        %1433 = vmatprep.subr.mxu0 0.0
        %1434 = vmatpush1.msra.mxu0 %v1380
        %1435 = vmatprep.subr.mxu0 0.0
        %1436 = vmatpush1.msra.mxu0 %v1381
        %1437 = vmatprep.subr.mxu0 0.0
        %1438 = vmatpush1.msra.mxu0 %v1382
        %1439 = vmatprep.subr.mxu0 0.0
        %1440 = vmatpush1.msra.mxu0 0.0
        %1441 = vmatprep.subr.mxu0 0.0
        %1442 = vmatpush1.msra.mxu0 0.0
        %1443 = vmatprep.subr.mxu0 0.0
        %1444 = vmatpush1.msra.mxu0 0.0
        %1445 = vmatprep.subr.mxu0 0.0
        %1446 = vmatpush1.msra.mxu0 0.0
        %1447 = vmatprep.subr.mxu0 0.0
        %1448 = vmatpush1.msra.mxu0 0.0
        %1449 = vmatprep.subr.mxu0 0.0
        %1450 = vmatpush1.msra.mxu0 0.0
        %1451 = vmatprep.subr.mxu0 0.0
        %1452 = vmatpush1.msra.mxu0 0.0
        %1453 = vmatprep.subr.mxu0 0.0
        %1454 = vmatpush1.msra.mxu0 0.0
        %1455 = vmatprep.subr.mxu0 0.0
        %1456 = vmatpush1.msra.mxu0 0.0
        %1457 = vmatprep.subr.mxu0 0.0
        %1458 = vmatpush1.msra.mxu0 0.0
        %1459 = vmatprep.subr.mxu0 0.0
        %1460 = vmatpush1.msra.mxu0 0.0
        %1461 = vmatprep.subr.mxu0 0.0
        %1462 = vmatpush1.msra.mxu0 0.0
        %1463 = vmatprep.subr.mxu0 0.0
        %1464 = vmatpush1.msra.mxu0 0.0
        %1465 = vmatprep.subr.mxu0 0.0
        %1466 = vmatpush1.msra.mxu0 0.0
        %1467 = vmatprep.subr.mxu0 0.0
        %1468 = vmatpush1.msra.mxu0 0.0
        %1469 = vmatprep.subr.mxu0 0.0
        %1470 = vmatpush1.msra.mxu0 0.0
        %1471 = vmatprep.subr.mxu0 0.0
        %1472 = vmatpush1.msra.mxu0 0.0
        %1473 = vmatprep.subr.mxu0 0.0
        %1474 = vmatpush1.msra.mxu0 0.0
        %1475 = vmatprep.subr.mxu0 0.0
        %1476 = vmatpush1.msra.mxu0 0.0
        %1477 = vmatprep.subr.mxu0 0.0
        %1478 = vmatpush1.msra.mxu0 0.0
        %1479 = vmatprep.subr.mxu0 0.0
        %1480 = vmatpush1.msra.mxu0 0.0
        %1481 = vmatprep.subr.mxu0 0.0
        %1482 = vmatpush1.msra.mxu0 0.0
        %1483 = vmatprep.subr.mxu0 0.0
        %1484 = vmatpush1.msra.mxu0 0.0
        %1485 = vmatprep.subr.mxu0 0.0
        %1486 = vmatpush1.msra.mxu0 0.0
        %1487 = vmatprep.subr.mxu0 0.0
        %1488 = vmatpush1.msra.mxu0 0.0
        %1489 = vmatprep.subr.mxu0 0.0
        %1490 = vmatpush1.msra.mxu0 0.0
        %1491 = vmatprep.subr.mxu0 0.0
        %1492 = vmatpush1.msra.mxu0 0.0
        %1493 = vmatprep.subr.mxu0 0.0
        %1494 = vmatpush1.msra.mxu0 0.0
        %1495 = vmatprep.mubr.f32.mxu0 0.0
        %1496 = vmatmul.mubr.f32.gmra.mrb[0].mxu0 %v1384
        %v1497 = vpop.f32.mrb[0].mxu0
        %v1498 = vadd.f32 0.0, %v1497
        %v1499 = vpop.f32.mrb[0].mxu0
        %1500 = vmatprep.mubr.f32.mxu0 0.0
        %1501 = vmatmul.mubr.f32.gmra.mrb[0].mxu0 %v1387
        %v1502 = vpop.f32.mrb[0].mxu0
        %v1503 = vadd.f32 0.0, %v1502
        %v1504 = vpop.f32.mrb[0].mxu0
        %1505 = vmatprep.mubr.f32.mxu0 0.0
        %1506 = vmatmul.mubr.f32.gmra.mrb[0].mxu0 %v1390
        %v1507 = vpop.f32.mrb[0].mxu0
        %v1508 = vadd.f32 0.0, %v1507
        %v1509 = vpop.f32.mrb[0].mxu0
        %1510 = vmatprep.mubr.f32.mxu0 0.0
        %1511 = vmatmul.mubr.f32.gmra.mrb[0].mxu0 %v1393
        %v1512 = vpop.f32.mrb[0].mxu0
        %v1513 = vadd.f32 0.0, %v1512
        %v1514 = vpop.f32.mrb[0].mxu0
        %1515 = vmatprep.mubr.f32.mxu0 0.0
        %1516 = vmatmul.mubr.f32.gmra.mrb[0].mxu0 %v1396
        %v1517 = vpop.f32.mrb[0].mxu0
        %v1518 = vadd.f32 0.0, %v1517
        %v1519 = vpop.f32.mrb[0].mxu0
        %1520 = vmatprep.mubr.f32.mxu0 0.0
        %1521 = vmatmul.mubr.f32.gmra.mrb[0].mxu0 %v1399
        %v1522 = vpop.f32.mrb[0].mxu0
        %v1523 = vadd.f32 0.0, %v1522
        %v1524 = vpop.f32.mrb[0].mxu0
        %1525 = vmatprep.mubr.f32.mxu0 0.0
        %1526 = vmatmul.mubr.f32.gmra.mrb[0].mxu0 %v1402
        %v1527 = vpop.f32.mrb[0].mxu0
        %v1528 = vadd.f32 0.0, %v1527
        %v1529 = vpop.f32.mrb[0].mxu0
        %1530 = vmatprep.mubr.f32.mxu0 0.0
        %1531 = vmatmul.mubr.f32.gmra.mrb[0].mxu0 %v1405
        %v1532 = vpop.f32.mrb[0].mxu0
        %v1533 = vadd.f32 0.0, %v1532
        %v1534 = vpop.f32.mrb[0].mxu0
        %1535 = vmatprep.mubr.f32.mxu0 0.0
        %1536 = vmatmul.mubr.f32.gmra.mrb[0].mxu0 %v1408
        %v1537 = vpop.f32.mrb[0].mxu0
        %v1538 = vadd.f32 0.0, %v1537
        %v1539 = vpop.f32.mrb[0].mxu0
        %1540 = vmatprep.mubr.f32.mxu0 0.0
        %1541 = vmatmul.mubr.f32.gmra.mrb[0].mxu0 %v1411
        %v1542 = vpop.f32.mrb[0].mxu0
        %v1543 = vadd.f32 0.0, %v1542
        %v1544 = vpop.f32.mrb[0].mxu0
        %1545 = vmatprep.mubr.f32.mxu0 0.0
        %1546 = vmatmul.mubr.f32.gmra.mrb[0].mxu0 %v1414
        %v1547 = vpop.f32.mrb[0].mxu0
        %v1548 = vadd.f32 0.0, %v1547
        %v1549 = vpop.f32.mrb[0].mxu0
        %1550 = vmatprep.mubr.f32.mxu0 0.0
        %1551 = vmatmul.mubr.f32.gmra.mrb[0].mxu0 %v1417
        %v1552 = vpop.f32.mrb[0].mxu0
        %v1553 = vadd.f32 0.0, %v1552
        %v1554 = vpop.f32.mrb[0].mxu0
        %1555 = vmatprep.mubr.f32.mxu0 0.0
        %1556 = vmatmul.mubr.f32.gmra.mrb[0].mxu0 %v1420
        %v1557 = vpop.f32.mrb[0].mxu0
        %v1558 = vadd.f32 0.0, %v1557
        %v1559 = vpop.f32.mrb[0].mxu0
        %1560 = vmatprep.mubr.f32.mxu0 0.0
        %1561 = vmatmul.mubr.f32.gmra.mrb[0].mxu0 %v1423
        %v1562 = vpop.f32.mrb[0].mxu0
        %v1563 = vadd.f32 0.0, %v1562
        %v1564 = vpop.f32.mrb[0].mxu0
        %1565 = vmatprep.mubr.f32.mxu0 0.0
        %1566 = vmatmul.mubr.f32.gmra.mrb[0].mxu0 %v1426
        %v1567 = vpop.f32.mrb[0].mxu0
        %v1568 = vadd.f32 0.0, %v1567
        %v1569 = vpop.f32.mrb[0].mxu0
        %1570 = vmatprep.mubr.f32.mxu0 0.0
        %1571 = vmatmul.mubr.f32.gmra.mrb[0].mxu0 %v1429
        %v1572 = vpop.f32.mrb[0].mxu0
        %v1573 = vadd.f32 0.0, %v1572
        %v1574 = vpop.f32.mrb[0].mxu0
        %1575 = vdwg.mxu0
        %v1577 = vsel %vm715, %v1326, 0
        %v1580 = vsel %vm715, %v1327, 0
        %v1583 = vsel %vm715, %v1328, 0
        %v1586 = vsel %vm715, %v1329, 0
        %v1589 = vsel %vm715, %v1330, 0
        %v1592 = vsel %vm715, %v1331, 0
        %v1595 = vsel %vm715, %v1332, 0
        %v1598 = vsel %vm715, %v1333, 0
        %v1601 = vsel %vm715, %v1334, 0
        %v1604 = vsel %vm715, %v1335, 0
        %v1607 = vsel %vm715, %v1336, 0
        %v1610 = vsel %vm715, %v1337, 0
        %v1613 = vsel %vm715, %v1338, 0
        %v1616 = vsel %vm715, %v1339, 0
        %v1619 = vsel %vm715, %v1340, 0
        %v1622 = vsel %vm715, %v1341, 0
        %1624 = vmatprep.subr.mxu0 0.0
        %1625 = vmatpush1.msra.mxu0 %v1374
        %1626 = vmatprep.subr.mxu0 0.0
        %1627 = vmatpush1.msra.mxu0 %v1375
        %1628 = vmatprep.subr.mxu0 0.0
        %1629 = vmatpush1.msra.mxu0 %v1376
        %1630 = vmatprep.subr.mxu0 0.0
        %1631 = vmatpush1.msra.mxu0 %v1377
        %1632 = vmatprep.subr.mxu0 0.0
        %1633 = vmatpush1.msra.mxu0 0.0
        %1634 = vmatprep.subr.mxu0 0.0
        %1635 = vmatpush1.msra.mxu0 0.0
        %1636 = vmatprep.subr.mxu0 0.0
        %1637 = vmatpush1.msra.mxu0 0.0
        %1638 = vmatprep.subr.mxu0 0.0
        %1639 = vmatpush1.msra.mxu0 0.0
        %1640 = vmatprep.subr.mxu0 0.0
        %1641 = vmatpush1.msra.mxu0 0.0
        %1642 = vmatprep.subr.mxu0 0.0
        %1643 = vmatpush1.msra.mxu0 0.0
        %1644 = vmatprep.subr.mxu0 0.0
        %1645 = vmatpush1.msra.mxu0 0.0
        %1646 = vmatprep.subr.mxu0 0.0
        %1647 = vmatpush1.msra.mxu0 0.0
        %1648 = vmatprep.subr.mxu0 0.0
        %1649 = vmatpush1.msra.mxu0 0.0
        %1650 = vmatprep.subr.mxu0 0.0
        %1651 = vmatpush1.msra.mxu0 0.0
        %1652 = vmatprep.subr.mxu0 0.0
        %1653 = vmatpush1.msra.mxu0 0.0
        %1654 = vmatprep.subr.mxu0 0.0
        %1655 = vmatpush1.msra.mxu0 0.0
        %1656 = vmatprep.subr.mxu0 0.0
        %1657 = vmatpush1.msra.mxu0 0.0
        %1658 = vmatprep.subr.mxu0 0.0
        %1659 = vmatpush1.msra.mxu0 0.0
        %1660 = vmatprep.subr.mxu0 0.0
        %1661 = vmatpush1.msra.mxu0 0.0
        %1662 = vmatprep.subr.mxu0 0.0
        %1663 = vmatpush1.msra.mxu0 0.0
        %1664 = vmatprep.subr.mxu0 0.0
        %1665 = vmatpush1.msra.mxu0 0.0
        %1666 = vmatprep.subr.mxu0 0.0
        %1667 = vmatpush1.msra.mxu0 0.0
        %1668 = vmatprep.subr.mxu0 0.0
        %1669 = vmatpush1.msra.mxu0 0.0
        %1670 = vmatprep.subr.mxu0 0.0
        %1671 = vmatpush1.msra.mxu0 0.0
        %1672 = vmatprep.subr.mxu0 0.0
        %1673 = vmatpush1.msra.mxu0 0.0
        %1674 = vmatprep.subr.mxu0 0.0
        %1675 = vmatpush1.msra.mxu0 0.0
        %1676 = vmatprep.subr.mxu0 0.0
        %1677 = vmatpush1.msra.mxu0 0.0
        %1678 = vmatprep.subr.mxu0 0.0
        %1679 = vmatpush1.msra.mxu0 0.0
        %1680 = vmatprep.subr.mxu0 0.0
        %1681 = vmatpush1.msra.mxu0 0.0
        %1682 = vmatprep.subr.mxu0 0.0
        %1683 = vmatpush1.msra.mxu0 0.0
        %1684 = vmatprep.subr.mxu0 0.0
        %1685 = vmatpush1.msra.mxu0 0.0
        %1686 = vmatprep.subr.mxu0 0.0
        %1687 = vmatpush1.msra.mxu0 0.0
        %1688 = vmatprep.mubr.f32.mxu0 0.0
        %1689 = vmatmul.mubr.f32.gmra.mrb[0].mxu0 %v1577
        %v1690 = vpop.f32.mrb[0].mxu0
        %v1691 = vadd.f32 %v1498, %v1690
        %v1692 = vpop.f32.mrb[0].mxu0
        %1693 = vmatprep.mubr.f32.mxu0 0.0
        %1694 = vmatmul.mubr.f32.gmra.mrb[0].mxu0 %v1580
        %v1695 = vpop.f32.mrb[0].mxu0
        %v1696 = vadd.f32 %v1503, %v1695
        %v1697 = vpop.f32.mrb[0].mxu0
        %1698 = vmatprep.mubr.f32.mxu0 0.0
        %1699 = vmatmul.mubr.f32.gmra.mrb[0].mxu0 %v1583
        %v1700 = vpop.f32.mrb[0].mxu0
        %v1701 = vadd.f32 %v1508, %v1700
        %v1702 = vpop.f32.mrb[0].mxu0
        %1703 = vmatprep.mubr.f32.mxu0 0.0
        %1704 = vmatmul.mubr.f32.gmra.mrb[0].mxu0 %v1586
        %v1705 = vpop.f32.mrb[0].mxu0
        %v1706 = vadd.f32 %v1513, %v1705
        %v1707 = vpop.f32.mrb[0].mxu0
        %1708 = vmatprep.mubr.f32.mxu0 0.0
        %1709 = vmatmul.mubr.f32.gmra.mrb[0].mxu0 %v1589
        %v1710 = vpop.f32.mrb[0].mxu0
        %v1711 = vadd.f32 %v1518, %v1710
        %v1712 = vpop.f32.mrb[0].mxu0
        %1713 = vmatprep.mubr.f32.mxu0 0.0
        %1714 = vmatmul.mubr.f32.gmra.mrb[0].mxu0 %v1592
        %v1715 = vpop.f32.mrb[0].mxu0
        %v1716 = vadd.f32 %v1523, %v1715
        %v1717 = vpop.f32.mrb[0].mxu0
        %1718 = vmatprep.mubr.f32.mxu0 0.0
        %1719 = vmatmul.mubr.f32.gmra.mrb[0].mxu0 %v1595
        %v1720 = vpop.f32.mrb[0].mxu0
        %v1721 = vadd.f32 %v1528, %v1720
        %v1722 = vpop.f32.mrb[0].mxu0
        %1723 = vmatprep.mubr.f32.mxu0 0.0
        %1724 = vmatmul.mubr.f32.gmra.mrb[0].mxu0 %v1598
        %v1725 = vpop.f32.mrb[0].mxu0
        %v1726 = vadd.f32 %v1533, %v1725
        %v1727 = vpop.f32.mrb[0].mxu0
        %1728 = vmatprep.mubr.f32.mxu0 0.0
        %1729 = vmatmul.mubr.f32.gmra.mrb[0].mxu0 %v1601
        %v1730 = vpop.f32.mrb[0].mxu0
        %v1731 = vadd.f32 %v1538, %v1730
        %v1732 = vpop.f32.mrb[0].mxu0
        %1733 = vmatprep.mubr.f32.mxu0 0.0
        %1734 = vmatmul.mubr.f32.gmra.mrb[0].mxu0 %v1604
        %v1735 = vpop.f32.mrb[0].mxu0
        %v1736 = vadd.f32 %v1543, %v1735
        %v1737 = vpop.f32.mrb[0].mxu0
        %1738 = vmatprep.mubr.f32.mxu0 0.0
        %1739 = vmatmul.mubr.f32.gmra.mrb[0].mxu0 %v1607
        %v1740 = vpop.f32.mrb[0].mxu0
        %v1741 = vadd.f32 %v1548, %v1740
        %v1742 = vpop.f32.mrb[0].mxu0
        %1743 = vmatprep.mubr.f32.mxu0 0.0
        %1744 = vmatmul.mubr.f32.gmra.mrb[0].mxu0 %v1610
        %v1745 = vpop.f32.mrb[0].mxu0
        %v1746 = vadd.f32 %v1553, %v1745
        %v1747 = vpop.f32.mrb[0].mxu0
        %1748 = vmatprep.mubr.f32.mxu0 0.0
        %1749 = vmatmul.mubr.f32.gmra.mrb[0].mxu0 %v1613
        %v1750 = vpop.f32.mrb[0].mxu0
        %v1751 = vadd.f32 %v1558, %v1750
        %v1752 = vpop.f32.mrb[0].mxu0
        %1753 = vmatprep.mubr.f32.mxu0 0.0
        %1754 = vmatmul.mubr.f32.gmra.mrb[0].mxu0 %v1616
        %v1755 = vpop.f32.mrb[0].mxu0
        %v1756 = vadd.f32 %v1563, %v1755
        %v1757 = vpop.f32.mrb[0].mxu0
        %1758 = vmatprep.mubr.f32.mxu0 0.0
        %1759 = vmatmul.mubr.f32.gmra.mrb[0].mxu0 %v1619
        %v1760 = vpop.f32.mrb[0].mxu0
        %v1761 = vadd.f32 %v1568, %v1760
        %v1762 = vpop.f32.mrb[0].mxu0
        %1763 = vmatprep.mubr.f32.mxu0 0.0
        %1764 = vmatmul.mubr.f32.gmra.mrb[0].mxu0 %v1622
        %v1765 = vpop.f32.mrb[0].mxu0
        %v1766 = vadd.f32 %v1573, %v1765
        %v1767 = vpop.f32.mrb[0].mxu0
        %1768 = vdwg.mxu0
        %s1769 = scalar_lea.vmem [#allocation6], 64
        %v1770 = vld [vmem:[%s1769] sm:$0xff]
        %v1771 = vld [vmem:[%s1769 + $0x8] sm:$0xff]
        %v1772 = vld [vmem:[%s1769 + $0x10] sm:$0xff]
        %v1773 = vld [vmem:[%s1769 + $0x18] sm:$0xff]
        %v1775 = vsel %vm715, %v1358, 0
        %v1778 = vsel %vm715, %v1359, 0
        %v1781 = vsel %vm715, %v1360, 0
        %v1784 = vsel %vm715, %v1361, 0
        %v1787 = vsel %vm715, %v1362, 0
        %v1790 = vsel %vm715, %v1363, 0
        %v1793 = vsel %vm715, %v1364, 0
        %v1796 = vsel %vm715, %v1365, 0
        %v1799 = vsel %vm715, %v1366, 0
        %v1802 = vsel %vm715, %v1367, 0
        %v1805 = vsel %vm715, %v1368, 0
        %v1808 = vsel %vm715, %v1369, 0
        %v1811 = vsel %vm715, %v1370, 0
        %v1814 = vsel %vm715, %v1371, 0
        %v1817 = vsel %vm715, %v1372, 0
        %v1820 = vsel %vm715, %v1373, 0
        %1822 = vmatprep.subr.mxu0 0.0
        %1823 = vmatpush1.msra.mxu0 %v1770
        %1824 = vmatprep.subr.mxu0 0.0
        %1825 = vmatpush1.msra.mxu0 %v1771
        %1826 = vmatprep.subr.mxu0 0.0
        %1827 = vmatpush1.msra.mxu0 %v1772
        %1828 = vmatprep.subr.mxu0 0.0
        %1829 = vmatpush1.msra.mxu0 %v1773
        %1830 = vmatprep.subr.mxu0 0.0
        %1831 = vmatpush1.msra.mxu0 0.0
        %1832 = vmatprep.subr.mxu0 0.0
        %1833 = vmatpush1.msra.mxu0 0.0
        %1834 = vmatprep.subr.mxu0 0.0
        %1835 = vmatpush1.msra.mxu0 0.0
        %1836 = vmatprep.subr.mxu0 0.0
        %1837 = vmatpush1.msra.mxu0 0.0
        %1838 = vmatprep.subr.mxu0 0.0
        %1839 = vmatpush1.msra.mxu0 0.0
        %1840 = vmatprep.subr.mxu0 0.0
        %1841 = vmatpush1.msra.mxu0 0.0
        %1842 = vmatprep.subr.mxu0 0.0
        %1843 = vmatpush1.msra.mxu0 0.0
        %1844 = vmatprep.subr.mxu0 0.0
        %1845 = vmatpush1.msra.mxu0 0.0
        %1846 = vmatprep.subr.mxu0 0.0
        %1847 = vmatpush1.msra.mxu0 0.0
        %1848 = vmatprep.subr.mxu0 0.0
        %1849 = vmatpush1.msra.mxu0 0.0
        %1850 = vmatprep.subr.mxu0 0.0
        %1851 = vmatpush1.msra.mxu0 0.0
        %1852 = vmatprep.subr.mxu0 0.0
        %1853 = vmatpush1.msra.mxu0 0.0
        %1854 = vmatprep.subr.mxu0 0.0
        %1855 = vmatpush1.msra.mxu0 0.0
        %1856 = vmatprep.subr.mxu0 0.0
        %1857 = vmatpush1.msra.mxu0 0.0
        %1858 = vmatprep.subr.mxu0 0.0
        %1859 = vmatpush1.msra.mxu0 0.0
        %1860 = vmatprep.subr.mxu0 0.0
        %1861 = vmatpush1.msra.mxu0 0.0
        %1862 = vmatprep.subr.mxu0 0.0
        %1863 = vmatpush1.msra.mxu0 0.0
        %1864 = vmatprep.subr.mxu0 0.0
        %1865 = vmatpush1.msra.mxu0 0.0
        %1866 = vmatprep.subr.mxu0 0.0
        %1867 = vmatpush1.msra.mxu0 0.0
        %1868 = vmatprep.subr.mxu0 0.0
        %1869 = vmatpush1.msra.mxu0 0.0
        %1870 = vmatprep.subr.mxu0 0.0
        %1871 = vmatpush1.msra.mxu0 0.0
        %1872 = vmatprep.subr.mxu0 0.0
        %1873 = vmatpush1.msra.mxu0 0.0
        %1874 = vmatprep.subr.mxu0 0.0
        %1875 = vmatpush1.msra.mxu0 0.0
        %1876 = vmatprep.subr.mxu0 0.0
        %1877 = vmatpush1.msra.mxu0 0.0
        %1878 = vmatprep.subr.mxu0 0.0
        %1879 = vmatpush1.msra.mxu0 0.0
        %1880 = vmatprep.subr.mxu0 0.0
        %1881 = vmatpush1.msra.mxu0 0.0
        %1882 = vmatprep.subr.mxu0 0.0
        %1883 = vmatpush1.msra.mxu0 0.0
        %1884 = vmatprep.subr.mxu0 0.0
        %1885 = vmatpush1.msra.mxu0 0.0
        %1886 = vmatprep.mubr.f32.mxu0 0.0
        %1887 = vmatmul.mubr.f32.gmra.mrb[0].mxu0 %v1775
        %v1888 = vpop.f32.mrb[0].mxu0
        %v1889 = vadd.f32 0.0, %v1888
        %v1890 = vpop.f32.mrb[0].mxu0
        %1891 = vmatprep.mubr.f32.mxu0 0.0
        %1892 = vmatmul.mubr.f32.gmra.mrb[0].mxu0 %v1778
        %v1893 = vpop.f32.mrb[0].mxu0
        %v1894 = vadd.f32 0.0, %v1893
        %v1895 = vpop.f32.mrb[0].mxu0
        %1896 = vmatprep.mubr.f32.mxu0 0.0
        %1897 = vmatmul.mubr.f32.gmra.mrb[0].mxu0 %v1781
        %v1898 = vpop.f32.mrb[0].mxu0
        %v1899 = vadd.f32 0.0, %v1898
        %v1900 = vpop.f32.mrb[0].mxu0
        %1901 = vmatprep.mubr.f32.mxu0 0.0
        %1902 = vmatmul.mubr.f32.gmra.mrb[0].mxu0 %v1784
        %v1903 = vpop.f32.mrb[0].mxu0
        %v1904 = vadd.f32 0.0, %v1903
        %v1905 = vpop.f32.mrb[0].mxu0
        %1906 = vmatprep.mubr.f32.mxu0 0.0
        %1907 = vmatmul.mubr.f32.gmra.mrb[0].mxu0 %v1787
        %v1908 = vpop.f32.mrb[0].mxu0
        %v1909 = vadd.f32 0.0, %v1908
        %v1910 = vpop.f32.mrb[0].mxu0
        %1911 = vmatprep.mubr.f32.mxu0 0.0
        %1912 = vmatmul.mubr.f32.gmra.mrb[0].mxu0 %v1790
        %v1913 = vpop.f32.mrb[0].mxu0
        %v1914 = vadd.f32 0.0, %v1913
        %v1915 = vpop.f32.mrb[0].mxu0
        %1916 = vmatprep.mubr.f32.mxu0 0.0
        %1917 = vmatmul.mubr.f32.gmra.mrb[0].mxu0 %v1793
        %v1918 = vpop.f32.mrb[0].mxu0
        %v1919 = vadd.f32 0.0, %v1918
        %v1920 = vpop.f32.mrb[0].mxu0
        %1921 = vmatprep.mubr.f32.mxu0 0.0
        %1922 = vmatmul.mubr.f32.gmra.mrb[0].mxu0 %v1796
        %v1923 = vpop.f32.mrb[0].mxu0
        %v1924 = vadd.f32 0.0, %v1923
        %v1925 = vpop.f32.mrb[0].mxu0
        %1926 = vmatprep.mubr.f32.mxu0 0.0
        %1927 = vmatmul.mubr.f32.gmra.mrb[0].mxu0 %v1799
        %v1928 = vpop.f32.mrb[0].mxu0
        %v1929 = vadd.f32 0.0, %v1928
        %v1930 = vpop.f32.mrb[0].mxu0
        %1931 = vmatprep.mubr.f32.mxu0 0.0
        %1932 = vmatmul.mubr.f32.gmra.mrb[0].mxu0 %v1802
        %v1933 = vpop.f32.mrb[0].mxu0
        %v1934 = vadd.f32 0.0, %v1933
        %v1935 = vpop.f32.mrb[0].mxu0
        %1936 = vmatprep.mubr.f32.mxu0 0.0
        %1937 = vmatmul.mubr.f32.gmra.mrb[0].mxu0 %v1805
        %v1938 = vpop.f32.mrb[0].mxu0
        %v1939 = vadd.f32 0.0, %v1938
        %v1940 = vpop.f32.mrb[0].mxu0
        %1941 = vmatprep.mubr.f32.mxu0 0.0
        %1942 = vmatmul.mubr.f32.gmra.mrb[0].mxu0 %v1808
        %v1943 = vpop.f32.mrb[0].mxu0
        %v1944 = vadd.f32 0.0, %v1943
        %v1945 = vpop.f32.mrb[0].mxu0
        %1946 = vmatprep.mubr.f32.mxu0 0.0
        %1947 = vmatmul.mubr.f32.gmra.mrb[0].mxu0 %v1811
        %v1948 = vpop.f32.mrb[0].mxu0
        %v1949 = vadd.f32 0.0, %v1948
        %v1950 = vpop.f32.mrb[0].mxu0
        %1951 = vmatprep.mubr.f32.mxu0 0.0
        %1952 = vmatmul.mubr.f32.gmra.mrb[0].mxu0 %v1814
        %v1953 = vpop.f32.mrb[0].mxu0
        %v1954 = vadd.f32 0.0, %v1953
        %v1955 = vpop.f32.mrb[0].mxu0
        %1956 = vmatprep.mubr.f32.mxu0 0.0
        %1957 = vmatmul.mubr.f32.gmra.mrb[0].mxu0 %v1817
        %v1958 = vpop.f32.mrb[0].mxu0
        %v1959 = vadd.f32 0.0, %v1958
        %v1960 = vpop.f32.mrb[0].mxu0
        %1961 = vmatprep.mubr.f32.mxu0 0.0
        %1962 = vmatmul.mubr.f32.gmra.mrb[0].mxu0 %v1820
        %v1963 = vpop.f32.mrb[0].mxu0
        %v1964 = vadd.f32 0.0, %v1963
        %v1965 = vpop.f32.mrb[0].mxu0
        %1966 = vdwg.mxu0
        %v1967 = vadd.f32 %v1691, %v1889
        %v1968 = vadd.f32 %v1696, %v1894
        %v1969 = vadd.f32 %v1701, %v1899
        %v1970 = vadd.f32 %v1706, %v1904
        %v1971 = vadd.f32 %v1711, %v1909
        %v1972 = vadd.f32 %v1716, %v1914
        %v1973 = vadd.f32 %v1721, %v1919
        %v1974 = vadd.f32 %v1726, %v1924
        %v1975 = vadd.f32 %v1731, %v1929
        %v1976 = vadd.f32 %v1736, %v1934
        %v1977 = vadd.f32 %v1741, %v1939
        %v1978 = vadd.f32 %v1746, %v1944
        %v1979 = vadd.f32 %v1751, %v1949
        %v1980 = vadd.f32 %v1756, %v1954
        %v1981 = vadd.f32 %v1761, %v1959
        %v1982 = vadd.f32 %v1766, %v1964
        %v1983 = vld [vmem:[#allocation2 + $0x1f] sm:$0xff]
        %v1984 = vld [vmem:[#allocation2 + $0x27] sm:$0xff]
        %v1985 = vld [vmem:[#allocation2 + $0x2f] sm:$0xff]
        %v1986 = vld [vmem:[#allocation2 + $0x37] sm:$0xff]
        %v1987 = vld [vmem:[#allocation2 + $0x3f] sm:$0xff]
        %v1988 = vld [vmem:[#allocation2 + $0x47] sm:$0xff]
        %v1989 = vld [vmem:[#allocation2 + $0x4f] sm:$0xff]
        %v1990 = vld [vmem:[#allocation2 + $0x57] sm:$0xff]
        %v1991 = vld [vmem:[#allocation2 + $0x5f] sm:$0xff]
        %v1992 = vld [vmem:[#allocation2 + $0x67] sm:$0xff]
        %v1993 = vld [vmem:[#allocation2 + $0x6f] sm:$0xff]
        %v1994 = vld [vmem:[#allocation2 + $0x77] sm:$0xff]
        %v1995 = vld [vmem:[#allocation2 + $0x7f] sm:$0xff]
        %v1996 = vld [vmem:[#allocation2 + $0x87] sm:$0xff]
        %v1997 = vld [vmem:[#allocation2 + $0x8f] sm:$0xff]
        %v1998 = vld [vmem:[#allocation2 + $0x97] sm:$0xff]
        %v1999 = vld [vmem:[#allocation2 + $0x20] sm:$0xff]
        %v2000 = vld [vmem:[#allocation2 + $0x28] sm:$0xff]
        %v2001 = vld [vmem:[#allocation2 + $0x30] sm:$0xff]
        %v2002 = vld [vmem:[#allocation2 + $0x38] sm:$0xff]
        %v2003 = vld [vmem:[#allocation2 + $0x40] sm:$0xff]
        %v2004 = vld [vmem:[#allocation2 + $0x48] sm:$0xff]
        %v2005 = vld [vmem:[#allocation2 + $0x50] sm:$0xff]
        %v2006 = vld [vmem:[#allocation2 + $0x58] sm:$0xff]
        %v2007 = vld [vmem:[#allocation2 + $0x60] sm:$0xff]
        %v2008 = vld [vmem:[#allocation2 + $0x68] sm:$0xff]
        %v2009 = vld [vmem:[#allocation2 + $0x70] sm:$0xff]
        %v2010 = vld [vmem:[#allocation2 + $0x78] sm:$0xff]
        %v2011 = vld [vmem:[#allocation2 + $0x80] sm:$0xff]
        %v2012 = vld [vmem:[#allocation2 + $0x88] sm:$0xff]
        %v2013 = vld [vmem:[#allocation2 + $0x90] sm:$0xff]
        %v2014 = vld [vmem:[#allocation2 + $0x98] sm:$0xff]
        %v2015 = vld [vmem:[#allocation2 + $0x21] sm:$0xff]
        %v2016 = vld [vmem:[#allocation2 + $0x29] sm:$0xff]
        %v2017 = vld [vmem:[#allocation2 + $0x31] sm:$0xff]
        %v2018 = vld [vmem:[#allocation2 + $0x39] sm:$0xff]
        %v2019 = vld [vmem:[#allocation2 + $0x41] sm:$0xff]
        %v2020 = vld [vmem:[#allocation2 + $0x49] sm:$0xff]
        %v2021 = vld [vmem:[#allocation2 + $0x51] sm:$0xff]
        %v2022 = vld [vmem:[#allocation2 + $0x59] sm:$0xff]
        %v2023 = vld [vmem:[#allocation2 + $0x61] sm:$0xff]
        %v2024 = vld [vmem:[#allocation2 + $0x69] sm:$0xff]
        %v2025 = vld [vmem:[#allocation2 + $0x71] sm:$0xff]
        %v2026 = vld [vmem:[#allocation2 + $0x79] sm:$0xff]
        %v2027 = vld [vmem:[#allocation2 + $0x81] sm:$0xff]
        %v2028 = vld [vmem:[#allocation2 + $0x89] sm:$0xff]
        %v2029 = vld [vmem:[#allocation2 + $0x91] sm:$0xff]
        %v2030 = vld [vmem:[#allocation2 + $0x99] sm:$0xff]
        %s2031 = scalar_lea.vmem [#allocation6], 96
        %v2032 = vld [vmem:[%s2031] sm:$0xff]
        %v2033 = vld [vmem:[%s2031 + $0x8] sm:$0xff]
        %v2034 = vld [vmem:[%s2031 + $0x10] sm:$0xff]
        %v2035 = vld [vmem:[%s2031 + $0x18] sm:$0xff]
        %v2037 = vsel %vm715, %v1983, 0
        %v2040 = vsel %vm715, %v1984, 0
        %v2043 = vsel %vm715, %v1985, 0
        %v2046 = vsel %vm715, %v1986, 0
        %v2049 = vsel %vm715, %v1987, 0
        %v2052 = vsel %vm715, %v1988, 0
        %v2055 = vsel %vm715, %v1989, 0
        %v2058 = vsel %vm715, %v1990, 0
        %v2061 = vsel %vm715, %v1991, 0
        %v2064 = vsel %vm715, %v1992, 0
        %v2067 = vsel %vm715, %v1993, 0
        %v2070 = vsel %vm715, %v1994, 0
        %v2073 = vsel %vm715, %v1995, 0
        %v2076 = vsel %vm715, %v1996, 0
        %v2079 = vsel %vm715, %v1997, 0
        %v2082 = vsel %vm715, %v1998, 0
        %2084 = vmatprep.subr.mxu0 0.0
        %2085 = vmatpush1.msra.mxu0 %v2032
        %2086 = vmatprep.subr.mxu0 0.0
        %2087 = vmatpush1.msra.mxu0 %v2033
        %2088 = vmatprep.subr.mxu0 0.0
        %2089 = vmatpush1.msra.mxu0 %v2034
        %2090 = vmatprep.subr.mxu0 0.0
        %2091 = vmatpush1.msra.mxu0 %v2035
        %2092 = vmatprep.subr.mxu0 0.0
        %2093 = vmatpush1.msra.mxu0 0.0
        %2094 = vmatprep.subr.mxu0 0.0
        %2095 = vmatpush1.msra.mxu0 0.0
        %2096 = vmatprep.subr.mxu0 0.0
        %2097 = vmatpush1.msra.mxu0 0.0
        %2098 = vmatprep.subr.mxu0 0.0
        %2099 = vmatpush1.msra.mxu0 0.0
        %2100 = vmatprep.subr.mxu0 0.0
        %2101 = vmatpush1.msra.mxu0 0.0
        %2102 = vmatprep.subr.mxu0 0.0
        %2103 = vmatpush1.msra.mxu0 0.0
        %2104 = vmatprep.subr.mxu0 0.0
        %2105 = vmatpush1.msra.mxu0 0.0
        %2106 = vmatprep.subr.mxu0 0.0
        %2107 = vmatpush1.msra.mxu0 0.0
        %2108 = vmatprep.subr.mxu0 0.0
        %2109 = vmatpush1.msra.mxu0 0.0
        %2110 = vmatprep.subr.mxu0 0.0
        %2111 = vmatpush1.msra.mxu0 0.0
        %2112 = vmatprep.subr.mxu0 0.0
        %2113 = vmatpush1.msra.mxu0 0.0
        %2114 = vmatprep.subr.mxu0 0.0
        %2115 = vmatpush1.msra.mxu0 0.0
        %2116 = vmatprep.subr.mxu0 0.0
        %2117 = vmatpush1.msra.mxu0 0.0
        %2118 = vmatprep.subr.mxu0 0.0
        %2119 = vmatpush1.msra.mxu0 0.0
        %2120 = vmatprep.subr.mxu0 0.0
        %2121 = vmatpush1.msra.mxu0 0.0
        %2122 = vmatprep.subr.mxu0 0.0
        %2123 = vmatpush1.msra.mxu0 0.0
        %2124 = vmatprep.subr.mxu0 0.0
        %2125 = vmatpush1.msra.mxu0 0.0
        %2126 = vmatprep.subr.mxu0 0.0
        %2127 = vmatpush1.msra.mxu0 0.0
        %2128 = vmatprep.subr.mxu0 0.0
        %2129 = vmatpush1.msra.mxu0 0.0
        %2130 = vmatprep.subr.mxu0 0.0
        %2131 = vmatpush1.msra.mxu0 0.0
        %2132 = vmatprep.subr.mxu0 0.0
        %2133 = vmatpush1.msra.mxu0 0.0
        %2134 = vmatprep.subr.mxu0 0.0
        %2135 = vmatpush1.msra.mxu0 0.0
        %2136 = vmatprep.subr.mxu0 0.0
        %2137 = vmatpush1.msra.mxu0 0.0
        %2138 = vmatprep.subr.mxu0 0.0
        %2139 = vmatpush1.msra.mxu0 0.0
        %2140 = vmatprep.subr.mxu0 0.0
        %2141 = vmatpush1.msra.mxu0 0.0
        %2142 = vmatprep.subr.mxu0 0.0
        %2143 = vmatpush1.msra.mxu0 0.0
        %2144 = vmatprep.subr.mxu0 0.0
        %2145 = vmatpush1.msra.mxu0 0.0
        %2146 = vmatprep.subr.mxu0 0.0
        %2147 = vmatpush1.msra.mxu0 0.0
        %2148 = vmatprep.mubr.f32.mxu0 0.0
        %2149 = vmatmul.mubr.f32.gmra.mrb[0].mxu0 %v2037
        %v2150 = vpop.f32.mrb[0].mxu0
        %v2151 = vadd.f32 0.0, %v2150
        %v2152 = vpop.f32.mrb[0].mxu0
        %2153 = vmatprep.mubr.f32.mxu0 0.0
        %2154 = vmatmul.mubr.f32.gmra.mrb[0].mxu0 %v2040
        %v2155 = vpop.f32.mrb[0].mxu0
        %v2156 = vadd.f32 0.0, %v2155
        %v2157 = vpop.f32.mrb[0].mxu0
        %2158 = vmatprep.mubr.f32.mxu0 0.0
        %2159 = vmatmul.mubr.f32.gmra.mrb[0].mxu0 %v2043
        %v2160 = vpop.f32.mrb[0].mxu0
        %v2161 = vadd.f32 0.0, %v2160
        %v2162 = vpop.f32.mrb[0].mxu0
        %2163 = vmatprep.mubr.f32.mxu0 0.0
        %2164 = vmatmul.mubr.f32.gmra.mrb[0].mxu0 %v2046
        %v2165 = vpop.f32.mrb[0].mxu0
        %v2166 = vadd.f32 0.0, %v2165
        %v2167 = vpop.f32.mrb[0].mxu0
        %2168 = vmatprep.mubr.f32.mxu0 0.0
        %2169 = vmatmul.mubr.f32.gmra.mrb[0].mxu0 %v2049
        %v2170 = vpop.f32.mrb[0].mxu0
        %v2171 = vadd.f32 0.0, %v2170
        %v2172 = vpop.f32.mrb[0].mxu0
        %2173 = vmatprep.mubr.f32.mxu0 0.0
        %2174 = vmatmul.mubr.f32.gmra.mrb[0].mxu0 %v2052
        %v2175 = vpop.f32.mrb[0].mxu0
        %v2176 = vadd.f32 0.0, %v2175
        %v2177 = vpop.f32.mrb[0].mxu0
        %2178 = vmatprep.mubr.f32.mxu0 0.0
        %2179 = vmatmul.mubr.f32.gmra.mrb[0].mxu0 %v2055
        %v2180 = vpop.f32.mrb[0].mxu0
        %v2181 = vadd.f32 0.0, %v2180
        %v2182 = vpop.f32.mrb[0].mxu0
        %2183 = vmatprep.mubr.f32.mxu0 0.0
        %2184 = vmatmul.mubr.f32.gmra.mrb[0].mxu0 %v2058
        %v2185 = vpop.f32.mrb[0].mxu0
        %v2186 = vadd.f32 0.0, %v2185
        %v2187 = vpop.f32.mrb[0].mxu0
        %2188 = vmatprep.mubr.f32.mxu0 0.0
        %2189 = vmatmul.mubr.f32.gmra.mrb[0].mxu0 %v2061
        %v2190 = vpop.f32.mrb[0].mxu0
        %v2191 = vadd.f32 0.0, %v2190
        %v2192 = vpop.f32.mrb[0].mxu0
        %2193 = vmatprep.mubr.f32.mxu0 0.0
        %2194 = vmatmul.mubr.f32.gmra.mrb[0].mxu0 %v2064
        %v2195 = vpop.f32.mrb[0].mxu0
        %v2196 = vadd.f32 0.0, %v2195
        %v2197 = vpop.f32.mrb[0].mxu0
        %2198 = vmatprep.mubr.f32.mxu0 0.0
        %2199 = vmatmul.mubr.f32.gmra.mrb[0].mxu0 %v2067
        %v2200 = vpop.f32.mrb[0].mxu0
        %v2201 = vadd.f32 0.0, %v2200
        %v2202 = vpop.f32.mrb[0].mxu0
        %2203 = vmatprep.mubr.f32.mxu0 0.0
        %2204 = vmatmul.mubr.f32.gmra.mrb[0].mxu0 %v2070
        %v2205 = vpop.f32.mrb[0].mxu0
        %v2206 = vadd.f32 0.0, %v2205
        %v2207 = vpop.f32.mrb[0].mxu0
        %2208 = vmatprep.mubr.f32.mxu0 0.0
        %2209 = vmatmul.mubr.f32.gmra.mrb[0].mxu0 %v2073
        %v2210 = vpop.f32.mrb[0].mxu0
        %v2211 = vadd.f32 0.0, %v2210
        %v2212 = vpop.f32.mrb[0].mxu0
        %2213 = vmatprep.mubr.f32.mxu0 0.0
        %2214 = vmatmul.mubr.f32.gmra.mrb[0].mxu0 %v2076
        %v2215 = vpop.f32.mrb[0].mxu0
        %v2216 = vadd.f32 0.0, %v2215
        %v2217 = vpop.f32.mrb[0].mxu0
        %2218 = vmatprep.mubr.f32.mxu0 0.0
        %2219 = vmatmul.mubr.f32.gmra.mrb[0].mxu0 %v2079
        %v2220 = vpop.f32.mrb[0].mxu0
        %v2221 = vadd.f32 0.0, %v2220
        %v2222 = vpop.f32.mrb[0].mxu0
        %2223 = vmatprep.mubr.f32.mxu0 0.0
        %2224 = vmatmul.mubr.f32.gmra.mrb[0].mxu0 %v2082
        %v2225 = vpop.f32.mrb[0].mxu0
        %v2226 = vadd.f32 0.0, %v2225
        %v2227 = vpop.f32.mrb[0].mxu0
        %2228 = vdwg.mxu0
        %v2229 = vadd.f32 %v1967, %v2151
        %v2230 = vadd.f32 %v1968, %v2156
        %v2231 = vadd.f32 %v1969, %v2161
        %v2232 = vadd.f32 %v1970, %v2166
        %v2233 = vadd.f32 %v1971, %v2171
        %v2234 = vadd.f32 %v1972, %v2176
        %v2235 = vadd.f32 %v1973, %v2181
        %v2236 = vadd.f32 %v1974, %v2186
        %v2237 = vadd.f32 %v1975, %v2191
        %v2238 = vadd.f32 %v1976, %v2196
        %v2239 = vadd.f32 %v1977, %v2201
        %v2240 = vadd.f32 %v1978, %v2206
        %v2241 = vadd.f32 %v1979, %v2211
        %v2242 = vadd.f32 %v1980, %v2216
        %v2243 = vadd.f32 %v1981, %v2221
        %v2244 = vadd.f32 %v1982, %v2226
        %s2245 = scalar_lea.vmem [#allocation6], 128
        %v2246 = vld [vmem:[%s2245] sm:$0xff]
        %v2247 = vld [vmem:[%s2245 + $0x8] sm:$0xff]
        %v2248 = vld [vmem:[%s2245 + $0x10] sm:$0xff]
        %v2249 = vld [vmem:[%s2245 + $0x18] sm:$0xff]
        %v2251 = vsel %vm715, %v1999, 0
        %v2254 = vsel %vm715, %v2000, 0
        %v2257 = vsel %vm715, %v2001, 0
        %v2260 = vsel %vm715, %v2002, 0
        %v2263 = vsel %vm715, %v2003, 0
        %v2266 = vsel %vm715, %v2004, 0
        %v2269 = vsel %vm715, %v2005, 0
        %v2272 = vsel %vm715, %v2006, 0
        %v2275 = vsel %vm715, %v2007, 0
        %v2278 = vsel %vm715, %v2008, 0
        %v2281 = vsel %vm715, %v2009, 0
        %v2284 = vsel %vm715, %v2010, 0
        %v2287 = vsel %vm715, %v2011, 0
        %v2290 = vsel %vm715, %v2012, 0
        %v2293 = vsel %vm715, %v2013, 0
        %v2296 = vsel %vm715, %v2014, 0
        %2298 = vmatprep.subr.mxu0 0.0
        %2299 = vmatpush1.msra.mxu0 %v2246
        %2300 = vmatprep.subr.mxu0 0.0
        %2301 = vmatpush1.msra.mxu0 %v2247
        %2302 = vmatprep.subr.mxu0 0.0
        %2303 = vmatpush1.msra.mxu0 %v2248
        %2304 = vmatprep.subr.mxu0 0.0
        %2305 = vmatpush1.msra.mxu0 %v2249
        %2306 = vmatprep.subr.mxu0 0.0
        %2307 = vmatpush1.msra.mxu0 0.0
        %2308 = vmatprep.subr.mxu0 0.0
        %2309 = vmatpush1.msra.mxu0 0.0
        %2310 = vmatprep.subr.mxu0 0.0
        %2311 = vmatpush1.msra.mxu0 0.0
        %2312 = vmatprep.subr.mxu0 0.0
        %2313 = vmatpush1.msra.mxu0 0.0
        %2314 = vmatprep.subr.mxu0 0.0
        %2315 = vmatpush1.msra.mxu0 0.0
        %2316 = vmatprep.subr.mxu0 0.0
        %2317 = vmatpush1.msra.mxu0 0.0
        %2318 = vmatprep.subr.mxu0 0.0
        %2319 = vmatpush1.msra.mxu0 0.0
        %2320 = vmatprep.subr.mxu0 0.0
        %2321 = vmatpush1.msra.mxu0 0.0
        %2322 = vmatprep.subr.mxu0 0.0
        %2323 = vmatpush1.msra.mxu0 0.0
        %2324 = vmatprep.subr.mxu0 0.0
        %2325 = vmatpush1.msra.mxu0 0.0
        %2326 = vmatprep.subr.mxu0 0.0
        %2327 = vmatpush1.msra.mxu0 0.0
        %2328 = vmatprep.subr.mxu0 0.0
        %2329 = vmatpush1.msra.mxu0 0.0
        %2330 = vmatprep.subr.mxu0 0.0
        %2331 = vmatpush1.msra.mxu0 0.0
        %2332 = vmatprep.subr.mxu0 0.0
        %2333 = vmatpush1.msra.mxu0 0.0
        %2334 = vmatprep.subr.mxu0 0.0
        %2335 = vmatpush1.msra.mxu0 0.0
        %2336 = vmatprep.subr.mxu0 0.0
        %2337 = vmatpush1.msra.mxu0 0.0
        %2338 = vmatprep.subr.mxu0 0.0
        %2339 = vmatpush1.msra.mxu0 0.0
        %2340 = vmatprep.subr.mxu0 0.0
        %2341 = vmatpush1.msra.mxu0 0.0
        %2342 = vmatprep.subr.mxu0 0.0
        %2343 = vmatpush1.msra.mxu0 0.0
        %2344 = vmatprep.subr.mxu0 0.0
        %2345 = vmatpush1.msra.mxu0 0.0
        %2346 = vmatprep.subr.mxu0 0.0
        %2347 = vmatpush1.msra.mxu0 0.0
        %2348 = vmatprep.subr.mxu0 0.0
        %2349 = vmatpush1.msra.mxu0 0.0
        %2350 = vmatprep.subr.mxu0 0.0
        %2351 = vmatpush1.msra.mxu0 0.0
        %2352 = vmatprep.subr.mxu0 0.0
        %2353 = vmatpush1.msra.mxu0 0.0
        %2354 = vmatprep.subr.mxu0 0.0
        %2355 = vmatpush1.msra.mxu0 0.0
        %2356 = vmatprep.subr.mxu0 0.0
        %2357 = vmatpush1.msra.mxu0 0.0
        %2358 = vmatprep.subr.mxu0 0.0
        %2359 = vmatpush1.msra.mxu0 0.0
        %2360 = vmatprep.subr.mxu0 0.0
        %2361 = vmatpush1.msra.mxu0 0.0
        %2362 = vmatprep.mubr.f32.mxu0 0.0
        %2363 = vmatmul.mubr.f32.gmra.mrb[0].mxu0 %v2251
        %v2364 = vpop.f32.mrb[0].mxu0
        %v2365 = vadd.f32 0.0, %v2364
        %v2366 = vpop.f32.mrb[0].mxu0
        %2367 = vmatprep.mubr.f32.mxu0 0.0
        %2368 = vmatmul.mubr.f32.gmra.mrb[0].mxu0 %v2254
        %v2369 = vpop.f32.mrb[0].mxu0
        %v2370 = vadd.f32 0.0, %v2369
        %v2371 = vpop.f32.mrb[0].mxu0
        %2372 = vmatprep.mubr.f32.mxu0 0.0
        %2373 = vmatmul.mubr.f32.gmra.mrb[0].mxu0 %v2257
        %v2374 = vpop.f32.mrb[0].mxu0
        %v2375 = vadd.f32 0.0, %v2374
        %v2376 = vpop.f32.mrb[0].mxu0
        %2377 = vmatprep.mubr.f32.mxu0 0.0
        %2378 = vmatmul.mubr.f32.gmra.mrb[0].mxu0 %v2260
        %v2379 = vpop.f32.mrb[0].mxu0
        %v2380 = vadd.f32 0.0, %v2379
        %v2381 = vpop.f32.mrb[0].mxu0
        %2382 = vmatprep.mubr.f32.mxu0 0.0
        %2383 = vmatmul.mubr.f32.gmra.mrb[0].mxu0 %v2263
        %v2384 = vpop.f32.mrb[0].mxu0
        %v2385 = vadd.f32 0.0, %v2384
        %v2386 = vpop.f32.mrb[0].mxu0
        %2387 = vmatprep.mubr.f32.mxu0 0.0
        %2388 = vmatmul.mubr.f32.gmra.mrb[0].mxu0 %v2266
        %v2389 = vpop.f32.mrb[0].mxu0
        %v2390 = vadd.f32 0.0, %v2389
        %v2391 = vpop.f32.mrb[0].mxu0
        %2392 = vmatprep.mubr.f32.mxu0 0.0
        %2393 = vmatmul.mubr.f32.gmra.mrb[0].mxu0 %v2269
        %v2394 = vpop.f32.mrb[0].mxu0
        %v2395 = vadd.f32 0.0, %v2394
        %v2396 = vpop.f32.mrb[0].mxu0
        %2397 = vmatprep.mubr.f32.mxu0 0.0
        %2398 = vmatmul.mubr.f32.gmra.mrb[0].mxu0 %v2272
        %v2399 = vpop.f32.mrb[0].mxu0
        %v2400 = vadd.f32 0.0, %v2399
        %v2401 = vpop.f32.mrb[0].mxu0
        %2402 = vmatprep.mubr.f32.mxu0 0.0
        %2403 = vmatmul.mubr.f32.gmra.mrb[0].mxu0 %v2275
        %v2404 = vpop.f32.mrb[0].mxu0
        %v2405 = vadd.f32 0.0, %v2404
        %v2406 = vpop.f32.mrb[0].mxu0
        %2407 = vmatprep.mubr.f32.mxu0 0.0
        %2408 = vmatmul.mubr.f32.gmra.mrb[0].mxu0 %v2278
        %v2409 = vpop.f32.mrb[0].mxu0
        %v2410 = vadd.f32 0.0, %v2409
        %v2411 = vpop.f32.mrb[0].mxu0
        %2412 = vmatprep.mubr.f32.mxu0 0.0
        %2413 = vmatmul.mubr.f32.gmra.mrb[0].mxu0 %v2281
        %v2414 = vpop.f32.mrb[0].mxu0
        %v2415 = vadd.f32 0.0, %v2414
        %v2416 = vpop.f32.mrb[0].mxu0
        %2417 = vmatprep.mubr.f32.mxu0 0.0
        %2418 = vmatmul.mubr.f32.gmra.mrb[0].mxu0 %v2284
        %v2419 = vpop.f32.mrb[0].mxu0
        %v2420 = vadd.f32 0.0, %v2419
        %v2421 = vpop.f32.mrb[0].mxu0
        %2422 = vmatprep.mubr.f32.mxu0 0.0
        %2423 = vmatmul.mubr.f32.gmra.mrb[0].mxu0 %v2287
        %v2424 = vpop.f32.mrb[0].mxu0
        %v2425 = vadd.f32 0.0, %v2424
        %v2426 = vpop.f32.mrb[0].mxu0
        %2427 = vmatprep.mubr.f32.mxu0 0.0
        %2428 = vmatmul.mubr.f32.gmra.mrb[0].mxu0 %v2290
        %v2429 = vpop.f32.mrb[0].mxu0
        %v2430 = vadd.f32 0.0, %v2429
        %v2431 = vpop.f32.mrb[0].mxu0
        %2432 = vmatprep.mubr.f32.mxu0 0.0
        %2433 = vmatmul.mubr.f32.gmra.mrb[0].mxu0 %v2293
        %v2434 = vpop.f32.mrb[0].mxu0
        %v2435 = vadd.f32 0.0, %v2434
        %v2436 = vpop.f32.mrb[0].mxu0
        %2437 = vmatprep.mubr.f32.mxu0 0.0
        %2438 = vmatmul.mubr.f32.gmra.mrb[0].mxu0 %v2296
        %v2439 = vpop.f32.mrb[0].mxu0
        %v2440 = vadd.f32 0.0, %v2439
        %v2441 = vpop.f32.mrb[0].mxu0
        %2442 = vdwg.mxu0
        %v2443 = vadd.f32 %v2229, %v2365
        %v2444 = vadd.f32 %v2230, %v2370
        %v2445 = vadd.f32 %v2231, %v2375
        %v2446 = vadd.f32 %v2232, %v2380
        %v2447 = vadd.f32 %v2233, %v2385
        %v2448 = vadd.f32 %v2234, %v2390
        %v2449 = vadd.f32 %v2235, %v2395
        %v2450 = vadd.f32 %v2236, %v2400
        %v2451 = vadd.f32 %v2237, %v2405
        %v2452 = vadd.f32 %v2238, %v2410
        %v2453 = vadd.f32 %v2239, %v2415
        %v2454 = vadd.f32 %v2240, %v2420
        %v2455 = vadd.f32 %v2241, %v2425
        %v2456 = vadd.f32 %v2242, %v2430
        %v2457 = vadd.f32 %v2243, %v2435
        %v2458 = vadd.f32 %v2244, %v2440
        %s2459 = scalar_lea.vmem [#allocation6], 160
        %v2460 = vld [vmem:[%s2459] sm:$0xff]
        %v2461 = vld [vmem:[%s2459 + $0x8] sm:$0xff]
        %v2462 = vld [vmem:[%s2459 + $0x10] sm:$0xff]
        %v2463 = vld [vmem:[%s2459 + $0x18] sm:$0xff]
        %v2465 = vsel %vm715, %v2015, 0
        %v2468 = vsel %vm715, %v2016, 0
        %v2471 = vsel %vm715, %v2017, 0
        %v2474 = vsel %vm715, %v2018, 0
        %v2477 = vsel %vm715, %v2019, 0
        %v2480 = vsel %vm715, %v2020, 0
        %v2483 = vsel %vm715, %v2021, 0
        %v2486 = vsel %vm715, %v2022, 0
        %v2489 = vsel %vm715, %v2023, 0
        %v2492 = vsel %vm715, %v2024, 0
        %v2495 = vsel %vm715, %v2025, 0
        %v2498 = vsel %vm715, %v2026, 0
        %v2501 = vsel %vm715, %v2027, 0
        %v2504 = vsel %vm715, %v2028, 0
        %v2507 = vsel %vm715, %v2029, 0
        %v2510 = vsel %vm715, %v2030, 0
        %2512 = vmatprep.subr.mxu0 0.0
        %2513 = vmatpush1.msra.mxu0 %v2460
        %2514 = vmatprep.subr.mxu0 0.0
        %2515 = vmatpush1.msra.mxu0 %v2461
        %2516 = vmatprep.subr.mxu0 0.0
        %2517 = vmatpush1.msra.mxu0 %v2462
        %2518 = vmatprep.subr.mxu0 0.0
        %2519 = vmatpush1.msra.mxu0 %v2463
        %2520 = vmatprep.subr.mxu0 0.0
        %2521 = vmatpush1.msra.mxu0 0.0
        %2522 = vmatprep.subr.mxu0 0.0
        %2523 = vmatpush1.msra.mxu0 0.0
        %2524 = vmatprep.subr.mxu0 0.0
        %2525 = vmatpush1.msra.mxu0 0.0
        %2526 = vmatprep.subr.mxu0 0.0
        %2527 = vmatpush1.msra.mxu0 0.0
        %2528 = vmatprep.subr.mxu0 0.0
        %2529 = vmatpush1.msra.mxu0 0.0
        %2530 = vmatprep.subr.mxu0 0.0
        %2531 = vmatpush1.msra.mxu0 0.0
        %2532 = vmatprep.subr.mxu0 0.0
        %2533 = vmatpush1.msra.mxu0 0.0
        %2534 = vmatprep.subr.mxu0 0.0
        %2535 = vmatpush1.msra.mxu0 0.0
        %2536 = vmatprep.subr.mxu0 0.0
        %2537 = vmatpush1.msra.mxu0 0.0
        %2538 = vmatprep.subr.mxu0 0.0
        %2539 = vmatpush1.msra.mxu0 0.0
        %2540 = vmatprep.subr.mxu0 0.0
        %2541 = vmatpush1.msra.mxu0 0.0
        %2542 = vmatprep.subr.mxu0 0.0
        %2543 = vmatpush1.msra.mxu0 0.0
        %2544 = vmatprep.subr.mxu0 0.0
        %2545 = vmatpush1.msra.mxu0 0.0
        %2546 = vmatprep.subr.mxu0 0.0
        %2547 = vmatpush1.msra.mxu0 0.0
        %2548 = vmatprep.subr.mxu0 0.0
        %2549 = vmatpush1.msra.mxu0 0.0
        %2550 = vmatprep.subr.mxu0 0.0
        %2551 = vmatpush1.msra.mxu0 0.0
        %2552 = vmatprep.subr.mxu0 0.0
        %2553 = vmatpush1.msra.mxu0 0.0
        %2554 = vmatprep.subr.mxu0 0.0
        %2555 = vmatpush1.msra.mxu0 0.0
        %2556 = vmatprep.subr.mxu0 0.0
        %2557 = vmatpush1.msra.mxu0 0.0
        %2558 = vmatprep.subr.mxu0 0.0
        %2559 = vmatpush1.msra.mxu0 0.0
        %2560 = vmatprep.subr.mxu0 0.0
        %2561 = vmatpush1.msra.mxu0 0.0
        %2562 = vmatprep.subr.mxu0 0.0
        %2563 = vmatpush1.msra.mxu0 0.0
        %2564 = vmatprep.subr.mxu0 0.0
        %2565 = vmatpush1.msra.mxu0 0.0
        %2566 = vmatprep.subr.mxu0 0.0
        %2567 = vmatpush1.msra.mxu0 0.0
        %2568 = vmatprep.subr.mxu0 0.0
        %2569 = vmatpush1.msra.mxu0 0.0
        %2570 = vmatprep.subr.mxu0 0.0
        %2571 = vmatpush1.msra.mxu0 0.0
        %2572 = vmatprep.subr.mxu0 0.0
        %2573 = vmatpush1.msra.mxu0 0.0
        %2574 = vmatprep.subr.mxu0 0.0
        %2575 = vmatpush1.msra.mxu0 0.0
        %2576 = vmatprep.mubr.f32.mxu0 0.0
        %2577 = vmatmul.mubr.f32.gmra.mrb[0].mxu0 %v2465
        %v2578 = vpop.f32.mrb[0].mxu0
        %v2579 = vadd.f32 0.0, %v2578
        %v2580 = vpop.f32.mrb[0].mxu0
        %2581 = vmatprep.mubr.f32.mxu0 0.0
        %2582 = vmatmul.mubr.f32.gmra.mrb[0].mxu0 %v2468
        %v2583 = vpop.f32.mrb[0].mxu0
        %v2584 = vadd.f32 0.0, %v2583
        %v2585 = vpop.f32.mrb[0].mxu0
        %2586 = vmatprep.mubr.f32.mxu0 0.0
        %2587 = vmatmul.mubr.f32.gmra.mrb[0].mxu0 %v2471
        %v2588 = vpop.f32.mrb[0].mxu0
        %v2589 = vadd.f32 0.0, %v2588
        %v2590 = vpop.f32.mrb[0].mxu0
        %2591 = vmatprep.mubr.f32.mxu0 0.0
        %2592 = vmatmul.mubr.f32.gmra.mrb[0].mxu0 %v2474
        %v2593 = vpop.f32.mrb[0].mxu0
        %v2594 = vadd.f32 0.0, %v2593
        %v2595 = vpop.f32.mrb[0].mxu0
        %2596 = vmatprep.mubr.f32.mxu0 0.0
        %2597 = vmatmul.mubr.f32.gmra.mrb[0].mxu0 %v2477
        %v2598 = vpop.f32.mrb[0].mxu0
        %v2599 = vadd.f32 0.0, %v2598
        %v2600 = vpop.f32.mrb[0].mxu0
        %2601 = vmatprep.mubr.f32.mxu0 0.0
        %2602 = vmatmul.mubr.f32.gmra.mrb[0].mxu0 %v2480
        %v2603 = vpop.f32.mrb[0].mxu0
        %v2604 = vadd.f32 0.0, %v2603
        %v2605 = vpop.f32.mrb[0].mxu0
        %2606 = vmatprep.mubr.f32.mxu0 0.0
        %2607 = vmatmul.mubr.f32.gmra.mrb[0].mxu0 %v2483
        %v2608 = vpop.f32.mrb[0].mxu0
        %v2609 = vadd.f32 0.0, %v2608
        %v2610 = vpop.f32.mrb[0].mxu0
        %2611 = vmatprep.mubr.f32.mxu0 0.0
        %2612 = vmatmul.mubr.f32.gmra.mrb[0].mxu0 %v2486
        %v2613 = vpop.f32.mrb[0].mxu0
        %v2614 = vadd.f32 0.0, %v2613
        %v2615 = vpop.f32.mrb[0].mxu0
        %2616 = vmatprep.mubr.f32.mxu0 0.0
        %2617 = vmatmul.mubr.f32.gmra.mrb[0].mxu0 %v2489
        %v2618 = vpop.f32.mrb[0].mxu0
        %v2619 = vadd.f32 0.0, %v2618
        %v2620 = vpop.f32.mrb[0].mxu0
        %2621 = vmatprep.mubr.f32.mxu0 0.0
        %2622 = vmatmul.mubr.f32.gmra.mrb[0].mxu0 %v2492
        %v2623 = vpop.f32.mrb[0].mxu0
        %v2624 = vadd.f32 0.0, %v2623
        %v2625 = vpop.f32.mrb[0].mxu0
        %2626 = vmatprep.mubr.f32.mxu0 0.0
        %2627 = vmatmul.mubr.f32.gmra.mrb[0].mxu0 %v2495
        %v2628 = vpop.f32.mrb[0].mxu0
        %v2629 = vadd.f32 0.0, %v2628
        %v2630 = vpop.f32.mrb[0].mxu0
        %2631 = vmatprep.mubr.f32.mxu0 0.0
        %2632 = vmatmul.mubr.f32.gmra.mrb[0].mxu0 %v2498
        %v2633 = vpop.f32.mrb[0].mxu0
        %v2634 = vadd.f32 0.0, %v2633
        %v2635 = vpop.f32.mrb[0].mxu0
        %2636 = vmatprep.mubr.f32.mxu0 0.0
        %2637 = vmatmul.mubr.f32.gmra.mrb[0].mxu0 %v2501
        %v2638 = vpop.f32.mrb[0].mxu0
        %v2639 = vadd.f32 0.0, %v2638
        %v2640 = vpop.f32.mrb[0].mxu0
        %2641 = vmatprep.mubr.f32.mxu0 0.0
        %2642 = vmatmul.mubr.f32.gmra.mrb[0].mxu0 %v2504
        %v2643 = vpop.f32.mrb[0].mxu0
        %v2644 = vadd.f32 0.0, %v2643
        %v2645 = vpop.f32.mrb[0].mxu0
        %2646 = vmatprep.mubr.f32.mxu0 0.0
        %2647 = vmatmul.mubr.f32.gmra.mrb[0].mxu0 %v2507
        %v2648 = vpop.f32.mrb[0].mxu0
        %v2649 = vadd.f32 0.0, %v2648
        %v2650 = vpop.f32.mrb[0].mxu0
        %2651 = vmatprep.mubr.f32.mxu0 0.0
        %2652 = vmatmul.mubr.f32.gmra.mrb[0].mxu0 %v2510
        %v2653 = vpop.f32.mrb[0].mxu0
        %v2654 = vadd.f32 0.0, %v2653
        %v2655 = vpop.f32.mrb[0].mxu0
        %2656 = vdwg.mxu0
        %v2657 = vadd.f32 %v2443, %v2579
        %v2658 = vadd.f32 %v2444, %v2584
        %v2659 = vadd.f32 %v2445, %v2589
        %v2660 = vadd.f32 %v2446, %v2594
        %v2661 = vadd.f32 %v2447, %v2599
        %v2662 = vadd.f32 %v2448, %v2604
        %v2663 = vadd.f32 %v2449, %v2609
        %v2664 = vadd.f32 %v2450, %v2614
        %v2665 = vadd.f32 %v2451, %v2619
        %v2666 = vadd.f32 %v2452, %v2624
        %v2667 = vadd.f32 %v2453, %v2629
        %v2668 = vadd.f32 %v2454, %v2634
        %v2669 = vadd.f32 %v2455, %v2639
        %v2670 = vadd.f32 %v2456, %v2644
        %v2671 = vadd.f32 %v2457, %v2649
        %v2672 = vadd.f32 %v2458, %v2654
        %v2673 = vld [vmem:[#allocation2 + $0x2f] sm:$0xff]
        %v2674 = vld [vmem:[#allocation2 + $0x37] sm:$0xff]
        %v2675 = vld [vmem:[#allocation2 + $0x3f] sm:$0xff]
        %v2676 = vld [vmem:[#allocation2 + $0x47] sm:$0xff]
        %v2677 = vld [vmem:[#allocation2 + $0x4f] sm:$0xff]
        %v2678 = vld [vmem:[#allocation2 + $0x57] sm:$0xff]
        %v2679 = vld [vmem:[#allocation2 + $0x5f] sm:$0xff]
        %v2680 = vld [vmem:[#allocation2 + $0x67] sm:$0xff]
        %v2681 = vld [vmem:[#allocation2 + $0x6f] sm:$0xff]
        %v2682 = vld [vmem:[#allocation2 + $0x77] sm:$0xff]
        %v2683 = vld [vmem:[#allocation2 + $0x7f] sm:$0xff]
        %v2684 = vld [vmem:[#allocation2 + $0x87] sm:$0xff]
        %v2685 = vld [vmem:[#allocation2 + $0x8f] sm:$0xff]
        %v2686 = vld [vmem:[#allocation2 + $0x97] sm:$0xff]
        %v2687 = vld [vmem:[#allocation2 + $0x9f] sm:$0xff]
        %v2688 = vld [vmem:[#allocation2 + $0xa7] sm:$0xff]
        %v2689 = vld [vmem:[#allocation2 + $0x30] sm:$0xff]
        %v2690 = vld [vmem:[#allocation2 + $0x38] sm:$0xff]
        %v2691 = vld [vmem:[#allocation2 + $0x40] sm:$0xff]
        %v2692 = vld [vmem:[#allocation2 + $0x48] sm:$0xff]
        %v2693 = vld [vmem:[#allocation2 + $0x50] sm:$0xff]
        %v2694 = vld [vmem:[#allocation2 + $0x58] sm:$0xff]
        %v2695 = vld [vmem:[#allocation2 + $0x60] sm:$0xff]
        %v2696 = vld [vmem:[#allocation2 + $0x68] sm:$0xff]
        %v2697 = vld [vmem:[#allocation2 + $0x70] sm:$0xff]
        %v2698 = vld [vmem:[#allocation2 + $0x78] sm:$0xff]
        %v2699 = vld [vmem:[#allocation2 + $0x80] sm:$0xff]
        %v2700 = vld [vmem:[#allocation2 + $0x88] sm:$0xff]
        %v2701 = vld [vmem:[#allocation2 + $0x90] sm:$0xff]
        %v2702 = vld [vmem:[#allocation2 + $0x98] sm:$0xff]
        %v2703 = vld [vmem:[#allocation2 + $0xa0] sm:$0xff]
        %v2704 = vld [vmem:[#allocation2 + $0xa8] sm:$0xff]
        %v2705 = vld [vmem:[#allocation2 + $0x31] sm:$0xff]
        %v2706 = vld [vmem:[#allocation2 + $0x39] sm:$0xff]
        %v2707 = vld [vmem:[#allocation2 + $0x41] sm:$0xff]
        %v2708 = vld [vmem:[#allocation2 + $0x49] sm:$0xff]
        %v2709 = vld [vmem:[#allocation2 + $0x51] sm:$0xff]
        %v2710 = vld [vmem:[#allocation2 + $0x59] sm:$0xff]
        %v2711 = vld [vmem:[#allocation2 + $0x61] sm:$0xff]
        %v2712 = vld [vmem:[#allocation2 + $0x69] sm:$0xff]
        %v2713 = vld [vmem:[#allocation2 + $0x71] sm:$0xff]
        %v2714 = vld [vmem:[#allocation2 + $0x79] sm:$0xff]
        %v2715 = vld [vmem:[#allocation2 + $0x81] sm:$0xff]
        %v2716 = vld [vmem:[#allocation2 + $0x89] sm:$0xff]
        %v2717 = vld [vmem:[#allocation2 + $0x91] sm:$0xff]
        %v2718 = vld [vmem:[#allocation2 + $0x99] sm:$0xff]
        %v2719 = vld [vmem:[#allocation2 + $0xa1] sm:$0xff]
        %v2720 = vld [vmem:[#allocation2 + $0xa9] sm:$0xff]
        %s2721 = scalar_lea.vmem [#allocation6], 192
        %v2722 = vld [vmem:[%s2721] sm:$0xff]
        %v2723 = vld [vmem:[%s2721 + $0x8] sm:$0xff]
        %v2724 = vld [vmem:[%s2721 + $0x10] sm:$0xff]
        %v2725 = vld [vmem:[%s2721 + $0x18] sm:$0xff]
        %v2727 = vsel %vm715, %v2673, 0
        %v2730 = vsel %vm715, %v2674, 0
        %v2733 = vsel %vm715, %v2675, 0
        %v2736 = vsel %vm715, %v2676, 0
        %v2739 = vsel %vm715, %v2677, 0
        %v2742 = vsel %vm715, %v2678, 0
        %v2745 = vsel %vm715, %v2679, 0
        %v2748 = vsel %vm715, %v2680, 0
        %v2751 = vsel %vm715, %v2681, 0
        %v2754 = vsel %vm715, %v2682, 0
        %v2757 = vsel %vm715, %v2683, 0
        %v2760 = vsel %vm715, %v2684, 0
        %v2763 = vsel %vm715, %v2685, 0
        %v2766 = vsel %vm715, %v2686, 0
        %v2769 = vsel %vm715, %v2687, 0
        %v2772 = vsel %vm715, %v2688, 0
        %2774 = vmatprep.subr.mxu0 0.0
        %2775 = vmatpush1.msra.mxu0 %v2722
        %2776 = vmatprep.subr.mxu0 0.0
        %2777 = vmatpush1.msra.mxu0 %v2723
        %2778 = vmatprep.subr.mxu0 0.0
        %2779 = vmatpush1.msra.mxu0 %v2724
        %2780 = vmatprep.subr.mxu0 0.0
        %2781 = vmatpush1.msra.mxu0 %v2725
        %2782 = vmatprep.subr.mxu0 0.0
        %2783 = vmatpush1.msra.mxu0 0.0
        %2784 = vmatprep.subr.mxu0 0.0
        %2785 = vmatpush1.msra.mxu0 0.0
        %2786 = vmatprep.subr.mxu0 0.0
        %2787 = vmatpush1.msra.mxu0 0.0
        %2788 = vmatprep.subr.mxu0 0.0
        %2789 = vmatpush1.msra.mxu0 0.0
        %2790 = vmatprep.subr.mxu0 0.0
        %2791 = vmatpush1.msra.mxu0 0.0
        %2792 = vmatprep.subr.mxu0 0.0
        %2793 = vmatpush1.msra.mxu0 0.0
        %2794 = vmatprep.subr.mxu0 0.0
        %2795 = vmatpush1.msra.mxu0 0.0
        %2796 = vmatprep.subr.mxu0 0.0
        %2797 = vmatpush1.msra.mxu0 0.0
        %2798 = vmatprep.subr.mxu0 0.0
        %2799 = vmatpush1.msra.mxu0 0.0
        %2800 = vmatprep.subr.mxu0 0.0
        %2801 = vmatpush1.msra.mxu0 0.0
        %2802 = vmatprep.subr.mxu0 0.0
        %2803 = vmatpush1.msra.mxu0 0.0
        %2804 = vmatprep.subr.mxu0 0.0
        %2805 = vmatpush1.msra.mxu0 0.0
        %2806 = vmatprep.subr.mxu0 0.0
        %2807 = vmatpush1.msra.mxu0 0.0
        %2808 = vmatprep.subr.mxu0 0.0
        %2809 = vmatpush1.msra.mxu0 0.0
        %2810 = vmatprep.subr.mxu0 0.0
        %2811 = vmatpush1.msra.mxu0 0.0
        %2812 = vmatprep.subr.mxu0 0.0
        %2813 = vmatpush1.msra.mxu0 0.0
        %2814 = vmatprep.subr.mxu0 0.0
        %2815 = vmatpush1.msra.mxu0 0.0
        %2816 = vmatprep.subr.mxu0 0.0
        %2817 = vmatpush1.msra.mxu0 0.0
        %2818 = vmatprep.subr.mxu0 0.0
        %2819 = vmatpush1.msra.mxu0 0.0
        %2820 = vmatprep.subr.mxu0 0.0
        %2821 = vmatpush1.msra.mxu0 0.0
        %2822 = vmatprep.subr.mxu0 0.0
        %2823 = vmatpush1.msra.mxu0 0.0
        %2824 = vmatprep.subr.mxu0 0.0
        %2825 = vmatpush1.msra.mxu0 0.0
        %2826 = vmatprep.subr.mxu0 0.0
        %2827 = vmatpush1.msra.mxu0 0.0
        %2828 = vmatprep.subr.mxu0 0.0
        %2829 = vmatpush1.msra.mxu0 0.0
        %2830 = vmatprep.subr.mxu0 0.0
        %2831 = vmatpush1.msra.mxu0 0.0
        %2832 = vmatprep.subr.mxu0 0.0
        %2833 = vmatpush1.msra.mxu0 0.0
        %2834 = vmatprep.subr.mxu0 0.0
        %2835 = vmatpush1.msra.mxu0 0.0
        %2836 = vmatprep.subr.mxu0 0.0
        %2837 = vmatpush1.msra.mxu0 0.0
        %2838 = vmatprep.mubr.f32.mxu0 0.0
        %2839 = vmatmul.mubr.f32.gmra.mrb[0].mxu0 %v2727
        %v2840 = vpop.f32.mrb[0].mxu0
        %v2841 = vadd.f32 0.0, %v2840
        %v2842 = vpop.f32.mrb[0].mxu0
        %2843 = vmatprep.mubr.f32.mxu0 0.0
        %2844 = vmatmul.mubr.f32.gmra.mrb[0].mxu0 %v2730
        %v2845 = vpop.f32.mrb[0].mxu0
        %v2846 = vadd.f32 0.0, %v2845
        %v2847 = vpop.f32.mrb[0].mxu0
        %2848 = vmatprep.mubr.f32.mxu0 0.0
        %2849 = vmatmul.mubr.f32.gmra.mrb[0].mxu0 %v2733
        %v2850 = vpop.f32.mrb[0].mxu0
        %v2851 = vadd.f32 0.0, %v2850
        %v2852 = vpop.f32.mrb[0].mxu0
        %2853 = vmatprep.mubr.f32.mxu0 0.0
        %2854 = vmatmul.mubr.f32.gmra.mrb[0].mxu0 %v2736
        %v2855 = vpop.f32.mrb[0].mxu0
        %v2856 = vadd.f32 0.0, %v2855
        %v2857 = vpop.f32.mrb[0].mxu0
        %2858 = vmatprep.mubr.f32.mxu0 0.0
        %2859 = vmatmul.mubr.f32.gmra.mrb[0].mxu0 %v2739
        %v2860 = vpop.f32.mrb[0].mxu0
        %v2861 = vadd.f32 0.0, %v2860
        %v2862 = vpop.f32.mrb[0].mxu0
        %2863 = vmatprep.mubr.f32.mxu0 0.0
        %2864 = vmatmul.mubr.f32.gmra.mrb[0].mxu0 %v2742
        %v2865 = vpop.f32.mrb[0].mxu0
        %v2866 = vadd.f32 0.0, %v2865
        %v2867 = vpop.f32.mrb[0].mxu0
        %2868 = vmatprep.mubr.f32.mxu0 0.0
        %2869 = vmatmul.mubr.f32.gmra.mrb[0].mxu0 %v2745
        %v2870 = vpop.f32.mrb[0].mxu0
        %v2871 = vadd.f32 0.0, %v2870
        %v2872 = vpop.f32.mrb[0].mxu0
        %2873 = vmatprep.mubr.f32.mxu0 0.0
        %2874 = vmatmul.mubr.f32.gmra.mrb[0].mxu0 %v2748
        %v2875 = vpop.f32.mrb[0].mxu0
        %v2876 = vadd.f32 0.0, %v2875
        %v2877 = vpop.f32.mrb[0].mxu0
        %2878 = vmatprep.mubr.f32.mxu0 0.0
        %2879 = vmatmul.mubr.f32.gmra.mrb[0].mxu0 %v2751
        %v2880 = vpop.f32.mrb[0].mxu0
        %v2881 = vadd.f32 0.0, %v2880
        %v2882 = vpop.f32.mrb[0].mxu0
        %2883 = vmatprep.mubr.f32.mxu0 0.0
        %2884 = vmatmul.mubr.f32.gmra.mrb[0].mxu0 %v2754
        %v2885 = vpop.f32.mrb[0].mxu0
        %v2886 = vadd.f32 0.0, %v2885
        %v2887 = vpop.f32.mrb[0].mxu0
        %2888 = vmatprep.mubr.f32.mxu0 0.0
        %2889 = vmatmul.mubr.f32.gmra.mrb[0].mxu0 %v2757
        %v2890 = vpop.f32.mrb[0].mxu0
        %v2891 = vadd.f32 0.0, %v2890
        %v2892 = vpop.f32.mrb[0].mxu0
        %2893 = vmatprep.mubr.f32.mxu0 0.0
        %2894 = vmatmul.mubr.f32.gmra.mrb[0].mxu0 %v2760
        %v2895 = vpop.f32.mrb[0].mxu0
        %v2896 = vadd.f32 0.0, %v2895
        %v2897 = vpop.f32.mrb[0].mxu0
        %2898 = vmatprep.mubr.f32.mxu0 0.0
        %2899 = vmatmul.mubr.f32.gmra.mrb[0].mxu0 %v2763
        %v2900 = vpop.f32.mrb[0].mxu0
        %v2901 = vadd.f32 0.0, %v2900
        %v2902 = vpop.f32.mrb[0].mxu0
        %2903 = vmatprep.mubr.f32.mxu0 0.0
        %2904 = vmatmul.mubr.f32.gmra.mrb[0].mxu0 %v2766
        %v2905 = vpop.f32.mrb[0].mxu0
        %v2906 = vadd.f32 0.0, %v2905
        %v2907 = vpop.f32.mrb[0].mxu0
        %2908 = vmatprep.mubr.f32.mxu0 0.0
        %2909 = vmatmul.mubr.f32.gmra.mrb[0].mxu0 %v2769
        %v2910 = vpop.f32.mrb[0].mxu0
        %v2911 = vadd.f32 0.0, %v2910
        %v2912 = vpop.f32.mrb[0].mxu0
        %2913 = vmatprep.mubr.f32.mxu0 0.0
        %2914 = vmatmul.mubr.f32.gmra.mrb[0].mxu0 %v2772
        %v2915 = vpop.f32.mrb[0].mxu0
        %v2916 = vadd.f32 0.0, %v2915
        %v2917 = vpop.f32.mrb[0].mxu0
        %2918 = vdwg.mxu0
        %v2919 = vadd.f32 %v2657, %v2841
        %v2920 = vadd.f32 %v2658, %v2846
        %v2921 = vadd.f32 %v2659, %v2851
        %v2922 = vadd.f32 %v2660, %v2856
        %v2923 = vadd.f32 %v2661, %v2861
        %v2924 = vadd.f32 %v2662, %v2866
        %v2925 = vadd.f32 %v2663, %v2871
        %v2926 = vadd.f32 %v2664, %v2876
        %v2927 = vadd.f32 %v2665, %v2881
        %v2928 = vadd.f32 %v2666, %v2886
        %v2929 = vadd.f32 %v2667, %v2891
        %v2930 = vadd.f32 %v2668, %v2896
        %v2931 = vadd.f32 %v2669, %v2901
        %v2932 = vadd.f32 %v2670, %v2906
        %v2933 = vadd.f32 %v2671, %v2911
        %v2934 = vadd.f32 %v2672, %v2916
        %s2935 = scalar_lea.vmem [#allocation6], 224
        %v2936 = vld [vmem:[%s2935] sm:$0xff]
        %v2937 = vld [vmem:[%s2935 + $0x8] sm:$0xff]
        %v2938 = vld [vmem:[%s2935 + $0x10] sm:$0xff]
        %v2939 = vld [vmem:[%s2935 + $0x18] sm:$0xff]
        %v2941 = vsel %vm715, %v2689, 0
        %v2944 = vsel %vm715, %v2690, 0
        %v2947 = vsel %vm715, %v2691, 0
        %v2950 = vsel %vm715, %v2692, 0
        %v2953 = vsel %vm715, %v2693, 0
        %v2956 = vsel %vm715, %v2694, 0
        %v2959 = vsel %vm715, %v2695, 0
        %v2962 = vsel %vm715, %v2696, 0
        %v2965 = vsel %vm715, %v2697, 0
        %v2968 = vsel %vm715, %v2698, 0
        %v2971 = vsel %vm715, %v2699, 0
        %v2974 = vsel %vm715, %v2700, 0
        %v2977 = vsel %vm715, %v2701, 0
        %v2980 = vsel %vm715, %v2702, 0
        %v2983 = vsel %vm715, %v2703, 0
        %v2986 = vsel %vm715, %v2704, 0
        %2988 = vmatprep.subr.mxu0 0.0
        %2989 = vmatpush1.msra.mxu0 %v2936
        %2990 = vmatprep.subr.mxu0 0.0
        %2991 = vmatpush1.msra.mxu0 %v2937
        %2992 = vmatprep.subr.mxu0 0.0
        %2993 = vmatpush1.msra.mxu0 %v2938
        %2994 = vmatprep.subr.mxu0 0.0
        %2995 = vmatpush1.msra.mxu0 %v2939
        %2996 = vmatprep.subr.mxu0 0.0
        %2997 = vmatpush1.msra.mxu0 0.0
        %2998 = vmatprep.subr.mxu0 0.0
        %2999 = vmatpush1.msra.mxu0 0.0
        %3000 = vmatprep.subr.mxu0 0.0
        %3001 = vmatpush1.msra.mxu0 0.0
        %3002 = vmatprep.subr.mxu0 0.0
        %3003 = vmatpush1.msra.mxu0 0.0
        %3004 = vmatprep.subr.mxu0 0.0
        %3005 = vmatpush1.msra.mxu0 0.0
        %3006 = vmatprep.subr.mxu0 0.0
        %3007 = vmatpush1.msra.mxu0 0.0
        %3008 = vmatprep.subr.mxu0 0.0
        %3009 = vmatpush1.msra.mxu0 0.0
        %3010 = vmatprep.subr.mxu0 0.0
        %3011 = vmatpush1.msra.mxu0 0.0
        %3012 = vmatprep.subr.mxu0 0.0
        %3013 = vmatpush1.msra.mxu0 0.0
        %3014 = vmatprep.subr.mxu0 0.0
        %3015 = vmatpush1.msra.mxu0 0.0
        %3016 = vmatprep.subr.mxu0 0.0
        %3017 = vmatpush1.msra.mxu0 0.0
        %3018 = vmatprep.subr.mxu0 0.0
        %3019 = vmatpush1.msra.mxu0 0.0
        %3020 = vmatprep.subr.mxu0 0.0
        %3021 = vmatpush1.msra.mxu0 0.0
        %3022 = vmatprep.subr.mxu0 0.0
        %3023 = vmatpush1.msra.mxu0 0.0
        %3024 = vmatprep.subr.mxu0 0.0
        %3025 = vmatpush1.msra.mxu0 0.0
        %3026 = vmatprep.subr.mxu0 0.0
        %3027 = vmatpush1.msra.mxu0 0.0
        %3028 = vmatprep.subr.mxu0 0.0
        %3029 = vmatpush1.msra.mxu0 0.0
        %3030 = vmatprep.subr.mxu0 0.0
        %3031 = vmatpush1.msra.mxu0 0.0
        %3032 = vmatprep.subr.mxu0 0.0
        %3033 = vmatpush1.msra.mxu0 0.0
        %3034 = vmatprep.subr.mxu0 0.0
        %3035 = vmatpush1.msra.mxu0 0.0
        %3036 = vmatprep.subr.mxu0 0.0
        %3037 = vmatpush1.msra.mxu0 0.0
        %3038 = vmatprep.subr.mxu0 0.0
        %3039 = vmatpush1.msra.mxu0 0.0
        %3040 = vmatprep.subr.mxu0 0.0
        %3041 = vmatpush1.msra.mxu0 0.0
        %3042 = vmatprep.subr.mxu0 0.0
        %3043 = vmatpush1.msra.mxu0 0.0
        %3044 = vmatprep.subr.mxu0 0.0
        %3045 = vmatpush1.msra.mxu0 0.0
        %3046 = vmatprep.subr.mxu0 0.0
        %3047 = vmatpush1.msra.mxu0 0.0
        %3048 = vmatprep.subr.mxu0 0.0
        %3049 = vmatpush1.msra.mxu0 0.0
        %3050 = vmatprep.subr.mxu0 0.0
        %3051 = vmatpush1.msra.mxu0 0.0
        %3052 = vmatprep.mubr.f32.mxu0 0.0
        %3053 = vmatmul.mubr.f32.gmra.mrb[0].mxu0 %v2941
        %v3054 = vpop.f32.mrb[0].mxu0
        %v3055 = vadd.f32 0.0, %v3054
        %v3056 = vpop.f32.mrb[0].mxu0
        %3057 = vmatprep.mubr.f32.mxu0 0.0
        %3058 = vmatmul.mubr.f32.gmra.mrb[0].mxu0 %v2944
        %v3059 = vpop.f32.mrb[0].mxu0
        %v3060 = vadd.f32 0.0, %v3059
        %v3061 = vpop.f32.mrb[0].mxu0
        %3062 = vmatprep.mubr.f32.mxu0 0.0
        %3063 = vmatmul.mubr.f32.gmra.mrb[0].mxu0 %v2947
        %v3064 = vpop.f32.mrb[0].mxu0
        %v3065 = vadd.f32 0.0, %v3064
        %v3066 = vpop.f32.mrb[0].mxu0
        %3067 = vmatprep.mubr.f32.mxu0 0.0
        %3068 = vmatmul.mubr.f32.gmra.mrb[0].mxu0 %v2950
        %v3069 = vpop.f32.mrb[0].mxu0
        %v3070 = vadd.f32 0.0, %v3069
        %v3071 = vpop.f32.mrb[0].mxu0
        %3072 = vmatprep.mubr.f32.mxu0 0.0
        %3073 = vmatmul.mubr.f32.gmra.mrb[0].mxu0 %v2953
        %v3074 = vpop.f32.mrb[0].mxu0
        %v3075 = vadd.f32 0.0, %v3074
        %v3076 = vpop.f32.mrb[0].mxu0
        %3077 = vmatprep.mubr.f32.mxu0 0.0
        %3078 = vmatmul.mubr.f32.gmra.mrb[0].mxu0 %v2956
        %v3079 = vpop.f32.mrb[0].mxu0
        %v3080 = vadd.f32 0.0, %v3079
        %v3081 = vpop.f32.mrb[0].mxu0
        %3082 = vmatprep.mubr.f32.mxu0 0.0
        %3083 = vmatmul.mubr.f32.gmra.mrb[0].mxu0 %v2959
        %v3084 = vpop.f32.mrb[0].mxu0
        %v3085 = vadd.f32 0.0, %v3084
        %v3086 = vpop.f32.mrb[0].mxu0
        %3087 = vmatprep.mubr.f32.mxu0 0.0
        %3088 = vmatmul.mubr.f32.gmra.mrb[0].mxu0 %v2962
        %v3089 = vpop.f32.mrb[0].mxu0
        %v3090 = vadd.f32 0.0, %v3089
        %v3091 = vpop.f32.mrb[0].mxu0
        %3092 = vmatprep.mubr.f32.mxu0 0.0
        %3093 = vmatmul.mubr.f32.gmra.mrb[0].mxu0 %v2965
        %v3094 = vpop.f32.mrb[0].mxu0
        %v3095 = vadd.f32 0.0, %v3094
        %v3096 = vpop.f32.mrb[0].mxu0
        %3097 = vmatprep.mubr.f32.mxu0 0.0
        %3098 = vmatmul.mubr.f32.gmra.mrb[0].mxu0 %v2968
        %v3099 = vpop.f32.mrb[0].mxu0
        %v3100 = vadd.f32 0.0, %v3099
        %v3101 = vpop.f32.mrb[0].mxu0
        %3102 = vmatprep.mubr.f32.mxu0 0.0
        %3103 = vmatmul.mubr.f32.gmra.mrb[0].mxu0 %v2971
        %v3104 = vpop.f32.mrb[0].mxu0
        %v3105 = vadd.f32 0.0, %v3104
        %v3106 = vpop.f32.mrb[0].mxu0
        %3107 = vmatprep.mubr.f32.mxu0 0.0
        %3108 = vmatmul.mubr.f32.gmra.mrb[0].mxu0 %v2974
        %v3109 = vpop.f32.mrb[0].mxu0
        %v3110 = vadd.f32 0.0, %v3109
        %v3111 = vpop.f32.mrb[0].mxu0
        %3112 = vmatprep.mubr.f32.mxu0 0.0
        %3113 = vmatmul.mubr.f32.gmra.mrb[0].mxu0 %v2977
        %v3114 = vpop.f32.mrb[0].mxu0
        %v3115 = vadd.f32 0.0, %v3114
        %v3116 = vpop.f32.mrb[0].mxu0
        %3117 = vmatprep.mubr.f32.mxu0 0.0
        %3118 = vmatmul.mubr.f32.gmra.mrb[0].mxu0 %v2980
        %v3119 = vpop.f32.mrb[0].mxu0
        %v3120 = vadd.f32 0.0, %v3119
        %v3121 = vpop.f32.mrb[0].mxu0
        %3122 = vmatprep.mubr.f32.mxu0 0.0
        %3123 = vmatmul.mubr.f32.gmra.mrb[0].mxu0 %v2983
        %v3124 = vpop.f32.mrb[0].mxu0
        %v3125 = vadd.f32 0.0, %v3124
        %v3126 = vpop.f32.mrb[0].mxu0
        %3127 = vmatprep.mubr.f32.mxu0 0.0
        %3128 = vmatmul.mubr.f32.gmra.mrb[0].mxu0 %v2986
        %v3129 = vpop.f32.mrb[0].mxu0
        %v3130 = vadd.f32 0.0, %v3129
        %v3131 = vpop.f32.mrb[0].mxu0
        %3132 = vdwg.mxu0
        %v3133 = vadd.f32 %v2919, %v3055
        %v3134 = vadd.f32 %v2920, %v3060
        %v3135 = vadd.f32 %v2921, %v3065
        %v3136 = vadd.f32 %v2922, %v3070
        %v3137 = vadd.f32 %v2923, %v3075
        %v3138 = vadd.f32 %v2924, %v3080
        %v3139 = vadd.f32 %v2925, %v3085
        %v3140 = vadd.f32 %v2926, %v3090
        %v3141 = vadd.f32 %v2927, %v3095
        %v3142 = vadd.f32 %v2928, %v3100
        %v3143 = vadd.f32 %v2929, %v3105
        %v3144 = vadd.f32 %v2930, %v3110
        %v3145 = vadd.f32 %v2931, %v3115
        %v3146 = vadd.f32 %v2932, %v3120
        %v3147 = vadd.f32 %v2933, %v3125
        %v3148 = vadd.f32 %v2934, %v3130
        %s3149 = scalar_lea.vmem [#allocation6], 256
        %v3150 = vld [vmem:[%s3149] sm:$0xff]
        %v3151 = vld [vmem:[%s3149 + $0x8] sm:$0xff]
        %v3152 = vld [vmem:[%s3149 + $0x10] sm:$0xff]
        %v3153 = vld [vmem:[%s3149 + $0x18] sm:$0xff]
        %v3155 = vsel %vm715, %v2705, 0
        %v3158 = vsel %vm715, %v2706, 0
        %v3161 = vsel %vm715, %v2707, 0
        %v3164 = vsel %vm715, %v2708, 0
        %v3167 = vsel %vm715, %v2709, 0
        %v3170 = vsel %vm715, %v2710, 0
        %v3173 = vsel %vm715, %v2711, 0
        %v3176 = vsel %vm715, %v2712, 0
        %v3179 = vsel %vm715, %v2713, 0
        %v3182 = vsel %vm715, %v2714, 0
        %v3185 = vsel %vm715, %v2715, 0
        %v3188 = vsel %vm715, %v2716, 0
        %v3191 = vsel %vm715, %v2717, 0
        %v3194 = vsel %vm715, %v2718, 0
        %v3197 = vsel %vm715, %v2719, 0
        %v3200 = vsel %vm715, %v2720, 0
        %3202 = vmatprep.subr.mxu0 0.0
        %3203 = vmatpush1.msra.mxu0 %v3150
        %3204 = vmatprep.subr.mxu0 0.0
        %3205 = vmatpush1.msra.mxu0 %v3151
        %3206 = vmatprep.subr.mxu0 0.0
        %3207 = vmatpush1.msra.mxu0 %v3152
        %3208 = vmatprep.subr.mxu0 0.0
        %3209 = vmatpush1.msra.mxu0 %v3153
        %3210 = vmatprep.subr.mxu0 0.0
        %3211 = vmatpush1.msra.mxu0 0.0
        %3212 = vmatprep.subr.mxu0 0.0
        %3213 = vmatpush1.msra.mxu0 0.0
        %3214 = vmatprep.subr.mxu0 0.0
        %3215 = vmatpush1.msra.mxu0 0.0
        %3216 = vmatprep.subr.mxu0 0.0
        %3217 = vmatpush1.msra.mxu0 0.0
        %3218 = vmatprep.subr.mxu0 0.0
        %3219 = vmatpush1.msra.mxu0 0.0
        %3220 = vmatprep.subr.mxu0 0.0
        %3221 = vmatpush1.msra.mxu0 0.0
        %3222 = vmatprep.subr.mxu0 0.0
        %3223 = vmatpush1.msra.mxu0 0.0
        %3224 = vmatprep.subr.mxu0 0.0
        %3225 = vmatpush1.msra.mxu0 0.0
        %3226 = vmatprep.subr.mxu0 0.0
        %3227 = vmatpush1.msra.mxu0 0.0
        %3228 = vmatprep.subr.mxu0 0.0
        %3229 = vmatpush1.msra.mxu0 0.0
        %3230 = vmatprep.subr.mxu0 0.0
        %3231 = vmatpush1.msra.mxu0 0.0
        %3232 = vmatprep.subr.mxu0 0.0
        %3233 = vmatpush1.msra.mxu0 0.0
        %3234 = vmatprep.subr.mxu0 0.0
        %3235 = vmatpush1.msra.mxu0 0.0
        %3236 = vmatprep.subr.mxu0 0.0
        %3237 = vmatpush1.msra.mxu0 0.0
        %3238 = vmatprep.subr.mxu0 0.0
        %3239 = vmatpush1.msra.mxu0 0.0
        %3240 = vmatprep.subr.mxu0 0.0
        %3241 = vmatpush1.msra.mxu0 0.0
        %3242 = vmatprep.subr.mxu0 0.0
        %3243 = vmatpush1.msra.mxu0 0.0
        %3244 = vmatprep.subr.mxu0 0.0
        %3245 = vmatpush1.msra.mxu0 0.0
        %3246 = vmatprep.subr.mxu0 0.0
        %3247 = vmatpush1.msra.mxu0 0.0
        %3248 = vmatprep.subr.mxu0 0.0
        %3249 = vmatpush1.msra.mxu0 0.0
        %3250 = vmatprep.subr.mxu0 0.0
        %3251 = vmatpush1.msra.mxu0 0.0
        %3252 = vmatprep.subr.mxu0 0.0
        %3253 = vmatpush1.msra.mxu0 0.0
        %3254 = vmatprep.subr.mxu0 0.0
        %3255 = vmatpush1.msra.mxu0 0.0
        %3256 = vmatprep.subr.mxu0 0.0
        %3257 = vmatpush1.msra.mxu0 0.0
        %3258 = vmatprep.subr.mxu0 0.0
        %3259 = vmatpush1.msra.mxu0 0.0
        %3260 = vmatprep.subr.mxu0 0.0
        %3261 = vmatpush1.msra.mxu0 0.0
        %3262 = vmatprep.subr.mxu0 0.0
        %3263 = vmatpush1.msra.mxu0 0.0
        %3264 = vmatprep.subr.mxu0 0.0
        %3265 = vmatpush1.msra.mxu0 0.0
        %3266 = vmatprep.mubr.f32.mxu0 0.0
        %3267 = vmatmul.mubr.f32.gmra.mrb[0].mxu0 %v3155
        %v3268 = vpop.f32.mrb[0].mxu0
        %v3269 = vadd.f32 0.0, %v3268
        %v3270 = vpop.f32.mrb[0].mxu0
        %3271 = vmatprep.mubr.f32.mxu0 0.0
        %3272 = vmatmul.mubr.f32.gmra.mrb[0].mxu0 %v3158
        %v3273 = vpop.f32.mrb[0].mxu0
        %v3274 = vadd.f32 0.0, %v3273
        %v3275 = vpop.f32.mrb[0].mxu0
        %3276 = vmatprep.mubr.f32.mxu0 0.0
        %3277 = vmatmul.mubr.f32.gmra.mrb[0].mxu0 %v3161
        %v3278 = vpop.f32.mrb[0].mxu0
        %v3279 = vadd.f32 0.0, %v3278
        %v3280 = vpop.f32.mrb[0].mxu0
        %3281 = vmatprep.mubr.f32.mxu0 0.0
        %3282 = vmatmul.mubr.f32.gmra.mrb[0].mxu0 %v3164
        %v3283 = vpop.f32.mrb[0].mxu0
        %v3284 = vadd.f32 0.0, %v3283
        %v3285 = vpop.f32.mrb[0].mxu0
        %3286 = vmatprep.mubr.f32.mxu0 0.0
        %3287 = vmatmul.mubr.f32.gmra.mrb[0].mxu0 %v3167
        %v3288 = vpop.f32.mrb[0].mxu0
        %v3289 = vadd.f32 0.0, %v3288
        %v3290 = vpop.f32.mrb[0].mxu0
        %3291 = vmatprep.mubr.f32.mxu0 0.0
        %3292 = vmatmul.mubr.f32.gmra.mrb[0].mxu0 %v3170
        %v3293 = vpop.f32.mrb[0].mxu0
        %v3294 = vadd.f32 0.0, %v3293
        %v3295 = vpop.f32.mrb[0].mxu0
        %3296 = vmatprep.mubr.f32.mxu0 0.0
        %3297 = vmatmul.mubr.f32.gmra.mrb[0].mxu0 %v3173
        %v3298 = vpop.f32.mrb[0].mxu0
        %v3299 = vadd.f32 0.0, %v3298
        %v3300 = vpop.f32.mrb[0].mxu0
        %3301 = vmatprep.mubr.f32.mxu0 0.0
        %3302 = vmatmul.mubr.f32.gmra.mrb[0].mxu0 %v3176
        %v3303 = vpop.f32.mrb[0].mxu0
        %v3304 = vadd.f32 0.0, %v3303
        %v3305 = vpop.f32.mrb[0].mxu0
        %3306 = vmatprep.mubr.f32.mxu0 0.0
        %3307 = vmatmul.mubr.f32.gmra.mrb[0].mxu0 %v3179
        %v3308 = vpop.f32.mrb[0].mxu0
        %v3309 = vadd.f32 0.0, %v3308
        %v3310 = vpop.f32.mrb[0].mxu0
        %3311 = vmatprep.mubr.f32.mxu0 0.0
        %3312 = vmatmul.mubr.f32.gmra.mrb[0].mxu0 %v3182
        %v3313 = vpop.f32.mrb[0].mxu0
        %v3314 = vadd.f32 0.0, %v3313
        %v3315 = vpop.f32.mrb[0].mxu0
        %3316 = vmatprep.mubr.f32.mxu0 0.0
        %3317 = vmatmul.mubr.f32.gmra.mrb[0].mxu0 %v3185
        %v3318 = vpop.f32.mrb[0].mxu0
        %v3319 = vadd.f32 0.0, %v3318
        %v3320 = vpop.f32.mrb[0].mxu0
        %3321 = vmatprep.mubr.f32.mxu0 0.0
        %3322 = vmatmul.mubr.f32.gmra.mrb[0].mxu0 %v3188
        %v3323 = vpop.f32.mrb[0].mxu0
        %v3324 = vadd.f32 0.0, %v3323
        %v3325 = vpop.f32.mrb[0].mxu0
        %3326 = vmatprep.mubr.f32.mxu0 0.0
        %3327 = vmatmul.mubr.f32.gmra.mrb[0].mxu0 %v3191
        %v3328 = vpop.f32.mrb[0].mxu0
        %v3329 = vadd.f32 0.0, %v3328
        %v3330 = vpop.f32.mrb[0].mxu0
        %3331 = vmatprep.mubr.f32.mxu0 0.0
        %3332 = vmatmul.mubr.f32.gmra.mrb[0].mxu0 %v3194
        %v3333 = vpop.f32.mrb[0].mxu0
        %v3334 = vadd.f32 0.0, %v3333
        %v3335 = vpop.f32.mrb[0].mxu0
        %3336 = vmatprep.mubr.f32.mxu0 0.0
        %3337 = vmatmul.mubr.f32.gmra.mrb[0].mxu0 %v3197
        %v3338 = vpop.f32.mrb[0].mxu0
        %v3339 = vadd.f32 0.0, %v3338
        %v3340 = vpop.f32.mrb[0].mxu0
        %3341 = vmatprep.mubr.f32.mxu0 0.0
        %3342 = vmatmul.mubr.f32.gmra.mrb[0].mxu0 %v3200
        %v3343 = vpop.f32.mrb[0].mxu0
        %v3344 = vadd.f32 0.0, %v3343
        %v3345 = vpop.f32.mrb[0].mxu0
        %3346 = vdwg.mxu0
        %v3347 = vadd.f32 %v3133, %v3269
        %v3348 = vadd.f32 %v3134, %v3274
        %v3349 = vadd.f32 %v3135, %v3279
        %v3350 = vadd.f32 %v3136, %v3284
        %v3351 = vadd.f32 %v3137, %v3289
        %v3352 = vadd.f32 %v3138, %v3294
        %v3353 = vadd.f32 %v3139, %v3299
        %v3354 = vadd.f32 %v3140, %v3304
        %v3355 = vadd.f32 %v3141, %v3309
        %v3356 = vadd.f32 %v3142, %v3314
        %v3357 = vadd.f32 %v3143, %v3319
        %v3358 = vadd.f32 %v3144, %v3324
        %v3359 = vadd.f32 %v3145, %v3329
        %v3360 = vadd.f32 %v3146, %v3334
        %v3361 = vadd.f32 %v3147, %v3339
        %v3362 = vadd.f32 %v3148, %v3344
        %v3364 = vlaneseq
        %v3365 = vshrl.u32 %v3364, 7
        %v3366 = vsub.s32 0, %v3365
        %v3367 = vrot.slane %v1325, %v3366
        %v3369 = vadd.f32 %v3347, %v3367
        %v3370 = vadd.f32 %v3348, %v3367
        %v3371 = vadd.f32 %v3349, %v3367
        %v3372 = vadd.f32 %v3350, %v3367
        %v3373 = vadd.f32 %v3351, %v3367
        %v3374 = vadd.f32 %v3352, %v3367
        %v3375 = vadd.f32 %v3353, %v3367
        %v3376 = vadd.f32 %v3354, %v3367
        %v3377 = vadd.f32 %v3355, %v3367
        %v3378 = vadd.f32 %v3356, %v3367
        %v3379 = vadd.f32 %v3357, %v3367
        %v3380 = vadd.f32 %v3358, %v3367
        %v3381 = vadd.f32 %v3359, %v3367
        %v3382 = vadd.f32 %v3360, %v3367
        %v3383 = vadd.f32 %v3361, %v3367
        %v3384 = vadd.f32 %v3362, %v3367
        %v3385 = vld [vmem:[%s10] sm:$0x1]
        %v3386 = vld [vmem:[%s11] sm:$0x1]
        %v3387 = vld [vmem:[%s8] sm:$0xff]
        %v3388 = vld [vmem:[%s8 + $0x8] sm:$0xff]
        %v3389 = vld [vmem:[%s8 + $0x10] sm:$0xff]
        %v3390 = vld [vmem:[%s8 + $0x18] sm:$0xff]
        %v3391 = vld [vmem:[%s8 + $0x20] sm:$0xff]
        %v3392 = vld [vmem:[%s8 + $0x28] sm:$0xff]
        %v3393 = vld [vmem:[%s8 + $0x30] sm:$0xff]
        %v3394 = vld [vmem:[%s8 + $0x38] sm:$0xff]
        %v3395 = vld [vmem:[%s9] sm:$0xff]
        %v3396 = vld [vmem:[%s9 + $0x8] sm:$0xff]
        %v3397 = vld [vmem:[%s9 + $0x10] sm:$0xff]
        %v3398 = vld [vmem:[%s9 + $0x18] sm:$0xff]
        %v3399 = vmul.f32 %v3369, %v622
        %v3400 = vmul.f32 %v3370, %v627
        %v3401 = vmul.f32 %v3371, %v632
        %v3402 = vmul.f32 %v3372, %v637
        %v3403 = vmul.f32 %v3373, %v642
        %v3404 = vmul.f32 %v3374, %v647
        %v3405 = vmul.f32 %v3375, %v652
        %v3406 = vmul.f32 %v3376, %v657
        %v3407 = vmul.f32 %v3377, %v662
        %v3408 = vmul.f32 %v3378, %v667
        %v3409 = vmul.f32 %v3379, %v672
        %v3410 = vmul.f32 %v3380, %v677
        %v3411 = vmul.f32 %v3381, %v682
        %v3412 = vmul.f32 %v3382, %v687
        %v3413 = vmul.f32 %v3383, %v692
        %v3414 = vmul.f32 %v3384, %v697
        %v3415 = vsel %vm585, %v3399, 0.0
        %v3416 = vsel %vm585, %v3400, 0.0
        %v3417 = vadd.f32 %v3415, %v3416
        %v3418 = vsel %vm585, %v3401, 0.0
        %v3419 = vadd.f32 %v3417, %v3418
        %v3420 = vsel %vm585, %v3402, 0.0
        %v3421 = vadd.f32 %v3419, %v3420
        %v3422 = vsel %vm585, %v3403, 0.0
        %v3423 = vadd.f32 %v3421, %v3422
        %v3424 = vsel %vm585, %v3404, 0.0
        %v3425 = vadd.f32 %v3423, %v3424
        %v3426 = vsel %vm585, %v3405, 0.0
        %v3427 = vadd.f32 %v3425, %v3426
        %v3428 = vsel %vm585, %v3406, 0.0
        %v3429 = vadd.f32 %v3427, %v3428
        %v3430 = vsel %vm585, %v3407, 0.0
        %v3431 = vadd.f32 %v3429, %v3430
        %v3432 = vsel %vm585, %v3408, 0.0
        %v3433 = vadd.f32 %v3431, %v3432
        %v3434 = vsel %vm585, %v3409, 0.0
        %v3435 = vadd.f32 %v3433, %v3434
        %v3436 = vsel %vm585, %v3410, 0.0
        %v3437 = vadd.f32 %v3435, %v3436
        %v3438 = vsel %vm585, %v3411, 0.0
        %v3439 = vadd.f32 %v3437, %v3438
        %v3440 = vsel %vm585, %v3412, 0.0
        %v3441 = vadd.f32 %v3439, %v3440
        %v3442 = vsel %vm585, %v3413, 0.0
        %v3443 = vadd.f32 %v3441, %v3442
        %v3444 = vsel %vm585, %v3414, 0.0
        %v3445 = vadd.f32 %v3443, %v3444
        %v3446 = vrot.slane %v3445, 4
        %v3447 = vadd.f32 %v3445, %v3446
        %v3448 = vrot.slane %v3447, 2
        %v3449 = vadd.f32 %v3447, %v3448
        %v3450 = vrot.slane %v3449, 1
        %v3451 = vadd.f32 %v3449, %v3450
        %v3453 = vsel %vm585, %v3451, 0
        %3455 = vmatprep.subr.mxu0 0.0
        %3456 = vmatpush1.msra.mxu0 %v3387
        %3457 = vmatprep.subr.mxu0 0.0
        %3458 = vmatpush1.msra.mxu0 %v3388
        %3459 = vmatprep.subr.mxu0 0.0
        %3460 = vmatpush1.msra.mxu0 %v3389
        %3461 = vmatprep.subr.mxu0 0.0
        %3462 = vmatpush1.msra.mxu0 %v3390
        %3463 = vmatprep.subr.mxu0 0.0
        %3464 = vmatpush1.msra.mxu0 %v3391
        %3465 = vmatprep.subr.mxu0 0.0
        %3466 = vmatpush1.msra.mxu0 %v3392
        %3467 = vmatprep.subr.mxu0 0.0
        %3468 = vmatpush1.msra.mxu0 %v3393
        %3469 = vmatprep.subr.mxu0 0.0
        %3470 = vmatpush1.msra.mxu0 %v3394
        %3471 = vmatprep.subr.mxu0 0.0
        %3472 = vmatpush1.msra.mxu0 0.0
        %3473 = vmatprep.subr.mxu0 0.0
        %3474 = vmatpush1.msra.mxu0 0.0
        %3475 = vmatprep.subr.mxu0 0.0
        %3476 = vmatpush1.msra.mxu0 0.0
        %3477 = vmatprep.subr.mxu0 0.0
        %3478 = vmatpush1.msra.mxu0 0.0
        %3479 = vmatprep.subr.mxu0 0.0
        %3480 = vmatpush1.msra.mxu0 0.0
        %3481 = vmatprep.subr.mxu0 0.0
        %3482 = vmatpush1.msra.mxu0 0.0
        %3483 = vmatprep.subr.mxu0 0.0
        %3484 = vmatpush1.msra.mxu0 0.0
        %3485 = vmatprep.subr.mxu0 0.0
        %3486 = vmatpush1.msra.mxu0 0.0
        %3487 = vmatprep.subr.mxu0 0.0
        %3488 = vmatpush1.msra.mxu0 0.0
        %3489 = vmatprep.subr.mxu0 0.0
        %3490 = vmatpush1.msra.mxu0 0.0
        %3491 = vmatprep.subr.mxu0 0.0
        %3492 = vmatpush1.msra.mxu0 0.0
        %3493 = vmatprep.subr.mxu0 0.0
        %3494 = vmatpush1.msra.mxu0 0.0
        %3495 = vmatprep.subr.mxu0 0.0
        %3496 = vmatpush1.msra.mxu0 0.0
        %3497 = vmatprep.subr.mxu0 0.0
        %3498 = vmatpush1.msra.mxu0 0.0
        %3499 = vmatprep.subr.mxu0 0.0
        %3500 = vmatpush1.msra.mxu0 0.0
        %3501 = vmatprep.subr.mxu0 0.0
        %3502 = vmatpush1.msra.mxu0 0.0
        %3503 = vmatprep.subr.mxu0 0.0
        %3504 = vmatpush1.msra.mxu0 0.0
        %3505 = vmatprep.subr.mxu0 0.0
        %3506 = vmatpush1.msra.mxu0 0.0
        %3507 = vmatprep.subr.mxu0 0.0
        %3508 = vmatpush1.msra.mxu0 0.0
        %3509 = vmatprep.subr.mxu0 0.0
        %3510 = vmatpush1.msra.mxu0 0.0
        %3511 = vmatprep.subr.mxu0 0.0
        %3512 = vmatpush1.msra.mxu0 0.0
        %3513 = vmatprep.subr.mxu0 0.0
        %3514 = vmatpush1.msra.mxu0 0.0
        %3515 = vmatprep.subr.mxu0 0.0
        %3516 = vmatpush1.msra.mxu0 0.0
        %3517 = vmatprep.subr.mxu0 0.0
        %3518 = vmatpush1.msra.mxu0 0.0
        %3519 = vmatprep.mubr.f32.mxu0 0.0
        %3520 = vmatmul.mubr.f32.gmra.mrb[0].mxu0 %v3453
        %v3521 = vpop.f32.mrb[0].mxu0
        %v3522 = vadd.f32 0.0, %v3521
        %v3523 = vpop.f32.mrb[0].mxu0
        %3524 = vdwg.mxu0
        %v3525 = vmul.f32 %v3522, 0.0078125
        %v3527 = vsel %vm715, %v3525, 0
        %3529 = vmatprep.subr.mxu0 0.0
        %3530 = vmatpush1.msra.mxu0 %v3395
        %3531 = vmatprep.subr.mxu0 0.0
        %3532 = vmatpush1.msra.mxu0 %v3396
        %3533 = vmatprep.subr.mxu0 0.0
        %3534 = vmatpush1.msra.mxu0 %v3397
        %3535 = vmatprep.subr.mxu0 0.0
        %3536 = vmatpush1.msra.mxu0 %v3398
        %3537 = vmatprep.subr.mxu0 0.0
        %3538 = vmatpush1.msra.mxu0 0.0
        %3539 = vmatprep.subr.mxu0 0.0
        %3540 = vmatpush1.msra.mxu0 0.0
        %3541 = vmatprep.subr.mxu0 0.0
        %3542 = vmatpush1.msra.mxu0 0.0
        %3543 = vmatprep.subr.mxu0 0.0
        %3544 = vmatpush1.msra.mxu0 0.0
        %3545 = vmatprep.subr.mxu0 0.0
        %3546 = vmatpush1.msra.mxu0 0.0
        %3547 = vmatprep.subr.mxu0 0.0
        %3548 = vmatpush1.msra.mxu0 0.0
        %3549 = vmatprep.subr.mxu0 0.0
        %3550 = vmatpush1.msra.mxu0 0.0
        %3551 = vmatprep.subr.mxu0 0.0
        %3552 = vmatpush1.msra.mxu0 0.0
        %3553 = vmatprep.subr.mxu0 0.0
        %3554 = vmatpush1.msra.mxu0 0.0
        %3555 = vmatprep.subr.mxu0 0.0
        %3556 = vmatpush1.msra.mxu0 0.0
        %3557 = vmatprep.subr.mxu0 0.0
        %3558 = vmatpush1.msra.mxu0 0.0
        %3559 = vmatprep.subr.mxu0 0.0
        %3560 = vmatpush1.msra.mxu0 0.0
        %3561 = vmatprep.subr.mxu0 0.0
        %3562 = vmatpush1.msra.mxu0 0.0
        %3563 = vmatprep.subr.mxu0 0.0
        %3564 = vmatpush1.msra.mxu0 0.0
        %3565 = vmatprep.subr.mxu0 0.0
        %3566 = vmatpush1.msra.mxu0 0.0
        %3567 = vmatprep.subr.mxu0 0.0
        %3568 = vmatpush1.msra.mxu0 0.0
        %3569 = vmatprep.subr.mxu0 0.0
        %3570 = vmatpush1.msra.mxu0 0.0
        %3571 = vmatprep.subr.mxu0 0.0
        %3572 = vmatpush1.msra.mxu0 0.0
        %3573 = vmatprep.subr.mxu0 0.0
        %3574 = vmatpush1.msra.mxu0 0.0
        %3575 = vmatprep.subr.mxu0 0.0
        %3576 = vmatpush1.msra.mxu0 0.0
        %3577 = vmatprep.subr.mxu0 0.0
        %3578 = vmatpush1.msra.mxu0 0.0
        %3579 = vmatprep.subr.mxu0 0.0
        %3580 = vmatpush1.msra.mxu0 0.0
        %3581 = vmatprep.subr.mxu0 0.0
        %3582 = vmatpush1.msra.mxu0 0.0
        %3583 = vmatprep.subr.mxu0 0.0
        %3584 = vmatpush1.msra.mxu0 0.0
        %3585 = vmatprep.subr.mxu0 0.0
        %3586 = vmatpush1.msra.mxu0 0.0
        %3587 = vmatprep.subr.mxu0 0.0
        %3588 = vmatpush1.msra.mxu0 0.0
        %3589 = vmatprep.subr.mxu0 0.0
        %3590 = vmatpush1.msra.mxu0 0.0
        %3591 = vmatprep.subr.mxu0 0.0
        %3592 = vmatpush1.msra.mxu0 0.0
        %3593 = vmatprep.mubr.f32.mxu0 0.0
        %3594 = vmatmul.mubr.f32.gmra.mrb[0].mxu0 %v3527
        %v3595 = vpop.f32.mrb[0].mxu0
        %v3596 = vadd.f32 0.0, %v3595
        %v3597 = vpop.f32.mrb[0].mxu0
        %3598 = vdwg.mxu0
        %v3599 = vlaneseq
        %v3600 = vshrl.u32 %v3599, 7
        %v3601 = vsub.s32 0, %v3600
        %v3602 = vrot.slane %v3596, %v3601
        %v3603 = vsub.f32 %v3369, %v3602
        %v3604 = vsub.f32 %v3370, %v3602
        %v3605 = vsub.f32 %v3371, %v3602
        %v3606 = vsub.f32 %v3372, %v3602
        %v3607 = vsub.f32 %v3373, %v3602
        %v3608 = vsub.f32 %v3374, %v3602
        %v3609 = vsub.f32 %v3375, %v3602
        %v3610 = vsub.f32 %v3376, %v3602
        %v3611 = vsub.f32 %v3377, %v3602
        %v3612 = vsub.f32 %v3378, %v3602
        %v3613 = vsub.f32 %v3379, %v3602
        %v3614 = vsub.f32 %v3380, %v3602
        %v3615 = vsub.f32 %v3381, %v3602
        %v3616 = vsub.f32 %v3382, %v3602
        %v3617 = vsub.f32 %v3383, %v3602
        %v3618 = vsub.f32 %v3384, %v3602
        %v3619 = vmul.f32 %v3603, %v622
        %v3620 = vmul.f32 %v3604, %v627
        %v3621 = vmul.f32 %v3605, %v632
        %v3622 = vmul.f32 %v3606, %v637
        %v3623 = vmul.f32 %v3607, %v642
        %v3624 = vmul.f32 %v3608, %v647
        %v3625 = vmul.f32 %v3609, %v652
        %v3626 = vmul.f32 %v3610, %v657
        %v3627 = vmul.f32 %v3611, %v662
        %v3628 = vmul.f32 %v3612, %v667
        %v3629 = vmul.f32 %v3613, %v672
        %v3630 = vmul.f32 %v3614, %v677
        %v3631 = vmul.f32 %v3615, %v682
        %v3632 = vmul.f32 %v3616, %v687
        %v3633 = vmul.f32 %v3617, %v692
        %v3634 = vmul.f32 %v3618, %v697
        %v3635 = vmul.f32 %v3619, %v3619
        %v3636 = vmul.f32 %v3620, %v3620
        %v3637 = vmul.f32 %v3621, %v3621
        %v3638 = vmul.f32 %v3622, %v3622
        %v3639 = vmul.f32 %v3623, %v3623
        %v3640 = vmul.f32 %v3624, %v3624
        %v3641 = vmul.f32 %v3625, %v3625
        %v3642 = vmul.f32 %v3626, %v3626
        %v3643 = vmul.f32 %v3627, %v3627
        %v3644 = vmul.f32 %v3628, %v3628
        %v3645 = vmul.f32 %v3629, %v3629
        %v3646 = vmul.f32 %v3630, %v3630
        %v3647 = vmul.f32 %v3631, %v3631
        %v3648 = vmul.f32 %v3632, %v3632
        %v3649 = vmul.f32 %v3633, %v3633
        %v3650 = vmul.f32 %v3634, %v3634
        %v3651 = vsel %vm585, %v3635, 0.0
        %v3652 = vsel %vm585, %v3636, 0.0
        %v3653 = vadd.f32 %v3651, %v3652
        %v3654 = vsel %vm585, %v3637, 0.0
        %v3655 = vadd.f32 %v3653, %v3654
        %v3656 = vsel %vm585, %v3638, 0.0
        %v3657 = vadd.f32 %v3655, %v3656
        %v3658 = vsel %vm585, %v3639, 0.0
        %v3659 = vadd.f32 %v3657, %v3658
        %v3660 = vsel %vm585, %v3640, 0.0
        %v3661 = vadd.f32 %v3659, %v3660
        %v3662 = vsel %vm585, %v3641, 0.0
        %v3663 = vadd.f32 %v3661, %v3662
        %v3664 = vsel %vm585, %v3642, 0.0
        %v3665 = vadd.f32 %v3663, %v3664
        %v3666 = vsel %vm585, %v3643, 0.0
        %v3667 = vadd.f32 %v3665, %v3666
        %v3668 = vsel %vm585, %v3644, 0.0
        %v3669 = vadd.f32 %v3667, %v3668
        %v3670 = vsel %vm585, %v3645, 0.0
        %v3671 = vadd.f32 %v3669, %v3670
        %v3672 = vsel %vm585, %v3646, 0.0
        %v3673 = vadd.f32 %v3671, %v3672
        %v3674 = vsel %vm585, %v3647, 0.0
        %v3675 = vadd.f32 %v3673, %v3674
        %v3676 = vsel %vm585, %v3648, 0.0
        %v3677 = vadd.f32 %v3675, %v3676
        %v3678 = vsel %vm585, %v3649, 0.0
        %v3679 = vadd.f32 %v3677, %v3678
        %v3680 = vsel %vm585, %v3650, 0.0
        %v3681 = vadd.f32 %v3679, %v3680
        %v3682 = vrot.slane %v3681, 4
        %v3683 = vadd.f32 %v3681, %v3682
        %v3684 = vrot.slane %v3683, 2
        %v3685 = vadd.f32 %v3683, %v3684
        %v3686 = vrot.slane %v3685, 1
        %v3687 = vadd.f32 %v3685, %v3686
        %v3689 = vsel %vm585, %v3687, 0
        %3691 = vmatprep.subr.mxu0 0.0
        %3692 = vmatpush1.msra.mxu0 %v3387
        %3693 = vmatprep.subr.mxu0 0.0
        %3694 = vmatpush1.msra.mxu0 %v3388
        %3695 = vmatprep.subr.mxu0 0.0
        %3696 = vmatpush1.msra.mxu0 %v3389
        %3697 = vmatprep.subr.mxu0 0.0
        %3698 = vmatpush1.msra.mxu0 %v3390
        %3699 = vmatprep.subr.mxu0 0.0
        %3700 = vmatpush1.msra.mxu0 %v3391
        %3701 = vmatprep.subr.mxu0 0.0
        %3702 = vmatpush1.msra.mxu0 %v3392
        %3703 = vmatprep.subr.mxu0 0.0
        %3704 = vmatpush1.msra.mxu0 %v3393
        %3705 = vmatprep.subr.mxu0 0.0
        %3706 = vmatpush1.msra.mxu0 %v3394
        %3707 = vmatprep.subr.mxu0 0.0
        %3708 = vmatpush1.msra.mxu0 0.0
        %3709 = vmatprep.subr.mxu0 0.0
        %3710 = vmatpush1.msra.mxu0 0.0
        %3711 = vmatprep.subr.mxu0 0.0
        %3712 = vmatpush1.msra.mxu0 0.0
        %3713 = vmatprep.subr.mxu0 0.0
        %3714 = vmatpush1.msra.mxu0 0.0
        %3715 = vmatprep.subr.mxu0 0.0
        %3716 = vmatpush1.msra.mxu0 0.0
        %3717 = vmatprep.subr.mxu0 0.0
        %3718 = vmatpush1.msra.mxu0 0.0
        %3719 = vmatprep.subr.mxu0 0.0
        %3720 = vmatpush1.msra.mxu0 0.0
        %3721 = vmatprep.subr.mxu0 0.0
        %3722 = vmatpush1.msra.mxu0 0.0
        %3723 = vmatprep.subr.mxu0 0.0
        %3724 = vmatpush1.msra.mxu0 0.0
        %3725 = vmatprep.subr.mxu0 0.0
        %3726 = vmatpush1.msra.mxu0 0.0
        %3727 = vmatprep.subr.mxu0 0.0
        %3728 = vmatpush1.msra.mxu0 0.0
        %3729 = vmatprep.subr.mxu0 0.0
        %3730 = vmatpush1.msra.mxu0 0.0
        %3731 = vmatprep.subr.mxu0 0.0
        %3732 = vmatpush1.msra.mxu0 0.0
        %3733 = vmatprep.subr.mxu0 0.0
        %3734 = vmatpush1.msra.mxu0 0.0
        %3735 = vmatprep.subr.mxu0 0.0
        %3736 = vmatpush1.msra.mxu0 0.0
        %3737 = vmatprep.subr.mxu0 0.0
        %3738 = vmatpush1.msra.mxu0 0.0
        %3739 = vmatprep.subr.mxu0 0.0
        %3740 = vmatpush1.msra.mxu0 0.0
        %3741 = vmatprep.subr.mxu0 0.0
        %3742 = vmatpush1.msra.mxu0 0.0
        %3743 = vmatprep.subr.mxu0 0.0
        %3744 = vmatpush1.msra.mxu0 0.0
        %3745 = vmatprep.subr.mxu0 0.0
        %3746 = vmatpush1.msra.mxu0 0.0
        %3747 = vmatprep.subr.mxu0 0.0
        %3748 = vmatpush1.msra.mxu0 0.0
        %3749 = vmatprep.subr.mxu0 0.0
        %3750 = vmatpush1.msra.mxu0 0.0
        %3751 = vmatprep.subr.mxu0 0.0
        %3752 = vmatpush1.msra.mxu0 0.0
        %3753 = vmatprep.subr.mxu0 0.0
        %3754 = vmatpush1.msra.mxu0 0.0
        %3755 = vmatprep.mubr.f32.mxu0 0.0
        %3756 = vmatmul.mubr.f32.gmra.mrb[0].mxu0 %v3689
        %v3757 = vpop.f32.mrb[0].mxu0
        %v3758 = vadd.f32 0.0, %v3757
        %v3759 = vpop.f32.mrb[0].mxu0
        %3760 = vdwg.mxu0
        %v3761 = vmul.f32 %v3758, 0.0078125
        %v3762 = vadd.f32 %v3761, 1e-06
        %v3763 = vrsqrt.pop %v3762
        %v3765 = vsel %vm715, %v3763, 0
        %3767 = vmatprep.subr.mxu0 0.0
        %3768 = vmatpush1.msra.mxu0 %v3395
        %3769 = vmatprep.subr.mxu0 0.0
        %3770 = vmatpush1.msra.mxu0 %v3396
        %3771 = vmatprep.subr.mxu0 0.0
        %3772 = vmatpush1.msra.mxu0 %v3397
        %3773 = vmatprep.subr.mxu0 0.0
        %3774 = vmatpush1.msra.mxu0 %v3398
        %3775 = vmatprep.subr.mxu0 0.0
        %3776 = vmatpush1.msra.mxu0 0.0
        %3777 = vmatprep.subr.mxu0 0.0
        %3778 = vmatpush1.msra.mxu0 0.0
        %3779 = vmatprep.subr.mxu0 0.0
        %3780 = vmatpush1.msra.mxu0 0.0
        %3781 = vmatprep.subr.mxu0 0.0
        %3782 = vmatpush1.msra.mxu0 0.0
        %3783 = vmatprep.subr.mxu0 0.0
        %3784 = vmatpush1.msra.mxu0 0.0
        %3785 = vmatprep.subr.mxu0 0.0
        %3786 = vmatpush1.msra.mxu0 0.0
        %3787 = vmatprep.subr.mxu0 0.0
        %3788 = vmatpush1.msra.mxu0 0.0
        %3789 = vmatprep.subr.mxu0 0.0
        %3790 = vmatpush1.msra.mxu0 0.0
        %3791 = vmatprep.subr.mxu0 0.0
        %3792 = vmatpush1.msra.mxu0 0.0
        %3793 = vmatprep.subr.mxu0 0.0
        %3794 = vmatpush1.msra.mxu0 0.0
        %3795 = vmatprep.subr.mxu0 0.0
        %3796 = vmatpush1.msra.mxu0 0.0
        %3797 = vmatprep.subr.mxu0 0.0
        %3798 = vmatpush1.msra.mxu0 0.0
        %3799 = vmatprep.subr.mxu0 0.0
        %3800 = vmatpush1.msra.mxu0 0.0
        %3801 = vmatprep.subr.mxu0 0.0
        %3802 = vmatpush1.msra.mxu0 0.0
        %3803 = vmatprep.subr.mxu0 0.0
        %3804 = vmatpush1.msra.mxu0 0.0
        %3805 = vmatprep.subr.mxu0 0.0
        %3806 = vmatpush1.msra.mxu0 0.0
        %3807 = vmatprep.subr.mxu0 0.0
        %3808 = vmatpush1.msra.mxu0 0.0
        %3809 = vmatprep.subr.mxu0 0.0
        %3810 = vmatpush1.msra.mxu0 0.0
        %3811 = vmatprep.subr.mxu0 0.0
        %3812 = vmatpush1.msra.mxu0 0.0
        %3813 = vmatprep.subr.mxu0 0.0
        %3814 = vmatpush1.msra.mxu0 0.0
        %3815 = vmatprep.subr.mxu0 0.0
        %3816 = vmatpush1.msra.mxu0 0.0
        %3817 = vmatprep.subr.mxu0 0.0
        %3818 = vmatpush1.msra.mxu0 0.0
        %3819 = vmatprep.subr.mxu0 0.0
        %3820 = vmatpush1.msra.mxu0 0.0
        %3821 = vmatprep.subr.mxu0 0.0
        %3822 = vmatpush1.msra.mxu0 0.0
        %3823 = vmatprep.subr.mxu0 0.0
        %3824 = vmatpush1.msra.mxu0 0.0
        %3825 = vmatprep.subr.mxu0 0.0
        %3826 = vmatpush1.msra.mxu0 0.0
        %3827 = vmatprep.subr.mxu0 0.0
        %3828 = vmatpush1.msra.mxu0 0.0
        %3829 = vmatprep.subr.mxu0 0.0
        %3830 = vmatpush1.msra.mxu0 0.0
        %3831 = vmatprep.mubr.f32.mxu0 0.0
        %3832 = vmatmul.mubr.f32.gmra.mrb[0].mxu0 %v3765
        %v3833 = vpop.f32.mrb[0].mxu0
        %v3834 = vadd.f32 0.0, %v3833
        %v3835 = vpop.f32.mrb[0].mxu0
        %3836 = vdwg.mxu0
        %v3837 = vmul.f32 %v3834, %v3385
        %v3838 = vlaneseq
        %v3839 = vshrl.u32 %v3838, 7
        %v3840 = vsub.s32 0, %v3839
        %v3841 = vrot.slane %v3837, %v3840
        %v3842 = vmul.f32 %v3603, %v3841
        %v3843 = vmul.f32 %v3604, %v3841
        %v3844 = vmul.f32 %v3605, %v3841
        %v3845 = vmul.f32 %v3606, %v3841
        %v3846 = vmul.f32 %v3607, %v3841
        %v3847 = vmul.f32 %v3608, %v3841
        %v3848 = vmul.f32 %v3609, %v3841
        %v3849 = vmul.f32 %v3610, %v3841
        %v3850 = vmul.f32 %v3611, %v3841
        %v3851 = vmul.f32 %v3612, %v3841
        %v3852 = vmul.f32 %v3613, %v3841
        %v3853 = vmul.f32 %v3614, %v3841
        %v3854 = vmul.f32 %v3615, %v3841
        %v3855 = vmul.f32 %v3616, %v3841
        %v3856 = vmul.f32 %v3617, %v3841
        %v3857 = vmul.f32 %v3618, %v3841
        %v3859 = vlaneseq
        %v3860 = vshrl.u32 %v3859, 7
        %v3861 = vsub.s32 0, %v3860
        %v3862 = vrot.slane %v3386, %v3861
        %v3864 = vadd.f32 %v3842, %v3862
        %v3865 = vadd.f32 %v3843, %v3862
        %v3866 = vadd.f32 %v3844, %v3862
        %v3867 = vadd.f32 %v3845, %v3862
        %v3868 = vadd.f32 %v3846, %v3862
        %v3869 = vadd.f32 %v3847, %v3862
        %v3870 = vadd.f32 %v3848, %v3862
        %v3871 = vadd.f32 %v3849, %v3862
        %v3872 = vadd.f32 %v3850, %v3862
        %v3873 = vadd.f32 %v3851, %v3862
        %v3874 = vadd.f32 %v3852, %v3862
        %v3875 = vadd.f32 %v3853, %v3862
        %v3876 = vadd.f32 %v3854, %v3862
        %v3877 = vadd.f32 %v3855, %v3862
        %v3878 = vadd.f32 %v3856, %v3862
        %v3879 = vadd.f32 %v3857, %v3862
        %v3880 = vxor.u32 %v3864, 2147483648
        %v3881 = vxor.u32 %v3865, 2147483648
        %v3882 = vxor.u32 %v3866, 2147483648
        %v3883 = vxor.u32 %v3867, 2147483648
        %v3884 = vxor.u32 %v3868, 2147483648
        %v3885 = vxor.u32 %v3869, 2147483648
        %v3886 = vxor.u32 %v3870, 2147483648
        %v3887 = vxor.u32 %v3871, 2147483648
        %v3888 = vxor.u32 %v3872, 2147483648
        %v3889 = vxor.u32 %v3873, 2147483648
        %v3890 = vxor.u32 %v3874, 2147483648
        %v3891 = vxor.u32 %v3875, 2147483648
        %v3892 = vxor.u32 %v3876, 2147483648
        %v3893 = vxor.u32 %v3877, 2147483648
        %v3894 = vxor.u32 %v3878, 2147483648
        %v3895 = vxor.u32 %v3879, 2147483648
        %v3896 = vmul.f32 %v3880, 1.442695
        %v3897 = vpow.pop %v3896
        %v3898 = vmul.f32 %v3881, 1.442695
        %v3899 = vpow.pop %v3898
        %v3900 = vmul.f32 %v3882, 1.442695
        %v3901 = vpow.pop %v3900
        %v3902 = vmul.f32 %v3883, 1.442695
        %v3903 = vpow.pop %v3902
        %v3904 = vmul.f32 %v3884, 1.442695
        %v3905 = vpow.pop %v3904
        %v3906 = vmul.f32 %v3885, 1.442695
        %v3907 = vpow.pop %v3906
        %v3908 = vmul.f32 %v3886, 1.442695
        %v3909 = vpow.pop %v3908
        %v3910 = vmul.f32 %v3887, 1.442695
        %v3911 = vpow.pop %v3910
        %v3912 = vmul.f32 %v3888, 1.442695
        %v3913 = vpow.pop %v3912
        %v3914 = vmul.f32 %v3889, 1.442695
        %v3915 = vpow.pop %v3914
        %v3916 = vmul.f32 %v3890, 1.442695
        %v3917 = vpow.pop %v3916
        %v3918 = vmul.f32 %v3891, 1.442695
        %v3919 = vpow.pop %v3918
        %v3920 = vmul.f32 %v3892, 1.442695
        %v3921 = vpow.pop %v3920
        %v3922 = vmul.f32 %v3893, 1.442695
        %v3923 = vpow.pop %v3922
        %v3924 = vmul.f32 %v3894, 1.442695
        %v3925 = vpow.pop %v3924
        %v3926 = vmul.f32 %v3895, 1.442695
        %v3927 = vpow.pop %v3926
        %v3928 = vadd.f32 %v3897, 1.0
        %v3929 = vadd.f32 %v3899, 1.0
        %v3930 = vadd.f32 %v3901, 1.0
        %v3931 = vadd.f32 %v3903, 1.0
        %v3932 = vadd.f32 %v3905, 1.0
        %v3933 = vadd.f32 %v3907, 1.0
        %v3934 = vadd.f32 %v3909, 1.0
        %v3935 = vadd.f32 %v3911, 1.0
        %v3936 = vadd.f32 %v3913, 1.0
        %v3937 = vadd.f32 %v3915, 1.0
        %v3938 = vadd.f32 %v3917, 1.0
        %v3939 = vadd.f32 %v3919, 1.0
        %v3940 = vadd.f32 %v3921, 1.0
        %v3941 = vadd.f32 %v3923, 1.0
        %v3942 = vadd.f32 %v3925, 1.0
        %v3943 = vadd.f32 %v3927, 1.0
        %v3944 = vrcp.pop %v3928
        %v3945 = vmul.f32 1.0, %v3944
        %v3946 = vrcp.pop %v3929
        %v3947 = vmul.f32 1.0, %v3946
        %v3948 = vrcp.pop %v3930
        %v3949 = vmul.f32 1.0, %v3948
        %v3950 = vrcp.pop %v3931
        %v3951 = vmul.f32 1.0, %v3950
        %v3952 = vrcp.pop %v3932
        %v3953 = vmul.f32 1.0, %v3952
        %v3954 = vrcp.pop %v3933
        %v3955 = vmul.f32 1.0, %v3954
        %v3956 = vrcp.pop %v3934
        %v3957 = vmul.f32 1.0, %v3956
        %v3958 = vrcp.pop %v3935
        %v3959 = vmul.f32 1.0, %v3958
        %v3960 = vrcp.pop %v3936
        %v3961 = vmul.f32 1.0, %v3960
        %v3962 = vrcp.pop %v3937
        %v3963 = vmul.f32 1.0, %v3962
        %v3964 = vrcp.pop %v3938
        %v3965 = vmul.f32 1.0, %v3964
        %v3966 = vrcp.pop %v3939
        %v3967 = vmul.f32 1.0, %v3966
        %v3968 = vrcp.pop %v3940
        %v3969 = vmul.f32 1.0, %v3968
        %v3970 = vrcp.pop %v3941
        %v3971 = vmul.f32 1.0, %v3970
        %v3972 = vrcp.pop %v3942
        %v3973 = vmul.f32 1.0, %v3972
        %v3974 = vrcp.pop %v3943
        %v3975 = vmul.f32 1.0, %v3974
        %v3976 = vmul.f32 %v3864, %v3945
        %v3977 = vmul.f32 %v3865, %v3947
        %v3978 = vmul.f32 %v3866, %v3949
        %v3979 = vmul.f32 %v3867, %v3951
        %v3980 = vmul.f32 %v3868, %v3953
        %v3981 = vmul.f32 %v3869, %v3955
        %v3982 = vmul.f32 %v3870, %v3957
        %v3983 = vmul.f32 %v3871, %v3959
        %v3984 = vmul.f32 %v3872, %v3961
        %v3985 = vmul.f32 %v3873, %v3963
        %v3986 = vmul.f32 %v3874, %v3965
        %v3987 = vmul.f32 %v3875, %v3967
        %v3988 = vmul.f32 %v3876, %v3969
        %v3989 = vmul.f32 %v3877, %v3971
        %v3990 = vmul.f32 %v3878, %v3973
        %v3991 = vmul.f32 %v3879, %v3975
        %v3992 = vmul.f32 %v3976, %v622
        %v3993 = vmul.f32 %v3977, %v627
        %v3994 = vmul.f32 %v3978, %v632
        %v3995 = vmul.f32 %v3979, %v637
        %v3996 = vmul.f32 %v3980, %v642
        %v3997 = vmul.f32 %v3981, %v647
        %v3998 = vmul.f32 %v3982, %v652
        %v3999 = vmul.f32 %v3983, %v657
        %v4000 = vmul.f32 %v3984, %v662
        %v4001 = vmul.f32 %v3985, %v667
        %v4002 = vmul.f32 %v3986, %v672
        %v4003 = vmul.f32 %v3987, %v677
        %v4004 = vmul.f32 %v3988, %v682
        %v4005 = vmul.f32 %v3989, %v687
        %v4006 = vmul.f32 %v3990, %v692
        %v4007 = vmul.f32 %v3991, %v697
        %4008 = vst.msk [vmem:[#allocation2 + $0x20] sm:$0xff] %vm585, %v3992
        %4009 = vst.msk [vmem:[#allocation2 + $0x28] sm:$0xff] %vm585, %v3993
        %4010 = vst.msk [vmem:[#allocation2 + $0x30] sm:$0xff] %vm585, %v3994
        %4011 = vst.msk [vmem:[#allocation2 + $0x38] sm:$0xff] %vm585, %v3995
        %4012 = vst.msk [vmem:[#allocation2 + $0x40] sm:$0xff] %vm585, %v3996
        %4013 = vst.msk [vmem:[#allocation2 + $0x48] sm:$0xff] %vm585, %v3997
        %4014 = vst.msk [vmem:[#allocation2 + $0x50] sm:$0xff] %vm585, %v3998
        %4015 = vst.msk [vmem:[#allocation2 + $0x58] sm:$0xff] %vm585, %v3999
        %4016 = vst.msk [vmem:[#allocation2 + $0x60] sm:$0xff] %vm585, %v4000
        %4017 = vst.msk [vmem:[#allocation2 + $0x68] sm:$0xff] %vm585, %v4001
        %4018 = vst.msk [vmem:[#allocation2 + $0x70] sm:$0xff] %vm585, %v4002
        %4019 = vst.msk [vmem:[#allocation2 + $0x78] sm:$0xff] %vm585, %v4003
        %4020 = vst.msk [vmem:[#allocation2 + $0x80] sm:$0xff] %vm585, %v4004
        %4021 = vst.msk [vmem:[#allocation2 + $0x88] sm:$0xff] %vm585, %v4005
        %4022 = vst.msk [vmem:[#allocation2 + $0x90] sm:$0xff] %vm585, %v4006
        %4023 = vst.msk [vmem:[#allocation2 + $0x98] sm:$0xff] %vm585, %v4007
        %v4024 = vld [vmem:[%s13] sm:$0x1]
        %v4025 = vld [vmem:[#allocation2 + $0xf] sm:$0xff]
        %v4026 = vld [vmem:[#allocation2 + $0x17] sm:$0xff]
        %v4027 = vld [vmem:[#allocation2 + $0x1f] sm:$0xff]
        %v4028 = vld [vmem:[#allocation2 + $0x27] sm:$0xff]
        %v4029 = vld [vmem:[#allocation2 + $0x2f] sm:$0xff]
        %v4030 = vld [vmem:[#allocation2 + $0x37] sm:$0xff]
        %v4031 = vld [vmem:[#allocation2 + $0x3f] sm:$0xff]
        %v4032 = vld [vmem:[#allocation2 + $0x47] sm:$0xff]
        %v4033 = vld [vmem:[#allocation2 + $0x4f] sm:$0xff]
        %v4034 = vld [vmem:[#allocation2 + $0x57] sm:$0xff]
        %v4035 = vld [vmem:[#allocation2 + $0x5f] sm:$0xff]
        %v4036 = vld [vmem:[#allocation2 + $0x67] sm:$0xff]
        %v4037 = vld [vmem:[#allocation2 + $0x6f] sm:$0xff]
        %v4038 = vld [vmem:[#allocation2 + $0x77] sm:$0xff]
        %v4039 = vld [vmem:[#allocation2 + $0x7f] sm:$0xff]
        %v4040 = vld [vmem:[#allocation2 + $0x87] sm:$0xff]
        %v4041 = vld [vmem:[#allocation2 + $0x10] sm:$0xff]
        %v4042 = vld [vmem:[#allocation2 + $0x18] sm:$0xff]
        %v4043 = vld [vmem:[#allocation2 + $0x20] sm:$0xff]
        %v4044 = vld [vmem:[#allocation2 + $0x28] sm:$0xff]
        %v4045 = vld [vmem:[#allocation2 + $0x30] sm:$0xff]
        %v4046 = vld [vmem:[#allocation2 + $0x38] sm:$0xff]
        %v4047 = vld [vmem:[#allocation2 + $0x40] sm:$0xff]
        %v4048 = vld [vmem:[#allocation2 + $0x48] sm:$0xff]
        %v4049 = vld [vmem:[#allocation2 + $0x50] sm:$0xff]
        %v4050 = vld [vmem:[#allocation2 + $0x58] sm:$0xff]
        %v4051 = vld [vmem:[#allocation2 + $0x60] sm:$0xff]
        %v4052 = vld [vmem:[#allocation2 + $0x68] sm:$0xff]
        %v4053 = vld [vmem:[#allocation2 + $0x70] sm:$0xff]
        %v4054 = vld [vmem:[#allocation2 + $0x78] sm:$0xff]
        %v4055 = vld [vmem:[#allocation2 + $0x80] sm:$0xff]
        %v4056 = vld [vmem:[#allocation2 + $0x88] sm:$0xff]
        %v4057 = vld [vmem:[#allocation2 + $0x11] sm:$0xff]
        %v4058 = vld [vmem:[#allocation2 + $0x19] sm:$0xff]
        %v4059 = vld [vmem:[#allocation2 + $0x21] sm:$0xff]
        %v4060 = vld [vmem:[#allocation2 + $0x29] sm:$0xff]
        %v4061 = vld [vmem:[#allocation2 + $0x31] sm:$0xff]
        %v4062 = vld [vmem:[#allocation2 + $0x39] sm:$0xff]
        %v4063 = vld [vmem:[#allocation2 + $0x41] sm:$0xff]
        %v4064 = vld [vmem:[#allocation2 + $0x49] sm:$0xff]
        %v4065 = vld [vmem:[#allocation2 + $0x51] sm:$0xff]
        %v4066 = vld [vmem:[#allocation2 + $0x59] sm:$0xff]
        %v4067 = vld [vmem:[#allocation2 + $0x61] sm:$0xff]
        %v4068 = vld [vmem:[#allocation2 + $0x69] sm:$0xff]
        %v4069 = vld [vmem:[#allocation2 + $0x71] sm:$0xff]
        %v4070 = vld [vmem:[#allocation2 + $0x79] sm:$0xff]
        %v4071 = vld [vmem:[#allocation2 + $0x81] sm:$0xff]
        %v4072 = vld [vmem:[#allocation2 + $0x89] sm:$0xff]
        %v4073 = vld [vmem:[#allocation8] sm:$0xff]
        %v4074 = vld [vmem:[#allocation8 + $0x8] sm:$0xff]
        %v4075 = vld [vmem:[#allocation8 + $0x10] sm:$0xff]
        %v4076 = vld [vmem:[#allocation8 + $0x18] sm:$0xff]
        %v4077 = vld [vmem:[#allocation8 + $0x20] sm:$0xff]
        %v4078 = vld [vmem:[#allocation8 + $0x28] sm:$0xff]
        %v4079 = vld [vmem:[#allocation8 + $0x30] sm:$0xff]
        %v4080 = vld [vmem:[#allocation8 + $0x38] sm:$0xff]
        %s4081 = scalar_lea.vmem [#allocation8], 64
        %v4082 = vld [vmem:[%s4081] sm:$0xff]
        %v4083 = vld [vmem:[%s4081 + $0x8] sm:$0xff]
        %v4084 = vld [vmem:[%s4081 + $0x10] sm:$0xff]
        %v4085 = vld [vmem:[%s4081 + $0x18] sm:$0xff]
        %v4086 = vld [vmem:[%s4081 + $0x20] sm:$0xff]
        %v4087 = vld [vmem:[%s4081 + $0x28] sm:$0xff]
        %v4088 = vld [vmem:[%s4081 + $0x30] sm:$0xff]
        %v4089 = vld [vmem:[%s4081 + $0x38] sm:$0xff]
        %v4091 = vsel %vm585, %v4041, 0
        %v4094 = vsel %vm585, %v4042, 0
        %v4097 = vsel %vm585, %v4043, 0
        %v4100 = vsel %vm585, %v4044, 0
        %v4103 = vsel %vm585, %v4045, 0
        %v4106 = vsel %vm585, %v4046, 0
        %v4109 = vsel %vm585, %v4047, 0
        %v4112 = vsel %vm585, %v4048, 0
        %v4115 = vsel %vm585, %v4049, 0
        %v4118 = vsel %vm585, %v4050, 0
        %v4121 = vsel %vm585, %v4051, 0
        %v4124 = vsel %vm585, %v4052, 0
        %v4127 = vsel %vm585, %v4053, 0
        %v4130 = vsel %vm585, %v4054, 0
        %v4133 = vsel %vm585, %v4055, 0
        %v4136 = vsel %vm585, %v4056, 0
        %4138 = vmatprep.subr.mxu0 0.0
        %4139 = vmatpush1.msra.mxu0 %v4082
        %4140 = vmatprep.subr.mxu0 0.0
        %4141 = vmatpush1.msra.mxu0 %v4083
        %4142 = vmatprep.subr.mxu0 0.0
        %4143 = vmatpush1.msra.mxu0 %v4084
        %4144 = vmatprep.subr.mxu0 0.0
        %4145 = vmatpush1.msra.mxu0 %v4085
        %4146 = vmatprep.subr.mxu0 0.0
        %4147 = vmatpush1.msra.mxu0 %v4086
        %4148 = vmatprep.subr.mxu0 0.0
        %4149 = vmatpush1.msra.mxu0 %v4087
        %4150 = vmatprep.subr.mxu0 0.0
        %4151 = vmatpush1.msra.mxu0 %v4088
        %4152 = vmatprep.subr.mxu0 0.0
        %4153 = vmatpush1.msra.mxu0 %v4089
        %4154 = vmatprep.subr.mxu0 0.0
        %4155 = vmatpush1.msra.mxu0 0.0
        %4156 = vmatprep.subr.mxu0 0.0
        %4157 = vmatpush1.msra.mxu0 0.0
        %4158 = vmatprep.subr.mxu0 0.0
        %4159 = vmatpush1.msra.mxu0 0.0
        %4160 = vmatprep.subr.mxu0 0.0
        %4161 = vmatpush1.msra.mxu0 0.0
        %4162 = vmatprep.subr.mxu0 0.0
        %4163 = vmatpush1.msra.mxu0 0.0
        %4164 = vmatprep.subr.mxu0 0.0
        %4165 = vmatpush1.msra.mxu0 0.0
        %4166 = vmatprep.subr.mxu0 0.0
        %4167 = vmatpush1.msra.mxu0 0.0
        %4168 = vmatprep.subr.mxu0 0.0
        %4169 = vmatpush1.msra.mxu0 0.0
        %4170 = vmatprep.subr.mxu0 0.0
        %4171 = vmatpush1.msra.mxu0 0.0
        %4172 = vmatprep.subr.mxu0 0.0
        %4173 = vmatpush1.msra.mxu0 0.0
        %4174 = vmatprep.subr.mxu0 0.0
        %4175 = vmatpush1.msra.mxu0 0.0
        %4176 = vmatprep.subr.mxu0 0.0
        %4177 = vmatpush1.msra.mxu0 0.0
        %4178 = vmatprep.subr.mxu0 0.0
        %4179 = vmatpush1.msra.mxu0 0.0
        %4180 = vmatprep.subr.mxu0 0.0
        %4181 = vmatpush1.msra.mxu0 0.0
        %4182 = vmatprep.subr.mxu0 0.0
        %4183 = vmatpush1.msra.mxu0 0.0
        %4184 = vmatprep.subr.mxu0 0.0
        %4185 = vmatpush1.msra.mxu0 0.0
        %4186 = vmatprep.subr.mxu0 0.0
        %4187 = vmatpush1.msra.mxu0 0.0
        %4188 = vmatprep.subr.mxu0 0.0
        %4189 = vmatpush1.msra.mxu0 0.0
        %4190 = vmatprep.subr.mxu0 0.0
        %4191 = vmatpush1.msra.mxu0 0.0
        %4192 = vmatprep.subr.mxu0 0.0
        %4193 = vmatpush1.msra.mxu0 0.0
        %4194 = vmatprep.subr.mxu0 0.0
        %4195 = vmatpush1.msra.mxu0 0.0
        %4196 = vmatprep.subr.mxu0 0.0
        %4197 = vmatpush1.msra.mxu0 0.0
        %4198 = vmatprep.subr.mxu0 0.0
        %4199 = vmatpush1.msra.mxu0 0.0
        %4200 = vmatprep.subr.mxu0 0.0
        %4201 = vmatpush1.msra.mxu0 0.0
        %4202 = vmatprep.mubr.f32.mxu0 0.0
        %4203 = vmatmul.mubr.f32.gmra.mrb[0].mxu0 %v4091
        %v4204 = vpop.f32.mrb[0].mxu0
        %v4205 = vadd.f32 0.0, %v4204
        %v4206 = vpop.f32.mrb[0].mxu0
        %4207 = vmatprep.mubr.f32.mxu0 0.0
        %4208 = vmatmul.mubr.f32.gmra.mrb[0].mxu0 %v4094
        %v4209 = vpop.f32.mrb[0].mxu0
        %v4210 = vadd.f32 0.0, %v4209
        %v4211 = vpop.f32.mrb[0].mxu0
        %4212 = vmatprep.mubr.f32.mxu0 0.0
        %4213 = vmatmul.mubr.f32.gmra.mrb[0].mxu0 %v4097
        %v4214 = vpop.f32.mrb[0].mxu0
        %v4215 = vadd.f32 0.0, %v4214
        %v4216 = vpop.f32.mrb[0].mxu0
        %4217 = vmatprep.mubr.f32.mxu0 0.0
        %4218 = vmatmul.mubr.f32.gmra.mrb[0].mxu0 %v4100
        %v4219 = vpop.f32.mrb[0].mxu0
        %v4220 = vadd.f32 0.0, %v4219
        %v4221 = vpop.f32.mrb[0].mxu0
        %4222 = vmatprep.mubr.f32.mxu0 0.0
        %4223 = vmatmul.mubr.f32.gmra.mrb[0].mxu0 %v4103
        %v4224 = vpop.f32.mrb[0].mxu0
        %v4225 = vadd.f32 0.0, %v4224
        %v4226 = vpop.f32.mrb[0].mxu0
        %4227 = vmatprep.mubr.f32.mxu0 0.0
        %4228 = vmatmul.mubr.f32.gmra.mrb[0].mxu0 %v4106
        %v4229 = vpop.f32.mrb[0].mxu0
        %v4230 = vadd.f32 0.0, %v4229
        %v4231 = vpop.f32.mrb[0].mxu0
        %4232 = vmatprep.mubr.f32.mxu0 0.0
        %4233 = vmatmul.mubr.f32.gmra.mrb[0].mxu0 %v4109
        %v4234 = vpop.f32.mrb[0].mxu0
        %v4235 = vadd.f32 0.0, %v4234
        %v4236 = vpop.f32.mrb[0].mxu0
        %4237 = vmatprep.mubr.f32.mxu0 0.0
        %4238 = vmatmul.mubr.f32.gmra.mrb[0].mxu0 %v4112
        %v4239 = vpop.f32.mrb[0].mxu0
        %v4240 = vadd.f32 0.0, %v4239
        %v4241 = vpop.f32.mrb[0].mxu0
        %4242 = vmatprep.mubr.f32.mxu0 0.0
        %4243 = vmatmul.mubr.f32.gmra.mrb[0].mxu0 %v4115
        %v4244 = vpop.f32.mrb[0].mxu0
        %v4245 = vadd.f32 0.0, %v4244
        %v4246 = vpop.f32.mrb[0].mxu0
        %4247 = vmatprep.mubr.f32.mxu0 0.0
        %4248 = vmatmul.mubr.f32.gmra.mrb[0].mxu0 %v4118
        %v4249 = vpop.f32.mrb[0].mxu0
        %v4250 = vadd.f32 0.0, %v4249
        %v4251 = vpop.f32.mrb[0].mxu0
        %4252 = vmatprep.mubr.f32.mxu0 0.0
        %4253 = vmatmul.mubr.f32.gmra.mrb[0].mxu0 %v4121
        %v4254 = vpop.f32.mrb[0].mxu0
        %v4255 = vadd.f32 0.0, %v4254
        %v4256 = vpop.f32.mrb[0].mxu0
        %4257 = vmatprep.mubr.f32.mxu0 0.0
        %4258 = vmatmul.mubr.f32.gmra.mrb[0].mxu0 %v4124
        %v4259 = vpop.f32.mrb[0].mxu0
        %v4260 = vadd.f32 0.0, %v4259
        %v4261 = vpop.f32.mrb[0].mxu0
        %4262 = vmatprep.mubr.f32.mxu0 0.0
        %4263 = vmatmul.mubr.f32.gmra.mrb[0].mxu0 %v4127
        %v4264 = vpop.f32.mrb[0].mxu0
        %v4265 = vadd.f32 0.0, %v4264
        %v4266 = vpop.f32.mrb[0].mxu0
        %4267 = vmatprep.mubr.f32.mxu0 0.0
        %4268 = vmatmul.mubr.f32.gmra.mrb[0].mxu0 %v4130
        %v4269 = vpop.f32.mrb[0].mxu0
        %v4270 = vadd.f32 0.0, %v4269
        %v4271 = vpop.f32.mrb[0].mxu0
        %4272 = vmatprep.mubr.f32.mxu0 0.0
        %4273 = vmatmul.mubr.f32.gmra.mrb[0].mxu0 %v4133
        %v4274 = vpop.f32.mrb[0].mxu0
        %v4275 = vadd.f32 0.0, %v4274
        %v4276 = vpop.f32.mrb[0].mxu0
        %4277 = vmatprep.mubr.f32.mxu0 0.0
        %4278 = vmatmul.mubr.f32.gmra.mrb[0].mxu0 %v4136
        %v4279 = vpop.f32.mrb[0].mxu0
        %v4280 = vadd.f32 0.0, %v4279
        %v4281 = vpop.f32.mrb[0].mxu0
        %4282 = vdwg.mxu0
        %v4284 = vsel %vm585, %v4025, 0
        %v4287 = vsel %vm585, %v4026, 0
        %v4290 = vsel %vm585, %v4027, 0
        %v4293 = vsel %vm585, %v4028, 0
        %v4296 = vsel %vm585, %v4029, 0
        %v4299 = vsel %vm585, %v4030, 0
        %v4302 = vsel %vm585, %v4031, 0
        %v4305 = vsel %vm585, %v4032, 0
        %v4308 = vsel %vm585, %v4033, 0
        %v4311 = vsel %vm585, %v4034, 0
        %v4314 = vsel %vm585, %v4035, 0
        %v4317 = vsel %vm585, %v4036, 0
        %v4320 = vsel %vm585, %v4037, 0
        %v4323 = vsel %vm585, %v4038, 0
        %v4326 = vsel %vm585, %v4039, 0
        %v4329 = vsel %vm585, %v4040, 0
        %4331 = vmatprep.subr.mxu0 0.0
        %4332 = vmatpush1.msra.mxu0 %v4073
        %4333 = vmatprep.subr.mxu0 0.0
        %4334 = vmatpush1.msra.mxu0 %v4074
        %4335 = vmatprep.subr.mxu0 0.0
        %4336 = vmatpush1.msra.mxu0 %v4075
        %4337 = vmatprep.subr.mxu0 0.0
        %4338 = vmatpush1.msra.mxu0 %v4076
        %4339 = vmatprep.subr.mxu0 0.0
        %4340 = vmatpush1.msra.mxu0 %v4077
        %4341 = vmatprep.subr.mxu0 0.0
        %4342 = vmatpush1.msra.mxu0 %v4078
        %4343 = vmatprep.subr.mxu0 0.0
        %4344 = vmatpush1.msra.mxu0 %v4079
        %4345 = vmatprep.subr.mxu0 0.0
        %4346 = vmatpush1.msra.mxu0 %v4080
        %4347 = vmatprep.subr.mxu0 0.0
        %4348 = vmatpush1.msra.mxu0 0.0
        %4349 = vmatprep.subr.mxu0 0.0
        %4350 = vmatpush1.msra.mxu0 0.0
        %4351 = vmatprep.subr.mxu0 0.0
        %4352 = vmatpush1.msra.mxu0 0.0
        %4353 = vmatprep.subr.mxu0 0.0
        %4354 = vmatpush1.msra.mxu0 0.0
        %4355 = vmatprep.subr.mxu0 0.0
        %4356 = vmatpush1.msra.mxu0 0.0
        %4357 = vmatprep.subr.mxu0 0.0
        %4358 = vmatpush1.msra.mxu0 0.0
        %4359 = vmatprep.subr.mxu0 0.0
        %4360 = vmatpush1.msra.mxu0 0.0
        %4361 = vmatprep.subr.mxu0 0.0
        %4362 = vmatpush1.msra.mxu0 0.0
        %4363 = vmatprep.subr.mxu0 0.0
        %4364 = vmatpush1.msra.mxu0 0.0
        %4365 = vmatprep.subr.mxu0 0.0
        %4366 = vmatpush1.msra.mxu0 0.0
        %4367 = vmatprep.subr.mxu0 0.0
        %4368 = vmatpush1.msra.mxu0 0.0
        %4369 = vmatprep.subr.mxu0 0.0
        %4370 = vmatpush1.msra.mxu0 0.0
        %4371 = vmatprep.subr.mxu0 0.0
        %4372 = vmatpush1.msra.mxu0 0.0
        %4373 = vmatprep.subr.mxu0 0.0
        %4374 = vmatpush1.msra.mxu0 0.0
        %4375 = vmatprep.subr.mxu0 0.0
        %4376 = vmatpush1.msra.mxu0 0.0
        %4377 = vmatprep.subr.mxu0 0.0
        %4378 = vmatpush1.msra.mxu0 0.0
        %4379 = vmatprep.subr.mxu0 0.0
        %4380 = vmatpush1.msra.mxu0 0.0
        %4381 = vmatprep.subr.mxu0 0.0
        %4382 = vmatpush1.msra.mxu0 0.0
        %4383 = vmatprep.subr.mxu0 0.0
        %4384 = vmatpush1.msra.mxu0 0.0
        %4385 = vmatprep.subr.mxu0 0.0
        %4386 = vmatpush1.msra.mxu0 0.0
        %4387 = vmatprep.subr.mxu0 0.0
        %4388 = vmatpush1.msra.mxu0 0.0
        %4389 = vmatprep.subr.mxu0 0.0
        %4390 = vmatpush1.msra.mxu0 0.0
        %4391 = vmatprep.subr.mxu0 0.0
        %4392 = vmatpush1.msra.mxu0 0.0
        %4393 = vmatprep.subr.mxu0 0.0
        %4394 = vmatpush1.msra.mxu0 0.0
        %4395 = vmatprep.mubr.f32.mxu0 0.0
        %4396 = vmatmul.mubr.f32.gmra.mrb[0].mxu0 %v4284
        %v4397 = vpop.f32.mrb[0].mxu0
        %v4398 = vadd.f32 %v4205, %v4397
        %v4399 = vpop.f32.mrb[0].mxu0
        %4400 = vmatprep.mubr.f32.mxu0 0.0
        %4401 = vmatmul.mubr.f32.gmra.mrb[0].mxu0 %v4287
        %v4402 = vpop.f32.mrb[0].mxu0
        %v4403 = vadd.f32 %v4210, %v4402
        %v4404 = vpop.f32.mrb[0].mxu0
        %4405 = vmatprep.mubr.f32.mxu0 0.0
        %4406 = vmatmul.mubr.f32.gmra.mrb[0].mxu0 %v4290
        %v4407 = vpop.f32.mrb[0].mxu0
        %v4408 = vadd.f32 %v4215, %v4407
        %v4409 = vpop.f32.mrb[0].mxu0
        %4410 = vmatprep.mubr.f32.mxu0 0.0
        %4411 = vmatmul.mubr.f32.gmra.mrb[0].mxu0 %v4293
        %v4412 = vpop.f32.mrb[0].mxu0
        %v4413 = vadd.f32 %v4220, %v4412
        %v4414 = vpop.f32.mrb[0].mxu0
        %4415 = vmatprep.mubr.f32.mxu0 0.0
        %4416 = vmatmul.mubr.f32.gmra.mrb[0].mxu0 %v4296
        %v4417 = vpop.f32.mrb[0].mxu0
        %v4418 = vadd.f32 %v4225, %v4417
        %v4419 = vpop.f32.mrb[0].mxu0
        %4420 = vmatprep.mubr.f32.mxu0 0.0
        %4421 = vmatmul.mubr.f32.gmra.mrb[0].mxu0 %v4299
        %v4422 = vpop.f32.mrb[0].mxu0
        %v4423 = vadd.f32 %v4230, %v4422
        %v4424 = vpop.f32.mrb[0].mxu0
        %4425 = vmatprep.mubr.f32.mxu0 0.0
        %4426 = vmatmul.mubr.f32.gmra.mrb[0].mxu0 %v4302
        %v4427 = vpop.f32.mrb[0].mxu0
        %v4428 = vadd.f32 %v4235, %v4427
        %v4429 = vpop.f32.mrb[0].mxu0
        %4430 = vmatprep.mubr.f32.mxu0 0.0
        %4431 = vmatmul.mubr.f32.gmra.mrb[0].mxu0 %v4305
        %v4432 = vpop.f32.mrb[0].mxu0
        %v4433 = vadd.f32 %v4240, %v4432
        %v4434 = vpop.f32.mrb[0].mxu0
        %4435 = vmatprep.mubr.f32.mxu0 0.0
        %4436 = vmatmul.mubr.f32.gmra.mrb[0].mxu0 %v4308
        %v4437 = vpop.f32.mrb[0].mxu0
        %v4438 = vadd.f32 %v4245, %v4437
        %v4439 = vpop.f32.mrb[0].mxu0
        %4440 = vmatprep.mubr.f32.mxu0 0.0
        %4441 = vmatmul.mubr.f32.gmra.mrb[0].mxu0 %v4311
        %v4442 = vpop.f32.mrb[0].mxu0
        %v4443 = vadd.f32 %v4250, %v4442
        %v4444 = vpop.f32.mrb[0].mxu0
        %4445 = vmatprep.mubr.f32.mxu0 0.0
        %4446 = vmatmul.mubr.f32.gmra.mrb[0].mxu0 %v4314
        %v4447 = vpop.f32.mrb[0].mxu0
        %v4448 = vadd.f32 %v4255, %v4447
        %v4449 = vpop.f32.mrb[0].mxu0
        %4450 = vmatprep.mubr.f32.mxu0 0.0
        %4451 = vmatmul.mubr.f32.gmra.mrb[0].mxu0 %v4317
        %v4452 = vpop.f32.mrb[0].mxu0
        %v4453 = vadd.f32 %v4260, %v4452
        %v4454 = vpop.f32.mrb[0].mxu0
        %4455 = vmatprep.mubr.f32.mxu0 0.0
        %4456 = vmatmul.mubr.f32.gmra.mrb[0].mxu0 %v4320
        %v4457 = vpop.f32.mrb[0].mxu0
        %v4458 = vadd.f32 %v4265, %v4457
        %v4459 = vpop.f32.mrb[0].mxu0
        %4460 = vmatprep.mubr.f32.mxu0 0.0
        %4461 = vmatmul.mubr.f32.gmra.mrb[0].mxu0 %v4323
        %v4462 = vpop.f32.mrb[0].mxu0
        %v4463 = vadd.f32 %v4270, %v4462
        %v4464 = vpop.f32.mrb[0].mxu0
        %4465 = vmatprep.mubr.f32.mxu0 0.0
        %4466 = vmatmul.mubr.f32.gmra.mrb[0].mxu0 %v4326
        %v4467 = vpop.f32.mrb[0].mxu0
        %v4468 = vadd.f32 %v4275, %v4467
        %v4469 = vpop.f32.mrb[0].mxu0
        %4470 = vmatprep.mubr.f32.mxu0 0.0
        %4471 = vmatmul.mubr.f32.gmra.mrb[0].mxu0 %v4329
        %v4472 = vpop.f32.mrb[0].mxu0
        %v4473 = vadd.f32 %v4280, %v4472
        %v4474 = vpop.f32.mrb[0].mxu0
        %4475 = vdwg.mxu0
        %s4476 = scalar_lea.vmem [#allocation8], 128
        %v4477 = vld [vmem:[%s4476] sm:$0xff]
        %v4478 = vld [vmem:[%s4476 + $0x8] sm:$0xff]
        %v4479 = vld [vmem:[%s4476 + $0x10] sm:$0xff]
        %v4480 = vld [vmem:[%s4476 + $0x18] sm:$0xff]
        %v4481 = vld [vmem:[%s4476 + $0x20] sm:$0xff]
        %v4482 = vld [vmem:[%s4476 + $0x28] sm:$0xff]
        %v4483 = vld [vmem:[%s4476 + $0x30] sm:$0xff]
        %v4484 = vld [vmem:[%s4476 + $0x38] sm:$0xff]
        %v4486 = vsel %vm585, %v4057, 0
        %v4489 = vsel %vm585, %v4058, 0
        %v4492 = vsel %vm585, %v4059, 0
        %v4495 = vsel %vm585, %v4060, 0
        %v4498 = vsel %vm585, %v4061, 0
        %v4501 = vsel %vm585, %v4062, 0
        %v4504 = vsel %vm585, %v4063, 0
        %v4507 = vsel %vm585, %v4064, 0
        %v4510 = vsel %vm585, %v4065, 0
        %v4513 = vsel %vm585, %v4066, 0
        %v4516 = vsel %vm585, %v4067, 0
        %v4519 = vsel %vm585, %v4068, 0
        %v4522 = vsel %vm585, %v4069, 0
        %v4525 = vsel %vm585, %v4070, 0
        %v4528 = vsel %vm585, %v4071, 0
        %v4531 = vsel %vm585, %v4072, 0
        %4533 = vmatprep.subr.mxu0 0.0
        %4534 = vmatpush1.msra.mxu0 %v4477
        %4535 = vmatprep.subr.mxu0 0.0
        %4536 = vmatpush1.msra.mxu0 %v4478
        %4537 = vmatprep.subr.mxu0 0.0
        %4538 = vmatpush1.msra.mxu0 %v4479
        %4539 = vmatprep.subr.mxu0 0.0
        %4540 = vmatpush1.msra.mxu0 %v4480
        %4541 = vmatprep.subr.mxu0 0.0
        %4542 = vmatpush1.msra.mxu0 %v4481
        %4543 = vmatprep.subr.mxu0 0.0
        %4544 = vmatpush1.msra.mxu0 %v4482
        %4545 = vmatprep.subr.mxu0 0.0
        %4546 = vmatpush1.msra.mxu0 %v4483
        %4547 = vmatprep.subr.mxu0 0.0
        %4548 = vmatpush1.msra.mxu0 %v4484
        %4549 = vmatprep.subr.mxu0 0.0
        %4550 = vmatpush1.msra.mxu0 0.0
        %4551 = vmatprep.subr.mxu0 0.0
        %4552 = vmatpush1.msra.mxu0 0.0
        %4553 = vmatprep.subr.mxu0 0.0
        %4554 = vmatpush1.msra.mxu0 0.0
        %4555 = vmatprep.subr.mxu0 0.0
        %4556 = vmatpush1.msra.mxu0 0.0
        %4557 = vmatprep.subr.mxu0 0.0
        %4558 = vmatpush1.msra.mxu0 0.0
        %4559 = vmatprep.subr.mxu0 0.0
        %4560 = vmatpush1.msra.mxu0 0.0
        %4561 = vmatprep.subr.mxu0 0.0
        %4562 = vmatpush1.msra.mxu0 0.0
        %4563 = vmatprep.subr.mxu0 0.0
        %4564 = vmatpush1.msra.mxu0 0.0
        %4565 = vmatprep.subr.mxu0 0.0
        %4566 = vmatpush1.msra.mxu0 0.0
        %4567 = vmatprep.subr.mxu0 0.0
        %4568 = vmatpush1.msra.mxu0 0.0
        %4569 = vmatprep.subr.mxu0 0.0
        %4570 = vmatpush1.msra.mxu0 0.0
        %4571 = vmatprep.subr.mxu0 0.0
        %4572 = vmatpush1.msra.mxu0 0.0
        %4573 = vmatprep.subr.mxu0 0.0
        %4574 = vmatpush1.msra.mxu0 0.0
        %4575 = vmatprep.subr.mxu0 0.0
        %4576 = vmatpush1.msra.mxu0 0.0
        %4577 = vmatprep.subr.mxu0 0.0
        %4578 = vmatpush1.msra.mxu0 0.0
        %4579 = vmatprep.subr.mxu0 0.0
        %4580 = vmatpush1.msra.mxu0 0.0
        %4581 = vmatprep.subr.mxu0 0.0
        %4582 = vmatpush1.msra.mxu0 0.0
        %4583 = vmatprep.subr.mxu0 0.0
        %4584 = vmatpush1.msra.mxu0 0.0
        %4585 = vmatprep.subr.mxu0 0.0
        %4586 = vmatpush1.msra.mxu0 0.0
        %4587 = vmatprep.subr.mxu0 0.0
        %4588 = vmatpush1.msra.mxu0 0.0
        %4589 = vmatprep.subr.mxu0 0.0
        %4590 = vmatpush1.msra.mxu0 0.0
        %4591 = vmatprep.subr.mxu0 0.0
        %4592 = vmatpush1.msra.mxu0 0.0
        %4593 = vmatprep.subr.mxu0 0.0
        %4594 = vmatpush1.msra.mxu0 0.0
        %4595 = vmatprep.subr.mxu0 0.0
        %4596 = vmatpush1.msra.mxu0 0.0
        %4597 = vmatprep.mubr.f32.mxu0 0.0
        %4598 = vmatmul.mubr.f32.gmra.mrb[0].mxu0 %v4486
        %v4599 = vpop.f32.mrb[0].mxu0
        %v4600 = vadd.f32 0.0, %v4599
        %v4601 = vpop.f32.mrb[0].mxu0
        %4602 = vmatprep.mubr.f32.mxu0 0.0
        %4603 = vmatmul.mubr.f32.gmra.mrb[0].mxu0 %v4489
        %v4604 = vpop.f32.mrb[0].mxu0
        %v4605 = vadd.f32 0.0, %v4604
        %v4606 = vpop.f32.mrb[0].mxu0
        %4607 = vmatprep.mubr.f32.mxu0 0.0
        %4608 = vmatmul.mubr.f32.gmra.mrb[0].mxu0 %v4492
        %v4609 = vpop.f32.mrb[0].mxu0
        %v4610 = vadd.f32 0.0, %v4609
        %v4611 = vpop.f32.mrb[0].mxu0
        %4612 = vmatprep.mubr.f32.mxu0 0.0
        %4613 = vmatmul.mubr.f32.gmra.mrb[0].mxu0 %v4495
        %v4614 = vpop.f32.mrb[0].mxu0
        %v4615 = vadd.f32 0.0, %v4614
        %v4616 = vpop.f32.mrb[0].mxu0
        %4617 = vmatprep.mubr.f32.mxu0 0.0
        %4618 = vmatmul.mubr.f32.gmra.mrb[0].mxu0 %v4498
        %v4619 = vpop.f32.mrb[0].mxu0
        %v4620 = vadd.f32 0.0, %v4619
        %v4621 = vpop.f32.mrb[0].mxu0
        %4622 = vmatprep.mubr.f32.mxu0 0.0
        %4623 = vmatmul.mubr.f32.gmra.mrb[0].mxu0 %v4501
        %v4624 = vpop.f32.mrb[0].mxu0
        %v4625 = vadd.f32 0.0, %v4624
        %v4626 = vpop.f32.mrb[0].mxu0
        %4627 = vmatprep.mubr.f32.mxu0 0.0
        %4628 = vmatmul.mubr.f32.gmra.mrb[0].mxu0 %v4504
        %v4629 = vpop.f32.mrb[0].mxu0
        %v4630 = vadd.f32 0.0, %v4629
        %v4631 = vpop.f32.mrb[0].mxu0
        %4632 = vmatprep.mubr.f32.mxu0 0.0
        %4633 = vmatmul.mubr.f32.gmra.mrb[0].mxu0 %v4507
        %v4634 = vpop.f32.mrb[0].mxu0
        %v4635 = vadd.f32 0.0, %v4634
        %v4636 = vpop.f32.mrb[0].mxu0
        %4637 = vmatprep.mubr.f32.mxu0 0.0
        %4638 = vmatmul.mubr.f32.gmra.mrb[0].mxu0 %v4510
        %v4639 = vpop.f32.mrb[0].mxu0
        %v4640 = vadd.f32 0.0, %v4639
        %v4641 = vpop.f32.mrb[0].mxu0
        %4642 = vmatprep.mubr.f32.mxu0 0.0
        %4643 = vmatmul.mubr.f32.gmra.mrb[0].mxu0 %v4513
        %v4644 = vpop.f32.mrb[0].mxu0
        %v4645 = vadd.f32 0.0, %v4644
        %v4646 = vpop.f32.mrb[0].mxu0
        %4647 = vmatprep.mubr.f32.mxu0 0.0
        %4648 = vmatmul.mubr.f32.gmra.mrb[0].mxu0 %v4516
        %v4649 = vpop.f32.mrb[0].mxu0
        %v4650 = vadd.f32 0.0, %v4649
        %v4651 = vpop.f32.mrb[0].mxu0
        %4652 = vmatprep.mubr.f32.mxu0 0.0
        %4653 = vmatmul.mubr.f32.gmra.mrb[0].mxu0 %v4519
        %v4654 = vpop.f32.mrb[0].mxu0
        %v4655 = vadd.f32 0.0, %v4654
        %v4656 = vpop.f32.mrb[0].mxu0
        %4657 = vmatprep.mubr.f32.mxu0 0.0
        %4658 = vmatmul.mubr.f32.gmra.mrb[0].mxu0 %v4522
        %v4659 = vpop.f32.mrb[0].mxu0
        %v4660 = vadd.f32 0.0, %v4659
        %v4661 = vpop.f32.mrb[0].mxu0
        %4662 = vmatprep.mubr.f32.mxu0 0.0
        %4663 = vmatmul.mubr.f32.gmra.mrb[0].mxu0 %v4525
        %v4664 = vpop.f32.mrb[0].mxu0
        %v4665 = vadd.f32 0.0, %v4664
        %v4666 = vpop.f32.mrb[0].mxu0
        %4667 = vmatprep.mubr.f32.mxu0 0.0
        %4668 = vmatmul.mubr.f32.gmra.mrb[0].mxu0 %v4528
        %v4669 = vpop.f32.mrb[0].mxu0
        %v4670 = vadd.f32 0.0, %v4669
        %v4671 = vpop.f32.mrb[0].mxu0
        %4672 = vmatprep.mubr.f32.mxu0 0.0
        %4673 = vmatmul.mubr.f32.gmra.mrb[0].mxu0 %v4531
        %v4674 = vpop.f32.mrb[0].mxu0
        %v4675 = vadd.f32 0.0, %v4674
        %v4676 = vpop.f32.mrb[0].mxu0
        %4677 = vdwg.mxu0
        %v4678 = vadd.f32 %v4398, %v4600
        %v4679 = vadd.f32 %v4403, %v4605
        %v4680 = vadd.f32 %v4408, %v4610
        %v4681 = vadd.f32 %v4413, %v4615
        %v4682 = vadd.f32 %v4418, %v4620
        %v4683 = vadd.f32 %v4423, %v4625
        %v4684 = vadd.f32 %v4428, %v4630
        %v4685 = vadd.f32 %v4433, %v4635
        %v4686 = vadd.f32 %v4438, %v4640
        %v4687 = vadd.f32 %v4443, %v4645
        %v4688 = vadd.f32 %v4448, %v4650
        %v4689 = vadd.f32 %v4453, %v4655
        %v4690 = vadd.f32 %v4458, %v4660
        %v4691 = vadd.f32 %v4463, %v4665
        %v4692 = vadd.f32 %v4468, %v4670
        %v4693 = vadd.f32 %v4473, %v4675
        %v4694 = vld [vmem:[#allocation2 + $0x1f] sm:$0xff]
        %v4695 = vld [vmem:[#allocation2 + $0x27] sm:$0xff]
        %v4696 = vld [vmem:[#allocation2 + $0x2f] sm:$0xff]
        %v4697 = vld [vmem:[#allocation2 + $0x37] sm:$0xff]
        %v4698 = vld [vmem:[#allocation2 + $0x3f] sm:$0xff]
        %v4699 = vld [vmem:[#allocation2 + $0x47] sm:$0xff]
        %v4700 = vld [vmem:[#allocation2 + $0x4f] sm:$0xff]
        %v4701 = vld [vmem:[#allocation2 + $0x57] sm:$0xff]
        %v4702 = vld [vmem:[#allocation2 + $0x5f] sm:$0xff]
        %v4703 = vld [vmem:[#allocation2 + $0x67] sm:$0xff]
        %v4704 = vld [vmem:[#allocation2 + $0x6f] sm:$0xff]
        %v4705 = vld [vmem:[#allocation2 + $0x77] sm:$0xff]
        %v4706 = vld [vmem:[#allocation2 + $0x7f] sm:$0xff]
        %v4707 = vld [vmem:[#allocation2 + $0x87] sm:$0xff]
        %v4708 = vld [vmem:[#allocation2 + $0x8f] sm:$0xff]
        %v4709 = vld [vmem:[#allocation2 + $0x97] sm:$0xff]
        %v4710 = vld [vmem:[#allocation2 + $0x20] sm:$0xff]
        %v4711 = vld [vmem:[#allocation2 + $0x28] sm:$0xff]
        %v4712 = vld [vmem:[#allocation2 + $0x30] sm:$0xff]
        %v4713 = vld [vmem:[#allocation2 + $0x38] sm:$0xff]
        %v4714 = vld [vmem:[#allocation2 + $0x40] sm:$0xff]
        %v4715 = vld [vmem:[#allocation2 + $0x48] sm:$0xff]
        %v4716 = vld [vmem:[#allocation2 + $0x50] sm:$0xff]
        %v4717 = vld [vmem:[#allocation2 + $0x58] sm:$0xff]
        %v4718 = vld [vmem:[#allocation2 + $0x60] sm:$0xff]
        %v4719 = vld [vmem:[#allocation2 + $0x68] sm:$0xff]
        %v4720 = vld [vmem:[#allocation2 + $0x70] sm:$0xff]
        %v4721 = vld [vmem:[#allocation2 + $0x78] sm:$0xff]
        %v4722 = vld [vmem:[#allocation2 + $0x80] sm:$0xff]
        %v4723 = vld [vmem:[#allocation2 + $0x88] sm:$0xff]
        %v4724 = vld [vmem:[#allocation2 + $0x90] sm:$0xff]
        %v4725 = vld [vmem:[#allocation2 + $0x98] sm:$0xff]
        %v4726 = vld [vmem:[#allocation2 + $0x21] sm:$0xff]
        %v4727 = vld [vmem:[#allocation2 + $0x29] sm:$0xff]
        %v4728 = vld [vmem:[#allocation2 + $0x31] sm:$0xff]
        %v4729 = vld [vmem:[#allocation2 + $0x39] sm:$0xff]
        %v4730 = vld [vmem:[#allocation2 + $0x41] sm:$0xff]
        %v4731 = vld [vmem:[#allocation2 + $0x49] sm:$0xff]
        %v4732 = vld [vmem:[#allocation2 + $0x51] sm:$0xff]
        %v4733 = vld [vmem:[#allocation2 + $0x59] sm:$0xff]
        %v4734 = vld [vmem:[#allocation2 + $0x61] sm:$0xff]
        %v4735 = vld [vmem:[#allocation2 + $0x69] sm:$0xff]
        %v4736 = vld [vmem:[#allocation2 + $0x71] sm:$0xff]
        %v4737 = vld [vmem:[#allocation2 + $0x79] sm:$0xff]
        %v4738 = vld [vmem:[#allocation2 + $0x81] sm:$0xff]
        %v4739 = vld [vmem:[#allocation2 + $0x89] sm:$0xff]
        %v4740 = vld [vmem:[#allocation2 + $0x91] sm:$0xff]
        %v4741 = vld [vmem:[#allocation2 + $0x99] sm:$0xff]
        %s4742 = scalar_lea.vmem [#allocation8], 192
        %v4743 = vld [vmem:[%s4742] sm:$0xff]
        %v4744 = vld [vmem:[%s4742 + $0x8] sm:$0xff]
        %v4745 = vld [vmem:[%s4742 + $0x10] sm:$0xff]
        %v4746 = vld [vmem:[%s4742 + $0x18] sm:$0xff]
        %v4747 = vld [vmem:[%s4742 + $0x20] sm:$0xff]
        %v4748 = vld [vmem:[%s4742 + $0x28] sm:$0xff]
        %v4749 = vld [vmem:[%s4742 + $0x30] sm:$0xff]
        %v4750 = vld [vmem:[%s4742 + $0x38] sm:$0xff]
        %v4752 = vsel %vm585, %v4694, 0
        %v4755 = vsel %vm585, %v4695, 0
        %v4758 = vsel %vm585, %v4696, 0
        %v4761 = vsel %vm585, %v4697, 0
        %v4764 = vsel %vm585, %v4698, 0
        %v4767 = vsel %vm585, %v4699, 0
        %v4770 = vsel %vm585, %v4700, 0
        %v4773 = vsel %vm585, %v4701, 0
        %v4776 = vsel %vm585, %v4702, 0
        %v4779 = vsel %vm585, %v4703, 0
        %v4782 = vsel %vm585, %v4704, 0
        %v4785 = vsel %vm585, %v4705, 0
        %v4788 = vsel %vm585, %v4706, 0
        %v4791 = vsel %vm585, %v4707, 0
        %v4794 = vsel %vm585, %v4708, 0
        %v4797 = vsel %vm585, %v4709, 0
        %4799 = vmatprep.subr.mxu0 0.0
        %4800 = vmatpush1.msra.mxu0 %v4743
        %4801 = vmatprep.subr.mxu0 0.0
        %4802 = vmatpush1.msra.mxu0 %v4744
        %4803 = vmatprep.subr.mxu0 0.0
        %4804 = vmatpush1.msra.mxu0 %v4745
        %4805 = vmatprep.subr.mxu0 0.0
        %4806 = vmatpush1.msra.mxu0 %v4746
        %4807 = vmatprep.subr.mxu0 0.0
        %4808 = vmatpush1.msra.mxu0 %v4747
        %4809 = vmatprep.subr.mxu0 0.0
        %4810 = vmatpush1.msra.mxu0 %v4748
        %4811 = vmatprep.subr.mxu0 0.0
        %4812 = vmatpush1.msra.mxu0 %v4749
        %4813 = vmatprep.subr.mxu0 0.0
        %4814 = vmatpush1.msra.mxu0 %v4750
        %4815 = vmatprep.subr.mxu0 0.0
        %4816 = vmatpush1.msra.mxu0 0.0
        %4817 = vmatprep.subr.mxu0 0.0
        %4818 = vmatpush1.msra.mxu0 0.0
        %4819 = vmatprep.subr.mxu0 0.0
        %4820 = vmatpush1.msra.mxu0 0.0
        %4821 = vmatprep.subr.mxu0 0.0
        %4822 = vmatpush1.msra.mxu0 0.0
        %4823 = vmatprep.subr.mxu0 0.0
        %4824 = vmatpush1.msra.mxu0 0.0
        %4825 = vmatprep.subr.mxu0 0.0
        %4826 = vmatpush1.msra.mxu0 0.0
        %4827 = vmatprep.subr.mxu0 0.0
        %4828 = vmatpush1.msra.mxu0 0.0
        %4829 = vmatprep.subr.mxu0 0.0
        %4830 = vmatpush1.msra.mxu0 0.0
        %4831 = vmatprep.subr.mxu0 0.0
        %4832 = vmatpush1.msra.mxu0 0.0
        %4833 = vmatprep.subr.mxu0 0.0
        %4834 = vmatpush1.msra.mxu0 0.0
        %4835 = vmatprep.subr.mxu0 0.0
        %4836 = vmatpush1.msra.mxu0 0.0
        %4837 = vmatprep.subr.mxu0 0.0
        %4838 = vmatpush1.msra.mxu0 0.0
        %4839 = vmatprep.subr.mxu0 0.0
        %4840 = vmatpush1.msra.mxu0 0.0
        %4841 = vmatprep.subr.mxu0 0.0
        %4842 = vmatpush1.msra.mxu0 0.0
        %4843 = vmatprep.subr.mxu0 0.0
        %4844 = vmatpush1.msra.mxu0 0.0
        %4845 = vmatprep.subr.mxu0 0.0
        %4846 = vmatpush1.msra.mxu0 0.0
        %4847 = vmatprep.subr.mxu0 0.0
        %4848 = vmatpush1.msra.mxu0 0.0
        %4849 = vmatprep.subr.mxu0 0.0
        %4850 = vmatpush1.msra.mxu0 0.0
        %4851 = vmatprep.subr.mxu0 0.0
        %4852 = vmatpush1.msra.mxu0 0.0
        %4853 = vmatprep.subr.mxu0 0.0
        %4854 = vmatpush1.msra.mxu0 0.0
        %4855 = vmatprep.subr.mxu0 0.0
        %4856 = vmatpush1.msra.mxu0 0.0
        %4857 = vmatprep.subr.mxu0 0.0
        %4858 = vmatpush1.msra.mxu0 0.0
        %4859 = vmatprep.subr.mxu0 0.0
        %4860 = vmatpush1.msra.mxu0 0.0
        %4861 = vmatprep.subr.mxu0 0.0
        %4862 = vmatpush1.msra.mxu0 0.0
        %4863 = vmatprep.mubr.f32.mxu0 0.0
        %4864 = vmatmul.mubr.f32.gmra.mrb[0].mxu0 %v4752
        %v4865 = vpop.f32.mrb[0].mxu0
        %v4866 = vadd.f32 0.0, %v4865
        %v4867 = vpop.f32.mrb[0].mxu0
        %4868 = vmatprep.mubr.f32.mxu0 0.0
        %4869 = vmatmul.mubr.f32.gmra.mrb[0].mxu0 %v4755
        %v4870 = vpop.f32.mrb[0].mxu0
        %v4871 = vadd.f32 0.0, %v4870
        %v4872 = vpop.f32.mrb[0].mxu0
        %4873 = vmatprep.mubr.f32.mxu0 0.0
        %4874 = vmatmul.mubr.f32.gmra.mrb[0].mxu0 %v4758
        %v4875 = vpop.f32.mrb[0].mxu0
        %v4876 = vadd.f32 0.0, %v4875
        %v4877 = vpop.f32.mrb[0].mxu0
        %4878 = vmatprep.mubr.f32.mxu0 0.0
        %4879 = vmatmul.mubr.f32.gmra.mrb[0].mxu0 %v4761
        %v4880 = vpop.f32.mrb[0].mxu0
        %v4881 = vadd.f32 0.0, %v4880
        %v4882 = vpop.f32.mrb[0].mxu0
        %4883 = vmatprep.mubr.f32.mxu0 0.0
        %4884 = vmatmul.mubr.f32.gmra.mrb[0].mxu0 %v4764
        %v4885 = vpop.f32.mrb[0].mxu0
        %v4886 = vadd.f32 0.0, %v4885
        %v4887 = vpop.f32.mrb[0].mxu0
        %4888 = vmatprep.mubr.f32.mxu0 0.0
        %4889 = vmatmul.mubr.f32.gmra.mrb[0].mxu0 %v4767
        %v4890 = vpop.f32.mrb[0].mxu0
        %v4891 = vadd.f32 0.0, %v4890
        %v4892 = vpop.f32.mrb[0].mxu0
        %4893 = vmatprep.mubr.f32.mxu0 0.0
        %4894 = vmatmul.mubr.f32.gmra.mrb[0].mxu0 %v4770
        %v4895 = vpop.f32.mrb[0].mxu0
        %v4896 = vadd.f32 0.0, %v4895
        %v4897 = vpop.f32.mrb[0].mxu0
        %4898 = vmatprep.mubr.f32.mxu0 0.0
        %4899 = vmatmul.mubr.f32.gmra.mrb[0].mxu0 %v4773
        %v4900 = vpop.f32.mrb[0].mxu0
        %v4901 = vadd.f32 0.0, %v4900
        %v4902 = vpop.f32.mrb[0].mxu0
        %4903 = vmatprep.mubr.f32.mxu0 0.0
        %4904 = vmatmul.mubr.f32.gmra.mrb[0].mxu0 %v4776
        %v4905 = vpop.f32.mrb[0].mxu0
        %v4906 = vadd.f32 0.0, %v4905
        %v4907 = vpop.f32.mrb[0].mxu0
        %4908 = vmatprep.mubr.f32.mxu0 0.0
        %4909 = vmatmul.mubr.f32.gmra.mrb[0].mxu0 %v4779
        %v4910 = vpop.f32.mrb[0].mxu0
        %v4911 = vadd.f32 0.0, %v4910
        %v4912 = vpop.f32.mrb[0].mxu0
        %4913 = vmatprep.mubr.f32.mxu0 0.0
        %4914 = vmatmul.mubr.f32.gmra.mrb[0].mxu0 %v4782
        %v4915 = vpop.f32.mrb[0].mxu0
        %v4916 = vadd.f32 0.0, %v4915
        %v4917 = vpop.f32.mrb[0].mxu0
        %4918 = vmatprep.mubr.f32.mxu0 0.0
        %4919 = vmatmul.mubr.f32.gmra.mrb[0].mxu0 %v4785
        %v4920 = vpop.f32.mrb[0].mxu0
        %v4921 = vadd.f32 0.0, %v4920
        %v4922 = vpop.f32.mrb[0].mxu0
        %4923 = vmatprep.mubr.f32.mxu0 0.0
        %4924 = vmatmul.mubr.f32.gmra.mrb[0].mxu0 %v4788
        %v4925 = vpop.f32.mrb[0].mxu0
        %v4926 = vadd.f32 0.0, %v4925
        %v4927 = vpop.f32.mrb[0].mxu0
        %4928 = vmatprep.mubr.f32.mxu0 0.0
        %4929 = vmatmul.mubr.f32.gmra.mrb[0].mxu0 %v4791
        %v4930 = vpop.f32.mrb[0].mxu0
        %v4931 = vadd.f32 0.0, %v4930
        %v4932 = vpop.f32.mrb[0].mxu0
        %4933 = vmatprep.mubr.f32.mxu0 0.0
        %4934 = vmatmul.mubr.f32.gmra.mrb[0].mxu0 %v4794
        %v4935 = vpop.f32.mrb[0].mxu0
        %v4936 = vadd.f32 0.0, %v4935
        %v4937 = vpop.f32.mrb[0].mxu0
        %4938 = vmatprep.mubr.f32.mxu0 0.0
        %4939 = vmatmul.mubr.f32.gmra.mrb[0].mxu0 %v4797
        %v4940 = vpop.f32.mrb[0].mxu0
        %v4941 = vadd.f32 0.0, %v4940
        %v4942 = vpop.f32.mrb[0].mxu0
        %4943 = vdwg.mxu0
        %v4944 = vadd.f32 %v4678, %v4866
        %v4945 = vadd.f32 %v4679, %v4871
        %v4946 = vadd.f32 %v4680, %v4876
        %v4947 = vadd.f32 %v4681, %v4881
        %v4948 = vadd.f32 %v4682, %v4886
        %v4949 = vadd.f32 %v4683, %v4891
        %v4950 = vadd.f32 %v4684, %v4896
        %v4951 = vadd.f32 %v4685, %v4901
        %v4952 = vadd.f32 %v4686, %v4906
        %v4953 = vadd.f32 %v4687, %v4911
        %v4954 = vadd.f32 %v4688, %v4916
        %v4955 = vadd.f32 %v4689, %v4921
        %v4956 = vadd.f32 %v4690, %v4926
        %v4957 = vadd.f32 %v4691, %v4931
        %v4958 = vadd.f32 %v4692, %v4936
        %v4959 = vadd.f32 %v4693, %v4941
        %s4960 = scalar_lea.vmem [#allocation8], 256
        %v4961 = vld [vmem:[%s4960] sm:$0xff]
        %v4962 = vld [vmem:[%s4960 + $0x8] sm:$0xff]
        %v4963 = vld [vmem:[%s4960 + $0x10] sm:$0xff]
        %v4964 = vld [vmem:[%s4960 + $0x18] sm:$0xff]
        %v4965 = vld [vmem:[%s4960 + $0x20] sm:$0xff]
        %v4966 = vld [vmem:[%s4960 + $0x28] sm:$0xff]
        %v4967 = vld [vmem:[%s4960 + $0x30] sm:$0xff]
        %v4968 = vld [vmem:[%s4960 + $0x38] sm:$0xff]
        %v4970 = vsel %vm585, %v4710, 0
        %v4973 = vsel %vm585, %v4711, 0
        %v4976 = vsel %vm585, %v4712, 0
        %v4979 = vsel %vm585, %v4713, 0
        %v4982 = vsel %vm585, %v4714, 0
        %v4985 = vsel %vm585, %v4715, 0
        %v4988 = vsel %vm585, %v4716, 0
        %v4991 = vsel %vm585, %v4717, 0
        %v4994 = vsel %vm585, %v4718, 0
        %v4997 = vsel %vm585, %v4719, 0
        %v5000 = vsel %vm585, %v4720, 0
        %v5003 = vsel %vm585, %v4721, 0
        %v5006 = vsel %vm585, %v4722, 0
        %v5009 = vsel %vm585, %v4723, 0
        %v5012 = vsel %vm585, %v4724, 0
        %v5015 = vsel %vm585, %v4725, 0
        %5017 = vmatprep.subr.mxu0 0.0
        %5018 = vmatpush1.msra.mxu0 %v4961
        %5019 = vmatprep.subr.mxu0 0.0
        %5020 = vmatpush1.msra.mxu0 %v4962
        %5021 = vmatprep.subr.mxu0 0.0
        %5022 = vmatpush1.msra.mxu0 %v4963
        %5023 = vmatprep.subr.mxu0 0.0
        %5024 = vmatpush1.msra.mxu0 %v4964
        %5025 = vmatprep.subr.mxu0 0.0
        %5026 = vmatpush1.msra.mxu0 %v4965
        %5027 = vmatprep.subr.mxu0 0.0
        %5028 = vmatpush1.msra.mxu0 %v4966
        %5029 = vmatprep.subr.mxu0 0.0
        %5030 = vmatpush1.msra.mxu0 %v4967
        %5031 = vmatprep.subr.mxu0 0.0
        %5032 = vmatpush1.msra.mxu0 %v4968
        %5033 = vmatprep.subr.mxu0 0.0
        %5034 = vmatpush1.msra.mxu0 0.0
        %5035 = vmatprep.subr.mxu0 0.0
        %5036 = vmatpush1.msra.mxu0 0.0
        %5037 = vmatprep.subr.mxu0 0.0
        %5038 = vmatpush1.msra.mxu0 0.0
        %5039 = vmatprep.subr.mxu0 0.0
        %5040 = vmatpush1.msra.mxu0 0.0
        %5041 = vmatprep.subr.mxu0 0.0
        %5042 = vmatpush1.msra.mxu0 0.0
        %5043 = vmatprep.subr.mxu0 0.0
        %5044 = vmatpush1.msra.mxu0 0.0
        %5045 = vmatprep.subr.mxu0 0.0
        %5046 = vmatpush1.msra.mxu0 0.0
        %5047 = vmatprep.subr.mxu0 0.0
        %5048 = vmatpush1.msra.mxu0 0.0
        %5049 = vmatprep.subr.mxu0 0.0
        %5050 = vmatpush1.msra.mxu0 0.0
        %5051 = vmatprep.subr.mxu0 0.0
        %5052 = vmatpush1.msra.mxu0 0.0
        %5053 = vmatprep.subr.mxu0 0.0
        %5054 = vmatpush1.msra.mxu0 0.0
        %5055 = vmatprep.subr.mxu0 0.0
        %5056 = vmatpush1.msra.mxu0 0.0
        %5057 = vmatprep.subr.mxu0 0.0
        %5058 = vmatpush1.msra.mxu0 0.0
        %5059 = vmatprep.subr.mxu0 0.0
        %5060 = vmatpush1.msra.mxu0 0.0
        %5061 = vmatprep.subr.mxu0 0.0
        %5062 = vmatpush1.msra.mxu0 0.0
        %5063 = vmatprep.subr.mxu0 0.0
        %5064 = vmatpush1.msra.mxu0 0.0
        %5065 = vmatprep.subr.mxu0 0.0
        %5066 = vmatpush1.msra.mxu0 0.0
        %5067 = vmatprep.subr.mxu0 0.0
        %5068 = vmatpush1.msra.mxu0 0.0
        %5069 = vmatprep.subr.mxu0 0.0
        %5070 = vmatpush1.msra.mxu0 0.0
        %5071 = vmatprep.subr.mxu0 0.0
        %5072 = vmatpush1.msra.mxu0 0.0
        %5073 = vmatprep.subr.mxu0 0.0
        %5074 = vmatpush1.msra.mxu0 0.0
        %5075 = vmatprep.subr.mxu0 0.0
        %5076 = vmatpush1.msra.mxu0 0.0
        %5077 = vmatprep.subr.mxu0 0.0
        %5078 = vmatpush1.msra.mxu0 0.0
        %5079 = vmatprep.subr.mxu0 0.0
        %5080 = vmatpush1.msra.mxu0 0.0
        %5081 = vmatprep.mubr.f32.mxu0 0.0
        %5082 = vmatmul.mubr.f32.gmra.mrb[0].mxu0 %v4970
        %v5083 = vpop.f32.mrb[0].mxu0
        %v5084 = vadd.f32 0.0, %v5083
        %v5085 = vpop.f32.mrb[0].mxu0
        %5086 = vmatprep.mubr.f32.mxu0 0.0
        %5087 = vmatmul.mubr.f32.gmra.mrb[0].mxu0 %v4973
        %v5088 = vpop.f32.mrb[0].mxu0
        %v5089 = vadd.f32 0.0, %v5088
        %v5090 = vpop.f32.mrb[0].mxu0
        %5091 = vmatprep.mubr.f32.mxu0 0.0
        %5092 = vmatmul.mubr.f32.gmra.mrb[0].mxu0 %v4976
        %v5093 = vpop.f32.mrb[0].mxu0
        %v5094 = vadd.f32 0.0, %v5093
        %v5095 = vpop.f32.mrb[0].mxu0
        %5096 = vmatprep.mubr.f32.mxu0 0.0
        %5097 = vmatmul.mubr.f32.gmra.mrb[0].mxu0 %v4979
        %v5098 = vpop.f32.mrb[0].mxu0
        %v5099 = vadd.f32 0.0, %v5098
        %v5100 = vpop.f32.mrb[0].mxu0
        %5101 = vmatprep.mubr.f32.mxu0 0.0
        %5102 = vmatmul.mubr.f32.gmra.mrb[0].mxu0 %v4982
        %v5103 = vpop.f32.mrb[0].mxu0
        %v5104 = vadd.f32 0.0, %v5103
        %v5105 = vpop.f32.mrb[0].mxu0
        %5106 = vmatprep.mubr.f32.mxu0 0.0
        %5107 = vmatmul.mubr.f32.gmra.mrb[0].mxu0 %v4985
        %v5108 = vpop.f32.mrb[0].mxu0
        %v5109 = vadd.f32 0.0, %v5108
        %v5110 = vpop.f32.mrb[0].mxu0
        %5111 = vmatprep.mubr.f32.mxu0 0.0
        %5112 = vmatmul.mubr.f32.gmra.mrb[0].mxu0 %v4988
        %v5113 = vpop.f32.mrb[0].mxu0
        %v5114 = vadd.f32 0.0, %v5113
        %v5115 = vpop.f32.mrb[0].mxu0
        %5116 = vmatprep.mubr.f32.mxu0 0.0
        %5117 = vmatmul.mubr.f32.gmra.mrb[0].mxu0 %v4991
        %v5118 = vpop.f32.mrb[0].mxu0
        %v5119 = vadd.f32 0.0, %v5118
        %v5120 = vpop.f32.mrb[0].mxu0
        %5121 = vmatprep.mubr.f32.mxu0 0.0
        %5122 = vmatmul.mubr.f32.gmra.mrb[0].mxu0 %v4994
        %v5123 = vpop.f32.mrb[0].mxu0
        %v5124 = vadd.f32 0.0, %v5123
        %v5125 = vpop.f32.mrb[0].mxu0
        %5126 = vmatprep.mubr.f32.mxu0 0.0
        %5127 = vmatmul.mubr.f32.gmra.mrb[0].mxu0 %v4997
        %v5128 = vpop.f32.mrb[0].mxu0
        %v5129 = vadd.f32 0.0, %v5128
        %v5130 = vpop.f32.mrb[0].mxu0
        %5131 = vmatprep.mubr.f32.mxu0 0.0
        %5132 = vmatmul.mubr.f32.gmra.mrb[0].mxu0 %v5000
        %v5133 = vpop.f32.mrb[0].mxu0
        %v5134 = vadd.f32 0.0, %v5133
        %v5135 = vpop.f32.mrb[0].mxu0
        %5136 = vmatprep.mubr.f32.mxu0 0.0
        %5137 = vmatmul.mubr.f32.gmra.mrb[0].mxu0 %v5003
        %v5138 = vpop.f32.mrb[0].mxu0
        %v5139 = vadd.f32 0.0, %v5138
        %v5140 = vpop.f32.mrb[0].mxu0
        %5141 = vmatprep.mubr.f32.mxu0 0.0
        %5142 = vmatmul.mubr.f32.gmra.mrb[0].mxu0 %v5006
        %v5143 = vpop.f32.mrb[0].mxu0
        %v5144 = vadd.f32 0.0, %v5143
        %v5145 = vpop.f32.mrb[0].mxu0
        %5146 = vmatprep.mubr.f32.mxu0 0.0
        %5147 = vmatmul.mubr.f32.gmra.mrb[0].mxu0 %v5009
        %v5148 = vpop.f32.mrb[0].mxu0
        %v5149 = vadd.f32 0.0, %v5148
        %v5150 = vpop.f32.mrb[0].mxu0
        %5151 = vmatprep.mubr.f32.mxu0 0.0
        %5152 = vmatmul.mubr.f32.gmra.mrb[0].mxu0 %v5012
        %v5153 = vpop.f32.mrb[0].mxu0
        %v5154 = vadd.f32 0.0, %v5153
        %v5155 = vpop.f32.mrb[0].mxu0
        %5156 = vmatprep.mubr.f32.mxu0 0.0
        %5157 = vmatmul.mubr.f32.gmra.mrb[0].mxu0 %v5015
        %v5158 = vpop.f32.mrb[0].mxu0
        %v5159 = vadd.f32 0.0, %v5158
        %v5160 = vpop.f32.mrb[0].mxu0
        %5161 = vdwg.mxu0
        %v5162 = vadd.f32 %v4944, %v5084
        %v5163 = vadd.f32 %v4945, %v5089
        %v5164 = vadd.f32 %v4946, %v5094
        %v5165 = vadd.f32 %v4947, %v5099
        %v5166 = vadd.f32 %v4948, %v5104
        %v5167 = vadd.f32 %v4949, %v5109
        %v5168 = vadd.f32 %v4950, %v5114
        %v5169 = vadd.f32 %v4951, %v5119
        %v5170 = vadd.f32 %v4952, %v5124
        %v5171 = vadd.f32 %v4953, %v5129
        %v5172 = vadd.f32 %v4954, %v5134
        %v5173 = vadd.f32 %v4955, %v5139
        %v5174 = vadd.f32 %v4956, %v5144
        %v5175 = vadd.f32 %v4957, %v5149
        %v5176 = vadd.f32 %v4958, %v5154
        %v5177 = vadd.f32 %v4959, %v5159
        %s5178 = scalar_lea.vmem [#allocation8], 320
        %v5179 = vld [vmem:[%s5178] sm:$0xff]
        %v5180 = vld [vmem:[%s5178 + $0x8] sm:$0xff]
        %v5181 = vld [vmem:[%s5178 + $0x10] sm:$0xff]
        %v5182 = vld [vmem:[%s5178 + $0x18] sm:$0xff]
        %v5183 = vld [vmem:[%s5178 + $0x20] sm:$0xff]
        %v5184 = vld [vmem:[%s5178 + $0x28] sm:$0xff]
        %v5185 = vld [vmem:[%s5178 + $0x30] sm:$0xff]
        %v5186 = vld [vmem:[%s5178 + $0x38] sm:$0xff]
        %v5188 = vsel %vm585, %v4726, 0
        %v5191 = vsel %vm585, %v4727, 0
        %v5194 = vsel %vm585, %v4728, 0
        %v5197 = vsel %vm585, %v4729, 0
        %v5200 = vsel %vm585, %v4730, 0
        %v5203 = vsel %vm585, %v4731, 0
        %v5206 = vsel %vm585, %v4732, 0
        %v5209 = vsel %vm585, %v4733, 0
        %v5212 = vsel %vm585, %v4734, 0
        %v5215 = vsel %vm585, %v4735, 0
        %v5218 = vsel %vm585, %v4736, 0
        %v5221 = vsel %vm585, %v4737, 0
        %v5224 = vsel %vm585, %v4738, 0
        %v5227 = vsel %vm585, %v4739, 0
        %v5230 = vsel %vm585, %v4740, 0
        %v5233 = vsel %vm585, %v4741, 0
        %5235 = vmatprep.subr.mxu0 0.0
        %5236 = vmatpush1.msra.mxu0 %v5179
        %5237 = vmatprep.subr.mxu0 0.0
        %5238 = vmatpush1.msra.mxu0 %v5180
        %5239 = vmatprep.subr.mxu0 0.0
        %5240 = vmatpush1.msra.mxu0 %v5181
        %5241 = vmatprep.subr.mxu0 0.0
        %5242 = vmatpush1.msra.mxu0 %v5182
        %5243 = vmatprep.subr.mxu0 0.0
        %5244 = vmatpush1.msra.mxu0 %v5183
        %5245 = vmatprep.subr.mxu0 0.0
        %5246 = vmatpush1.msra.mxu0 %v5184
        %5247 = vmatprep.subr.mxu0 0.0
        %5248 = vmatpush1.msra.mxu0 %v5185
        %5249 = vmatprep.subr.mxu0 0.0
        %5250 = vmatpush1.msra.mxu0 %v5186
        %5251 = vmatprep.subr.mxu0 0.0
        %5252 = vmatpush1.msra.mxu0 0.0
        %5253 = vmatprep.subr.mxu0 0.0
        %5254 = vmatpush1.msra.mxu0 0.0
        %5255 = vmatprep.subr.mxu0 0.0
        %5256 = vmatpush1.msra.mxu0 0.0
        %5257 = vmatprep.subr.mxu0 0.0
        %5258 = vmatpush1.msra.mxu0 0.0
        %5259 = vmatprep.subr.mxu0 0.0
        %5260 = vmatpush1.msra.mxu0 0.0
        %5261 = vmatprep.subr.mxu0 0.0
        %5262 = vmatpush1.msra.mxu0 0.0
        %5263 = vmatprep.subr.mxu0 0.0
        %5264 = vmatpush1.msra.mxu0 0.0
        %5265 = vmatprep.subr.mxu0 0.0
        %5266 = vmatpush1.msra.mxu0 0.0
        %5267 = vmatprep.subr.mxu0 0.0
        %5268 = vmatpush1.msra.mxu0 0.0
        %5269 = vmatprep.subr.mxu0 0.0
        %5270 = vmatpush1.msra.mxu0 0.0
        %5271 = vmatprep.subr.mxu0 0.0
        %5272 = vmatpush1.msra.mxu0 0.0
        %5273 = vmatprep.subr.mxu0 0.0
        %5274 = vmatpush1.msra.mxu0 0.0
        %5275 = vmatprep.subr.mxu0 0.0
        %5276 = vmatpush1.msra.mxu0 0.0
        %5277 = vmatprep.subr.mxu0 0.0
        %5278 = vmatpush1.msra.mxu0 0.0
        %5279 = vmatprep.subr.mxu0 0.0
        %5280 = vmatpush1.msra.mxu0 0.0
        %5281 = vmatprep.subr.mxu0 0.0
        %5282 = vmatpush1.msra.mxu0 0.0
        %5283 = vmatprep.subr.mxu0 0.0
        %5284 = vmatpush1.msra.mxu0 0.0
        %5285 = vmatprep.subr.mxu0 0.0
        %5286 = vmatpush1.msra.mxu0 0.0
        %5287 = vmatprep.subr.mxu0 0.0
        %5288 = vmatpush1.msra.mxu0 0.0
        %5289 = vmatprep.subr.mxu0 0.0
        %5290 = vmatpush1.msra.mxu0 0.0
        %5291 = vmatprep.subr.mxu0 0.0
        %5292 = vmatpush1.msra.mxu0 0.0
        %5293 = vmatprep.subr.mxu0 0.0
        %5294 = vmatpush1.msra.mxu0 0.0
        %5295 = vmatprep.subr.mxu0 0.0
        %5296 = vmatpush1.msra.mxu0 0.0
        %5297 = vmatprep.subr.mxu0 0.0
        %5298 = vmatpush1.msra.mxu0 0.0
        %5299 = vmatprep.mubr.f32.mxu0 0.0
        %5300 = vmatmul.mubr.f32.gmra.mrb[0].mxu0 %v5188
        %v5301 = vpop.f32.mrb[0].mxu0
        %v5302 = vadd.f32 0.0, %v5301
        %v5303 = vpop.f32.mrb[0].mxu0
        %5304 = vmatprep.mubr.f32.mxu0 0.0
        %5305 = vmatmul.mubr.f32.gmra.mrb[0].mxu0 %v5191
        %v5306 = vpop.f32.mrb[0].mxu0
        %v5307 = vadd.f32 0.0, %v5306
        %v5308 = vpop.f32.mrb[0].mxu0
        %5309 = vmatprep.mubr.f32.mxu0 0.0
        %5310 = vmatmul.mubr.f32.gmra.mrb[0].mxu0 %v5194
        %v5311 = vpop.f32.mrb[0].mxu0
        %v5312 = vadd.f32 0.0, %v5311
        %v5313 = vpop.f32.mrb[0].mxu0
        %5314 = vmatprep.mubr.f32.mxu0 0.0
        %5315 = vmatmul.mubr.f32.gmra.mrb[0].mxu0 %v5197
        %v5316 = vpop.f32.mrb[0].mxu0
        %v5317 = vadd.f32 0.0, %v5316
        %v5318 = vpop.f32.mrb[0].mxu0
        %5319 = vmatprep.mubr.f32.mxu0 0.0
        %5320 = vmatmul.mubr.f32.gmra.mrb[0].mxu0 %v5200
        %v5321 = vpop.f32.mrb[0].mxu0
        %v5322 = vadd.f32 0.0, %v5321
        %v5323 = vpop.f32.mrb[0].mxu0
        %5324 = vmatprep.mubr.f32.mxu0 0.0
        %5325 = vmatmul.mubr.f32.gmra.mrb[0].mxu0 %v5203
        %v5326 = vpop.f32.mrb[0].mxu0
        %v5327 = vadd.f32 0.0, %v5326
        %v5328 = vpop.f32.mrb[0].mxu0
        %5329 = vmatprep.mubr.f32.mxu0 0.0
        %5330 = vmatmul.mubr.f32.gmra.mrb[0].mxu0 %v5206
        %v5331 = vpop.f32.mrb[0].mxu0
        %v5332 = vadd.f32 0.0, %v5331
        %v5333 = vpop.f32.mrb[0].mxu0
        %5334 = vmatprep.mubr.f32.mxu0 0.0
        %5335 = vmatmul.mubr.f32.gmra.mrb[0].mxu0 %v5209
        %v5336 = vpop.f32.mrb[0].mxu0
        %v5337 = vadd.f32 0.0, %v5336
        %v5338 = vpop.f32.mrb[0].mxu0
        %5339 = vmatprep.mubr.f32.mxu0 0.0
        %5340 = vmatmul.mubr.f32.gmra.mrb[0].mxu0 %v5212
        %v5341 = vpop.f32.mrb[0].mxu0
        %v5342 = vadd.f32 0.0, %v5341
        %v5343 = vpop.f32.mrb[0].mxu0
        %5344 = vmatprep.mubr.f32.mxu0 0.0
        %5345 = vmatmul.mubr.f32.gmra.mrb[0].mxu0 %v5215
        %v5346 = vpop.f32.mrb[0].mxu0
        %v5347 = vadd.f32 0.0, %v5346
        %v5348 = vpop.f32.mrb[0].mxu0
        %5349 = vmatprep.mubr.f32.mxu0 0.0
        %5350 = vmatmul.mubr.f32.gmra.mrb[0].mxu0 %v5218
        %v5351 = vpop.f32.mrb[0].mxu0
        %v5352 = vadd.f32 0.0, %v5351
        %v5353 = vpop.f32.mrb[0].mxu0
        %5354 = vmatprep.mubr.f32.mxu0 0.0
        %5355 = vmatmul.mubr.f32.gmra.mrb[0].mxu0 %v5221
        %v5356 = vpop.f32.mrb[0].mxu0
        %v5357 = vadd.f32 0.0, %v5356
        %v5358 = vpop.f32.mrb[0].mxu0
        %5359 = vmatprep.mubr.f32.mxu0 0.0
        %5360 = vmatmul.mubr.f32.gmra.mrb[0].mxu0 %v5224
        %v5361 = vpop.f32.mrb[0].mxu0
        %v5362 = vadd.f32 0.0, %v5361
        %v5363 = vpop.f32.mrb[0].mxu0
        %5364 = vmatprep.mubr.f32.mxu0 0.0
        %5365 = vmatmul.mubr.f32.gmra.mrb[0].mxu0 %v5227
        %v5366 = vpop.f32.mrb[0].mxu0
        %v5367 = vadd.f32 0.0, %v5366
        %v5368 = vpop.f32.mrb[0].mxu0
        %5369 = vmatprep.mubr.f32.mxu0 0.0
        %5370 = vmatmul.mubr.f32.gmra.mrb[0].mxu0 %v5230
        %v5371 = vpop.f32.mrb[0].mxu0
        %v5372 = vadd.f32 0.0, %v5371
        %v5373 = vpop.f32.mrb[0].mxu0
        %5374 = vmatprep.mubr.f32.mxu0 0.0
        %5375 = vmatmul.mubr.f32.gmra.mrb[0].mxu0 %v5233
        %v5376 = vpop.f32.mrb[0].mxu0
        %v5377 = vadd.f32 0.0, %v5376
        %v5378 = vpop.f32.mrb[0].mxu0
        %5379 = vdwg.mxu0
        %v5380 = vadd.f32 %v5162, %v5302
        %v5381 = vadd.f32 %v5163, %v5307
        %v5382 = vadd.f32 %v5164, %v5312
        %v5383 = vadd.f32 %v5165, %v5317
        %v5384 = vadd.f32 %v5166, %v5322
        %v5385 = vadd.f32 %v5167, %v5327
        %v5386 = vadd.f32 %v5168, %v5332
        %v5387 = vadd.f32 %v5169, %v5337
        %v5388 = vadd.f32 %v5170, %v5342
        %v5389 = vadd.f32 %v5171, %v5347
        %v5390 = vadd.f32 %v5172, %v5352
        %v5391 = vadd.f32 %v5173, %v5357
        %v5392 = vadd.f32 %v5174, %v5362
        %v5393 = vadd.f32 %v5175, %v5367
        %v5394 = vadd.f32 %v5176, %v5372
        %v5395 = vadd.f32 %v5177, %v5377
        %v5396 = vld [vmem:[#allocation2 + $0x2f] sm:$0xff]
        %v5397 = vld [vmem:[#allocation2 + $0x37] sm:$0xff]
        %v5398 = vld [vmem:[#allocation2 + $0x3f] sm:$0xff]
        %v5399 = vld [vmem:[#allocation2 + $0x47] sm:$0xff]
        %v5400 = vld [vmem:[#allocation2 + $0x4f] sm:$0xff]
        %v5401 = vld [vmem:[#allocation2 + $0x57] sm:$0xff]
        %v5402 = vld [vmem:[#allocation2 + $0x5f] sm:$0xff]
        %v5403 = vld [vmem:[#allocation2 + $0x67] sm:$0xff]
        %v5404 = vld [vmem:[#allocation2 + $0x6f] sm:$0xff]
        %v5405 = vld [vmem:[#allocation2 + $0x77] sm:$0xff]
        %v5406 = vld [vmem:[#allocation2 + $0x7f] sm:$0xff]
        %v5407 = vld [vmem:[#allocation2 + $0x87] sm:$0xff]
        %v5408 = vld [vmem:[#allocation2 + $0x8f] sm:$0xff]
        %v5409 = vld [vmem:[#allocation2 + $0x97] sm:$0xff]
        %v5410 = vld [vmem:[#allocation2 + $0x9f] sm:$0xff]
        %v5411 = vld [vmem:[#allocation2 + $0xa7] sm:$0xff]
        %v5412 = vld [vmem:[#allocation2 + $0x30] sm:$0xff]
        %v5413 = vld [vmem:[#allocation2 + $0x38] sm:$0xff]
        %v5414 = vld [vmem:[#allocation2 + $0x40] sm:$0xff]
        %v5415 = vld [vmem:[#allocation2 + $0x48] sm:$0xff]
        %v5416 = vld [vmem:[#allocation2 + $0x50] sm:$0xff]
        %v5417 = vld [vmem:[#allocation2 + $0x58] sm:$0xff]
        %v5418 = vld [vmem:[#allocation2 + $0x60] sm:$0xff]
        %v5419 = vld [vmem:[#allocation2 + $0x68] sm:$0xff]
        %v5420 = vld [vmem:[#allocation2 + $0x70] sm:$0xff]
        %v5421 = vld [vmem:[#allocation2 + $0x78] sm:$0xff]
        %v5422 = vld [vmem:[#allocation2 + $0x80] sm:$0xff]
        %v5423 = vld [vmem:[#allocation2 + $0x88] sm:$0xff]
        %v5424 = vld [vmem:[#allocation2 + $0x90] sm:$0xff]
        %v5425 = vld [vmem:[#allocation2 + $0x98] sm:$0xff]
        %v5426 = vld [vmem:[#allocation2 + $0xa0] sm:$0xff]
        %v5427 = vld [vmem:[#allocation2 + $0xa8] sm:$0xff]
        %v5428 = vld [vmem:[#allocation2 + $0x31] sm:$0xff]
        %v5429 = vld [vmem:[#allocation2 + $0x39] sm:$0xff]
        %v5430 = vld [vmem:[#allocation2 + $0x41] sm:$0xff]
        %v5431 = vld [vmem:[#allocation2 + $0x49] sm:$0xff]
        %v5432 = vld [vmem:[#allocation2 + $0x51] sm:$0xff]
        %v5433 = vld [vmem:[#allocation2 + $0x59] sm:$0xff]
        %v5434 = vld [vmem:[#allocation2 + $0x61] sm:$0xff]
        %v5435 = vld [vmem:[#allocation2 + $0x69] sm:$0xff]
        %v5436 = vld [vmem:[#allocation2 + $0x71] sm:$0xff]
        %v5437 = vld [vmem:[#allocation2 + $0x79] sm:$0xff]
        %v5438 = vld [vmem:[#allocation2 + $0x81] sm:$0xff]
        %v5439 = vld [vmem:[#allocation2 + $0x89] sm:$0xff]
        %v5440 = vld [vmem:[#allocation2 + $0x91] sm:$0xff]
        %v5441 = vld [vmem:[#allocation2 + $0x99] sm:$0xff]
        %v5442 = vld [vmem:[#allocation2 + $0xa1] sm:$0xff]
        %v5443 = vld [vmem:[#allocation2 + $0xa9] sm:$0xff]
        %s5444 = scalar_lea.vmem [#allocation8], 384
        %v5445 = vld [vmem:[%s5444] sm:$0xff]
        %v5446 = vld [vmem:[%s5444 + $0x8] sm:$0xff]
        %v5447 = vld [vmem:[%s5444 + $0x10] sm:$0xff]
        %v5448 = vld [vmem:[%s5444 + $0x18] sm:$0xff]
        %v5449 = vld [vmem:[%s5444 + $0x20] sm:$0xff]
        %v5450 = vld [vmem:[%s5444 + $0x28] sm:$0xff]
        %v5451 = vld [vmem:[%s5444 + $0x30] sm:$0xff]
        %v5452 = vld [vmem:[%s5444 + $0x38] sm:$0xff]
        %v5454 = vsel %vm585, %v5396, 0
        %v5457 = vsel %vm585, %v5397, 0
        %v5460 = vsel %vm585, %v5398, 0
        %v5463 = vsel %vm585, %v5399, 0
        %v5466 = vsel %vm585, %v5400, 0
        %v5469 = vsel %vm585, %v5401, 0
        %v5472 = vsel %vm585, %v5402, 0
        %v5475 = vsel %vm585, %v5403, 0
        %v5478 = vsel %vm585, %v5404, 0
        %v5481 = vsel %vm585, %v5405, 0
        %v5484 = vsel %vm585, %v5406, 0
        %v5487 = vsel %vm585, %v5407, 0
        %v5490 = vsel %vm585, %v5408, 0
        %v5493 = vsel %vm585, %v5409, 0
        %v5496 = vsel %vm585, %v5410, 0
        %v5499 = vsel %vm585, %v5411, 0
        %5501 = vmatprep.subr.mxu0 0.0
        %5502 = vmatpush1.msra.mxu0 %v5445
        %5503 = vmatprep.subr.mxu0 0.0
        %5504 = vmatpush1.msra.mxu0 %v5446
        %5505 = vmatprep.subr.mxu0 0.0
        %5506 = vmatpush1.msra.mxu0 %v5447
        %5507 = vmatprep.subr.mxu0 0.0
        %5508 = vmatpush1.msra.mxu0 %v5448
        %5509 = vmatprep.subr.mxu0 0.0
        %5510 = vmatpush1.msra.mxu0 %v5449
        %5511 = vmatprep.subr.mxu0 0.0
        %5512 = vmatpush1.msra.mxu0 %v5450
        %5513 = vmatprep.subr.mxu0 0.0
        %5514 = vmatpush1.msra.mxu0 %v5451
        %5515 = vmatprep.subr.mxu0 0.0
        %5516 = vmatpush1.msra.mxu0 %v5452
        %5517 = vmatprep.subr.mxu0 0.0
        %5518 = vmatpush1.msra.mxu0 0.0
        %5519 = vmatprep.subr.mxu0 0.0
        %5520 = vmatpush1.msra.mxu0 0.0
        %5521 = vmatprep.subr.mxu0 0.0
        %5522 = vmatpush1.msra.mxu0 0.0
        %5523 = vmatprep.subr.mxu0 0.0
        %5524 = vmatpush1.msra.mxu0 0.0
        %5525 = vmatprep.subr.mxu0 0.0
        %5526 = vmatpush1.msra.mxu0 0.0
        %5527 = vmatprep.subr.mxu0 0.0
        %5528 = vmatpush1.msra.mxu0 0.0
        %5529 = vmatprep.subr.mxu0 0.0
        %5530 = vmatpush1.msra.mxu0 0.0
        %5531 = vmatprep.subr.mxu0 0.0
        %5532 = vmatpush1.msra.mxu0 0.0
        %5533 = vmatprep.subr.mxu0 0.0
        %5534 = vmatpush1.msra.mxu0 0.0
        %5535 = vmatprep.subr.mxu0 0.0
        %5536 = vmatpush1.msra.mxu0 0.0
        %5537 = vmatprep.subr.mxu0 0.0
        %5538 = vmatpush1.msra.mxu0 0.0
        %5539 = vmatprep.subr.mxu0 0.0
        %5540 = vmatpush1.msra.mxu0 0.0
        %5541 = vmatprep.subr.mxu0 0.0
        %5542 = vmatpush1.msra.mxu0 0.0
        %5543 = vmatprep.subr.mxu0 0.0
        %5544 = vmatpush1.msra.mxu0 0.0
        %5545 = vmatprep.subr.mxu0 0.0
        %5546 = vmatpush1.msra.mxu0 0.0
        %5547 = vmatprep.subr.mxu0 0.0
        %5548 = vmatpush1.msra.mxu0 0.0
        %5549 = vmatprep.subr.mxu0 0.0
        %5550 = vmatpush1.msra.mxu0 0.0
        %5551 = vmatprep.subr.mxu0 0.0
        %5552 = vmatpush1.msra.mxu0 0.0
        %5553 = vmatprep.subr.mxu0 0.0
        %5554 = vmatpush1.msra.mxu0 0.0
        %5555 = vmatprep.subr.mxu0 0.0
        %5556 = vmatpush1.msra.mxu0 0.0
        %5557 = vmatprep.subr.mxu0 0.0
        %5558 = vmatpush1.msra.mxu0 0.0
        %5559 = vmatprep.subr.mxu0 0.0
        %5560 = vmatpush1.msra.mxu0 0.0
        %5561 = vmatprep.subr.mxu0 0.0
        %5562 = vmatpush1.msra.mxu0 0.0
        %5563 = vmatprep.subr.mxu0 0.0
        %5564 = vmatpush1.msra.mxu0 0.0
        %5565 = vmatprep.mubr.f32.mxu0 0.0
        %5566 = vmatmul.mubr.f32.gmra.mrb[0].mxu0 %v5454
        %v5567 = vpop.f32.mrb[0].mxu0
        %v5568 = vadd.f32 0.0, %v5567
        %v5569 = vpop.f32.mrb[0].mxu0
        %5570 = vmatprep.mubr.f32.mxu0 0.0
        %5571 = vmatmul.mubr.f32.gmra.mrb[0].mxu0 %v5457
        %v5572 = vpop.f32.mrb[0].mxu0
        %v5573 = vadd.f32 0.0, %v5572
        %v5574 = vpop.f32.mrb[0].mxu0
        %5575 = vmatprep.mubr.f32.mxu0 0.0
        %5576 = vmatmul.mubr.f32.gmra.mrb[0].mxu0 %v5460
        %v5577 = vpop.f32.mrb[0].mxu0
        %v5578 = vadd.f32 0.0, %v5577
        %v5579 = vpop.f32.mrb[0].mxu0
        %5580 = vmatprep.mubr.f32.mxu0 0.0
        %5581 = vmatmul.mubr.f32.gmra.mrb[0].mxu0 %v5463
        %v5582 = vpop.f32.mrb[0].mxu0
        %v5583 = vadd.f32 0.0, %v5582
        %v5584 = vpop.f32.mrb[0].mxu0
        %5585 = vmatprep.mubr.f32.mxu0 0.0
        %5586 = vmatmul.mubr.f32.gmra.mrb[0].mxu0 %v5466
        %v5587 = vpop.f32.mrb[0].mxu0
        %v5588 = vadd.f32 0.0, %v5587
        %v5589 = vpop.f32.mrb[0].mxu0
        %5590 = vmatprep.mubr.f32.mxu0 0.0
        %5591 = vmatmul.mubr.f32.gmra.mrb[0].mxu0 %v5469
        %v5592 = vpop.f32.mrb[0].mxu0
        %v5593 = vadd.f32 0.0, %v5592
        %v5594 = vpop.f32.mrb[0].mxu0
        %5595 = vmatprep.mubr.f32.mxu0 0.0
        %5596 = vmatmul.mubr.f32.gmra.mrb[0].mxu0 %v5472
        %v5597 = vpop.f32.mrb[0].mxu0
        %v5598 = vadd.f32 0.0, %v5597
        %v5599 = vpop.f32.mrb[0].mxu0
        %5600 = vmatprep.mubr.f32.mxu0 0.0
        %5601 = vmatmul.mubr.f32.gmra.mrb[0].mxu0 %v5475
        %v5602 = vpop.f32.mrb[0].mxu0
        %v5603 = vadd.f32 0.0, %v5602
        %v5604 = vpop.f32.mrb[0].mxu0
        %5605 = vmatprep.mubr.f32.mxu0 0.0
        %5606 = vmatmul.mubr.f32.gmra.mrb[0].mxu0 %v5478
        %v5607 = vpop.f32.mrb[0].mxu0
        %v5608 = vadd.f32 0.0, %v5607
        %v5609 = vpop.f32.mrb[0].mxu0
        %5610 = vmatprep.mubr.f32.mxu0 0.0
        %5611 = vmatmul.mubr.f32.gmra.mrb[0].mxu0 %v5481
        %v5612 = vpop.f32.mrb[0].mxu0
        %v5613 = vadd.f32 0.0, %v5612
        %v5614 = vpop.f32.mrb[0].mxu0
        %5615 = vmatprep.mubr.f32.mxu0 0.0
        %5616 = vmatmul.mubr.f32.gmra.mrb[0].mxu0 %v5484
        %v5617 = vpop.f32.mrb[0].mxu0
        %v5618 = vadd.f32 0.0, %v5617
        %v5619 = vpop.f32.mrb[0].mxu0
        %5620 = vmatprep.mubr.f32.mxu0 0.0
        %5621 = vmatmul.mubr.f32.gmra.mrb[0].mxu0 %v5487
        %v5622 = vpop.f32.mrb[0].mxu0
        %v5623 = vadd.f32 0.0, %v5622
        %v5624 = vpop.f32.mrb[0].mxu0
        %5625 = vmatprep.mubr.f32.mxu0 0.0
        %5626 = vmatmul.mubr.f32.gmra.mrb[0].mxu0 %v5490
        %v5627 = vpop.f32.mrb[0].mxu0
        %v5628 = vadd.f32 0.0, %v5627
        %v5629 = vpop.f32.mrb[0].mxu0
        %5630 = vmatprep.mubr.f32.mxu0 0.0
        %5631 = vmatmul.mubr.f32.gmra.mrb[0].mxu0 %v5493
        %v5632 = vpop.f32.mrb[0].mxu0
        %v5633 = vadd.f32 0.0, %v5632
        %v5634 = vpop.f32.mrb[0].mxu0
        %5635 = vmatprep.mubr.f32.mxu0 0.0
        %5636 = vmatmul.mubr.f32.gmra.mrb[0].mxu0 %v5496
        %v5637 = vpop.f32.mrb[0].mxu0
        %v5638 = vadd.f32 0.0, %v5637
        %v5639 = vpop.f32.mrb[0].mxu0
        %5640 = vmatprep.mubr.f32.mxu0 0.0
        %5641 = vmatmul.mubr.f32.gmra.mrb[0].mxu0 %v5499
        %v5642 = vpop.f32.mrb[0].mxu0
        %v5643 = vadd.f32 0.0, %v5642
        %v5644 = vpop.f32.mrb[0].mxu0
        %5645 = vdwg.mxu0
        %v5646 = vadd.f32 %v5380, %v5568
        %v5647 = vadd.f32 %v5381, %v5573
        %v5648 = vadd.f32 %v5382, %v5578
        %v5649 = vadd.f32 %v5383, %v5583
        %v5650 = vadd.f32 %v5384, %v5588
        %v5651 = vadd.f32 %v5385, %v5593
        %v5652 = vadd.f32 %v5386, %v5598
        %v5653 = vadd.f32 %v5387, %v5603
        %v5654 = vadd.f32 %v5388, %v5608
        %v5655 = vadd.f32 %v5389, %v5613
        %v5656 = vadd.f32 %v5390, %v5618
        %v5657 = vadd.f32 %v5391, %v5623
        %v5658 = vadd.f32 %v5392, %v5628
        %v5659 = vadd.f32 %v5393, %v5633
        %v5660 = vadd.f32 %v5394, %v5638
        %v5661 = vadd.f32 %v5395, %v5643
        %s5662 = scalar_lea.vmem [#allocation8], 448
        %v5663 = vld [vmem:[%s5662] sm:$0xff]
        %v5664 = vld [vmem:[%s5662 + $0x8] sm:$0xff]
        %v5665 = vld [vmem:[%s5662 + $0x10] sm:$0xff]
        %v5666 = vld [vmem:[%s5662 + $0x18] sm:$0xff]
        %v5667 = vld [vmem:[%s5662 + $0x20] sm:$0xff]
        %v5668 = vld [vmem:[%s5662 + $0x28] sm:$0xff]
        %v5669 = vld [vmem:[%s5662 + $0x30] sm:$0xff]
        %v5670 = vld [vmem:[%s5662 + $0x38] sm:$0xff]
        %v5672 = vsel %vm585, %v5412, 0
        %v5675 = vsel %vm585, %v5413, 0
        %v5678 = vsel %vm585, %v5414, 0
        %v5681 = vsel %vm585, %v5415, 0
        %v5684 = vsel %vm585, %v5416, 0
        %v5687 = vsel %vm585, %v5417, 0
        %v5690 = vsel %vm585, %v5418, 0
        %v5693 = vsel %vm585, %v5419, 0
        %v5696 = vsel %vm585, %v5420, 0
        %v5699 = vsel %vm585, %v5421, 0
        %v5702 = vsel %vm585, %v5422, 0
        %v5705 = vsel %vm585, %v5423, 0
        %v5708 = vsel %vm585, %v5424, 0
        %v5711 = vsel %vm585, %v5425, 0
        %v5714 = vsel %vm585, %v5426, 0
        %v5717 = vsel %vm585, %v5427, 0
        %5719 = vmatprep.subr.mxu0 0.0
        %5720 = vmatpush1.msra.mxu0 %v5663
        %5721 = vmatprep.subr.mxu0 0.0
        %5722 = vmatpush1.msra.mxu0 %v5664
        %5723 = vmatprep.subr.mxu0 0.0
        %5724 = vmatpush1.msra.mxu0 %v5665
        %5725 = vmatprep.subr.mxu0 0.0
        %5726 = vmatpush1.msra.mxu0 %v5666
        %5727 = vmatprep.subr.mxu0 0.0
        %5728 = vmatpush1.msra.mxu0 %v5667
        %5729 = vmatprep.subr.mxu0 0.0
        %5730 = vmatpush1.msra.mxu0 %v5668
        %5731 = vmatprep.subr.mxu0 0.0
        %5732 = vmatpush1.msra.mxu0 %v5669
        %5733 = vmatprep.subr.mxu0 0.0
        %5734 = vmatpush1.msra.mxu0 %v5670
        %5735 = vmatprep.subr.mxu0 0.0
        %5736 = vmatpush1.msra.mxu0 0.0
        %5737 = vmatprep.subr.mxu0 0.0
        %5738 = vmatpush1.msra.mxu0 0.0
        %5739 = vmatprep.subr.mxu0 0.0
        %5740 = vmatpush1.msra.mxu0 0.0
        %5741 = vmatprep.subr.mxu0 0.0
        %5742 = vmatpush1.msra.mxu0 0.0
        %5743 = vmatprep.subr.mxu0 0.0
        %5744 = vmatpush1.msra.mxu0 0.0
        %5745 = vmatprep.subr.mxu0 0.0
        %5746 = vmatpush1.msra.mxu0 0.0
        %5747 = vmatprep.subr.mxu0 0.0
        %5748 = vmatpush1.msra.mxu0 0.0
        %5749 = vmatprep.subr.mxu0 0.0
        %5750 = vmatpush1.msra.mxu0 0.0
        %5751 = vmatprep.subr.mxu0 0.0
        %5752 = vmatpush1.msra.mxu0 0.0
        %5753 = vmatprep.subr.mxu0 0.0
        %5754 = vmatpush1.msra.mxu0 0.0
        %5755 = vmatprep.subr.mxu0 0.0
        %5756 = vmatpush1.msra.mxu0 0.0
        %5757 = vmatprep.subr.mxu0 0.0
        %5758 = vmatpush1.msra.mxu0 0.0
        %5759 = vmatprep.subr.mxu0 0.0
        %5760 = vmatpush1.msra.mxu0 0.0
        %5761 = vmatprep.subr.mxu0 0.0
        %5762 = vmatpush1.msra.mxu0 0.0
        %5763 = vmatprep.subr.mxu0 0.0
        %5764 = vmatpush1.msra.mxu0 0.0
        %5765 = vmatprep.subr.mxu0 0.0
        %5766 = vmatpush1.msra.mxu0 0.0
        %5767 = vmatprep.subr.mxu0 0.0
        %5768 = vmatpush1.msra.mxu0 0.0
        %5769 = vmatprep.subr.mxu0 0.0
        %5770 = vmatpush1.msra.mxu0 0.0
        %5771 = vmatprep.subr.mxu0 0.0
        %5772 = vmatpush1.msra.mxu0 0.0
        %5773 = vmatprep.subr.mxu0 0.0
        %5774 = vmatpush1.msra.mxu0 0.0
        %5775 = vmatprep.subr.mxu0 0.0
        %5776 = vmatpush1.msra.mxu0 0.0
        %5777 = vmatprep.subr.mxu0 0.0
        %5778 = vmatpush1.msra.mxu0 0.0
        %5779 = vmatprep.subr.mxu0 0.0
        %5780 = vmatpush1.msra.mxu0 0.0
        %5781 = vmatprep.subr.mxu0 0.0
        %5782 = vmatpush1.msra.mxu0 0.0
        %5783 = vmatprep.mubr.f32.mxu0 0.0
        %5784 = vmatmul.mubr.f32.gmra.mrb[0].mxu0 %v5672
        %v5785 = vpop.f32.mrb[0].mxu0
        %v5786 = vadd.f32 0.0, %v5785
        %v5787 = vpop.f32.mrb[0].mxu0
        %5788 = vmatprep.mubr.f32.mxu0 0.0
        %5789 = vmatmul.mubr.f32.gmra.mrb[0].mxu0 %v5675
        %v5790 = vpop.f32.mrb[0].mxu0
        %v5791 = vadd.f32 0.0, %v5790
        %v5792 = vpop.f32.mrb[0].mxu0
        %5793 = vmatprep.mubr.f32.mxu0 0.0
        %5794 = vmatmul.mubr.f32.gmra.mrb[0].mxu0 %v5678
        %v5795 = vpop.f32.mrb[0].mxu0
        %v5796 = vadd.f32 0.0, %v5795
        %v5797 = vpop.f32.mrb[0].mxu0
        %5798 = vmatprep.mubr.f32.mxu0 0.0
        %5799 = vmatmul.mubr.f32.gmra.mrb[0].mxu0 %v5681
        %v5800 = vpop.f32.mrb[0].mxu0
        %v5801 = vadd.f32 0.0, %v5800
        %v5802 = vpop.f32.mrb[0].mxu0
        %5803 = vmatprep.mubr.f32.mxu0 0.0
        %5804 = vmatmul.mubr.f32.gmra.mrb[0].mxu0 %v5684
        %v5805 = vpop.f32.mrb[0].mxu0
        %v5806 = vadd.f32 0.0, %v5805
        %v5807 = vpop.f32.mrb[0].mxu0
        %5808 = vmatprep.mubr.f32.mxu0 0.0
        %5809 = vmatmul.mubr.f32.gmra.mrb[0].mxu0 %v5687
        %v5810 = vpop.f32.mrb[0].mxu0
        %v5811 = vadd.f32 0.0, %v5810
        %v5812 = vpop.f32.mrb[0].mxu0
        %5813 = vmatprep.mubr.f32.mxu0 0.0
        %5814 = vmatmul.mubr.f32.gmra.mrb[0].mxu0 %v5690
        %v5815 = vpop.f32.mrb[0].mxu0
        %v5816 = vadd.f32 0.0, %v5815
        %v5817 = vpop.f32.mrb[0].mxu0
        %5818 = vmatprep.mubr.f32.mxu0 0.0
        %5819 = vmatmul.mubr.f32.gmra.mrb[0].mxu0 %v5693
        %v5820 = vpop.f32.mrb[0].mxu0
        %v5821 = vadd.f32 0.0, %v5820
        %v5822 = vpop.f32.mrb[0].mxu0
        %5823 = vmatprep.mubr.f32.mxu0 0.0
        %5824 = vmatmul.mubr.f32.gmra.mrb[0].mxu0 %v5696
        %v5825 = vpop.f32.mrb[0].mxu0
        %v5826 = vadd.f32 0.0, %v5825
        %v5827 = vpop.f32.mrb[0].mxu0
        %5828 = vmatprep.mubr.f32.mxu0 0.0
        %5829 = vmatmul.mubr.f32.gmra.mrb[0].mxu0 %v5699
        %v5830 = vpop.f32.mrb[0].mxu0
        %v5831 = vadd.f32 0.0, %v5830
        %v5832 = vpop.f32.mrb[0].mxu0
        %5833 = vmatprep.mubr.f32.mxu0 0.0
        %5834 = vmatmul.mubr.f32.gmra.mrb[0].mxu0 %v5702
        %v5835 = vpop.f32.mrb[0].mxu0
        %v5836 = vadd.f32 0.0, %v5835
        %v5837 = vpop.f32.mrb[0].mxu0
        %5838 = vmatprep.mubr.f32.mxu0 0.0
        %5839 = vmatmul.mubr.f32.gmra.mrb[0].mxu0 %v5705
        %v5840 = vpop.f32.mrb[0].mxu0
        %v5841 = vadd.f32 0.0, %v5840
        %v5842 = vpop.f32.mrb[0].mxu0
        %5843 = vmatprep.mubr.f32.mxu0 0.0
        %5844 = vmatmul.mubr.f32.gmra.mrb[0].mxu0 %v5708
        %v5845 = vpop.f32.mrb[0].mxu0
        %v5846 = vadd.f32 0.0, %v5845
        %v5847 = vpop.f32.mrb[0].mxu0
        %5848 = vmatprep.mubr.f32.mxu0 0.0
        %5849 = vmatmul.mubr.f32.gmra.mrb[0].mxu0 %v5711
        %v5850 = vpop.f32.mrb[0].mxu0
        %v5851 = vadd.f32 0.0, %v5850
        %v5852 = vpop.f32.mrb[0].mxu0
        %5853 = vmatprep.mubr.f32.mxu0 0.0
        %5854 = vmatmul.mubr.f32.gmra.mrb[0].mxu0 %v5714
        %v5855 = vpop.f32.mrb[0].mxu0
        %v5856 = vadd.f32 0.0, %v5855
        %v5857 = vpop.f32.mrb[0].mxu0
        %5858 = vmatprep.mubr.f32.mxu0 0.0
        %5859 = vmatmul.mubr.f32.gmra.mrb[0].mxu0 %v5717
        %v5860 = vpop.f32.mrb[0].mxu0
        %v5861 = vadd.f32 0.0, %v5860
        %v5862 = vpop.f32.mrb[0].mxu0
        %5863 = vdwg.mxu0
        %v5864 = vadd.f32 %v5646, %v5786
        %v5865 = vadd.f32 %v5647, %v5791
        %v5866 = vadd.f32 %v5648, %v5796
        %v5867 = vadd.f32 %v5649, %v5801
        %v5868 = vadd.f32 %v5650, %v5806
        %v5869 = vadd.f32 %v5651, %v5811
        %v5870 = vadd.f32 %v5652, %v5816
        %v5871 = vadd.f32 %v5653, %v5821
        %v5872 = vadd.f32 %v5654, %v5826
        %v5873 = vadd.f32 %v5655, %v5831
        %v5874 = vadd.f32 %v5656, %v5836
        %v5875 = vadd.f32 %v5657, %v5841
        %v5876 = vadd.f32 %v5658, %v5846
        %v5877 = vadd.f32 %v5659, %v5851
        %v5878 = vadd.f32 %v5660, %v5856
        %v5879 = vadd.f32 %v5661, %v5861
        %s5880 = scalar_lea.vmem [#allocation8], 512
        %v5881 = vld [vmem:[%s5880] sm:$0xff]
        %v5882 = vld [vmem:[%s5880 + $0x8] sm:$0xff]
        %v5883 = vld [vmem:[%s5880 + $0x10] sm:$0xff]
        %v5884 = vld [vmem:[%s5880 + $0x18] sm:$0xff]
        %v5885 = vld [vmem:[%s5880 + $0x20] sm:$0xff]
        %v5886 = vld [vmem:[%s5880 + $0x28] sm:$0xff]
        %v5887 = vld [vmem:[%s5880 + $0x30] sm:$0xff]
        %v5888 = vld [vmem:[%s5880 + $0x38] sm:$0xff]
        %v5890 = vsel %vm585, %v5428, 0
        %v5893 = vsel %vm585, %v5429, 0
        %v5896 = vsel %vm585, %v5430, 0
        %v5899 = vsel %vm585, %v5431, 0
        %v5902 = vsel %vm585, %v5432, 0
        %v5905 = vsel %vm585, %v5433, 0
        %v5908 = vsel %vm585, %v5434, 0
        %v5911 = vsel %vm585, %v5435, 0
        %v5914 = vsel %vm585, %v5436, 0
        %v5917 = vsel %vm585, %v5437, 0
        %v5920 = vsel %vm585, %v5438, 0
        %v5923 = vsel %vm585, %v5439, 0
        %v5926 = vsel %vm585, %v5440, 0
        %v5929 = vsel %vm585, %v5441, 0
        %v5932 = vsel %vm585, %v5442, 0
        %v5935 = vsel %vm585, %v5443, 0
        %5937 = vmatprep.subr.mxu0 0.0
        %5938 = vmatpush1.msra.mxu0 %v5881
        %5939 = vmatprep.subr.mxu0 0.0
        %5940 = vmatpush1.msra.mxu0 %v5882
        %5941 = vmatprep.subr.mxu0 0.0
        %5942 = vmatpush1.msra.mxu0 %v5883
        %5943 = vmatprep.subr.mxu0 0.0
        %5944 = vmatpush1.msra.mxu0 %v5884
        %5945 = vmatprep.subr.mxu0 0.0
        %5946 = vmatpush1.msra.mxu0 %v5885
        %5947 = vmatprep.subr.mxu0 0.0
        %5948 = vmatpush1.msra.mxu0 %v5886
        %5949 = vmatprep.subr.mxu0 0.0
        %5950 = vmatpush1.msra.mxu0 %v5887
        %5951 = vmatprep.subr.mxu0 0.0
        %5952 = vmatpush1.msra.mxu0 %v5888
        %5953 = vmatprep.subr.mxu0 0.0
        %5954 = vmatpush1.msra.mxu0 0.0
        %5955 = vmatprep.subr.mxu0 0.0
        %5956 = vmatpush1.msra.mxu0 0.0
        %5957 = vmatprep.subr.mxu0 0.0
        %5958 = vmatpush1.msra.mxu0 0.0
        %5959 = vmatprep.subr.mxu0 0.0
        %5960 = vmatpush1.msra.mxu0 0.0
        %5961 = vmatprep.subr.mxu0 0.0
        %5962 = vmatpush1.msra.mxu0 0.0
        %5963 = vmatprep.subr.mxu0 0.0
        %5964 = vmatpush1.msra.mxu0 0.0
        %5965 = vmatprep.subr.mxu0 0.0
        %5966 = vmatpush1.msra.mxu0 0.0
        %5967 = vmatprep.subr.mxu0 0.0
        %5968 = vmatpush1.msra.mxu0 0.0
        %5969 = vmatprep.subr.mxu0 0.0
        %5970 = vmatpush1.msra.mxu0 0.0
        %5971 = vmatprep.subr.mxu0 0.0
        %5972 = vmatpush1.msra.mxu0 0.0
        %5973 = vmatprep.subr.mxu0 0.0
        %5974 = vmatpush1.msra.mxu0 0.0
        %5975 = vmatprep.subr.mxu0 0.0
        %5976 = vmatpush1.msra.mxu0 0.0
        %5977 = vmatprep.subr.mxu0 0.0
        %5978 = vmatpush1.msra.mxu0 0.0
        %5979 = vmatprep.subr.mxu0 0.0
        %5980 = vmatpush1.msra.mxu0 0.0
        %5981 = vmatprep.subr.mxu0 0.0
        %5982 = vmatpush1.msra.mxu0 0.0
        %5983 = vmatprep.subr.mxu0 0.0
        %5984 = vmatpush1.msra.mxu0 0.0
        %5985 = vmatprep.subr.mxu0 0.0
        %5986 = vmatpush1.msra.mxu0 0.0
        %5987 = vmatprep.subr.mxu0 0.0
        %5988 = vmatpush1.msra.mxu0 0.0
        %5989 = vmatprep.subr.mxu0 0.0
        %5990 = vmatpush1.msra.mxu0 0.0
        %5991 = vmatprep.subr.mxu0 0.0
        %5992 = vmatpush1.msra.mxu0 0.0
        %5993 = vmatprep.subr.mxu0 0.0
        %5994 = vmatpush1.msra.mxu0 0.0
        %5995 = vmatprep.subr.mxu0 0.0
        %5996 = vmatpush1.msra.mxu0 0.0
        %5997 = vmatprep.subr.mxu0 0.0
        %5998 = vmatpush1.msra.mxu0 0.0
        %5999 = vmatprep.subr.mxu0 0.0
        %6000 = vmatpush1.msra.mxu0 0.0
        %6001 = vmatprep.mubr.f32.mxu0 0.0
        %6002 = vmatmul.mubr.f32.gmra.mrb[0].mxu0 %v5890
        %v6003 = vpop.f32.mrb[0].mxu0
        %v6004 = vadd.f32 0.0, %v6003
        %v6005 = vpop.f32.mrb[0].mxu0
        %6006 = vmatprep.mubr.f32.mxu0 0.0
        %6007 = vmatmul.mubr.f32.gmra.mrb[0].mxu0 %v5893
        %v6008 = vpop.f32.mrb[0].mxu0
        %v6009 = vadd.f32 0.0, %v6008
        %v6010 = vpop.f32.mrb[0].mxu0
        %6011 = vmatprep.mubr.f32.mxu0 0.0
        %6012 = vmatmul.mubr.f32.gmra.mrb[0].mxu0 %v5896
        %v6013 = vpop.f32.mrb[0].mxu0
        %v6014 = vadd.f32 0.0, %v6013
        %v6015 = vpop.f32.mrb[0].mxu0
        %6016 = vmatprep.mubr.f32.mxu0 0.0
        %6017 = vmatmul.mubr.f32.gmra.mrb[0].mxu0 %v5899
        %v6018 = vpop.f32.mrb[0].mxu0
        %v6019 = vadd.f32 0.0, %v6018
        %v6020 = vpop.f32.mrb[0].mxu0
        %6021 = vmatprep.mubr.f32.mxu0 0.0
        %6022 = vmatmul.mubr.f32.gmra.mrb[0].mxu0 %v5902
        %v6023 = vpop.f32.mrb[0].mxu0
        %v6024 = vadd.f32 0.0, %v6023
        %v6025 = vpop.f32.mrb[0].mxu0
        %6026 = vmatprep.mubr.f32.mxu0 0.0
        %6027 = vmatmul.mubr.f32.gmra.mrb[0].mxu0 %v5905
        %v6028 = vpop.f32.mrb[0].mxu0
        %v6029 = vadd.f32 0.0, %v6028
        %v6030 = vpop.f32.mrb[0].mxu0
        %6031 = vmatprep.mubr.f32.mxu0 0.0
        %6032 = vmatmul.mubr.f32.gmra.mrb[0].mxu0 %v5908
        %v6033 = vpop.f32.mrb[0].mxu0
        %v6034 = vadd.f32 0.0, %v6033
        %v6035 = vpop.f32.mrb[0].mxu0
        %6036 = vmatprep.mubr.f32.mxu0 0.0
        %6037 = vmatmul.mubr.f32.gmra.mrb[0].mxu0 %v5911
        %v6038 = vpop.f32.mrb[0].mxu0
        %v6039 = vadd.f32 0.0, %v6038
        %v6040 = vpop.f32.mrb[0].mxu0
        %6041 = vmatprep.mubr.f32.mxu0 0.0
        %6042 = vmatmul.mubr.f32.gmra.mrb[0].mxu0 %v5914
        %v6043 = vpop.f32.mrb[0].mxu0
        %v6044 = vadd.f32 0.0, %v6043
        %v6045 = vpop.f32.mrb[0].mxu0
        %6046 = vmatprep.mubr.f32.mxu0 0.0
        %6047 = vmatmul.mubr.f32.gmra.mrb[0].mxu0 %v5917
        %v6048 = vpop.f32.mrb[0].mxu0
        %v6049 = vadd.f32 0.0, %v6048
        %v6050 = vpop.f32.mrb[0].mxu0
        %6051 = vmatprep.mubr.f32.mxu0 0.0
        %6052 = vmatmul.mubr.f32.gmra.mrb[0].mxu0 %v5920
        %v6053 = vpop.f32.mrb[0].mxu0
        %v6054 = vadd.f32 0.0, %v6053
        %v6055 = vpop.f32.mrb[0].mxu0
        %6056 = vmatprep.mubr.f32.mxu0 0.0
        %6057 = vmatmul.mubr.f32.gmra.mrb[0].mxu0 %v5923
        %v6058 = vpop.f32.mrb[0].mxu0
        %v6059 = vadd.f32 0.0, %v6058
        %v6060 = vpop.f32.mrb[0].mxu0
        %6061 = vmatprep.mubr.f32.mxu0 0.0
        %6062 = vmatmul.mubr.f32.gmra.mrb[0].mxu0 %v5926
        %v6063 = vpop.f32.mrb[0].mxu0
        %v6064 = vadd.f32 0.0, %v6063
        %v6065 = vpop.f32.mrb[0].mxu0
        %6066 = vmatprep.mubr.f32.mxu0 0.0
        %6067 = vmatmul.mubr.f32.gmra.mrb[0].mxu0 %v5929
        %v6068 = vpop.f32.mrb[0].mxu0
        %v6069 = vadd.f32 0.0, %v6068
        %v6070 = vpop.f32.mrb[0].mxu0
        %6071 = vmatprep.mubr.f32.mxu0 0.0
        %6072 = vmatmul.mubr.f32.gmra.mrb[0].mxu0 %v5932
        %v6073 = vpop.f32.mrb[0].mxu0
        %v6074 = vadd.f32 0.0, %v6073
        %v6075 = vpop.f32.mrb[0].mxu0
        %6076 = vmatprep.mubr.f32.mxu0 0.0
        %6077 = vmatmul.mubr.f32.gmra.mrb[0].mxu0 %v5935
        %v6078 = vpop.f32.mrb[0].mxu0
        %v6079 = vadd.f32 0.0, %v6078
        %v6080 = vpop.f32.mrb[0].mxu0
        %6081 = vdwg.mxu0
        %v6082 = vadd.f32 %v5864, %v6004
        %v6083 = vadd.f32 %v5865, %v6009
        %v6084 = vadd.f32 %v5866, %v6014
        %v6085 = vadd.f32 %v5867, %v6019
        %v6086 = vadd.f32 %v5868, %v6024
        %v6087 = vadd.f32 %v5869, %v6029
        %v6088 = vadd.f32 %v5870, %v6034
        %v6089 = vadd.f32 %v5871, %v6039
        %v6090 = vadd.f32 %v5872, %v6044
        %v6091 = vadd.f32 %v5873, %v6049
        %v6092 = vadd.f32 %v5874, %v6054
        %v6093 = vadd.f32 %v5875, %v6059
        %v6094 = vadd.f32 %v5876, %v6064
        %v6095 = vadd.f32 %v5877, %v6069
        %v6096 = vadd.f32 %v5878, %v6074
        %v6097 = vadd.f32 %v5879, %v6079
        %v6099 = vlaneseq
        %v6100 = vshrl.u32 %v6099, 7
        %v6101 = vsub.s32 0, %v6100
        %v6102 = vrot.slane %v4024, %v6101
        %v6104 = vadd.f32 %v6082, %v6102
        %v6105 = vadd.f32 %v6083, %v6102
        %v6106 = vadd.f32 %v6084, %v6102
        %v6107 = vadd.f32 %v6085, %v6102
        %v6108 = vadd.f32 %v6086, %v6102
        %v6109 = vadd.f32 %v6087, %v6102
        %v6110 = vadd.f32 %v6088, %v6102
        %v6111 = vadd.f32 %v6089, %v6102
        %v6112 = vadd.f32 %v6090, %v6102
        %v6113 = vadd.f32 %v6091, %v6102
        %v6114 = vadd.f32 %v6092, %v6102
        %v6115 = vadd.f32 %v6093, %v6102
        %v6116 = vadd.f32 %v6094, %v6102
        %v6117 = vadd.f32 %v6095, %v6102
        %v6118 = vadd.f32 %v6096, %v6102
        %v6119 = vadd.f32 %v6097, %v6102
        %v6120 = vld [vmem:[%s14] sm:$0xff]
        %v6121 = vld [vmem:[%s14 + $0x8] sm:$0xff]
        %v6122 = vld [vmem:[%s14 + $0x10] sm:$0xff]
        %v6123 = vld [vmem:[%s14 + $0x18] sm:$0xff]
        %v6124 = vld [vmem:[%s15] sm:$0x1]
        %v6126 = vlaneseq
        %v6127 = vshrl.u32 %v6126, 7
        %v6128 = vsub.s32 0, %v6127
        %v6129 = vrot.slane %v6124, %v6128
        %v6132 = vsel %vm715, %v593, 0
        %v6135 = vsel %vm715, %v594, 0
        %v6138 = vsel %vm715, %v595, 0
        %v6141 = vsel %vm715, %v596, 0
        %v6144 = vsel %vm715, %v597, 0
        %v6147 = vsel %vm715, %v598, 0
        %v6150 = vsel %vm715, %v599, 0
        %v6153 = vsel %vm715, %v600, 0
        %v6156 = vsel %vm715, %v601, 0
        %v6159 = vsel %vm715, %v602, 0
        %v6162 = vsel %vm715, %v603, 0
        %v6165 = vsel %vm715, %v604, 0
        %v6168 = vsel %vm715, %v605, 0
        %v6171 = vsel %vm715, %v606, 0
        %v6174 = vsel %vm715, %v607, 0
        %v6177 = vsel %vm715, %v608, 0
        %6179 = vmatprep.subr.mxu0 0.0
        %6180 = vmatpush1.msra.mxu0 %v6120
        %6181 = vmatprep.subr.mxu0 0.0
        %6182 = vmatpush1.msra.mxu0 %v6121
        %6183 = vmatprep.subr.mxu0 0.0
        %6184 = vmatpush1.msra.mxu0 %v6122
        %6185 = vmatprep.subr.mxu0 0.0
        %6186 = vmatpush1.msra.mxu0 %v6123
        %6187 = vmatprep.subr.mxu0 0.0
        %6188 = vmatpush1.msra.mxu0 0.0
        %6189 = vmatprep.subr.mxu0 0.0
        %6190 = vmatpush1.msra.mxu0 0.0
        %6191 = vmatprep.subr.mxu0 0.0
        %6192 = vmatpush1.msra.mxu0 0.0
        %6193 = vmatprep.subr.mxu0 0.0
        %6194 = vmatpush1.msra.mxu0 0.0
        %6195 = vmatprep.subr.mxu0 0.0
        %6196 = vmatpush1.msra.mxu0 0.0
        %6197 = vmatprep.subr.mxu0 0.0
        %6198 = vmatpush1.msra.mxu0 0.0
        %6199 = vmatprep.subr.mxu0 0.0
        %6200 = vmatpush1.msra.mxu0 0.0
        %6201 = vmatprep.subr.mxu0 0.0
        %6202 = vmatpush1.msra.mxu0 0.0
        %6203 = vmatprep.subr.mxu0 0.0
        %6204 = vmatpush1.msra.mxu0 0.0
        %6205 = vmatprep.subr.mxu0 0.0
        %6206 = vmatpush1.msra.mxu0 0.0
        %6207 = vmatprep.subr.mxu0 0.0
        %6208 = vmatpush1.msra.mxu0 0.0
        %6209 = vmatprep.subr.mxu0 0.0
        %6210 = vmatpush1.msra.mxu0 0.0
        %6211 = vmatprep.subr.mxu0 0.0
        %6212 = vmatpush1.msra.mxu0 0.0
        %6213 = vmatprep.subr.mxu0 0.0
        %6214 = vmatpush1.msra.mxu0 0.0
        %6215 = vmatprep.subr.mxu0 0.0
        %6216 = vmatpush1.msra.mxu0 0.0
        %6217 = vmatprep.subr.mxu0 0.0
        %6218 = vmatpush1.msra.mxu0 0.0
        %6219 = vmatprep.subr.mxu0 0.0
        %6220 = vmatpush1.msra.mxu0 0.0
        %6221 = vmatprep.subr.mxu0 0.0
        %6222 = vmatpush1.msra.mxu0 0.0
        %6223 = vmatprep.subr.mxu0 0.0
        %6224 = vmatpush1.msra.mxu0 0.0
        %6225 = vmatprep.subr.mxu0 0.0
        %6226 = vmatpush1.msra.mxu0 0.0
        %6227 = vmatprep.subr.mxu0 0.0
        %6228 = vmatpush1.msra.mxu0 0.0
        %6229 = vmatprep.subr.mxu0 0.0
        %6230 = vmatpush1.msra.mxu0 0.0
        %6231 = vmatprep.subr.mxu0 0.0
        %6232 = vmatpush1.msra.mxu0 0.0
        %6233 = vmatprep.subr.mxu0 0.0
        %6234 = vmatpush1.msra.mxu0 0.0
        %6235 = vmatprep.subr.mxu0 0.0
        %6236 = vmatpush1.msra.mxu0 0.0
        %6237 = vmatprep.subr.mxu0 0.0
        %6238 = vmatpush1.msra.mxu0 0.0
        %6239 = vmatprep.subr.mxu0 0.0
        %6240 = vmatpush1.msra.mxu0 0.0
        %6241 = vmatprep.subr.mxu0 0.0
        %6242 = vmatpush1.msra.mxu0 0.0
        %6243 = vmatprep.mubr.f32.mxu0 0.0
        %6244 = vmatmul.mubr.f32.gmra.mrb[0].mxu0 %v6132
        %v6245 = vpop.f32.mrb[0].mxu0
        %v6246 = vadd.f32 %v6129, %v6245
        %v6247 = vpop.f32.mrb[0].mxu0
        %6248 = vmatprep.mubr.f32.mxu0 0.0
        %6249 = vmatmul.mubr.f32.gmra.mrb[0].mxu0 %v6135
        %v6250 = vpop.f32.mrb[0].mxu0
        %v6251 = vadd.f32 %v6129, %v6250
        %v6252 = vpop.f32.mrb[0].mxu0
        %6253 = vmatprep.mubr.f32.mxu0 0.0
        %6254 = vmatmul.mubr.f32.gmra.mrb[0].mxu0 %v6138
        %v6255 = vpop.f32.mrb[0].mxu0
        %v6256 = vadd.f32 %v6129, %v6255
        %v6257 = vpop.f32.mrb[0].mxu0
        %6258 = vmatprep.mubr.f32.mxu0 0.0
        %6259 = vmatmul.mubr.f32.gmra.mrb[0].mxu0 %v6141
        %v6260 = vpop.f32.mrb[0].mxu0
        %v6261 = vadd.f32 %v6129, %v6260
        %v6262 = vpop.f32.mrb[0].mxu0
        %6263 = vmatprep.mubr.f32.mxu0 0.0
        %6264 = vmatmul.mubr.f32.gmra.mrb[0].mxu0 %v6144
        %v6265 = vpop.f32.mrb[0].mxu0
        %v6266 = vadd.f32 %v6129, %v6265
        %v6267 = vpop.f32.mrb[0].mxu0
        %6268 = vmatprep.mubr.f32.mxu0 0.0
        %6269 = vmatmul.mubr.f32.gmra.mrb[0].mxu0 %v6147
        %v6270 = vpop.f32.mrb[0].mxu0
        %v6271 = vadd.f32 %v6129, %v6270
        %v6272 = vpop.f32.mrb[0].mxu0
        %6273 = vmatprep.mubr.f32.mxu0 0.0
        %6274 = vmatmul.mubr.f32.gmra.mrb[0].mxu0 %v6150
        %v6275 = vpop.f32.mrb[0].mxu0
        %v6276 = vadd.f32 %v6129, %v6275
        %v6277 = vpop.f32.mrb[0].mxu0
        %6278 = vmatprep.mubr.f32.mxu0 0.0
        %6279 = vmatmul.mubr.f32.gmra.mrb[0].mxu0 %v6153
        %v6280 = vpop.f32.mrb[0].mxu0
        %v6281 = vadd.f32 %v6129, %v6280
        %v6282 = vpop.f32.mrb[0].mxu0
        %6283 = vmatprep.mubr.f32.mxu0 0.0
        %6284 = vmatmul.mubr.f32.gmra.mrb[0].mxu0 %v6156
        %v6285 = vpop.f32.mrb[0].mxu0
        %v6286 = vadd.f32 %v6129, %v6285
        %v6287 = vpop.f32.mrb[0].mxu0
        %6288 = vmatprep.mubr.f32.mxu0 0.0
        %6289 = vmatmul.mubr.f32.gmra.mrb[0].mxu0 %v6159
        %v6290 = vpop.f32.mrb[0].mxu0
        %v6291 = vadd.f32 %v6129, %v6290
        %v6292 = vpop.f32.mrb[0].mxu0
        %6293 = vmatprep.mubr.f32.mxu0 0.0
        %6294 = vmatmul.mubr.f32.gmra.mrb[0].mxu0 %v6162
        %v6295 = vpop.f32.mrb[0].mxu0
        %v6296 = vadd.f32 %v6129, %v6295
        %v6297 = vpop.f32.mrb[0].mxu0
        %6298 = vmatprep.mubr.f32.mxu0 0.0
        %6299 = vmatmul.mubr.f32.gmra.mrb[0].mxu0 %v6165
        %v6300 = vpop.f32.mrb[0].mxu0
        %v6301 = vadd.f32 %v6129, %v6300
        %v6302 = vpop.f32.mrb[0].mxu0
        %6303 = vmatprep.mubr.f32.mxu0 0.0
        %6304 = vmatmul.mubr.f32.gmra.mrb[0].mxu0 %v6168
        %v6305 = vpop.f32.mrb[0].mxu0
        %v6306 = vadd.f32 %v6129, %v6305
        %v6307 = vpop.f32.mrb[0].mxu0
        %6308 = vmatprep.mubr.f32.mxu0 0.0
        %6309 = vmatmul.mubr.f32.gmra.mrb[0].mxu0 %v6171
        %v6310 = vpop.f32.mrb[0].mxu0
        %v6311 = vadd.f32 %v6129, %v6310
        %v6312 = vpop.f32.mrb[0].mxu0
        %6313 = vmatprep.mubr.f32.mxu0 0.0
        %6314 = vmatmul.mubr.f32.gmra.mrb[0].mxu0 %v6174
        %v6315 = vpop.f32.mrb[0].mxu0
        %v6316 = vadd.f32 %v6129, %v6315
        %v6317 = vpop.f32.mrb[0].mxu0
        %6318 = vmatprep.mubr.f32.mxu0 0.0
        %6319 = vmatmul.mubr.f32.gmra.mrb[0].mxu0 %v6177
        %v6320 = vpop.f32.mrb[0].mxu0
        %v6321 = vadd.f32 %v6129, %v6320
        %v6322 = vpop.f32.mrb[0].mxu0
        %6323 = vdwg.mxu0
        %v6324 = vadd.f32 %v6246, %v6104
        %v6325 = vadd.f32 %v6251, %v6105
        %v6326 = vadd.f32 %v6256, %v6106
        %v6327 = vadd.f32 %v6261, %v6107
        %v6328 = vadd.f32 %v6266, %v6108
        %v6329 = vadd.f32 %v6271, %v6109
        %v6330 = vadd.f32 %v6276, %v6110
        %v6331 = vadd.f32 %v6281, %v6111
        %v6332 = vadd.f32 %v6286, %v6112
        %v6333 = vadd.f32 %v6291, %v6113
        %v6334 = vadd.f32 %v6296, %v6114
        %v6335 = vadd.f32 %v6301, %v6115
        %v6336 = vadd.f32 %v6306, %v6116
        %v6337 = vadd.f32 %v6311, %v6117
        %v6338 = vadd.f32 %v6316, %v6118
        %v6339 = vadd.f32 %v6321, %v6119
        %6340 = vst.msk [vmem:[%s568] sm:$0xff] %vm585, %v6324
        %6341 = vst.msk [vmem:[%s568 + $0x8] sm:$0xff] %vm585, %v6325
        %6342 = vst.msk [vmem:[%s568 + $0x10] sm:$0xff] %vm585, %v6326
        %6343 = vst.msk [vmem:[%s568 + $0x18] sm:$0xff] %vm585, %v6327
        %6344 = vst.msk [vmem:[%s568 + $0x20] sm:$0xff] %vm585, %v6328
        %6345 = vst.msk [vmem:[%s568 + $0x28] sm:$0xff] %vm585, %v6329
        %6346 = vst.msk [vmem:[%s568 + $0x30] sm:$0xff] %vm585, %v6330
        %6347 = vst.msk [vmem:[%s568 + $0x38] sm:$0xff] %vm585, %v6331
        %6348 = vst.msk [vmem:[%s568 + $0x40] sm:$0xff] %vm585, %v6332
        %6349 = vst.msk [vmem:[%s568 + $0x48] sm:$0xff] %vm585, %v6333
        %6350 = vst.msk [vmem:[%s568 + $0x50] sm:$0xff] %vm585, %v6334
        %6351 = vst.msk [vmem:[%s568 + $0x58] sm:$0xff] %vm585, %v6335
        %6352 = vst.msk [vmem:[%s568 + $0x60] sm:$0xff] %vm585, %v6336
        %6353 = vst.msk [vmem:[%s568 + $0x68] sm:$0xff] %vm585, %v6337
        %6354 = vst.msk [vmem:[%s568 + $0x70] sm:$0xff] %vm585, %v6338
        %6355 = vst.msk [vmem:[%s568 + $0x78] sm:$0xff] %vm585, %v6339
        %s6356 = sand.u32 %s383, 1
        %s6357 = scalar_lea.sflag [#allocation5], %s6356
        %s6358 = sand.u32 %s383, 1
        %s6359 = smul.addr %s6358, 128
        %s6360 = scalar_lea.vmem [#allocation9], %s6359
        // Predicated region
        $region97: #{tpu_custom_call.1} parent=83 // pred_check
          %p6361 = pneg %p393
        $region98: #{tpu_custom_call.1} parent=83 // pred_check_branch
          %6363 = sbr.rel (%p6361) target = $region100
        $region99: #{tpu_custom_call.1} parent=83 // pred_region
          %s6365 = ssub.s32 2048, 2048
          %6366 = vsyncadd %s6357, %s6365
          %s6367 = smul.addr %s34, 16
          %s6368 = smul.addr %s6367, 128
          %s6369 = scalar_lea.hbm %s16, %s6368
          %s6370 = sshll.u32 %s6360, 4
          %s6371 = int_to_ptr.vmem [resolvable:$true] %s6370
          %6376 = dma.vmem_to_hbm [thread:$0]  %s6371, 2048, %s6369, %s6357, 128, 128, 8
        $region100: #{tpu_custom_call.1} parent=83 // pred_fallthru
          _
      $region84: #{tpu_custom_call.1} parent=5 // pred_fallthru
        _
      %p6377 = scmp.le.s32.totalorder 2, %s29
      // Predicated region
      $region101: #{tpu_custom_call.1} parent=5 // pred_check
        %p6378 = pneg %p6377
      $region102: #{tpu_custom_call.1} parent=5 // pred_check_branch
        %6380 = sbr.rel (%p6378) target = $region104
      $region103: #{tpu_custom_call.1} parent=5 // pred_region
        %s6381 = ssub.s32 %s29, 2
        // Predicated region
        $region105: #{tpu_custom_call.1} parent=103 // pred_check
          %p6382 = pneg %p399
        $region106: #{tpu_custom_call.1} parent=103 // pred_check_branch
          %6384 = sbr.rel (%p6382) target = $region108
        $region107: #{tpu_custom_call.1} parent=103 // pred_region
          %s6385 = sand.u32 %s384, 1
          %s6386 = scalar_lea.sflag [#allocation5], %s6385
          %s6387 = sand.u32 %s384, 1
          %s6388 = smul.addr %s6387, 128
          %s6389 = scalar_lea.vmem [#allocation9], %s6388
          %6390 = dma.done %s6386, 2048
        $region108: #{tpu_custom_call.1} parent=103 // pred_fallthru
          _
      $region104: #{tpu_custom_call.1} parent=5 // pred_fallthru
        _
    $region6: #{tpu_custom_call.1} parent=1 // loop_footer
      %s33 = sadd.s32 1, %s29
    $region7: #{tpu_custom_call.1} parent=1 // loop_footer_branch
      %28 = sbr.rel target = $region3
    $region8: #{tpu_custom_call.1} parent=1 // loop_exit
      _
    %6391 = vsyncpa [#allocation4], 1
    %s6392 = scalar_lea.sflag [#allocation4], 1
    %6393 = vsyncpa %s6392, 1
    %6394 = vsyncpa [#allocation7], 1
    %6395 = vsyncpa [#allocation5], 1
    %s6396 = scalar_lea.sflag [#allocation5], 1
    %6397 = vsyncpa %s6396, 1

</llo_original>
